<compile_context>
chip_gen: v5e
topology: v5e:2x2
jax: 0.10.0
libtpu: 0.0.40
codegen_flags: <defaults>
</compile_context>

<pallas_src>
import functools

import jax
import jax.numpy as jnp
from jax.experimental import pallas as pl
from jax.experimental.pallas import tpu as pltpu

INPUT_FEATURES = 16
HIDDEN_SIZE = 200      # logical (PyTorch) hidden width
HIDDEN_PAD = 256       # lane-padded hidden width (multiple of 128)
NUM_HIDDEN_LAYERS = 6
LN_EPS = 1e-5


def _softplus(v):
    # numerically stable softplus: log(1 + exp(v))
    return jnp.maximum(v, 0.0) + jnp.log1p(jnp.exp(-jnp.abs(v)))


def _round_up(n, m):
    return -(-n // m) * m


def ao_ann_kernel(x_ref, w1_ref, b1_ref, wh_ref, bh_ref,
                  lnw_ref, lnb_ref, wo_ref, bo_ref, o_ref, *, matmul_dtype):
    """Full forward pass on one batch tile; all weights VMEM-resident."""
    strict_f32 = matmul_dtype == jnp.float32
    dot_kwargs = dict(preferred_element_type=jnp.float32)
    if strict_f32:
        # strict PyTorch-f32 semantics (opt-in); default bf16 path uses a
        # single MXU pass with f32 accumulation.
        dot_kwargs["precision"] = jax.lax.Precision.HIGHEST

    inv_n = jnp.float32(1.0 / HIDDEN_SIZE)

    # hoisted once per tile; reused by all 7 LayerNorm calls
    lnw = lnw_ref[...]
    lnb = lnb_ref[...]

    def layernorm(v):
        # single-pass stats over the 200 real features: padded lanes of v are
        # exactly zero, so 256-lane sums equal 200-lane sums; divide by 200.
        # (E[x^2]-E[x]^2 cancellation is fine at the tolerances used here.)
        mu = jnp.sum(v, axis=-1, keepdims=True) * inv_n
        ex2 = jnp.sum(v * v, axis=-1, keepdims=True) * inv_n
        var = ex2 - mu * mu
        vhat = (v - mu) * jax.lax.rsqrt(var + LN_EPS)
        # padded lanes of lnw/lnb are zero -> result's padded lanes stay zero.
        return vhat * lnw + lnb

    def mish(v):
        # mish(x) = x * tanh(softplus(x)); with t = exp(x):
        #   tanh(softplus(x)) = (t^2 + 2t) / (t^2 + 2t + 2)
        # -> 1 EUP exp + 1 EUP approx reciprocal. Newton refinement only on the
        # strict-f32 path (on the bf16 path the VPU is the binding slot and
        # the vrcp approx error ~2^-12 is negligible vs. bf16 rounding).
        # Clamp at 20: tanh(softplus(x)) == 1 in f32 beyond that.
        t = jnp.exp(jnp.minimum(v, 20.0))
        num = t * (t + 2.0)
        den = num + 2.0
        r = pl.reciprocal(den, approx=True)
        if strict_f32:
            r = r * (2.0 - den * r)      # one Newton step, VPU only
        return v * (num * r)

    # input projection: [TB, 16] @ [16, 256] + [1, 256]
    h = jnp.dot(x_ref[...].astype(matmul_dtype), w1_ref[...], **dot_kwargs)
    h = h + b1_ref[...]
    h = mish(layernorm(h))

    # hidden blocks (statically unrolled; LLO gets full visibility)
    for i in range(NUM_HIDDEN_LAYERS):
        h = jnp.dot(h.astype(matmul_dtype), wh_ref[i], **dot_kwargs) + bh_ref[i]
        h = mish(layernorm(h))
        # Dropout(p=0.0) -> identity.

    # output head (N=1): VPU multiply + lane reduction instead of an MXU matmul
    # with a single live result column.  wo is stored as a [1, 256] row.
    out = jnp.sum(h * wo_ref[...], axis=-1, keepdims=True) + bo_ref[...]
    o_ref[...] = _softplus(out)


def _pad_axis(a, target, axis):
    pad = target - a.shape[axis]
    if pad <= 0:
        return a
    widths = [(0, 0)] * a.ndim
    widths[axis] = (0, pad)
    return jnp.pad(a, widths)


def pad_params(params, weights_dtype=jnp.bfloat16):
    """Pad logical (hidden=200) params to the 256-lane kernel layout."""
    w1, b1, wh, bh, lnw, lnb, wo, bo = params
    hp = HIDDEN_PAD
    w1p = _pad_axis(w1, hp, 1).astype(weights_dtype)                        # [16, 256]
    b1p = _pad_axis(b1.reshape(1, -1), hp, 1).astype(jnp.float32)           # [1, 256]
    whp = _pad_axis(_pad_axis(wh, hp, 1), hp, 2).astype(weights_dtype)      # [6, 256, 256]
    bhp = _pad_axis(bh.reshape(NUM_HIDDEN_LAYERS, 1, -1), hp, 2).astype(jnp.float32)
    lnwp = _pad_axis(lnw.reshape(1, -1), hp, 1).astype(jnp.float32)
    lnbp = _pad_axis(lnb.reshape(1, -1), hp, 1).astype(jnp.float32)
    wop = _pad_axis(wo.reshape(1, -1), hp, 1).astype(jnp.float32)           # [1, 256]
    bop = bo.reshape(1, 1).astype(jnp.float32)
    return w1p, b1p, whp, bhp, lnwp, lnbp, wop, bop


def ao_ann_forward(x, params, *, block_batch=1024, weights_dtype=jnp.bfloat16,
                   single_buffer_weights=True):
    """x: [batch, 16] f32 -> [batch, 1] f32."""
    batch = x.shape[0]
    hp = HIDDEN_PAD
    padded = pad_params(params, weights_dtype)

    # Batch tile: guarantee >= 2 grid steps whenever batch allows it (v7x has
    # two TensorCores and the "parallel" axis only shards with >= 2 steps);
    # cap at block_batch (1024 default: big enough to amortize per-step
    # overhead on v5e/v6e, small enough for v7x's 64 MiB VMEM).
    tb = min(block_batch, max(8, _round_up(pl.cdiv(batch, 2), 8)))
    padded_batch = _round_up(batch, tb)
    if padded_batch != batch:
        x = jnp.pad(x, ((0, padded_batch - batch), (0, 0)))
    grid = (padded_batch // tb,)

    weight_bytes = sum(int(p.size) * p.dtype.itemsize for p in padded)
    act_bytes = tb * hp * 4
    io_bytes = tb * (INPUT_FEATURES + 1) * 4
    vmem_est = 2 * weight_bytes + 12 * act_bytes + 4 * io_bytes + (2 << 20)
    vmem_limit = int(min(48 * 2**20, max(32 * 2**20, vmem_est)))   # 48 MiB cap (v7x-safe)

    flops_per_row = 2 * (INPUT_FEATURES * HIDDEN_SIZE
                         + NUM_HIDDEN_LAYERS * HIDDEN_SIZE * HIDDEN_SIZE
                         + HIDDEN_SIZE)
    cost = pl.CostEstimate(
        flops=int(padded_batch * flops_per_row),
        transcendentals=int(padded_batch * (HIDDEN_SIZE * 7 * 3 + 16)),
        bytes_accessed=int(padded_batch * (INPUT_FEATURES + 1) * 4 + weight_bytes),
    )

    # Constant-index (VMEM-resident) blocks: single-buffer them when the
    # installed Pallas supports pipeline_mode -> saves ~0.8 MB (bf16 weights).
    res_kwargs = {}
    if single_buffer_weights and hasattr(pl, "Buffered"):
        res_kwargs["pipeline_mode"] = pl.Buffered(1)

    const2 = lambda i: (0, 0)
    const3 = lambda i: (0, 0, 0)
    in_specs = [
        pl.BlockSpec((tb, INPUT_FEATURES), lambda i: (i, 0)),                # x (tiled)
        pl.BlockSpec((INPUT_FEATURES, hp), const2, **res_kwargs),            # w1 (resident)
        pl.BlockSpec((1, hp), const2, **res_kwargs),                         # b1
        pl.BlockSpec((NUM_HIDDEN_LAYERS, hp, hp), const3, **res_kwargs),     # wh
        pl.BlockSpec((NUM_HIDDEN_LAYERS, 1, hp), const3, **res_kwargs),      # bh
        pl.BlockSpec((1, hp), const2, **res_kwargs),                         # ln weight
        pl.BlockSpec((1, hp), const2, **res_kwargs),                         # ln bias
        pl.BlockSpec((1, hp), const2, **res_kwargs),                         # wo (row)
        pl.BlockSpec((1, 1), const2, **res_kwargs),                          # bo
    ]
    out_specs = pl.BlockSpec((tb, 1), lambda i: (i, 0))

    kernel = functools.partial(ao_ann_kernel, matmul_dtype=weights_dtype)
    out = pl.pallas_call(
        kernel,
        grid=grid,
        in_specs=in_specs,
        out_specs=out_specs,
        out_shape=jax.ShapeDtypeStruct((padded_batch, 1), jnp.float32),
        compiler_params=pltpu.CompilerParams(
            dimension_semantics=("parallel",),
            vmem_limit_bytes=vmem_limit,
        ),
        cost_estimate=cost,
    )(x, *padded)
    return out[:batch]


def init_params(key):
    """Logical (hidden=200) params mirroring the PyTorch init:
       Linear weights ~ kaiming_normal_ (std = sqrt(2/fan_in)), biases = 0,
       one shared LayerNorm (weight=1, bias=0). Weights stored as [in, out]."""
    k1, k2, k3 = jax.random.split(key, 3)

    def kaiming(k, fan_in, shape):
        return jnp.sqrt(2.0 / fan_in) * jax.random.normal(k, shape, jnp.float32)

    w1 = kaiming(k1, INPUT_FEATURES, (INPUT_FEATURES, HIDDEN_SIZE))
    b1 = jnp.zeros((HIDDEN_SIZE,), jnp.float32)
    wh = kaiming(k2, HIDDEN_SIZE, (NUM_HIDDEN_LAYERS, HIDDEN_SIZE, HIDDEN_SIZE))
    bh = jnp.zeros((NUM_HIDDEN_LAYERS, HIDDEN_SIZE), jnp.float32)
    lnw = jnp.ones((HIDDEN_SIZE,), jnp.float32)
    lnb = jnp.zeros((HIDDEN_SIZE,), jnp.float32)
    wo = kaiming(k3, HIDDEN_SIZE, (HIDDEN_SIZE, 1))
    bo = jnp.zeros((1,), jnp.float32)
    return w1, b1, wh, bh, lnw, lnb, wo, bo


def ao_ann_ref(x, params):
    """Pure-JAX, unpadded f32 reference (matches the PyTorch module)."""
    w1, b1, wh, bh, lnw, lnb, wo, bo = params
    hi = jax.lax.Precision.HIGHEST

    def layernorm(v):
        mu = jnp.mean(v, axis=-1, keepdims=True)
        var = jnp.mean((v - mu) ** 2, axis=-1, keepdims=True)
        return (v - mu) / jnp.sqrt(var + LN_EPS) * lnw + lnb

    def mish(v):
        return v * jnp.tanh(_softplus(v))

    h = mish(layernorm(jnp.dot(x, w1, precision=hi) + b1))
    for i in range(NUM_HIDDEN_LAYERS):
        h = mish(layernorm(jnp.dot(h, wh[i], precision=hi) + bh[i]))
    return _softplus(jnp.dot(h, wo, precision=hi) + bo)


if __name__ == "__main__":
    key = jax.random.PRNGKey(0)
    k_param, k_x = jax.random.split(key)

    params = init_params(k_param)
    batch = 50   # exercises batch padding AND a 2-step "parallel" grid
    x = jax.random.normal(k_x, (batch, INPUT_FEATURES), dtype=jnp.float32)

    ref = ao_ann_ref(x, params)

    # Fast default path: bf16 MXU inputs, f32 accumulation, resident weights.
    try:
        out = ao_ann_forward(x, params)
    except Exception:
        # Fallback for Pallas versions without single-buffer pipeline_mode.
        out = ao_ann_forward(x, params, single_buffer_weights=False)
    out = jax.block_until_ready(out)
    assert out.shape == (batch, 1)
    assert bool(jnp.all(jnp.isfinite(out)))
    # bf16-matmul tolerance (documented accuracy/speed trade-off)
    assert jnp.allclose(out, ref, atol=3e-2, rtol=3e-2), \
        float(jnp.max(jnp.abs(out - ref)))

    # Strict-f32 path (matches PyTorch f32 semantics) — tight tolerance.
    out_f32 = ao_ann_forward(x, params, weights_dtype=jnp.float32,
                             single_buffer_weights=False)
    out_f32 = jax.block_until_ready(out_f32)
    assert jnp.allclose(out_f32, ref, atol=1e-3, rtol=1e-3), \
        float(jnp.max(jnp.abs(out_f32 - ref)))

    print("KERNEL_OK")
</pallas_src>

<mosaic_0001>
module attributes {stable_mosaic.version = 11 : i64} {
  func.func @ao_ann_kernel(%arg0: i32, %arg1: memref<32x16xf32, #tpu.memory_space<vmem>>, %arg2: memref<16x256xbf16, #tpu.memory_space<vmem>>, %arg3: memref<1x256xf32, #tpu.memory_space<vmem>>, %arg4: memref<6x256x256xbf16, #tpu.memory_space<vmem>>, %arg5: memref<6x1x256xf32, #tpu.memory_space<vmem>>, %arg6: memref<1x256xf32, #tpu.memory_space<vmem>>, %arg7: memref<1x256xf32, #tpu.memory_space<vmem>>, %arg8: memref<1x256xf32, #tpu.memory_space<vmem>>, %arg9: memref<1x1xf32, #tpu.memory_space<vmem>>, %arg10: memref<32x1xf32, #tpu.memory_space<vmem>>) attributes {dimension_semantics = [#tpu.dimension_semantics<parallel>], iteration_bounds = array<i64: 2>, scalar_prefetch = 0 : i64, scratch_operands = 0 : i64, tpu.core_type = #tpu.core_type<tc>, window_params = [{transform_indices = @transform_0, window_bounds = array<i64: 32, 16>}, {pipeline_mode = #tpu.pipeline_mode<synchronous>, transform_indices = @transform_1, window_bounds = array<i64: 16, 256>}, {pipeline_mode = #tpu.pipeline_mode<synchronous>, transform_indices = @transform_2, window_bounds = array<i64: 1, 256>}, {pipeline_mode = #tpu.pipeline_mode<synchronous>, transform_indices = @transform_3, window_bounds = array<i64: 6, 256, 256>}, {pipeline_mode = #tpu.pipeline_mode<synchronous>, transform_indices = @transform_4, window_bounds = array<i64: 6, 1, 256>}, {pipeline_mode = #tpu.pipeline_mode<synchronous>, transform_indices = @transform_5, window_bounds = array<i64: 1, 256>}, {pipeline_mode = #tpu.pipeline_mode<synchronous>, transform_indices = @transform_6, window_bounds = array<i64: 1, 256>}, {pipeline_mode = #tpu.pipeline_mode<synchronous>, transform_indices = @transform_7, window_bounds = array<i64: 1, 256>}, {pipeline_mode = #tpu.pipeline_mode<synchronous>, transform_indices = @transform_8, window_bounds = array<i64: 1, 1>}, {transform_indices = @transform_9, window_bounds = array<i64: 32, 1>}]} {
    %c0 = arith.constant 0 : index
    %c0_0 = arith.constant 0 : index
    %0 = vector.load %arg6[%c0, %c0_0] : memref<1x256xf32, #tpu.memory_space<vmem>>, vector<1x256xf32>
    %c0_1 = arith.constant 0 : index
    %c0_2 = arith.constant 0 : index
    %1 = vector.load %arg7[%c0_1, %c0_2] : memref<1x256xf32, #tpu.memory_space<vmem>>, vector<1x256xf32>
    %c0_3 = arith.constant 0 : index
    %c0_4 = arith.constant 0 : index
    %2 = vector.load %arg1[%c0_3, %c0_4] : memref<32x16xf32, #tpu.memory_space<vmem>>, vector<32x16xf32>
    %3 = arith.truncf %2 : vector<32x16xf32> to vector<32x16xbf16>
    %c0_5 = arith.constant 0 : index
    %c0_6 = arith.constant 0 : index
    %4 = vector.load %arg2[%c0_5, %c0_6] : memref<16x256xbf16, #tpu.memory_space<vmem>>, vector<16x256xbf16>
    %cst = arith.constant dense<0.000000e+00> : vector<32x256xf32>
    %5 = tpu.matmul %3, %4, %cst {dimension_numbers = #tpu.dot_dimension_numbers<[1], [0], [0], [1], [0, 0, 1, 1], [], []>} : vector<32x16xbf16>, vector<16x256xbf16>, vector<32x256xf32> -> vector<32x256xf32>
    %c0_7 = arith.constant 0 : index
    %c0_8 = arith.constant 0 : index
    %6 = vector.load %arg3[%c0_7, %c0_8] : memref<1x256xf32, #tpu.memory_space<vmem>>, vector<1x256xf32>
    %7 = vector.broadcast %6 : vector<1x256xf32> to vector<32x256xf32>
    %8 = arith.addf %5, %7 : vector<32x256xf32>
    %cst_9 = arith.constant dense<0.000000e+00> : vector<32xf32>
    %9 = vector.multi_reduction <add>, %8, %cst_9 [1] : vector<32x256xf32> to vector<32xf32>
    %10 = vector.shape_cast %9 : vector<32xf32> to vector<32x1xf32>
    %cst_10 = arith.constant 5.000000e-03 : f32
    %11 = vector.broadcast %cst_10 : f32 to vector<32x1xf32>
    %12 = arith.mulf %10, %11 : vector<32x1xf32>
    %13 = arith.mulf %8, %8 : vector<32x256xf32>
    %cst_11 = arith.constant dense<0.000000e+00> : vector<32xf32>
    %14 = vector.multi_reduction <add>, %13, %cst_11 [1] : vector<32x256xf32> to vector<32xf32>
    %15 = vector.shape_cast %14 : vector<32xf32> to vector<32x1xf32>
    %cst_12 = arith.constant 5.000000e-03 : f32
    %16 = vector.broadcast %cst_12 : f32 to vector<32x1xf32>
    %17 = arith.mulf %15, %16 : vector<32x1xf32>
    %18 = arith.mulf %12, %12 : vector<32x1xf32>
    %19 = arith.subf %17, %18 : vector<32x1xf32>
    %20 = vector.broadcast %12 : vector<32x1xf32> to vector<32x256xf32>
    %21 = arith.subf %8, %20 : vector<32x256xf32>
    %cst_13 = arith.constant 9.99999974E-6 : f32
    %22 = vector.broadcast %cst_13 : f32 to vector<32x1xf32>
    %23 = arith.addf %19, %22 : vector<32x1xf32>
    %24 = math.rsqrt %23 : vector<32x1xf32>
    %25 = vector.broadcast %24 : vector<32x1xf32> to vector<32x256xf32>
    %26 = arith.mulf %21, %25 : vector<32x256xf32>
    %27 = vector.broadcast %0 : vector<1x256xf32> to vector<32x256xf32>
    %28 = arith.mulf %26, %27 : vector<32x256xf32>
    %29 = vector.broadcast %1 : vector<1x256xf32> to vector<32x256xf32>
    %30 = arith.addf %28, %29 : vector<32x256xf32>
    %cst_14 = arith.constant 2.000000e+01 : f32
    %31 = vector.broadcast %cst_14 : f32 to vector<32x256xf32>
    %32 = arith.minimumf %30, %31 : vector<32x256xf32>
    %33 = math.exp %32 : vector<32x256xf32>
    %cst_15 = arith.constant 2.000000e+00 : f32
    %34 = vector.broadcast %cst_15 : f32 to vector<32x256xf32>
    %35 = arith.addf %33, %34 : vector<32x256xf32>
    %36 = arith.mulf %33, %35 : vector<32x256xf32>
    %cst_16 = arith.constant 2.000000e+00 : f32
    %37 = vector.broadcast %cst_16 : f32 to vector<32x256xf32>
    %38 = arith.addf %36, %37 : vector<32x256xf32>
    %39 = tpu.reciprocal %38 {approx = true} : vector<32x256xf32> -> vector<32x256xf32>
    %40 = arith.mulf %36, %39 : vector<32x256xf32>
    %41 = arith.mulf %30, %40 : vector<32x256xf32>
    %42 = arith.truncf %41 : vector<32x256xf32> to vector<32x256xbf16>
    %c0_17 = arith.constant 0 : index
    %c0_18 = arith.constant 0 : index
    %c0_19 = arith.constant 0 : index
    %43 = vector.load %arg4[%c0_17, %c0_18, %c0_19] : memref<6x256x256xbf16, #tpu.memory_space<vmem>>, vector<1x256x256xbf16>
    %44 = vector.shape_cast %43 : vector<1x256x256xbf16> to vector<256x256xbf16>
    %cst_20 = arith.constant dense<0.000000e+00> : vector<32x256xf32>
    %45 = tpu.matmul %42, %44, %cst_20 {dimension_numbers = #tpu.dot_dimension_numbers<[1], [0], [0], [1], [0, 0, 1, 1], [], []>} : vector<32x256xbf16>, vector<256x256xbf16>, vector<32x256xf32> -> vector<32x256xf32>
    %c0_21 = arith.constant 0 : index
    %c0_22 = arith.constant 0 : index
    %c0_23 = arith.constant 0 : index
    %46 = vector.load %arg5[%c0_21, %c0_22, %c0_23] : memref<6x1x256xf32, #tpu.memory_space<vmem>>, vector<1x1x256xf32>
    %47 = vector.shape_cast %46 : vector<1x1x256xf32> to vector<1x256xf32>
    %48 = vector.broadcast %47 : vector<1x256xf32> to vector<32x256xf32>
    %49 = arith.addf %45, %48 : vector<32x256xf32>
    %cst_24 = arith.constant dense<0.000000e+00> : vector<32xf32>
    %50 = vector.multi_reduction <add>, %49, %cst_24 [1] : vector<32x256xf32> to vector<32xf32>
    %51 = vector.shape_cast %50 : vector<32xf32> to vector<32x1xf32>
    %cst_25 = arith.constant 5.000000e-03 : f32
    %52 = vector.broadcast %cst_25 : f32 to vector<32x1xf32>
    %53 = arith.mulf %51, %52 : vector<32x1xf32>
    %54 = arith.mulf %49, %49 : vector<32x256xf32>
    %cst_26 = arith.constant dense<0.000000e+00> : vector<32xf32>
    %55 = vector.multi_reduction <add>, %54, %cst_26 [1] : vector<32x256xf32> to vector<32xf32>
    %56 = vector.shape_cast %55 : vector<32xf32> to vector<32x1xf32>
    %cst_27 = arith.constant 5.000000e-03 : f32
    %57 = vector.broadcast %cst_27 : f32 to vector<32x1xf32>
    %58 = arith.mulf %56, %57 : vector<32x1xf32>
    %59 = arith.mulf %53, %53 : vector<32x1xf32>
    %60 = arith.subf %58, %59 : vector<32x1xf32>
    %61 = vector.broadcast %53 : vector<32x1xf32> to vector<32x256xf32>
    %62 = arith.subf %49, %61 : vector<32x256xf32>
    %cst_28 = arith.constant 9.99999974E-6 : f32
    %63 = vector.broadcast %cst_28 : f32 to vector<32x1xf32>
    %64 = arith.addf %60, %63 : vector<32x1xf32>
    %65 = math.rsqrt %64 : vector<32x1xf32>
    %66 = vector.broadcast %65 : vector<32x1xf32> to vector<32x256xf32>
    %67 = arith.mulf %62, %66 : vector<32x256xf32>
    %68 = vector.broadcast %0 : vector<1x256xf32> to vector<32x256xf32>
    %69 = arith.mulf %67, %68 : vector<32x256xf32>
    %70 = vector.broadcast %1 : vector<1x256xf32> to vector<32x256xf32>
    %71 = arith.addf %69, %70 : vector<32x256xf32>
    %cst_29 = arith.constant 2.000000e+01 : f32
    %72 = vector.broadcast %cst_29 : f32 to vector<32x256xf32>
    %73 = arith.minimumf %71, %72 : vector<32x256xf32>
    %74 = math.exp %73 : vector<32x256xf32>
    %cst_30 = arith.constant 2.000000e+00 : f32
    %75 = vector.broadcast %cst_30 : f32 to vector<32x256xf32>
    %76 = arith.addf %74, %75 : vector<32x256xf32>
    %77 = arith.mulf %74, %76 : vector<32x256xf32>
    %cst_31 = arith.constant 2.000000e+00 : f32
    %78 = vector.broadcast %cst_31 : f32 to vector<32x256xf32>
    %79 = arith.addf %77, %78 : vector<32x256xf32>
    %80 = tpu.reciprocal %79 {approx = true} : vector<32x256xf32> -> vector<32x256xf32>
    %81 = arith.mulf %77, %80 : vector<32x256xf32>
    %82 = arith.mulf %71, %81 : vector<32x256xf32>
    %83 = arith.truncf %82 : vector<32x256xf32> to vector<32x256xbf16>
    %c1 = arith.constant 1 : index
    %c0_32 = arith.constant 0 : index
    %c0_33 = arith.constant 0 : index
    %84 = vector.load %arg4[%c1, %c0_32, %c0_33] : memref<6x256x256xbf16, #tpu.memory_space<vmem>>, vector<1x256x256xbf16>
    %85 = vector.shape_cast %84 : vector<1x256x256xbf16> to vector<256x256xbf16>
    %cst_34 = arith.constant dense<0.000000e+00> : vector<32x256xf32>
    %86 = tpu.matmul %83, %85, %cst_34 {dimension_numbers = #tpu.dot_dimension_numbers<[1], [0], [0], [1], [0, 0, 1, 1], [], []>} : vector<32x256xbf16>, vector<256x256xbf16>, vector<32x256xf32> -> vector<32x256xf32>
    %c1_35 = arith.constant 1 : index
    %c0_36 = arith.constant 0 : index
    %c0_37 = arith.constant 0 : index
    %87 = vector.load %arg5[%c1_35, %c0_36, %c0_37] : memref<6x1x256xf32, #tpu.memory_space<vmem>>, vector<1x1x256xf32>
    %88 = vector.shape_cast %87 : vector<1x1x256xf32> to vector<1x256xf32>
    %89 = vector.broadcast %88 : vector<1x256xf32> to vector<32x256xf32>
    %90 = arith.addf %86, %89 : vector<32x256xf32>
    %cst_38 = arith.constant dense<0.000000e+00> : vector<32xf32>
    %91 = vector.multi_reduction <add>, %90, %cst_38 [1] : vector<32x256xf32> to vector<32xf32>
    %92 = vector.shape_cast %91 : vector<32xf32> to vector<32x1xf32>
    %cst_39 = arith.constant 5.000000e-03 : f32
    %93 = vector.broadcast %cst_39 : f32 to vector<32x1xf32>
    %94 = arith.mulf %92, %93 : vector<32x1xf32>
    %95 = arith.mulf %90, %90 : vector<32x256xf32>
    %cst_40 = arith.constant dense<0.000000e+00> : vector<32xf32>
    %96 = vector.multi_reduction <add>, %95, %cst_40 [1] : vector<32x256xf32> to vector<32xf32>
    %97 = vector.shape_cast %96 : vector<32xf32> to vector<32x1xf32>
    %cst_41 = arith.constant 5.000000e-03 : f32
    %98 = vector.broadcast %cst_41 : f32 to vector<32x1xf32>
    %99 = arith.mulf %97, %98 : vector<32x1xf32>
    %100 = arith.mulf %94, %94 : vector<32x1xf32>
    %101 = arith.subf %99, %100 : vector<32x1xf32>
    %102 = vector.broadcast %94 : vector<32x1xf32> to vector<32x256xf32>
    %103 = arith.subf %90, %102 : vector<32x256xf32>
    %cst_42 = arith.constant 9.99999974E-6 : f32
    %104 = vector.broadcast %cst_42 : f32 to vector<32x1xf32>
    %105 = arith.addf %101, %104 : vector<32x1xf32>
    %106 = math.rsqrt %105 : vector<32x1xf32>
    %107 = vector.broadcast %106 : vector<32x1xf32> to vector<32x256xf32>
    %108 = arith.mulf %103, %107 : vector<32x256xf32>
    %109 = vector.broadcast %0 : vector<1x256xf32> to vector<32x256xf32>
    %110 = arith.mulf %108, %109 : vector<32x256xf32>
    %111 = vector.broadcast %1 : vector<1x256xf32> to vector<32x256xf32>
    %112 = arith.addf %110, %111 : vector<32x256xf32>
    %cst_43 = arith.constant 2.000000e+01 : f32
    %113 = vector.broadcast %cst_43 : f32 to vector<32x256xf32>
    %114 = arith.minimumf %112, %113 : vector<32x256xf32>
    %115 = math.exp %114 : vector<32x256xf32>
    %cst_44 = arith.constant 2.000000e+00 : f32
    %116 = vector.broadcast %cst_44 : f32 to vector<32x256xf32>
    %117 = arith.addf %115, %116 : vector<32x256xf32>
    %118 = arith.mulf %115, %117 : vector<32x256xf32>
    %cst_45 = arith.constant 2.000000e+00 : f32
    %119 = vector.broadcast %cst_45 : f32 to vector<32x256xf32>
    %120 = arith.addf %118, %119 : vector<32x256xf32>
    %121 = tpu.reciprocal %120 {approx = true} : vector<32x256xf32> -> vector<32x256xf32>
    %122 = arith.mulf %118, %121 : vector<32x256xf32>
    %123 = arith.mulf %112, %122 : vector<32x256xf32>
    %124 = arith.truncf %123 : vector<32x256xf32> to vector<32x256xbf16>
    %c2 = arith.constant 2 : index
    %c0_46 = arith.constant 0 : index
    %c0_47 = arith.constant 0 : index
    %125 = vector.load %arg4[%c2, %c0_46, %c0_47] : memref<6x256x256xbf16, #tpu.memory_space<vmem>>, vector<1x256x256xbf16>
    %126 = vector.shape_cast %125 : vector<1x256x256xbf16> to vector<256x256xbf16>
    %cst_48 = arith.constant dense<0.000000e+00> : vector<32x256xf32>
    %127 = tpu.matmul %124, %126, %cst_48 {dimension_numbers = #tpu.dot_dimension_numbers<[1], [0], [0], [1], [0, 0, 1, 1], [], []>} : vector<32x256xbf16>, vector<256x256xbf16>, vector<32x256xf32> -> vector<32x256xf32>
    %c2_49 = arith.constant 2 : index
    %c0_50 = arith.constant 0 : index
    %c0_51 = arith.constant 0 : index
    %128 = vector.load %arg5[%c2_49, %c0_50, %c0_51] : memref<6x1x256xf32, #tpu.memory_space<vmem>>, vector<1x1x256xf32>
    %129 = vector.shape_cast %128 : vector<1x1x256xf32> to vector<1x256xf32>
    %130 = vector.broadcast %129 : vector<1x256xf32> to vector<32x256xf32>
    %131 = arith.addf %127, %130 : vector<32x256xf32>
    %cst_52 = arith.constant dense<0.000000e+00> : vector<32xf32>
    %132 = vector.multi_reduction <add>, %131, %cst_52 [1] : vector<32x256xf32> to vector<32xf32>
    %133 = vector.shape_cast %132 : vector<32xf32> to vector<32x1xf32>
    %cst_53 = arith.constant 5.000000e-03 : f32
    %134 = vector.broadcast %cst_53 : f32 to vector<32x1xf32>
    %135 = arith.mulf %133, %134 : vector<32x1xf32>
    %136 = arith.mulf %131, %131 : vector<32x256xf32>
    %cst_54 = arith.constant dense<0.000000e+00> : vector<32xf32>
    %137 = vector.multi_reduction <add>, %136, %cst_54 [1] : vector<32x256xf32> to vector<32xf32>
    %138 = vector.shape_cast %137 : vector<32xf32> to vector<32x1xf32>
    %cst_55 = arith.constant 5.000000e-03 : f32
    %139 = vector.broadcast %cst_55 : f32 to vector<32x1xf32>
    %140 = arith.mulf %138, %139 : vector<32x1xf32>
    %141 = arith.mulf %135, %135 : vector<32x1xf32>
    %142 = arith.subf %140, %141 : vector<32x1xf32>
    %143 = vector.broadcast %135 : vector<32x1xf32> to vector<32x256xf32>
    %144 = arith.subf %131, %143 : vector<32x256xf32>
    %cst_56 = arith.constant 9.99999974E-6 : f32
    %145 = vector.broadcast %cst_56 : f32 to vector<32x1xf32>
    %146 = arith.addf %142, %145 : vector<32x1xf32>
    %147 = math.rsqrt %146 : vector<32x1xf32>
    %148 = vector.broadcast %147 : vector<32x1xf32> to vector<32x256xf32>
    %149 = arith.mulf %144, %148 : vector<32x256xf32>
    %150 = vector.broadcast %0 : vector<1x256xf32> to vector<32x256xf32>
    %151 = arith.mulf %149, %150 : vector<32x256xf32>
    %152 = vector.broadcast %1 : vector<1x256xf32> to vector<32x256xf32>
    %153 = arith.addf %151, %152 : vector<32x256xf32>
    %cst_57 = arith.constant 2.000000e+01 : f32
    %154 = vector.broadcast %cst_57 : f32 to vector<32x256xf32>
    %155 = arith.minimumf %153, %154 : vector<32x256xf32>
    %156 = math.exp %155 : vector<32x256xf32>
    %cst_58 = arith.constant 2.000000e+00 : f32
    %157 = vector.broadcast %cst_58 : f32 to vector<32x256xf32>
    %158 = arith.addf %156, %157 : vector<32x256xf32>
    %159 = arith.mulf %156, %158 : vector<32x256xf32>
    %cst_59 = arith.constant 2.000000e+00 : f32
    %160 = vector.broadcast %cst_59 : f32 to vector<32x256xf32>
    %161 = arith.addf %159, %160 : vector<32x256xf32>
    %162 = tpu.reciprocal %161 {approx = true} : vector<32x256xf32> -> vector<32x256xf32>
    %163 = arith.mulf %159, %162 : vector<32x256xf32>
    %164 = arith.mulf %153, %163 : vector<32x256xf32>
    %165 = arith.truncf %164 : vector<32x256xf32> to vector<32x256xbf16>
    %c3 = arith.constant 3 : index
    %c0_60 = arith.constant 0 : index
    %c0_61 = arith.constant 0 : index
    %166 = vector.load %arg4[%c3, %c0_60, %c0_61] : memref<6x256x256xbf16, #tpu.memory_space<vmem>>, vector<1x256x256xbf16>
    %167 = vector.shape_cast %166 : vector<1x256x256xbf16> to vector<256x256xbf16>
    %cst_62 = arith.constant dense<0.000000e+00> : vector<32x256xf32>
    %168 = tpu.matmul %165, %167, %cst_62 {dimension_numbers = #tpu.dot_dimension_numbers<[1], [0], [0], [1], [0, 0, 1, 1], [], []>} : vector<32x256xbf16>, vector<256x256xbf16>, vector<32x256xf32> -> vector<32x256xf32>
    %c3_63 = arith.constant 3 : index
    %c0_64 = arith.constant 0 : index
    %c0_65 = arith.constant 0 : index
    %169 = vector.load %arg5[%c3_63, %c0_64, %c0_65] : memref<6x1x256xf32, #tpu.memory_space<vmem>>, vector<1x1x256xf32>
    %170 = vector.shape_cast %169 : vector<1x1x256xf32> to vector<1x256xf32>
    %171 = vector.broadcast %170 : vector<1x256xf32> to vector<32x256xf32>
    %172 = arith.addf %168, %171 : vector<32x256xf32>
    %cst_66 = arith.constant dense<0.000000e+00> : vector<32xf32>
    %173 = vector.multi_reduction <add>, %172, %cst_66 [1] : vector<32x256xf32> to vector<32xf32>
    %174 = vector.shape_cast %173 : vector<32xf32> to vector<32x1xf32>
    %cst_67 = arith.constant 5.000000e-03 : f32
    %175 = vector.broadcast %cst_67 : f32 to vector<32x1xf32>
    %176 = arith.mulf %174, %175 : vector<32x1xf32>
    %177 = arith.mulf %172, %172 : vector<32x256xf32>
    %cst_68 = arith.constant dense<0.000000e+00> : vector<32xf32>
    %178 = vector.multi_reduction <add>, %177, %cst_68 [1] : vector<32x256xf32> to vector<32xf32>
    %179 = vector.shape_cast %178 : vector<32xf32> to vector<32x1xf32>
    %cst_69 = arith.constant 5.000000e-03 : f32
    %180 = vector.broadcast %cst_69 : f32 to vector<32x1xf32>
    %181 = arith.mulf %179, %180 : vector<32x1xf32>
    %182 = arith.mulf %176, %176 : vector<32x1xf32>
    %183 = arith.subf %181, %182 : vector<32x1xf32>
    %184 = vector.broadcast %176 : vector<32x1xf32> to vector<32x256xf32>
    %185 = arith.subf %172, %184 : vector<32x256xf32>
    %cst_70 = arith.constant 9.99999974E-6 : f32
    %186 = vector.broadcast %cst_70 : f32 to vector<32x1xf32>
    %187 = arith.addf %183, %186 : vector<32x1xf32>
    %188 = math.rsqrt %187 : vector<32x1xf32>
    %189 = vector.broadcast %188 : vector<32x1xf32> to vector<32x256xf32>
    %190 = arith.mulf %185, %189 : vector<32x256xf32>
    %191 = vector.broadcast %0 : vector<1x256xf32> to vector<32x256xf32>
    %192 = arith.mulf %190, %191 : vector<32x256xf32>
    %193 = vector.broadcast %1 : vector<1x256xf32> to vector<32x256xf32>
    %194 = arith.addf %192, %193 : vector<32x256xf32>
    %cst_71 = arith.constant 2.000000e+01 : f32
    %195 = vector.broadcast %cst_71 : f32 to vector<32x256xf32>
    %196 = arith.minimumf %194, %195 : vector<32x256xf32>
    %197 = math.exp %196 : vector<32x256xf32>
    %cst_72 = arith.constant 2.000000e+00 : f32
    %198 = vector.broadcast %cst_72 : f32 to vector<32x256xf32>
    %199 = arith.addf %197, %198 : vector<32x256xf32>
    %200 = arith.mulf %197, %199 : vector<32x256xf32>
    %cst_73 = arith.constant 2.000000e+00 : f32
    %201 = vector.broadcast %cst_73 : f32 to vector<32x256xf32>
    %202 = arith.addf %200, %201 : vector<32x256xf32>
    %203 = tpu.reciprocal %202 {approx = true} : vector<32x256xf32> -> vector<32x256xf32>
    %204 = arith.mulf %200, %203 : vector<32x256xf32>
    %205 = arith.mulf %194, %204 : vector<32x256xf32>
    %206 = arith.truncf %205 : vector<32x256xf32> to vector<32x256xbf16>
    %c4 = arith.constant 4 : index
    %c0_74 = arith.constant 0 : index
    %c0_75 = arith.constant 0 : index
    %207 = vector.load %arg4[%c4, %c0_74, %c0_75] : memref<6x256x256xbf16, #tpu.memory_space<vmem>>, vector<1x256x256xbf16>
    %208 = vector.shape_cast %207 : vector<1x256x256xbf16> to vector<256x256xbf16>
    %cst_76 = arith.constant dense<0.000000e+00> : vector<32x256xf32>
    %209 = tpu.matmul %206, %208, %cst_76 {dimension_numbers = #tpu.dot_dimension_numbers<[1], [0], [0], [1], [0, 0, 1, 1], [], []>} : vector<32x256xbf16>, vector<256x256xbf16>, vector<32x256xf32> -> vector<32x256xf32>
    %c4_77 = arith.constant 4 : index
    %c0_78 = arith.constant 0 : index
    %c0_79 = arith.constant 0 : index
    %210 = vector.load %arg5[%c4_77, %c0_78, %c0_79] : memref<6x1x256xf32, #tpu.memory_space<vmem>>, vector<1x1x256xf32>
    %211 = vector.shape_cast %210 : vector<1x1x256xf32> to vector<1x256xf32>
    %212 = vector.broadcast %211 : vector<1x256xf32> to vector<32x256xf32>
    %213 = arith.addf %209, %212 : vector<32x256xf32>
    %cst_80 = arith.constant dense<0.000000e+00> : vector<32xf32>
    %214 = vector.multi_reduction <add>, %213, %cst_80 [1] : vector<32x256xf32> to vector<32xf32>
    %215 = vector.shape_cast %214 : vector<32xf32> to vector<32x1xf32>
    %cst_81 = arith.constant 5.000000e-03 : f32
    %216 = vector.broadcast %cst_81 : f32 to vector<32x1xf32>
    %217 = arith.mulf %215, %216 : vector<32x1xf32>
    %218 = arith.mulf %213, %213 : vector<32x256xf32>
    %cst_82 = arith.constant dense<0.000000e+00> : vector<32xf32>
    %219 = vector.multi_reduction <add>, %218, %cst_82 [1] : vector<32x256xf32> to vector<32xf32>
    %220 = vector.shape_cast %219 : vector<32xf32> to vector<32x1xf32>
    %cst_83 = arith.constant 5.000000e-03 : f32
    %221 = vector.broadcast %cst_83 : f32 to vector<32x1xf32>
    %222 = arith.mulf %220, %221 : vector<32x1xf32>
    %223 = arith.mulf %217, %217 : vector<32x1xf32>
    %224 = arith.subf %222, %223 : vector<32x1xf32>
    %225 = vector.broadcast %217 : vector<32x1xf32> to vector<32x256xf32>
    %226 = arith.subf %213, %225 : vector<32x256xf32>
    %cst_84 = arith.constant 9.99999974E-6 : f32
    %227 = vector.broadcast %cst_84 : f32 to vector<32x1xf32>
    %228 = arith.addf %224, %227 : vector<32x1xf32>
    %229 = math.rsqrt %228 : vector<32x1xf32>
    %230 = vector.broadcast %229 : vector<32x1xf32> to vector<32x256xf32>
    %231 = arith.mulf %226, %230 : vector<32x256xf32>
    %232 = vector.broadcast %0 : vector<1x256xf32> to vector<32x256xf32>
    %233 = arith.mulf %231, %232 : vector<32x256xf32>
    %234 = vector.broadcast %1 : vector<1x256xf32> to vector<32x256xf32>
    %235 = arith.addf %233, %234 : vector<32x256xf32>
    %cst_85 = arith.constant 2.000000e+01 : f32
    %236 = vector.broadcast %cst_85 : f32 to vector<32x256xf32>
    %237 = arith.minimumf %235, %236 : vector<32x256xf32>
    %238 = math.exp %237 : vector<32x256xf32>
    %cst_86 = arith.constant 2.000000e+00 : f32
    %239 = vector.broadcast %cst_86 : f32 to vector<32x256xf32>
    %240 = arith.addf %238, %239 : vector<32x256xf32>
    %241 = arith.mulf %238, %240 : vector<32x256xf32>
    %cst_87 = arith.constant 2.000000e+00 : f32
    %242 = vector.broadcast %cst_87 : f32 to vector<32x256xf32>
    %243 = arith.addf %241, %242 : vector<32x256xf32>
    %244 = tpu.reciprocal %243 {approx = true} : vector<32x256xf32> -> vector<32x256xf32>
    %245 = arith.mulf %241, %244 : vector<32x256xf32>
    %246 = arith.mulf %235, %245 : vector<32x256xf32>
    %247 = arith.truncf %246 : vector<32x256xf32> to vector<32x256xbf16>
    %c5 = arith.constant 5 : index
    %c0_88 = arith.constant 0 : index
    %c0_89 = arith.constant 0 : index
    %248 = vector.load %arg4[%c5, %c0_88, %c0_89] : memref<6x256x256xbf16, #tpu.memory_space<vmem>>, vector<1x256x256xbf16>
    %249 = vector.shape_cast %248 : vector<1x256x256xbf16> to vector<256x256xbf16>
    %cst_90 = arith.constant dense<0.000000e+00> : vector<32x256xf32>
    %250 = tpu.matmul %247, %249, %cst_90 {dimension_numbers = #tpu.dot_dimension_numbers<[1], [0], [0], [1], [0, 0, 1, 1], [], []>} : vector<32x256xbf16>, vector<256x256xbf16>, vector<32x256xf32> -> vector<32x256xf32>
    %c5_91 = arith.constant 5 : index
    %c0_92 = arith.constant 0 : index
    %c0_93 = arith.constant 0 : index
    %251 = vector.load %arg5[%c5_91, %c0_92, %c0_93] : memref<6x1x256xf32, #tpu.memory_space<vmem>>, vector<1x1x256xf32>
    %252 = vector.shape_cast %251 : vector<1x1x256xf32> to vector<1x256xf32>
    %253 = vector.broadcast %252 : vector<1x256xf32> to vector<32x256xf32>
    %254 = arith.addf %250, %253 : vector<32x256xf32>
    %cst_94 = arith.constant dense<0.000000e+00> : vector<32xf32>
    %255 = vector.multi_reduction <add>, %254, %cst_94 [1] : vector<32x256xf32> to vector<32xf32>
    %256 = vector.shape_cast %255 : vector<32xf32> to vector<32x1xf32>
    %cst_95 = arith.constant 5.000000e-03 : f32
    %257 = vector.broadcast %cst_95 : f32 to vector<32x1xf32>
    %258 = arith.mulf %256, %257 : vector<32x1xf32>
    %259 = arith.mulf %254, %254 : vector<32x256xf32>
    %cst_96 = arith.constant dense<0.000000e+00> : vector<32xf32>
    %260 = vector.multi_reduction <add>, %259, %cst_96 [1] : vector<32x256xf32> to vector<32xf32>
    %261 = vector.shape_cast %260 : vector<32xf32> to vector<32x1xf32>
    %cst_97 = arith.constant 5.000000e-03 : f32
    %262 = vector.broadcast %cst_97 : f32 to vector<32x1xf32>
    %263 = arith.mulf %261, %262 : vector<32x1xf32>
    %264 = arith.mulf %258, %258 : vector<32x1xf32>
    %265 = arith.subf %263, %264 : vector<32x1xf32>
    %266 = vector.broadcast %258 : vector<32x1xf32> to vector<32x256xf32>
    %267 = arith.subf %254, %266 : vector<32x256xf32>
    %cst_98 = arith.constant 9.99999974E-6 : f32
    %268 = vector.broadcast %cst_98 : f32 to vector<32x1xf32>
    %269 = arith.addf %265, %268 : vector<32x1xf32>
    %270 = math.rsqrt %269 : vector<32x1xf32>
    %271 = vector.broadcast %270 : vector<32x1xf32> to vector<32x256xf32>
    %272 = arith.mulf %267, %271 : vector<32x256xf32>
    %273 = vector.broadcast %0 : vector<1x256xf32> to vector<32x256xf32>
    %274 = arith.mulf %272, %273 : vector<32x256xf32>
    %275 = vector.broadcast %1 : vector<1x256xf32> to vector<32x256xf32>
    %276 = arith.addf %274, %275 : vector<32x256xf32>
    %cst_99 = arith.constant 2.000000e+01 : f32
    %277 = vector.broadcast %cst_99 : f32 to vector<32x256xf32>
    %278 = arith.minimumf %276, %277 : vector<32x256xf32>
    %279 = math.exp %278 : vector<32x256xf32>
    %cst_100 = arith.constant 2.000000e+00 : f32
    %280 = vector.broadcast %cst_100 : f32 to vector<32x256xf32>
    %281 = arith.addf %279, %280 : vector<32x256xf32>
    %282 = arith.mulf %279, %281 : vector<32x256xf32>
    %cst_101 = arith.constant 2.000000e+00 : f32
    %283 = vector.broadcast %cst_101 : f32 to vector<32x256xf32>
    %284 = arith.addf %282, %283 : vector<32x256xf32>
    %285 = tpu.reciprocal %284 {approx = true} : vector<32x256xf32> -> vector<32x256xf32>
    %286 = arith.mulf %282, %285 : vector<32x256xf32>
    %287 = arith.mulf %276, %286 : vector<32x256xf32>
    %c0_102 = arith.constant 0 : index
    %c0_103 = arith.constant 0 : index
    %288 = vector.load %arg8[%c0_102, %c0_103] : memref<1x256xf32, #tpu.memory_space<vmem>>, vector<1x256xf32>
    %289 = vector.broadcast %288 : vector<1x256xf32> to vector<32x256xf32>
    %290 = arith.mulf %287, %289 : vector<32x256xf32>
    %cst_104 = arith.constant dense<0.000000e+00> : vector<32xf32>
    %291 = vector.multi_reduction <add>, %290, %cst_104 [1] : vector<32x256xf32> to vector<32xf32>
    %292 = vector.shape_cast %291 : vector<32xf32> to vector<32x1xf32>
    %c0_105 = arith.constant 0 : index
    %c0_106 = arith.constant 0 : index
    %293 = vector.load %arg9[%c0_105, %c0_106] : memref<1x1xf32, #tpu.memory_space<vmem>>, vector<1x1xf32>
    %294 = vector.broadcast %293 : vector<1x1xf32> to vector<32x1xf32>
    %295 = arith.addf %292, %294 : vector<32x1xf32>
    %cst_107 = arith.constant 0.000000e+00 : f32
    %296 = vector.broadcast %cst_107 : f32 to vector<32x1xf32>
    %297 = arith.maximumf %295, %296 : vector<32x1xf32>
    %298 = math.absf %295 : vector<32x1xf32>
    %cst_108 = arith.constant 0.000000e+00 : f32
    %299 = vector.broadcast %cst_108 : f32 to vector<32x1xf32>
    %300 = arith.subf %299, %298 : vector<32x1xf32>
    %301 = math.exp %300 : vector<32x1xf32>
    %302 = math.log1p %301 : vector<32x1xf32>
    %303 = arith.addf %297, %302 : vector<32x1xf32>
    %c0_109 = arith.constant 0 : index
    %c0_110 = arith.constant 0 : index
    %304 = vector.load %arg10[%c0_109, %c0_110] : memref<32x1xf32, #tpu.memory_space<vmem>>, vector<32x1xf32>
    tpu.vector_store %arg10[%c0_109, %c0_110], %303 {strides = array<i32>} : memref<32x1xf32, #tpu.memory_space<vmem>>, vector<32x1xf32>,
    return
  }
  func.func @transform_0(%arg0: i32) -> (i32, i32) {
    %c0_i32 = arith.constant 0 : i32
    %c0_i32_0 = arith.constant 0 : i32
    return %arg0, %c0_i32 : i32, i32
  }
  func.func @transform_1(%arg0: i32) -> (i32, i32) {
    %c0_i32 = arith.constant 0 : i32
    %c0_i32_0 = arith.constant 0 : i32
    %c0_i32_1 = arith.constant 0 : i32
    return %c0_i32, %c0_i32_0 : i32, i32
  }
  func.func @transform_2(%arg0: i32) -> (i32, i32) {
    %c0_i32 = arith.constant 0 : i32
    %c0_i32_0 = arith.constant 0 : i32
    %c0_i32_1 = arith.constant 0 : i32
    return %c0_i32, %c0_i32_0 : i32, i32
  }
  func.func @transform_3(%arg0: i32) -> (i32, i32, i32) {
    %c0_i32 = arith.constant 0 : i32
    %c0_i32_0 = arith.constant 0 : i32
    %c0_i32_1 = arith.constant 0 : i32
    %c0_i32_2 = arith.constant 0 : i32
    return %c0_i32, %c0_i32_0, %c0_i32_1 : i32, i32, i32
  }
  func.func @transform_4(%arg0: i32) -> (i32, i32, i32) {
    %c0_i32 = arith.constant 0 : i32
    %c0_i32_0 = arith.constant 0 : i32
    %c0_i32_1 = arith.constant 0 : i32
    %c0_i32_2 = arith.constant 0 : i32
    return %c0_i32, %c0_i32_0, %c0_i32_1 : i32, i32, i32
  }
  func.func @transform_5(%arg0: i32) -> (i32, i32) {
    %c0_i32 = arith.constant 0 : i32
    %c0_i32_0 = arith.constant 0 : i32
    %c0_i32_1 = arith.constant 0 : i32
    return %c0_i32, %c0_i32_0 : i32, i32
  }
  func.func @transform_6(%arg0: i32) -> (i32, i32) {
    %c0_i32 = arith.constant 0 : i32
    %c0_i32_0 = arith.constant 0 : i32
    %c0_i32_1 = arith.constant 0 : i32
    return %c0_i32, %c0_i32_0 : i32, i32
  }
  func.func @transform_7(%arg0: i32) -> (i32, i32) {
    %c0_i32 = arith.constant 0 : i32
    %c0_i32_0 = arith.constant 0 : i32
    %c0_i32_1 = arith.constant 0 : i32
    return %c0_i32, %c0_i32_0 : i32, i32
  }
  func.func @transform_8(%arg0: i32) -> (i32, i32) {
    %c0_i32 = arith.constant 0 : i32
    %c0_i32_0 = arith.constant 0 : i32
    %c0_i32_1 = arith.constant 0 : i32
    return %c0_i32, %c0_i32_0 : i32, i32
  }
  func.func @transform_9(%arg0: i32) -> (i32, i32) {
    %c0_i32 = arith.constant 0 : i32
    %c0_i32_0 = arith.constant 0 : i32
    return %arg0, %c0_i32 : i32, i32
  }
}

module attributes {stable_mosaic.version = 11 : i64} {
  func.func @ao_ann_kernel(%arg0: i32, %arg1: memref<32x16xf32, #tpu.memory_space<vmem>>, %arg2: memref<16x256xbf16, #tpu.memory_space<vmem>>, %arg3: memref<1x256xf32, #tpu.memory_space<vmem>>, %arg4: memref<6x256x256xbf16, #tpu.memory_space<vmem>>, %arg5: memref<6x1x256xf32, #tpu.memory_space<vmem>>, %arg6: memref<1x256xf32, #tpu.memory_space<vmem>>, %arg7: memref<1x256xf32, #tpu.memory_space<vmem>>, %arg8: memref<1x256xf32, #tpu.memory_space<vmem>>, %arg9: memref<1x1xf32, #tpu.memory_space<vmem>>, %arg10: memref<32x1xf32, #tpu.memory_space<vmem>>) attributes {dimension_semantics = [#tpu.dimension_semantics<parallel>], iteration_bounds = array<i64: 2>, scalar_prefetch = 0 : i64, scratch_operands = 0 : i64, tpu.core_type = #tpu.core_type<tc>, window_params = [{transform_indices = @transform_0, window_bounds = array<i64: 32, 16>}, {pipeline_mode = #tpu.pipeline_mode<synchronous>, transform_indices = @transform_1, window_bounds = array<i64: 16, 256>}, {pipeline_mode = #tpu.pipeline_mode<synchronous>, transform_indices = @transform_2, window_bounds = array<i64: 1, 256>}, {pipeline_mode = #tpu.pipeline_mode<synchronous>, transform_indices = @transform_3, window_bounds = array<i64: 6, 256, 256>}, {pipeline_mode = #tpu.pipeline_mode<synchronous>, transform_indices = @transform_4, window_bounds = array<i64: 6, 1, 256>}, {pipeline_mode = #tpu.pipeline_mode<synchronous>, transform_indices = @transform_5, window_bounds = array<i64: 1, 256>}, {pipeline_mode = #tpu.pipeline_mode<synchronous>, transform_indices = @transform_6, window_bounds = array<i64: 1, 256>}, {pipeline_mode = #tpu.pipeline_mode<synchronous>, transform_indices = @transform_7, window_bounds = array<i64: 1, 256>}, {pipeline_mode = #tpu.pipeline_mode<synchronous>, transform_indices = @transform_8, window_bounds = array<i64: 1, 1>}, {transform_indices = @transform_9, window_bounds = array<i64: 32, 1>}]} {
    %c0 = arith.constant 0 : index
    %c0_0 = arith.constant 0 : index
    %0 = vector.load %arg6[%c0, %c0_0] : memref<1x256xf32, #tpu.memory_space<vmem>>, vector<1x256xf32>
    %c0_1 = arith.constant 0 : index
    %c0_2 = arith.constant 0 : index
    %1 = vector.load %arg7[%c0_1, %c0_2] : memref<1x256xf32, #tpu.memory_space<vmem>>, vector<1x256xf32>
    %c0_3 = arith.constant 0 : index
    %c0_4 = arith.constant 0 : index
    %2 = vector.load %arg1[%c0_3, %c0_4] : memref<32x16xf32, #tpu.memory_space<vmem>>, vector<32x16xf32>
    %3 = arith.truncf %2 : vector<32x16xf32> to vector<32x16xbf16>
    %c0_5 = arith.constant 0 : index
    %c0_6 = arith.constant 0 : index
    %4 = vector.load %arg2[%c0_5, %c0_6] : memref<16x256xbf16, #tpu.memory_space<vmem>>, vector<16x256xbf16>
    %cst = arith.constant dense<0.000000e+00> : vector<32x256xf32>
    %5 = tpu.matmul %3, %4, %cst {dimension_numbers = #tpu.dot_dimension_numbers<[1], [0], [0], [1], [0, 0, 1, 1], [], []>} : vector<32x16xbf16>, vector<16x256xbf16>, vector<32x256xf32> -> vector<32x256xf32>
    %c0_7 = arith.constant 0 : index
    %c0_8 = arith.constant 0 : index
    %6 = vector.load %arg3[%c0_7, %c0_8] : memref<1x256xf32, #tpu.memory_space<vmem>>, vector<1x256xf32>
    %7 = vector.broadcast %6 : vector<1x256xf32> to vector<32x256xf32>
    %8 = arith.addf %5, %7 : vector<32x256xf32>
    %cst_9 = arith.constant dense<0.000000e+00> : vector<32xf32>
    %9 = vector.multi_reduction <add>, %8, %cst_9 [1] : vector<32x256xf32> to vector<32xf32>
    %10 = vector.shape_cast %9 : vector<32xf32> to vector<32x1xf32>
    %cst_10 = arith.constant 5.000000e-03 : f32
    %11 = vector.broadcast %cst_10 : f32 to vector<32x1xf32>
    %12 = arith.mulf %10, %11 : vector<32x1xf32>
    %13 = arith.mulf %8, %8 : vector<32x256xf32>
    %cst_11 = arith.constant dense<0.000000e+00> : vector<32xf32>
    %14 = vector.multi_reduction <add>, %13, %cst_11 [1] : vector<32x256xf32> to vector<32xf32>
    %15 = vector.shape_cast %14 : vector<32xf32> to vector<32x1xf32>
    %cst_12 = arith.constant 5.000000e-03 : f32
    %16 = vector.broadcast %cst_12 : f32 to vector<32x1xf32>
    %17 = arith.mulf %15, %16 : vector<32x1xf32>
    %18 = arith.mulf %12, %12 : vector<32x1xf32>
    %19 = arith.subf %17, %18 : vector<32x1xf32>
    %20 = vector.broadcast %12 : vector<32x1xf32> to vector<32x256xf32>
    %21 = arith.subf %8, %20 : vector<32x256xf32>
    %cst_13 = arith.constant 9.99999974E-6 : f32
    %22 = vector.broadcast %cst_13 : f32 to vector<32x1xf32>
    %23 = arith.addf %19, %22 : vector<32x1xf32>
    %24 = math.rsqrt %23 : vector<32x1xf32>
    %25 = vector.broadcast %24 : vector<32x1xf32> to vector<32x256xf32>
    %26 = arith.mulf %21, %25 : vector<32x256xf32>
    %27 = vector.broadcast %0 : vector<1x256xf32> to vector<32x256xf32>
    %28 = arith.mulf %26, %27 : vector<32x256xf32>
    %29 = vector.broadcast %1 : vector<1x256xf32> to vector<32x256xf32>
    %30 = arith.addf %28, %29 : vector<32x256xf32>
    %cst_14 = arith.constant 2.000000e+01 : f32
    %31 = vector.broadcast %cst_14 : f32 to vector<32x256xf32>
    %32 = arith.minimumf %30, %31 : vector<32x256xf32>
    %33 = math.exp %32 : vector<32x256xf32>
    %cst_15 = arith.constant 2.000000e+00 : f32
    %34 = vector.broadcast %cst_15 : f32 to vector<32x256xf32>
    %35 = arith.addf %33, %34 : vector<32x256xf32>
    %36 = arith.mulf %33, %35 : vector<32x256xf32>
    %cst_16 = arith.constant 2.000000e+00 : f32
    %37 = vector.broadcast %cst_16 : f32 to vector<32x256xf32>
    %38 = arith.addf %36, %37 : vector<32x256xf32>
    %39 = tpu.reciprocal %38 {approx = true} : vector<32x256xf32> -> vector<32x256xf32>
    %40 = arith.mulf %36, %39 : vector<32x256xf32>
    %41 = arith.mulf %30, %40 : vector<32x256xf32>
    %42 = arith.truncf %41 : vector<32x256xf32> to vector<32x256xbf16>
    %c0_17 = arith.constant 0 : index
    %c0_18 = arith.constant 0 : index
    %c0_19 = arith.constant 0 : index
    %43 = vector.load %arg4[%c0_17, %c0_18, %c0_19] : memref<6x256x256xbf16, #tpu.memory_space<vmem>>, vector<1x256x256xbf16>
    %44 = vector.shape_cast %43 : vector<1x256x256xbf16> to vector<256x256xbf16>
    %cst_20 = arith.constant dense<0.000000e+00> : vector<32x256xf32>
    %45 = tpu.matmul %42, %44, %cst_20 {dimension_numbers = #tpu.dot_dimension_numbers<[1], [0], [0], [1], [0, 0, 1, 1], [], []>} : vector<32x256xbf16>, vector<256x256xbf16>, vector<32x256xf32> -> vector<32x256xf32>
    %c0_21 = arith.constant 0 : index
    %c0_22 = arith.constant 0 : index
    %c0_23 = arith.constant 0 : index
    %46 = vector.load %arg5[%c0_21, %c0_22, %c0_23] : memref<6x1x256xf32, #tpu.memory_space<vmem>>, vector<1x1x256xf32>
    %47 = vector.shape_cast %46 : vector<1x1x256xf32> to vector<1x256xf32>
    %48 = vector.broadcast %47 : vector<1x256xf32> to vector<32x256xf32>
    %49 = arith.addf %45, %48 : vector<32x256xf32>
    %cst_24 = arith.constant dense<0.000000e+00> : vector<32xf32>
    %50 = vector.multi_reduction <add>, %49, %cst_24 [1] : vector<32x256xf32> to vector<32xf32>
    %51 = vector.shape_cast %50 : vector<32xf32> to vector<32x1xf32>
    %cst_25 = arith.constant 5.000000e-03 : f32
    %52 = vector.broadcast %cst_25 : f32 to vector<32x1xf32>
    %53 = arith.mulf %51, %52 : vector<32x1xf32>
    %54 = arith.mulf %49, %49 : vector<32x256xf32>
    %cst_26 = arith.constant dense<0.000000e+00> : vector<32xf32>
    %55 = vector.multi_reduction <add>, %54, %cst_26 [1] : vector<32x256xf32> to vector<32xf32>
    %56 = vector.shape_cast %55 : vector<32xf32> to vector<32x1xf32>
    %cst_27 = arith.constant 5.000000e-03 : f32
    %57 = vector.broadcast %cst_27 : f32 to vector<32x1xf32>
    %58 = arith.mulf %56, %57 : vector<32x1xf32>
    %59 = arith.mulf %53, %53 : vector<32x1xf32>
    %60 = arith.subf %58, %59 : vector<32x1xf32>
    %61 = vector.broadcast %53 : vector<32x1xf32> to vector<32x256xf32>
    %62 = arith.subf %49, %61 : vector<32x256xf32>
    %cst_28 = arith.constant 9.99999974E-6 : f32
    %63 = vector.broadcast %cst_28 : f32 to vector<32x1xf32>
    %64 = arith.addf %60, %63 : vector<32x1xf32>
    %65 = math.rsqrt %64 : vector<32x1xf32>
    %66 = vector.broadcast %65 : vector<32x1xf32> to vector<32x256xf32>
    %67 = arith.mulf %62, %66 : vector<32x256xf32>
    %68 = vector.broadcast %0 : vector<1x256xf32> to vector<32x256xf32>
    %69 = arith.mulf %67, %68 : vector<32x256xf32>
    %70 = vector.broadcast %1 : vector<1x256xf32> to vector<32x256xf32>
    %71 = arith.addf %69, %70 : vector<32x256xf32>
    %cst_29 = arith.constant 2.000000e+01 : f32
    %72 = vector.broadcast %cst_29 : f32 to vector<32x256xf32>
    %73 = arith.minimumf %71, %72 : vector<32x256xf32>
    %74 = math.exp %73 : vector<32x256xf32>
    %cst_30 = arith.constant 2.000000e+00 : f32
    %75 = vector.broadcast %cst_30 : f32 to vector<32x256xf32>
    %76 = arith.addf %74, %75 : vector<32x256xf32>
    %77 = arith.mulf %74, %76 : vector<32x256xf32>
    %cst_31 = arith.constant 2.000000e+00 : f32
    %78 = vector.broadcast %cst_31 : f32 to vector<32x256xf32>
    %79 = arith.addf %77, %78 : vector<32x256xf32>
    %80 = tpu.reciprocal %79 {approx = true} : vector<32x256xf32> -> vector<32x256xf32>
    %81 = arith.mulf %77, %80 : vector<32x256xf32>
    %82 = arith.mulf %71, %81 : vector<32x256xf32>
    %83 = arith.truncf %82 : vector<32x256xf32> to vector<32x256xbf16>
    %c1 = arith.constant 1 : index
    %c0_32 = arith.constant 0 : index
    %c0_33 = arith.constant 0 : index
    %84 = vector.load %arg4[%c1, %c0_32, %c0_33] : memref<6x256x256xbf16, #tpu.memory_space<vmem>>, vector<1x256x256xbf16>
    %85 = vector.shape_cast %84 : vector<1x256x256xbf16> to vector<256x256xbf16>
    %cst_34 = arith.constant dense<0.000000e+00> : vector<32x256xf32>
    %86 = tpu.matmul %83, %85, %cst_34 {dimension_numbers = #tpu.dot_dimension_numbers<[1], [0], [0], [1], [0, 0, 1, 1], [], []>} : vector<32x256xbf16>, vector<256x256xbf16>, vector<32x256xf32> -> vector<32x256xf32>
    %c1_35 = arith.constant 1 : index
    %c0_36 = arith.constant 0 : index
    %c0_37 = arith.constant 0 : index
    %87 = vector.load %arg5[%c1_35, %c0_36, %c0_37] : memref<6x1x256xf32, #tpu.memory_space<vmem>>, vector<1x1x256xf32>
    %88 = vector.shape_cast %87 : vector<1x1x256xf32> to vector<1x256xf32>
    %89 = vector.broadcast %88 : vector<1x256xf32> to vector<32x256xf32>
    %90 = arith.addf %86, %89 : vector<32x256xf32>
    %cst_38 = arith.constant dense<0.000000e+00> : vector<32xf32>
    %91 = vector.multi_reduction <add>, %90, %cst_38 [1] : vector<32x256xf32> to vector<32xf32>
    %92 = vector.shape_cast %91 : vector<32xf32> to vector<32x1xf32>
    %cst_39 = arith.constant 5.000000e-03 : f32
    %93 = vector.broadcast %cst_39 : f32 to vector<32x1xf32>
    %94 = arith.mulf %92, %93 : vector<32x1xf32>
    %95 = arith.mulf %90, %90 : vector<32x256xf32>
    %cst_40 = arith.constant dense<0.000000e+00> : vector<32xf32>
    %96 = vector.multi_reduction <add>, %95, %cst_40 [1] : vector<32x256xf32> to vector<32xf32>
    %97 = vector.shape_cast %96 : vector<32xf32> to vector<32x1xf32>
    %cst_41 = arith.constant 5.000000e-03 : f32
    %98 = vector.broadcast %cst_41 : f32 to vector<32x1xf32>
    %99 = arith.mulf %97, %98 : vector<32x1xf32>
    %100 = arith.mulf %94, %94 : vector<32x1xf32>
    %101 = arith.subf %99, %100 : vector<32x1xf32>
    %102 = vector.broadcast %94 : vector<32x1xf32> to vector<32x256xf32>
    %103 = arith.subf %90, %102 : vector<32x256xf32>
    %cst_42 = arith.constant 9.99999974E-6 : f32
    %104 = vector.broadcast %cst_42 : f32 to vector<32x1xf32>
    %105 = arith.addf %101, %104 : vector<32x1xf32>
    %106 = math.rsqrt %105 : vector<32x1xf32>
    %107 = vector.broadcast %106 : vector<32x1xf32> to vector<32x256xf32>
    %108 = arith.mulf %103, %107 : vector<32x256xf32>
    %109 = vector.broadcast %0 : vector<1x256xf32> to vector<32x256xf32>
    %110 = arith.mulf %108, %109 : vector<32x256xf32>
    %111 = vector.broadcast %1 : vector<1x256xf32> to vector<32x256xf32>
    %112 = arith.addf %110, %111 : vector<32x256xf32>
    %cst_43 = arith.constant 2.000000e+01 : f32
    %113 = vector.broadcast %cst_43 : f32 to vector<32x256xf32>
    %114 = arith.minimumf %112, %113 : vector<32x256xf32>
    %115 = math.exp %114 : vector<32x256xf32>
    %cst_44 = arith.constant 2.000000e+00 : f32
    %116 = vector.broadcast %cst_44 : f32 to vector<32x256xf32>
    %117 = arith.addf %115, %116 : vector<32x256xf32>
    %118 = arith.mulf %115, %117 : vector<32x256xf32>
    %cst_45 = arith.constant 2.000000e+00 : f32
    %119 = vector.broadcast %cst_45 : f32 to vector<32x256xf32>
    %120 = arith.addf %118, %119 : vector<32x256xf32>
    %121 = tpu.reciprocal %120 {approx = true} : vector<32x256xf32> -> vector<32x256xf32>
    %122 = arith.mulf %118, %121 : vector<32x256xf32>
    %123 = arith.mulf %112, %122 : vector<32x256xf32>
    %124 = arith.truncf %123 : vector<32x256xf32> to vector<32x256xbf16>
    %c2 = arith.constant 2 : index
    %c0_46 = arith.constant 0 : index
    %c0_47 = arith.constant 0 : index
    %125 = vector.load %arg4[%c2, %c0_46, %c0_47] : memref<6x256x256xbf16, #tpu.memory_space<vmem>>, vector<1x256x256xbf16>
    %126 = vector.shape_cast %125 : vector<1x256x256xbf16> to vector<256x256xbf16>
    %cst_48 = arith.constant dense<0.000000e+00> : vector<32x256xf32>
    %127 = tpu.matmul %124, %126, %cst_48 {dimension_numbers = #tpu.dot_dimension_numbers<[1], [0], [0], [1], [0, 0, 1, 1], [], []>} : vector<32x256xbf16>, vector<256x256xbf16>, vector<32x256xf32> -> vector<32x256xf32>
    %c2_49 = arith.constant 2 : index
    %c0_50 = arith.constant 0 : index
    %c0_51 = arith.constant 0 : index
    %128 = vector.load %arg5[%c2_49, %c0_50, %c0_51] : memref<6x1x256xf32, #tpu.memory_space<vmem>>, vector<1x1x256xf32>
    %129 = vector.shape_cast %128 : vector<1x1x256xf32> to vector<1x256xf32>
    %130 = vector.broadcast %129 : vector<1x256xf32> to vector<32x256xf32>
    %131 = arith.addf %127, %130 : vector<32x256xf32>
    %cst_52 = arith.constant dense<0.000000e+00> : vector<32xf32>
    %132 = vector.multi_reduction <add>, %131, %cst_52 [1] : vector<32x256xf32> to vector<32xf32>
    %133 = vector.shape_cast %132 : vector<32xf32> to vector<32x1xf32>
    %cst_53 = arith.constant 5.000000e-03 : f32
    %134 = vector.broadcast %cst_53 : f32 to vector<32x1xf32>
    %135 = arith.mulf %133, %134 : vector<32x1xf32>
    %136 = arith.mulf %131, %131 : vector<32x256xf32>
    %cst_54 = arith.constant dense<0.000000e+00> : vector<32xf32>
    %137 = vector.multi_reduction <add>, %136, %cst_54 [1] : vector<32x256xf32> to vector<32xf32>
    %138 = vector.shape_cast %137 : vector<32xf32> to vector<32x1xf32>
    %cst_55 = arith.constant 5.000000e-03 : f32
    %139 = vector.broadcast %cst_55 : f32 to vector<32x1xf32>
    %140 = arith.mulf %138, %139 : vector<32x1xf32>
    %141 = arith.mulf %135, %135 : vector<32x1xf32>
    %142 = arith.subf %140, %141 : vector<32x1xf32>
    %143 = vector.broadcast %135 : vector<32x1xf32> to vector<32x256xf32>
    %144 = arith.subf %131, %143 : vector<32x256xf32>
    %cst_56 = arith.constant 9.99999974E-6 : f32
    %145 = vector.broadcast %cst_56 : f32 to vector<32x1xf32>
    %146 = arith.addf %142, %145 : vector<32x1xf32>
    %147 = math.rsqrt %146 : vector<32x1xf32>
    %148 = vector.broadcast %147 : vector<32x1xf32> to vector<32x256xf32>
    %149 = arith.mulf %144, %148 : vector<32x256xf32>
    %150 = vector.broadcast %0 : vector<1x256xf32> to vector<32x256xf32>
    %151 = arith.mulf %149, %150 : vector<32x256xf32>
    %152 = vector.broadcast %1 : vector<1x256xf32> to vector<32x256xf32>
    %153 = arith.addf %151, %152 : vector<32x256xf32>
    %cst_57 = arith.constant 2.000000e+01 : f32
    %154 = vector.broadcast %cst_57 : f32 to vector<32x256xf32>
    %155 = arith.minimumf %153, %154 : vector<32x256xf32>
    %156 = math.exp %155 : vector<32x256xf32>
    %cst_58 = arith.constant 2.000000e+00 : f32
    %157 = vector.broadcast %cst_58 : f32 to vector<32x256xf32>
    %158 = arith.addf %156, %157 : vector<32x256xf32>
    %159 = arith.mulf %156, %158 : vector<32x256xf32>
    %cst_59 = arith.constant 2.000000e+00 : f32
    %160 = vector.broadcast %cst_59 : f32 to vector<32x256xf32>
    %161 = arith.addf %159, %160 : vector<32x256xf32>
    %162 = tpu.reciprocal %161 {approx = true} : vector<32x256xf32> -> vector<32x256xf32>
    %163 = arith.mulf %159, %162 : vector<32x256xf32>
    %164 = arith.mulf %153, %163 : vector<32x256xf32>
    %165 = arith.truncf %164 : vector<32x256xf32> to vector<32x256xbf16>
    %c3 = arith.constant 3 : index
    %c0_60 = arith.constant 0 : index
    %c0_61 = arith.constant 0 : index
    %166 = vector.load %arg4[%c3, %c0_60, %c0_61] : memref<6x256x256xbf16, #tpu.memory_space<vmem>>, vector<1x256x256xbf16>
    %167 = vector.shape_cast %166 : vector<1x256x256xbf16> to vector<256x256xbf16>
    %cst_62 = arith.constant dense<0.000000e+00> : vector<32x256xf32>
    %168 = tpu.matmul %165, %167, %cst_62 {dimension_numbers = #tpu.dot_dimension_numbers<[1], [0], [0], [1], [0, 0, 1, 1], [], []>} : vector<32x256xbf16>, vector<256x256xbf16>, vector<32x256xf32> -> vector<32x256xf32>
    %c3_63 = arith.constant 3 : index
    %c0_64 = arith.constant 0 : index
    %c0_65 = arith.constant 0 : index
    %169 = vector.load %arg5[%c3_63, %c0_64, %c0_65] : memref<6x1x256xf32, #tpu.memory_space<vmem>>, vector<1x1x256xf32>
    %170 = vector.shape_cast %169 : vector<1x1x256xf32> to vector<1x256xf32>
    %171 = vector.broadcast %170 : vector<1x256xf32> to vector<32x256xf32>
    %172 = arith.addf %168, %171 : vector<32x256xf32>
    %cst_66 = arith.constant dense<0.000000e+00> : vector<32xf32>
    %173 = vector.multi_reduction <add>, %172, %cst_66 [1] : vector<32x256xf32> to vector<32xf32>
    %174 = vector.shape_cast %173 : vector<32xf32> to vector<32x1xf32>
    %cst_67 = arith.constant 5.000000e-03 : f32
    %175 = vector.broadcast %cst_67 : f32 to vector<32x1xf32>
    %176 = arith.mulf %174, %175 : vector<32x1xf32>
    %177 = arith.mulf %172, %172 : vector<32x256xf32>
    %cst_68 = arith.constant dense<0.000000e+00> : vector<32xf32>
    %178 = vector.multi_reduction <add>, %177, %cst_68 [1] : vector<32x256xf32> to vector<32xf32>
    %179 = vector.shape_cast %178 : vector<32xf32> to vector<32x1xf32>
    %cst_69 = arith.constant 5.000000e-03 : f32
    %180 = vector.broadcast %cst_69 : f32 to vector<32x1xf32>
    %181 = arith.mulf %179, %180 : vector<32x1xf32>
    %182 = arith.mulf %176, %176 : vector<32x1xf32>
    %183 = arith.subf %181, %182 : vector<32x1xf32>
    %184 = vector.broadcast %176 : vector<32x1xf32> to vector<32x256xf32>
    %185 = arith.subf %172, %184 : vector<32x256xf32>
    %cst_70 = arith.constant 9.99999974E-6 : f32
    %186 = vector.broadcast %cst_70 : f32 to vector<32x1xf32>
    %187 = arith.addf %183, %186 : vector<32x1xf32>
    %188 = math.rsqrt %187 : vector<32x1xf32>
    %189 = vector.broadcast %188 : vector<32x1xf32> to vector<32x256xf32>
    %190 = arith.mulf %185, %189 : vector<32x256xf32>
    %191 = vector.broadcast %0 : vector<1x256xf32> to vector<32x256xf32>
    %192 = arith.mulf %190, %191 : vector<32x256xf32>
    %193 = vector.broadcast %1 : vector<1x256xf32> to vector<32x256xf32>
    %194 = arith.addf %192, %193 : vector<32x256xf32>
    %cst_71 = arith.constant 2.000000e+01 : f32
    %195 = vector.broadcast %cst_71 : f32 to vector<32x256xf32>
    %196 = arith.minimumf %194, %195 : vector<32x256xf32>
    %197 = math.exp %196 : vector<32x256xf32>
    %cst_72 = arith.constant 2.000000e+00 : f32
    %198 = vector.broadcast %cst_72 : f32 to vector<32x256xf32>
    %199 = arith.addf %197, %198 : vector<32x256xf32>
    %200 = arith.mulf %197, %199 : vector<32x256xf32>
    %cst_73 = arith.constant 2.000000e+00 : f32
    %201 = vector.broadcast %cst_73 : f32 to vector<32x256xf32>
    %202 = arith.addf %200, %201 : vector<32x256xf32>
    %203 = tpu.reciprocal %202 {approx = true} : vector<32x256xf32> -> vector<32x256xf32>
    %204 = arith.mulf %200, %203 : vector<32x256xf32>
    %205 = arith.mulf %194, %204 : vector<32x256xf32>
    %206 = arith.truncf %205 : vector<32x256xf32> to vector<32x256xbf16>
    %c4 = arith.constant 4 : index
    %c0_74 = arith.constant 0 : index
    %c0_75 = arith.constant 0 : index
    %207 = vector.load %arg4[%c4, %c0_74, %c0_75] : memref<6x256x256xbf16, #tpu.memory_space<vmem>>, vector<1x256x256xbf16>
    %208 = vector.shape_cast %207 : vector<1x256x256xbf16> to vector<256x256xbf16>
    %cst_76 = arith.constant dense<0.000000e+00> : vector<32x256xf32>
    %209 = tpu.matmul %206, %208, %cst_76 {dimension_numbers = #tpu.dot_dimension_numbers<[1], [0], [0], [1], [0, 0, 1, 1], [], []>} : vector<32x256xbf16>, vector<256x256xbf16>, vector<32x256xf32> -> vector<32x256xf32>
    %c4_77 = arith.constant 4 : index
    %c0_78 = arith.constant 0 : index
    %c0_79 = arith.constant 0 : index
    %210 = vector.load %arg5[%c4_77, %c0_78, %c0_79] : memref<6x1x256xf32, #tpu.memory_space<vmem>>, vector<1x1x256xf32>
    %211 = vector.shape_cast %210 : vector<1x1x256xf32> to vector<1x256xf32>
    %212 = vector.broadcast %211 : vector<1x256xf32> to vector<32x256xf32>
    %213 = arith.addf %209, %212 : vector<32x256xf32>
    %cst_80 = arith.constant dense<0.000000e+00> : vector<32xf32>
    %214 = vector.multi_reduction <add>, %213, %cst_80 [1] : vector<32x256xf32> to vector<32xf32>
    %215 = vector.shape_cast %214 : vector<32xf32> to vector<32x1xf32>
    %cst_81 = arith.constant 5.000000e-03 : f32
    %216 = vector.broadcast %cst_81 : f32 to vector<32x1xf32>
    %217 = arith.mulf %215, %216 : vector<32x1xf32>
    %218 = arith.mulf %213, %213 : vector<32x256xf32>
    %cst_82 = arith.constant dense<0.000000e+00> : vector<32xf32>
    %219 = vector.multi_reduction <add>, %218, %cst_82 [1] : vector<32x256xf32> to vector<32xf32>
    %220 = vector.shape_cast %219 : vector<32xf32> to vector<32x1xf32>
    %cst_83 = arith.constant 5.000000e-03 : f32
    %221 = vector.broadcast %cst_83 : f32 to vector<32x1xf32>
    %222 = arith.mulf %220, %221 : vector<32x1xf32>
    %223 = arith.mulf %217, %217 : vector<32x1xf32>
    %224 = arith.subf %222, %223 : vector<32x1xf32>
    %225 = vector.broadcast %217 : vector<32x1xf32> to vector<32x256xf32>
    %226 = arith.subf %213, %225 : vector<32x256xf32>
    %cst_84 = arith.constant 9.99999974E-6 : f32
    %227 = vector.broadcast %cst_84 : f32 to vector<32x1xf32>
    %228 = arith.addf %224, %227 : vector<32x1xf32>
    %229 = math.rsqrt %228 : vector<32x1xf32>
    %230 = vector.broadcast %229 : vector<32x1xf32> to vector<32x256xf32>
    %231 = arith.mulf %226, %230 : vector<32x256xf32>
    %232 = vector.broadcast %0 : vector<1x256xf32> to vector<32x256xf32>
    %233 = arith.mulf %231, %232 : vector<32x256xf32>
    %234 = vector.broadcast %1 : vector<1x256xf32> to vector<32x256xf32>
    %235 = arith.addf %233, %234 : vector<32x256xf32>
    %cst_85 = arith.constant 2.000000e+01 : f32
    %236 = vector.broadcast %cst_85 : f32 to vector<32x256xf32>
    %237 = arith.minimumf %235, %236 : vector<32x256xf32>
    %238 = math.exp %237 : vector<32x256xf32>
    %cst_86 = arith.constant 2.000000e+00 : f32
    %239 = vector.broadcast %cst_86 : f32 to vector<32x256xf32>
    %240 = arith.addf %238, %239 : vector<32x256xf32>
    %241 = arith.mulf %238, %240 : vector<32x256xf32>
    %cst_87 = arith.constant 2.000000e+00 : f32
    %242 = vector.broadcast %cst_87 : f32 to vector<32x256xf32>
    %243 = arith.addf %241, %242 : vector<32x256xf32>
    %244 = tpu.reciprocal %243 {approx = true} : vector<32x256xf32> -> vector<32x256xf32>
    %245 = arith.mulf %241, %244 : vector<32x256xf32>
    %246 = arith.mulf %235, %245 : vector<32x256xf32>
    %247 = arith.truncf %246 : vector<32x256xf32> to vector<32x256xbf16>
    %c5 = arith.constant 5 : index
    %c0_88 = arith.constant 0 : index
    %c0_89 = arith.constant 0 : index
    %248 = vector.load %arg4[%c5, %c0_88, %c0_89] : memref<6x256x256xbf16, #tpu.memory_space<vmem>>, vector<1x256x256xbf16>
    %249 = vector.shape_cast %248 : vector<1x256x256xbf16> to vector<256x256xbf16>
    %cst_90 = arith.constant dense<0.000000e+00> : vector<32x256xf32>
    %250 = tpu.matmul %247, %249, %cst_90 {dimension_numbers = #tpu.dot_dimension_numbers<[1], [0], [0], [1], [0, 0, 1, 1], [], []>} : vector<32x256xbf16>, vector<256x256xbf16>, vector<32x256xf32> -> vector<32x256xf32>
    %c5_91 = arith.constant 5 : index
    %c0_92 = arith.constant 0 : index
    %c0_93 = arith.constant 0 : index
    %251 = vector.load %arg5[%c5_91, %c0_92, %c0_93] : memref<6x1x256xf32, #tpu.memory_space<vmem>>, vector<1x1x256xf32>
    %252 = vector.shape_cast %251 : vector<1x1x256xf32> to vector<1x256xf32>
    %253 = vector.broadcast %252 : vector<1x256xf32> to vector<32x256xf32>
    %254 = arith.addf %250, %253 : vector<32x256xf32>
    %cst_94 = arith.constant dense<0.000000e+00> : vector<32xf32>
    %255 = vector.multi_reduction <add>, %254, %cst_94 [1] : vector<32x256xf32> to vector<32xf32>
    %256 = vector.shape_cast %255 : vector<32xf32> to vector<32x1xf32>
    %cst_95 = arith.constant 5.000000e-03 : f32
    %257 = vector.broadcast %cst_95 : f32 to vector<32x1xf32>
    %258 = arith.mulf %256, %257 : vector<32x1xf32>
    %259 = arith.mulf %254, %254 : vector<32x256xf32>
    %cst_96 = arith.constant dense<0.000000e+00> : vector<32xf32>
    %260 = vector.multi_reduction <add>, %259, %cst_96 [1] : vector<32x256xf32> to vector<32xf32>
    %261 = vector.shape_cast %260 : vector<32xf32> to vector<32x1xf32>
    %cst_97 = arith.constant 5.000000e-03 : f32
    %262 = vector.broadcast %cst_97 : f32 to vector<32x1xf32>
    %263 = arith.mulf %261, %262 : vector<32x1xf32>
    %264 = arith.mulf %258, %258 : vector<32x1xf32>
    %265 = arith.subf %263, %264 : vector<32x1xf32>
    %266 = vector.broadcast %258 : vector<32x1xf32> to vector<32x256xf32>
    %267 = arith.subf %254, %266 : vector<32x256xf32>
    %cst_98 = arith.constant 9.99999974E-6 : f32
    %268 = vector.broadcast %cst_98 : f32 to vector<32x1xf32>
    %269 = arith.addf %265, %268 : vector<32x1xf32>
    %270 = math.rsqrt %269 : vector<32x1xf32>
    %271 = vector.broadcast %270 : vector<32x1xf32> to vector<32x256xf32>
    %272 = arith.mulf %267, %271 : vector<32x256xf32>
    %273 = vector.broadcast %0 : vector<1x256xf32> to vector<32x256xf32>
    %274 = arith.mulf %272, %273 : vector<32x256xf32>
    %275 = vector.broadcast %1 : vector<1x256xf32> to vector<32x256xf32>
    %276 = arith.addf %274, %275 : vector<32x256xf32>
    %cst_99 = arith.constant 2.000000e+01 : f32
    %277 = vector.broadcast %cst_99 : f32 to vector<32x256xf32>
    %278 = arith.minimumf %276, %277 : vector<32x256xf32>
    %279 = math.exp %278 : vector<32x256xf32>
    %cst_100 = arith.constant 2.000000e+00 : f32
    %280 = vector.broadcast %cst_100 : f32 to vector<32x256xf32>
    %281 = arith.addf %279, %280 : vector<32x256xf32>
    %282 = arith.mulf %279, %281 : vector<32x256xf32>
    %cst_101 = arith.constant 2.000000e+00 : f32
    %283 = vector.broadcast %cst_101 : f32 to vector<32x256xf32>
    %284 = arith.addf %282, %283 : vector<32x256xf32>
    %285 = tpu.reciprocal %284 {approx = true} : vector<32x256xf32> -> vector<32x256xf32>
    %286 = arith.mulf %282, %285 : vector<32x256xf32>
    %287 = arith.mulf %276, %286 : vector<32x256xf32>
    %c0_102 = arith.constant 0 : index
    %c0_103 = arith.constant 0 : index
    %288 = vector.load %arg8[%c0_102, %c0_103] : memref<1x256xf32, #tpu.memory_space<vmem>>, vector<1x256xf32>
    %289 = vector.broadcast %288 : vector<1x256xf32> to vector<32x256xf32>
    %290 = arith.mulf %287, %289 : vector<32x256xf32>
    %cst_104 = arith.constant dense<0.000000e+00> : vector<32xf32>
    %291 = vector.multi_reduction <add>, %290, %cst_104 [1] : vector<32x256xf32> to vector<32xf32>
    %292 = vector.shape_cast %291 : vector<32xf32> to vector<32x1xf32>
    %c0_105 = arith.constant 0 : index
    %c0_106 = arith.constant 0 : index
    %293 = vector.load %arg9[%c0_105, %c0_106] : memref<1x1xf32, #tpu.memory_space<vmem>>, vector<1x1xf32>
    %294 = vector.broadcast %293 : vector<1x1xf32> to vector<32x1xf32>
    %295 = arith.addf %292, %294 : vector<32x1xf32>
    %cst_107 = arith.constant 0.000000e+00 : f32
    %296 = vector.broadcast %cst_107 : f32 to vector<32x1xf32>
    %297 = arith.maximumf %295, %296 : vector<32x1xf32>
    %298 = math.absf %295 : vector<32x1xf32>
    %cst_108 = arith.constant 0.000000e+00 : f32
    %299 = vector.broadcast %cst_108 : f32 to vector<32x1xf32>
    %300 = arith.subf %299, %298 : vector<32x1xf32>
    %301 = math.exp %300 : vector<32x1xf32>
    %302 = math.log1p %301 : vector<32x1xf32>
    %303 = arith.addf %297, %302 : vector<32x1xf32>
    %c0_109 = arith.constant 0 : index
    %c0_110 = arith.constant 0 : index
    %304 = vector.load %arg10[%c0_109, %c0_110] : memref<32x1xf32, #tpu.memory_space<vmem>>, vector<32x1xf32>
    tpu.vector_store %arg10[%c0_109, %c0_110], %303 {strides = array<i32>} : memref<32x1xf32, #tpu.memory_space<vmem>>, vector<32x1xf32>,
    return
  }
  func.func @transform_0(%arg0: i32) -> (i32, i32) {
    %c0_i32 = arith.constant 0 : i32
    %c0_i32_0 = arith.constant 0 : i32
    return %arg0, %c0_i32 : i32, i32
  }
  func.func @transform_1(%arg0: i32) -> (i32, i32) {
    %c0_i32 = arith.constant 0 : i32
    %c0_i32_0 = arith.constant 0 : i32
    %c0_i32_1 = arith.constant 0 : i32
    return %c0_i32, %c0_i32_0 : i32, i32
  }
  func.func @transform_2(%arg0: i32) -> (i32, i32) {
    %c0_i32 = arith.constant 0 : i32
    %c0_i32_0 = arith.constant 0 : i32
    %c0_i32_1 = arith.constant 0 : i32
    return %c0_i32, %c0_i32_0 : i32, i32
  }
  func.func @transform_3(%arg0: i32) -> (i32, i32, i32) {
    %c0_i32 = arith.constant 0 : i32
    %c0_i32_0 = arith.constant 0 : i32
    %c0_i32_1 = arith.constant 0 : i32
    %c0_i32_2 = arith.constant 0 : i32
    return %c0_i32, %c0_i32_0, %c0_i32_1 : i32, i32, i32
  }
  func.func @transform_4(%arg0: i32) -> (i32, i32, i32) {
    %c0_i32 = arith.constant 0 : i32
    %c0_i32_0 = arith.constant 0 : i32
    %c0_i32_1 = arith.constant 0 : i32
    %c0_i32_2 = arith.constant 0 : i32
    return %c0_i32, %c0_i32_0, %c0_i32_1 : i32, i32, i32
  }
  func.func @transform_5(%arg0: i32) -> (i32, i32) {
    %c0_i32 = arith.constant 0 : i32
    %c0_i32_0 = arith.constant 0 : i32
    %c0_i32_1 = arith.constant 0 : i32
    return %c0_i32, %c0_i32_0 : i32, i32
  }
  func.func @transform_6(%arg0: i32) -> (i32, i32) {
    %c0_i32 = arith.constant 0 : i32
    %c0_i32_0 = arith.constant 0 : i32
    %c0_i32_1 = arith.constant 0 : i32
    return %c0_i32, %c0_i32_0 : i32, i32
  }
  func.func @transform_7(%arg0: i32) -> (i32, i32) {
    %c0_i32 = arith.constant 0 : i32
    %c0_i32_0 = arith.constant 0 : i32
    %c0_i32_1 = arith.constant 0 : i32
    return %c0_i32, %c0_i32_0 : i32, i32
  }
  func.func @transform_8(%arg0: i32) -> (i32, i32) {
    %c0_i32 = arith.constant 0 : i32
    %c0_i32_0 = arith.constant 0 : i32
    %c0_i32_1 = arith.constant 0 : i32
    return %c0_i32, %c0_i32_0 : i32, i32
  }
  func.func @transform_9(%arg0: i32) -> (i32, i32) {
    %c0_i32 = arith.constant 0 : i32
    %c0_i32_0 = arith.constant 0 : i32
    return %arg0, %c0_i32 : i32, i32
  }
}

</mosaic_0001>

<llo_original>
// kernel: tpu_custom_call.1
$region0: #{tpu_custom_call.1}
  #allocation0 [shape = 'u32[]', space=smem, size = 0x4, offset = 0x4, fixed_abs, tag = 'smem constant byte address 0x4 - core index']
  #allocation1 [shape = 'u32[72,128]{1,0:T(1,128)}', space=vmem, size = 0x9000, scoped, tag = 'internal scratch']
  #allocation2 [shape = 'f32[1,1]{1,0:T(1,128)S(1)}', space=vmem, size = 0x200, scoped, tag = 'scoped memory for tpu_custom_call.1']
  %s0 = inlined_call_operand.vmem [shape: f32[64,16], index: 0, kind: input, shape index: {}]
  %s1 = inlined_call_operand.vmem [shape: bf16[16,256], index: 1, kind: input, shape index: {}]
  %s2 = inlined_call_operand.vmem [shape: f32[1,256], index: 2, kind: input, shape index: {}]
  %s3 = inlined_call_operand.hbm [shape: bf16[6,256,256], index: 3, kind: input, shape index: {}]
  %s4 = inlined_call_operand.vmem [shape: f32[6,1,256], index: 4, kind: input, shape index: {}]
  %s5 = inlined_call_operand.vmem [shape: f32[1,256], index: 5, kind: input, shape index: {}]
  %s6 = inlined_call_operand.vmem [shape: f32[1,256], index: 6, kind: input, shape index: {}]
  %s7 = inlined_call_operand.vmem [shape: f32[1,256], index: 7, kind: input, shape index: {}]
  %s8 = inlined_call_operand.<no memory space> [shape: f32[1,1], index: 8, kind: input, shape index: {}]
  %s9 = inlined_call_operand.vmem [shape: f32[64,1], index: 9, kind: output, shape index: {}]
  %s10 = sld [smem:[#allocation0]]
  $region73: #{tpu_custom_call.1} parent=0
    _
  %s12 = ssub.s32 1, %s10
  %s13 = scalar_select 0, %s12, %s10
  %v14 = vstv %s8
  %15 = vst [vmem:[#allocation2] sm:$0x1] %v14
  $region1: #{tpu_custom_call.1} parent=0
    #allocation3 [shape = 'u8[786432]{0}', space=vmem, size = 0xc0000, scoped, tag = 'input window, operand 3, single buffered']
    #allocation4 [shape = 's32[2]{0}', space=sflag, size = 0x8, scoped, tag = 'scoped memory for tpu_custom_call.1']
    %16 = vsyncpa [#allocation4], 0
    loop: start=0, step=1, limit=4
    $region2: #{tpu_custom_call.1} parent=1 // loop_pre_header
      _
    $region3: #{tpu_custom_call.1} parent=1 // loop_header
      %s18 = sphi 0, %s22
      %p19 = scmp.ge.s32.totalorder %s18, 4
      %s28 = sphi 0, %s30
      %s31 = sphi 0, %s28
      %s32 = sphi 0, %s31
      %s48 = sphi 0, %s32
      %s52 = sphi 0, %s52
      %s54 = sphi 0, %s52
      %s55 = sphi 0, %s54
      %s69 = sphi 0, %s55
      %s73 = sphi 0, %s73
      %s75 = sphi 0, %s73
      %s76 = sphi 0, %s75
      %s90 = sphi 0, %s76
      %s94 = sphi 0, %s94
      %s96 = sphi 0, %s94
      %s97 = sphi 0, %s96
      %s111 = sphi 0, %s97
      %s115 = sphi 0, %s115
      %s117 = sphi 0, %s115
      %s118 = sphi 0, %s117
      %s132 = sphi 0, %s118
      %s136 = sphi 0, %s136
      %s138 = sphi 0, %s136
      %s139 = sphi 0, %s138
      %s153 = sphi 0, %s139
      %s157 = sphi 0, %s157
      %s159 = sphi 0, %s157
      %s160 = sphi 0, %s159
      %s174 = sphi 0, %s160
      %s178 = sphi 0, %s178
      %s180 = sphi 0, %s178
      %s181 = sphi 0, %s180
      %s195 = sphi 0, %s181
      %s199 = sphi 0, %s199
      %s201 = sphi 0, %s199
      %s202 = sphi 0, %s201
      %s216 = sphi 0, %s202
      %s222 = sphi 0, %s224
      %s225 = sphi 0, %s222
      %s226 = sphi 0, %s225
      %s242 = sphi 0, %s226
    $region4: #{tpu_custom_call.1} parent=1 // loop_header_branch
      %21 = sbr.rel (%p19) target = $region8
    $region5: #{tpu_custom_call.1} parent=1 // loop_body
      %s23 = ssub.s32 %s18, 1
      %s24 = ssub.s32 %s18, 2
      %s25 = sadd.s32 %s18, 1
      %s26 = ssub.s32 %s18, %s25
      %p27 = scmp.eq.s32.totalorder %s26, 0
      %s29 = sadd.s32 %s28, 1
      %s30 = scalar_select %p27, %s28, %s29
      %p33 = pneg %p27
      %p34 = scmp.eq.s32.totalorder %s18, 1
      %p35 = por %p33, %p34
      %p36 = scmp.ne.s32.totalorder %s28, %s31
      %p37 = scmp.eq.s32.totalorder %s18, 0
      %p38 = por %p36, %p37
      %p39 = scmp.ne.s32.totalorder %s28, %s31
      %p40 = scmp.eq.s32.totalorder %s23, 1
      %p41 = por %p39, %p40
      %p42 = scmp.ne.s32.totalorder %s31, %s32
      %p43 = scmp.eq.s32.totalorder %s23, 0
      %p44 = por %p42, %p43
      %p45 = scmp.ne.s32.totalorder %s31, %s32
      %p46 = scmp.eq.s32.totalorder %s24, 1
      %p47 = por %p45, %p46
      %p49 = scmp.ne.s32.totalorder %s32, %s48
      %p50 = scmp.eq.s32.totalorder %s24, 0
      %p51 = por %p49, %p50
      %s53 = sadd.s32 %s52, 1
      %p56 = scmp.eq.s32.totalorder %s18, 1
      %p57 = scmp.ne.s32.totalorder %s52, %s54
      %p58 = scmp.eq.s32.totalorder %s18, 0
      %p59 = por %p57, %p58
      %p60 = scmp.ne.s32.totalorder %s52, %s54
      %p61 = scmp.eq.s32.totalorder %s23, 1
      %p62 = por %p60, %p61
      %p63 = scmp.ne.s32.totalorder %s54, %s55
      %p64 = scmp.eq.s32.totalorder %s23, 0
      %p65 = por %p63, %p64
      %p66 = scmp.ne.s32.totalorder %s54, %s55
      %p67 = scmp.eq.s32.totalorder %s24, 1
      %p68 = por %p66, %p67
      %p70 = scmp.ne.s32.totalorder %s55, %s69
      %p71 = scmp.eq.s32.totalorder %s24, 0
      %p72 = por %p70, %p71
      %s74 = sadd.s32 %s73, 1
      %p77 = scmp.eq.s32.totalorder %s18, 1
      %p78 = scmp.ne.s32.totalorder %s73, %s75
      %p79 = scmp.eq.s32.totalorder %s18, 0
      %p80 = por %p78, %p79
      %p81 = scmp.ne.s32.totalorder %s73, %s75
      %p82 = scmp.eq.s32.totalorder %s23, 1
      %p83 = por %p81, %p82
      %p84 = scmp.ne.s32.totalorder %s75, %s76
      %p85 = scmp.eq.s32.totalorder %s23, 0
      %p86 = por %p84, %p85
      %p87 = scmp.ne.s32.totalorder %s75, %s76
      %p88 = scmp.eq.s32.totalorder %s24, 1
      %p89 = por %p87, %p88
      %p91 = scmp.ne.s32.totalorder %s76, %s90
      %p92 = scmp.eq.s32.totalorder %s24, 0
      %p93 = por %p91, %p92
      %s95 = sadd.s32 %s94, 1
      %p98 = scmp.eq.s32.totalorder %s18, 1
      %p99 = scmp.ne.s32.totalorder %s94, %s96
      %p100 = scmp.eq.s32.totalorder %s18, 0
      %p101 = por %p99, %p100
      %p102 = scmp.ne.s32.totalorder %s94, %s96
      %p103 = scmp.eq.s32.totalorder %s23, 1
      %p104 = por %p102, %p103
      %p105 = scmp.ne.s32.totalorder %s96, %s97
      %p106 = scmp.eq.s32.totalorder %s23, 0
      %p107 = por %p105, %p106
      %p108 = scmp.ne.s32.totalorder %s96, %s97
      %p109 = scmp.eq.s32.totalorder %s24, 1
      %p110 = por %p108, %p109
      %p112 = scmp.ne.s32.totalorder %s97, %s111
      %p113 = scmp.eq.s32.totalorder %s24, 0
      %p114 = por %p112, %p113
      %s116 = sadd.s32 %s115, 1
      %p119 = scmp.eq.s32.totalorder %s18, 1
      %p120 = scmp.ne.s32.totalorder %s115, %s117
      %p121 = scmp.eq.s32.totalorder %s18, 0
      %p122 = por %p120, %p121
      %p123 = scmp.ne.s32.totalorder %s115, %s117
      %p124 = scmp.eq.s32.totalorder %s23, 1
      %p125 = por %p123, %p124
      %p126 = scmp.ne.s32.totalorder %s117, %s118
      %p127 = scmp.eq.s32.totalorder %s23, 0
      %p128 = por %p126, %p127
      %p129 = scmp.ne.s32.totalorder %s117, %s118
      %p130 = scmp.eq.s32.totalorder %s24, 1
      %p131 = por %p129, %p130
      %p133 = scmp.ne.s32.totalorder %s118, %s132
      %p134 = scmp.eq.s32.totalorder %s24, 0
      %p135 = por %p133, %p134
      %s137 = sadd.s32 %s136, 1
      %p140 = scmp.eq.s32.totalorder %s18, 1
      %p141 = scmp.ne.s32.totalorder %s136, %s138
      %p142 = scmp.eq.s32.totalorder %s18, 0
      %p143 = por %p141, %p142
      %p144 = scmp.ne.s32.totalorder %s136, %s138
      %p145 = scmp.eq.s32.totalorder %s23, 1
      %p146 = por %p144, %p145
      %p147 = scmp.ne.s32.totalorder %s138, %s139
      %p148 = scmp.eq.s32.totalorder %s23, 0
      %p149 = por %p147, %p148
      %p150 = scmp.ne.s32.totalorder %s138, %s139
      %p151 = scmp.eq.s32.totalorder %s24, 1
      %p152 = por %p150, %p151
      %p154 = scmp.ne.s32.totalorder %s139, %s153
      %p155 = scmp.eq.s32.totalorder %s24, 0
      %p156 = por %p154, %p155
      %s158 = sadd.s32 %s157, 1
      %p161 = scmp.eq.s32.totalorder %s18, 1
      %p162 = scmp.ne.s32.totalorder %s157, %s159
      %p163 = scmp.eq.s32.totalorder %s18, 0
      %p164 = por %p162, %p163
      %p165 = scmp.ne.s32.totalorder %s157, %s159
      %p166 = scmp.eq.s32.totalorder %s23, 1
      %p167 = por %p165, %p166
      %p168 = scmp.ne.s32.totalorder %s159, %s160
      %p169 = scmp.eq.s32.totalorder %s23, 0
      %p170 = por %p168, %p169
      %p171 = scmp.ne.s32.totalorder %s159, %s160
      %p172 = scmp.eq.s32.totalorder %s24, 1
      %p173 = por %p171, %p172
      %p175 = scmp.ne.s32.totalorder %s160, %s174
      %p176 = scmp.eq.s32.totalorder %s24, 0
      %p177 = por %p175, %p176
      %s179 = sadd.s32 %s178, 1
      %p182 = scmp.eq.s32.totalorder %s18, 1
      %p183 = scmp.ne.s32.totalorder %s178, %s180
      %p184 = scmp.eq.s32.totalorder %s18, 0
      %p185 = por %p183, %p184
      %p186 = scmp.ne.s32.totalorder %s178, %s180
      %p187 = scmp.eq.s32.totalorder %s23, 1
      %p188 = por %p186, %p187
      %p189 = scmp.ne.s32.totalorder %s180, %s181
      %p190 = scmp.eq.s32.totalorder %s23, 0
      %p191 = por %p189, %p190
      %p192 = scmp.ne.s32.totalorder %s180, %s181
      %p193 = scmp.eq.s32.totalorder %s24, 1
      %p194 = por %p192, %p193
      %p196 = scmp.ne.s32.totalorder %s181, %s195
      %p197 = scmp.eq.s32.totalorder %s24, 0
      %p198 = por %p196, %p197
      %s200 = sadd.s32 %s199, 1
      %p203 = scmp.eq.s32.totalorder %s18, 1
      %p204 = scmp.ne.s32.totalorder %s199, %s201
      %p205 = scmp.eq.s32.totalorder %s18, 0
      %p206 = por %p204, %p205
      %p207 = scmp.ne.s32.totalorder %s199, %s201
      %p208 = scmp.eq.s32.totalorder %s23, 1
      %p209 = por %p207, %p208
      %p210 = scmp.ne.s32.totalorder %s201, %s202
      %p211 = scmp.eq.s32.totalorder %s23, 0
      %p212 = por %p210, %p211
      %p213 = scmp.ne.s32.totalorder %s201, %s202
      %p214 = scmp.eq.s32.totalorder %s24, 1
      %p215 = por %p213, %p214
      %p217 = scmp.ne.s32.totalorder %s202, %s216
      %p218 = scmp.eq.s32.totalorder %s24, 0
      %p219 = por %p217, %p218
      %s220 = ssub.s32 %s18, %s25
      %p221 = scmp.eq.s32.totalorder %s220, 0
      %s223 = sadd.s32 %s222, 1
      %s224 = scalar_select %p221, %s222, %s223
      %p227 = pneg %p221
      %p228 = scmp.eq.s32.totalorder %s18, 1
      %p229 = por %p227, %p228
      %p230 = scmp.ne.s32.totalorder %s222, %s225
      %p231 = scmp.eq.s32.totalorder %s18, 0
      %p232 = por %p230, %p231
      %p233 = scmp.ne.s32.totalorder %s222, %s225
      %p234 = scmp.eq.s32.totalorder %s23, 1
      %p235 = por %p233, %p234
      %p236 = scmp.ne.s32.totalorder %s225, %s226
      %p237 = scmp.eq.s32.totalorder %s23, 0
      %p238 = por %p236, %p237
      %p239 = scmp.ne.s32.totalorder %s225, %s226
      %p240 = scmp.eq.s32.totalorder %s24, 1
      %p241 = por %p239, %p240
      %p243 = scmp.ne.s32.totalorder %s226, %s242
      %p244 = scmp.eq.s32.totalorder %s24, 0
      %p245 = por %p243, %p244
      %p246 = scmp.le.s32.totalorder 1, %s18
      %p247 = scmp.lt.s32.totalorder %s18, 3
      %p248 = pnand %p246, %p247
      %p249 = pneg %p248
      // Predicated region
      $region9: #{tpu_custom_call.1} parent=5 // pred_check
        _
      $region10: #{tpu_custom_call.1} parent=5 // pred_check_branch
        %251 = sbr.rel (%p248) target = $region12
      $region11: #{tpu_custom_call.1} parent=5 // pred_region
        %s252 = ssub.s32 %s18, 1
        // Predicated region
        $region13: #{tpu_custom_call.1} parent=11 // pred_check
          %p253 = pneg %p65
        $region14: #{tpu_custom_call.1} parent=11 // pred_check_branch
          %255 = sbr.rel (%p253) target = $region16
        $region15: #{tpu_custom_call.1} parent=11 // pred_region
          _
        $region16: #{tpu_custom_call.1} parent=11 // pred_fallthru
          _
        // Predicated region
        $region17: #{tpu_custom_call.1} parent=11 // pred_check
          %p256 = pneg %p86
        $region18: #{tpu_custom_call.1} parent=11 // pred_check_branch
          %258 = sbr.rel (%p256) target = $region20
        $region19: #{tpu_custom_call.1} parent=11 // pred_region
          _
        $region20: #{tpu_custom_call.1} parent=11 // pred_fallthru
          _
        // Predicated region
        $region21: #{tpu_custom_call.1} parent=11 // pred_check
          %p259 = pneg %p107
        $region22: #{tpu_custom_call.1} parent=11 // pred_check_branch
          %261 = sbr.rel (%p259) target = $region24
        $region23: #{tpu_custom_call.1} parent=11 // pred_region
          %263 = vsyncadd [#allocation4], 0
          %s264 = sshll.u32 %s3, 4
          %s265 = int_to_ptr.hbm [resolvable:$true] %s264
          %s266 = sshll.u32 [#allocation3], 4
          %s267 = int_to_ptr.vmem [resolvable:$true] %s266
          %272 = dma.hbm_to_vmem [thread:$0]  %s265, 24576, %s267, [#allocation4], 128, 128, 8
        $region24: #{tpu_custom_call.1} parent=11 // pred_fallthru
          _
        // Predicated region
        $region25: #{tpu_custom_call.1} parent=11 // pred_check
          %p273 = pneg %p128
        $region26: #{tpu_custom_call.1} parent=11 // pred_check_branch
          %275 = sbr.rel (%p273) target = $region28
        $region27: #{tpu_custom_call.1} parent=11 // pred_region
          _
        $region28: #{tpu_custom_call.1} parent=11 // pred_fallthru
          _
        // Predicated region
        $region29: #{tpu_custom_call.1} parent=11 // pred_check
          %p276 = pneg %p149
        $region30: #{tpu_custom_call.1} parent=11 // pred_check_branch
          %278 = sbr.rel (%p276) target = $region32
        $region31: #{tpu_custom_call.1} parent=11 // pred_region
          _
        $region32: #{tpu_custom_call.1} parent=11 // pred_fallthru
          _
        // Predicated region
        $region33: #{tpu_custom_call.1} parent=11 // pred_check
          %p279 = pneg %p170
        $region34: #{tpu_custom_call.1} parent=11 // pred_check_branch
          %281 = sbr.rel (%p279) target = $region36
        $region35: #{tpu_custom_call.1} parent=11 // pred_region
          _
        $region36: #{tpu_custom_call.1} parent=11 // pred_fallthru
          _
        // Predicated region
        $region37: #{tpu_custom_call.1} parent=11 // pred_check
          %p282 = pneg %p191
        $region38: #{tpu_custom_call.1} parent=11 // pred_check_branch
          %284 = sbr.rel (%p282) target = $region40
        $region39: #{tpu_custom_call.1} parent=11 // pred_region
          _
        $region40: #{tpu_custom_call.1} parent=11 // pred_fallthru
          _
        // Predicated region
        $region41: #{tpu_custom_call.1} parent=11 // pred_check
          %p285 = pneg %p212
        $region42: #{tpu_custom_call.1} parent=11 // pred_check_branch
          %287 = sbr.rel (%p285) target = $region44
        $region43: #{tpu_custom_call.1} parent=11 // pred_region
          _
        $region44: #{tpu_custom_call.1} parent=11 // pred_fallthru
          _
      $region12: #{tpu_custom_call.1} parent=5 // pred_fallthru
        _
      %p288 = scmp.lt.s32.totalorder %s18, 2
      // Predicated region
      $region45: #{tpu_custom_call.1} parent=5 // pred_check
        %p289 = pneg %p288
      $region46: #{tpu_custom_call.1} parent=5 // pred_check_branch
        %291 = sbr.rel (%p289) target = $region48
      $region47: #{tpu_custom_call.1} parent=5 // pred_region
        // Predicated region
        $region49: #{tpu_custom_call.1} parent=47 // pred_check
          %p292 = pneg %p38
        $region50: #{tpu_custom_call.1} parent=47 // pred_check_branch
          %294 = sbr.rel (%p292) target = $region52
        $region51: #{tpu_custom_call.1} parent=47 // pred_region
          %s295 = smul.u32 4, %s18
          %p296 = scmp.lt.s32.totalorder %s295, 7
          %s297 = scalar_select %p296, %s295, 7
          %s298 = smul.addr %s297, 8
          %s299 = scalar_lea.vmem %s0, %s298
          %s300 = smul.u32 4, %s18
        $region52: #{tpu_custom_call.1} parent=47 // pred_fallthru
          _
      $region48: #{tpu_custom_call.1} parent=5 // pred_fallthru
        _
      %p301 = scmp.le.s32.totalorder 1, %s18
      %p302 = scmp.lt.s32.totalorder %s18, 3
      %p303 = pnand %p301, %p302
      %p304 = pneg %p303
      // Predicated region
      $region53: #{tpu_custom_call.1} parent=5 // pred_check
        _
      $region54: #{tpu_custom_call.1} parent=5 // pred_check_branch
        %306 = sbr.rel (%p303) target = $region56
      $region55: #{tpu_custom_call.1} parent=5 // pred_region
        %s307 = ssub.s32 %s18, 1
        // Predicated region
        $region57: #{tpu_custom_call.1} parent=55 // pred_check
          %p308 = pneg %p107
        $region58: #{tpu_custom_call.1} parent=55 // pred_check_branch
          %310 = sbr.rel (%p308) target = $region60
        $region59: #{tpu_custom_call.1} parent=55 // pred_region
          %312 = dma.done [#allocation4], 24576
        $region60: #{tpu_custom_call.1} parent=55 // pred_fallthru
          _
        %s313 = smul.u32 4, %s23
        %p314 = scmp.lt.s32.totalorder %s313, 7
        %s315 = scalar_select %p314, %s313, 7
        %s316 = smul.addr %s315, 8
        %s317 = scalar_lea.vmem %s0, %s316
        %p318 = pneg %p44
        %p319 = pneg %p41
        %p320 = pneg %p65
        %p321 = pneg %p62
        %p322 = pneg %p86
        %p323 = pneg %p83
        %p324 = pneg %p107
        %p325 = pneg %p104
        %p326 = pneg %p128
        %p327 = pneg %p125
        %p328 = pneg %p149
        %p329 = pneg %p146
        %p330 = pneg %p170
        %p331 = pneg %p167
        %p332 = pneg %p191
        %p333 = pneg %p188
        %p334 = pneg %p212
        %p335 = pneg %p209
        %p336 = pneg %p238
        %p337 = pneg %p235
        %s338 = smul.u32 4, %s23
        %p339 = scmp.lt.s32.totalorder %s338, 7
        %s340 = scalar_select %p339, %s338, 7
        %s341 = smul.addr %s340, 8
        %s342 = scalar_lea.vmem %s9, %s341
        %s343 = smul.u32 4, %s23
        %p344 = scmp.lt.s32.totalorder %s343, 7
        %s345 = scalar_select %p344, %s343, 7
        %s346 = smul.addr %s345, 8
        %s347 = scalar_lea.vmem %s0, %s346
        %s348 = smul.u32 4, %s23
        %s349 = smul.u32 4, %s23
        %p350 = scmp.lt.s32.totalorder %s349, 7
        %s351 = scalar_select %p350, %s349, 7
        %s352 = smul.addr %s351, 8
        %s353 = scalar_lea.vmem %s9, %s352
        %s354 = smul.u32 4, %s23
        %v356 = vld [vmem:[%s5] sm:$0x3]
        %v357 = vld [vmem:[%s6] sm:$0x3]
        %v358 = vld [vmem:[%s347] sm:$0xff]
        %v359 = vld [vmem:[%s347 + $0x8] sm:$0xff]
        %v360 = vld [vmem:[%s347 + $0x10] sm:$0xff]
        %v361 = vld [vmem:[%s347 + $0x18] sm:$0xff]
        %v362 = vpack.c.bf16 %v359, %v358
        %v363 = vpack.c.bf16 %v361, %v360
        %v364 = vld [vmem:[%s1] sm:$0xff]
        %v365 = vld [vmem:[%s1 + $0x8] sm:$0xff]
        %v366 = vld [vmem:[%s2] sm:$0x3]
        %v368 = vperm.slane %v366, 0
        %v369 = vperm.slane %v366, 1
        %v374 = vunpack.c.l.b16 %v364
        %v375 = vunpack.c.h.b16 %v364
        %v376 = vunpack.c.l.b16 %v365
        %v377 = vunpack.c.h.b16 %v365
        %v378 = vpack.c.b16 %v376, %v374
        %v379 = vpack.c.b16 %v377, %v375
        %vm382 = vcmask 130048
        %v384 = vsel %vm382, %v362, 0
        %v387 = vsel %vm382, %v363, 0
        %389 = vmatpush.bf16.msra.mxu0 0
        %390 = vmatpush.bf16.msra.mxu0 0
        %391 = vmatpush.bf16.msra.mxu0 0
        %392 = vmatpush.bf16.msra.mxu0 0
        %393 = vmatpush.bf16.msra.mxu0 0
        %394 = vmatpush.bf16.msra.mxu0 0
        %395 = vmatpush.bf16.msra.mxu0 0
        %396 = vmatpush.bf16.msra.mxu0 %v378
        %397 = vmatmul.bf16.gmra.mxu0 %v384
        %v398 = vpop.f32.mrf.mxu0
        %v399 = vadd.f32 %v368, %v398
        %v400 = vpop.f32.mrf.mxu0
        %v401 = vadd.f32 %v368, %v400
        %402 = vmatmul.bf16.gmra.mxu0 %v387
        %v403 = vpop.f32.mrf.mxu0
        %v404 = vadd.f32 %v368, %v403
        %v405 = vpop.f32.mrf.mxu0
        %v406 = vadd.f32 %v368, %v405
        %407 = vdwg.mxu0
        %408 = vmatpush.bf16.msra.mxu0 0
        %409 = vmatpush.bf16.msra.mxu0 0
        %410 = vmatpush.bf16.msra.mxu0 0
        %411 = vmatpush.bf16.msra.mxu0 0
        %412 = vmatpush.bf16.msra.mxu0 0
        %413 = vmatpush.bf16.msra.mxu0 0
        %414 = vmatpush.bf16.msra.mxu0 0
        %415 = vmatpush.bf16.msra.mxu0 %v379
        %416 = vmatmul.bf16.gmra.mxu0 %v384
        %v417 = vpop.f32.mrf.mxu0
        %v418 = vadd.f32 %v369, %v417
        %v419 = vpop.f32.mrf.mxu0
        %v420 = vadd.f32 %v369, %v419
        %421 = vmatmul.bf16.gmra.mxu0 %v387
        %v422 = vpop.f32.mrf.mxu0
        %v423 = vadd.f32 %v369, %v422
        %v424 = vpop.f32.mrf.mxu0
        %v425 = vadd.f32 %v369, %v424
        %426 = vdwg.mxu0
        %v427 = vadd.f32 %v399, %v418
        %428 = vadd.xlane.f32.xlu0 %v427
        %v429 = vpop.xlane.xlu0 %428
        %v430 = vadd.f32 %v401, %v420
        %431 = vadd.xlane.f32.xlu0 %v430
        %v432 = vpop.xlane.xlu0 %431
        %v433 = vadd.f32 %v404, %v423
        %434 = vadd.xlane.f32.xlu0 %v433
        %v435 = vpop.xlane.xlu0 %434
        %v436 = vadd.f32 %v406, %v425
        %437 = vadd.xlane.f32.xlu0 %v436
        %v438 = vpop.xlane.xlu0 %437
        %v439 = vmul.f32 %v429, 0.005
        %v440 = vmul.f32 %v432, 0.005
        %v441 = vmul.f32 %v435, 0.005
        %v442 = vmul.f32 %v438, 0.005
        %v443 = vmul.f32 %v399, %v399
        %v444 = vmul.f32 %v418, %v418
        %v445 = vmul.f32 %v401, %v401
        %v446 = vmul.f32 %v420, %v420
        %v447 = vmul.f32 %v404, %v404
        %v448 = vmul.f32 %v423, %v423
        %v449 = vmul.f32 %v406, %v406
        %v450 = vmul.f32 %v425, %v425
        %v451 = vadd.f32 %v443, %v444
        %452 = vadd.xlane.f32.xlu0 %v451
        %v453 = vpop.xlane.xlu0 %452
        %v454 = vadd.f32 %v445, %v446
        %455 = vadd.xlane.f32.xlu0 %v454
        %v456 = vpop.xlane.xlu0 %455
        %v457 = vadd.f32 %v447, %v448
        %458 = vadd.xlane.f32.xlu0 %v457
        %v459 = vpop.xlane.xlu0 %458
        %v460 = vadd.f32 %v449, %v450
        %461 = vadd.xlane.f32.xlu0 %v460
        %v462 = vpop.xlane.xlu0 %461
        %v463 = vmul.f32 %v453, 0.005
        %v464 = vmul.f32 %v456, 0.005
        %v465 = vmul.f32 %v459, 0.005
        %v466 = vmul.f32 %v462, 0.005
        %v467 = vmul.f32 %v439, %v439
        %v468 = vmul.f32 %v440, %v440
        %v469 = vmul.f32 %v441, %v441
        %v470 = vmul.f32 %v442, %v442
        %v471 = vsub.f32 %v463, %v467
        %v472 = vsub.f32 %v464, %v468
        %v473 = vsub.f32 %v465, %v469
        %v474 = vsub.f32 %v466, %v470
        %v475 = vsub.f32 %v399, %v439
        %v476 = vsub.f32 %v418, %v439
        %v477 = vsub.f32 %v401, %v440
        %v478 = vsub.f32 %v420, %v440
        %v479 = vsub.f32 %v404, %v441
        %v480 = vsub.f32 %v423, %v441
        %v481 = vsub.f32 %v406, %v442
        %v482 = vsub.f32 %v425, %v442
        %v483 = vadd.f32 %v471, 1e-05
        %v484 = vadd.f32 %v472, 1e-05
        %v485 = vadd.f32 %v473, 1e-05
        %v486 = vadd.f32 %v474, 1e-05
        %v487 = vrsqrt.pop %v483
        %v488 = vmul.f32 %v487, %v483
        %v489 = vmul.f32 %v488, %v487
        %v490 = vmul.f32 0.5, %v489
        %v491 = vsub.f32 1.5, %v490
        %v492 = vmul.f32 %v487, %v491
        %vm493 = vweird.f32 %v483
        %vm494 = vweird.f32 %v487
        %vm495 = vmor %vm493, %vm494
        %v496 = vsel %vm495, %v487, %v492
        %v497 = vrsqrt.pop %v484
        %v498 = vmul.f32 %v497, %v484
        %v499 = vmul.f32 %v498, %v497
        %v500 = vmul.f32 0.5, %v499
        %v501 = vsub.f32 1.5, %v500
        %v502 = vmul.f32 %v497, %v501
        %vm503 = vweird.f32 %v484
        %vm504 = vweird.f32 %v497
        %vm505 = vmor %vm503, %vm504
        %v506 = vsel %vm505, %v497, %v502
        %v507 = vrsqrt.pop %v485
        %v508 = vmul.f32 %v507, %v485
        %v509 = vmul.f32 %v508, %v507
        %v510 = vmul.f32 0.5, %v509
        %v511 = vsub.f32 1.5, %v510
        %v512 = vmul.f32 %v507, %v511
        %vm513 = vweird.f32 %v485
        %vm514 = vweird.f32 %v507
        %vm515 = vmor %vm513, %vm514
        %v516 = vsel %vm515, %v507, %v512
        %v517 = vrsqrt.pop %v486
        %v518 = vmul.f32 %v517, %v486
        %v519 = vmul.f32 %v518, %v517
        %v520 = vmul.f32 0.5, %v519
        %v521 = vsub.f32 1.5, %v520
        %v522 = vmul.f32 %v517, %v521
        %vm523 = vweird.f32 %v486
        %vm524 = vweird.f32 %v517
        %vm525 = vmor %vm523, %vm524
        %v526 = vsel %vm525, %v517, %v522
        %v527 = vmul.f32 %v475, %v496
        %v528 = vmul.f32 %v476, %v496
        %v529 = vmul.f32 %v477, %v506
        %v530 = vmul.f32 %v478, %v506
        %v531 = vmul.f32 %v479, %v516
        %v532 = vmul.f32 %v480, %v516
        %v533 = vmul.f32 %v481, %v526
        %v534 = vmul.f32 %v482, %v526
        %v536 = vperm.slane %v356, 0
        %v537 = vperm.slane %v356, 1
        %v540 = vmul.f32 %v527, %v536
        %v541 = vmul.f32 %v528, %v537
        %v542 = vmul.f32 %v529, %v536
        %v543 = vmul.f32 %v530, %v537
        %v544 = vmul.f32 %v531, %v536
        %v545 = vmul.f32 %v532, %v537
        %v546 = vmul.f32 %v533, %v536
        %v547 = vmul.f32 %v534, %v537
        %v549 = vperm.slane %v357, 0
        %v550 = vperm.slane %v357, 1
        %v553 = vadd.f32 %v540, %v549
        %v554 = vadd.f32 %v541, %v550
        %v555 = vadd.f32 %v542, %v549
        %v556 = vadd.f32 %v543, %v550
        %v557 = vadd.f32 %v544, %v549
        %v558 = vadd.f32 %v545, %v550
        %v559 = vadd.f32 %v546, %v549
        %v560 = vadd.f32 %v547, %v550
        %v561 = vmin.f32 %v553, 20.0
        %v562 = vmin.f32 %v554, 20.0
        %v563 = vmin.f32 %v555, 20.0
        %v564 = vmin.f32 %v556, 20.0
        %v565 = vmin.f32 %v557, 20.0
        %v566 = vmin.f32 %v558, 20.0
        %v567 = vmin.f32 %v559, 20.0
        %v568 = vmin.f32 %v560, 20.0
        %v569 = vmul.f32 %v561, 1.442695
        %v570 = vpow.pop %v569
        %v571 = vmul.f32 %v562, 1.442695
        %v572 = vpow.pop %v571
        %v573 = vmul.f32 %v563, 1.442695
        %v574 = vpow.pop %v573
        %v575 = vmul.f32 %v564, 1.442695
        %v576 = vpow.pop %v575
        %v577 = vmul.f32 %v565, 1.442695
        %v578 = vpow.pop %v577
        %v579 = vmul.f32 %v566, 1.442695
        %v580 = vpow.pop %v579
        %v581 = vmul.f32 %v567, 1.442695
        %v582 = vpow.pop %v581
        %v583 = vmul.f32 %v568, 1.442695
        %v584 = vpow.pop %v583
        %v585 = vadd.f32 %v570, 2.0
        %v586 = vadd.f32 %v572, 2.0
        %v587 = vadd.f32 %v574, 2.0
        %v588 = vadd.f32 %v576, 2.0
        %v589 = vadd.f32 %v578, 2.0
        %v590 = vadd.f32 %v580, 2.0
        %v591 = vadd.f32 %v582, 2.0
        %v592 = vadd.f32 %v584, 2.0
        %v593 = vmul.f32 %v570, %v585
        %v594 = vmul.f32 %v572, %v586
        %v595 = vmul.f32 %v574, %v587
        %v596 = vmul.f32 %v576, %v588
        %v597 = vmul.f32 %v578, %v589
        %v598 = vmul.f32 %v580, %v590
        %v599 = vmul.f32 %v582, %v591
        %v600 = vmul.f32 %v584, %v592
        %v601 = vadd.f32 %v593, 2.0
        %v602 = vadd.f32 %v594, 2.0
        %v603 = vadd.f32 %v595, 2.0
        %v604 = vadd.f32 %v596, 2.0
        %v605 = vadd.f32 %v597, 2.0
        %v606 = vadd.f32 %v598, 2.0
        %v607 = vadd.f32 %v599, 2.0
        %v608 = vadd.f32 %v600, 2.0
        %v609 = vrcp.pop %v601
        %v610 = vrcp.pop %v602
        %v611 = vrcp.pop %v603
        %v612 = vrcp.pop %v604
        %v613 = vrcp.pop %v605
        %v614 = vrcp.pop %v606
        %v615 = vrcp.pop %v607
        %v616 = vrcp.pop %v608
        %v617 = vmul.f32 %v593, %v609
        %v618 = vmul.f32 %v594, %v610
        %v619 = vmul.f32 %v595, %v611
        %v620 = vmul.f32 %v596, %v612
        %v621 = vmul.f32 %v597, %v613
        %v622 = vmul.f32 %v598, %v614
        %v623 = vmul.f32 %v599, %v615
        %v624 = vmul.f32 %v600, %v616
        %v625 = vmul.f32 %v553, %v617
        %v626 = vmul.f32 %v554, %v618
        %v627 = vmul.f32 %v555, %v619
        %v628 = vmul.f32 %v556, %v620
        %v629 = vmul.f32 %v557, %v621
        %v630 = vmul.f32 %v558, %v622
        %v631 = vmul.f32 %v559, %v623
        %v632 = vmul.f32 %v560, %v624
        %v633 = vpack.c.bf16 %v627, %v625
        %v634 = vpack.c.bf16 %v628, %v626
        %v635 = vpack.c.bf16 %v631, %v629
        %v636 = vpack.c.bf16 %v632, %v630
        %v637 = vld [vmem:[#allocation3] sm:$0xff]
        %v638 = vld [vmem:[#allocation3 + $0x8] sm:$0xff]
        %v639 = vld [vmem:[#allocation3 + $0x10] sm:$0xff]
        %v640 = vld [vmem:[#allocation3 + $0x18] sm:$0xff]
        %v641 = vld [vmem:[#allocation3 + $0x20] sm:$0xff]
        %v642 = vld [vmem:[#allocation3 + $0x28] sm:$0xff]
        %v643 = vld [vmem:[#allocation3 + $0x30] sm:$0xff]
        %v644 = vld [vmem:[#allocation3 + $0x38] sm:$0xff]
        %v645 = vld [vmem:[#allocation3 + $0x40] sm:$0xff]
        %v646 = vld [vmem:[#allocation3 + $0x48] sm:$0xff]
        %v647 = vld [vmem:[#allocation3 + $0x50] sm:$0xff]
        %v648 = vld [vmem:[#allocation3 + $0x58] sm:$0xff]
        %v649 = vld [vmem:[#allocation3 + $0x60] sm:$0xff]
        %v650 = vld [vmem:[#allocation3 + $0x68] sm:$0xff]
        %v651 = vld [vmem:[#allocation3 + $0x70] sm:$0xff]
        %v652 = vld [vmem:[#allocation3 + $0x78] sm:$0xff]
        %v653 = vld [vmem:[#allocation3 + $0x80] sm:$0xff]
        %v654 = vld [vmem:[#allocation3 + $0x88] sm:$0xff]
        %v655 = vld [vmem:[#allocation3 + $0x90] sm:$0xff]
        %v656 = vld [vmem:[#allocation3 + $0x98] sm:$0xff]
        %v657 = vld [vmem:[#allocation3 + $0xa0] sm:$0xff]
        %v658 = vld [vmem:[#allocation3 + $0xa8] sm:$0xff]
        %v659 = vld [vmem:[#allocation3 + $0xb0] sm:$0xff]
        %v660 = vld [vmem:[#allocation3 + $0xb8] sm:$0xff]
        %v661 = vld [vmem:[#allocation3 + $0xc0] sm:$0xff]
        %v662 = vld [vmem:[#allocation3 + $0xc8] sm:$0xff]
        %v663 = vld [vmem:[#allocation3 + $0xd0] sm:$0xff]
        %v664 = vld [vmem:[#allocation3 + $0xd8] sm:$0xff]
        %v665 = vld [vmem:[#allocation3 + $0xe0] sm:$0xff]
        %v666 = vld [vmem:[#allocation3 + $0xe8] sm:$0xff]
        %v667 = vld [vmem:[#allocation3 + $0xf0] sm:$0xff]
        %v668 = vld [vmem:[#allocation3 + $0xf8] sm:$0xff]
        %v669 = vld [vmem:[%s4] sm:$0x3]
        %v671 = vperm.slane %v669, 0
        %v672 = vperm.slane %v669, 1
        %v707 = vunpack.c.l.b16 %v637
        %v708 = vunpack.c.h.b16 %v637
        %v709 = vunpack.c.l.b16 %v638
        %v710 = vunpack.c.h.b16 %v638
        %v711 = vunpack.c.l.b16 %v639
        %v712 = vunpack.c.h.b16 %v639
        %v713 = vunpack.c.l.b16 %v640
        %v714 = vunpack.c.h.b16 %v640
        %v715 = vunpack.c.l.b16 %v641
        %v716 = vunpack.c.h.b16 %v641
        %v717 = vunpack.c.l.b16 %v642
        %v718 = vunpack.c.h.b16 %v642
        %v719 = vunpack.c.l.b16 %v643
        %v720 = vunpack.c.h.b16 %v643
        %v721 = vunpack.c.l.b16 %v644
        %v722 = vunpack.c.h.b16 %v644
        %v723 = vunpack.c.l.b16 %v645
        %v724 = vunpack.c.h.b16 %v645
        %v725 = vunpack.c.l.b16 %v646
        %v726 = vunpack.c.h.b16 %v646
        %v727 = vunpack.c.l.b16 %v647
        %v728 = vunpack.c.h.b16 %v647
        %v729 = vunpack.c.l.b16 %v648
        %v730 = vunpack.c.h.b16 %v648
        %v731 = vunpack.c.l.b16 %v649
        %v732 = vunpack.c.h.b16 %v649
        %v733 = vunpack.c.l.b16 %v650
        %v734 = vunpack.c.h.b16 %v650
        %v735 = vunpack.c.l.b16 %v651
        %v736 = vunpack.c.h.b16 %v651
        %v737 = vunpack.c.l.b16 %v652
        %v738 = vunpack.c.h.b16 %v652
        %v739 = vunpack.c.l.b16 %v653
        %v740 = vunpack.c.h.b16 %v653
        %v741 = vunpack.c.l.b16 %v654
        %v742 = vunpack.c.h.b16 %v654
        %v743 = vunpack.c.l.b16 %v655
        %v744 = vunpack.c.h.b16 %v655
        %v745 = vunpack.c.l.b16 %v656
        %v746 = vunpack.c.h.b16 %v656
        %v747 = vunpack.c.l.b16 %v657
        %v748 = vunpack.c.h.b16 %v657
        %v749 = vunpack.c.l.b16 %v658
        %v750 = vunpack.c.h.b16 %v658
        %v751 = vunpack.c.l.b16 %v659
        %v752 = vunpack.c.h.b16 %v659
        %v753 = vunpack.c.l.b16 %v660
        %v754 = vunpack.c.h.b16 %v660
        %v755 = vunpack.c.l.b16 %v661
        %v756 = vunpack.c.h.b16 %v661
        %v757 = vunpack.c.l.b16 %v662
        %v758 = vunpack.c.h.b16 %v662
        %v759 = vunpack.c.l.b16 %v663
        %v760 = vunpack.c.h.b16 %v663
        %v761 = vunpack.c.l.b16 %v664
        %v762 = vunpack.c.h.b16 %v664
        %v763 = vunpack.c.l.b16 %v665
        %v764 = vunpack.c.h.b16 %v665
        %v765 = vunpack.c.l.b16 %v666
        %v766 = vunpack.c.h.b16 %v666
        %v767 = vunpack.c.l.b16 %v667
        %v768 = vunpack.c.h.b16 %v667
        %v769 = vunpack.c.l.b16 %v668
        %v770 = vunpack.c.h.b16 %v668
        %v771 = vpack.c.b16 %v709, %v707
        %v772 = vpack.c.b16 %v710, %v708
        %v773 = vpack.c.b16 %v713, %v711
        %v774 = vpack.c.b16 %v714, %v712
        %v775 = vpack.c.b16 %v717, %v715
        %v776 = vpack.c.b16 %v718, %v716
        %v777 = vpack.c.b16 %v721, %v719
        %v778 = vpack.c.b16 %v722, %v720
        %v779 = vpack.c.b16 %v725, %v723
        %v780 = vpack.c.b16 %v726, %v724
        %v781 = vpack.c.b16 %v729, %v727
        %v782 = vpack.c.b16 %v730, %v728
        %v783 = vpack.c.b16 %v733, %v731
        %v784 = vpack.c.b16 %v734, %v732
        %v785 = vpack.c.b16 %v737, %v735
        %v786 = vpack.c.b16 %v738, %v736
        %v787 = vpack.c.b16 %v741, %v739
        %v788 = vpack.c.b16 %v742, %v740
        %v789 = vpack.c.b16 %v745, %v743
        %v790 = vpack.c.b16 %v746, %v744
        %v791 = vpack.c.b16 %v749, %v747
        %v792 = vpack.c.b16 %v750, %v748
        %v793 = vpack.c.b16 %v753, %v751
        %v794 = vpack.c.b16 %v754, %v752
        %v795 = vpack.c.b16 %v757, %v755
        %v796 = vpack.c.b16 %v758, %v756
        %v797 = vpack.c.b16 %v761, %v759
        %v798 = vpack.c.b16 %v762, %v760
        %v799 = vpack.c.b16 %v765, %v763
        %v800 = vpack.c.b16 %v766, %v764
        %v801 = vpack.c.b16 %v769, %v767
        %v802 = vpack.c.b16 %v770, %v768
        %835 = vmatpush.bf16.msra.mxu0 %v785
        %836 = vmatpush.bf16.msra.mxu0 %v783
        %837 = vmatpush.bf16.msra.mxu0 %v781
        %838 = vmatpush.bf16.msra.mxu0 %v779
        %839 = vmatpush.bf16.msra.mxu0 %v777
        %840 = vmatpush.bf16.msra.mxu0 %v775
        %841 = vmatpush.bf16.msra.mxu0 %v773
        %842 = vmatpush.bf16.msra.mxu0 %v771
        %843 = vmatmul.bf16.gmra.mxu0 %v633
        %v844 = vpop.f32.mrf.mxu0
        %v845 = vadd.f32 %v671, %v844
        %v846 = vpop.f32.mrf.mxu0
        %v847 = vadd.f32 %v671, %v846
        %848 = vmatmul.bf16.gmra.mxu0 %v635
        %v849 = vpop.f32.mrf.mxu0
        %v850 = vadd.f32 %v671, %v849
        %v851 = vpop.f32.mrf.mxu0
        %v852 = vadd.f32 %v671, %v851
        %853 = vdwg.mxu0
        %854 = vmatpush.bf16.msra.mxu0 %v801
        %855 = vmatpush.bf16.msra.mxu0 %v799
        %856 = vmatpush.bf16.msra.mxu0 %v797
        %857 = vmatpush.bf16.msra.mxu0 %v795
        %858 = vmatpush.bf16.msra.mxu0 %v793
        %859 = vmatpush.bf16.msra.mxu0 %v791
        %860 = vmatpush.bf16.msra.mxu0 %v789
        %861 = vmatpush.bf16.msra.mxu0 %v787
        %862 = vmatmul.bf16.gmra.mxu0 %v634
        %v863 = vpop.f32.mrf.mxu0
        %v864 = vadd.f32 %v845, %v863
        %v865 = vpop.f32.mrf.mxu0
        %v866 = vadd.f32 %v847, %v865
        %867 = vmatmul.bf16.gmra.mxu0 %v636
        %v868 = vpop.f32.mrf.mxu0
        %v869 = vadd.f32 %v850, %v868
        %v870 = vpop.f32.mrf.mxu0
        %v871 = vadd.f32 %v852, %v870
        %872 = vdwg.mxu0
        %873 = vmatpush.bf16.msra.mxu0 %v786
        %874 = vmatpush.bf16.msra.mxu0 %v784
        %875 = vmatpush.bf16.msra.mxu0 %v782
        %876 = vmatpush.bf16.msra.mxu0 %v780
        %877 = vmatpush.bf16.msra.mxu0 %v778
        %878 = vmatpush.bf16.msra.mxu0 %v776
        %879 = vmatpush.bf16.msra.mxu0 %v774
        %880 = vmatpush.bf16.msra.mxu0 %v772
        %881 = vmatmul.bf16.gmra.mxu0 %v633
        %v882 = vpop.f32.mrf.mxu0
        %v883 = vadd.f32 %v672, %v882
        %v884 = vpop.f32.mrf.mxu0
        %v885 = vadd.f32 %v672, %v884
        %886 = vmatmul.bf16.gmra.mxu0 %v635
        %v887 = vpop.f32.mrf.mxu0
        %v888 = vadd.f32 %v672, %v887
        %v889 = vpop.f32.mrf.mxu0
        %v890 = vadd.f32 %v672, %v889
        %891 = vdwg.mxu0
        %892 = vmatpush.bf16.msra.mxu0 %v802
        %893 = vmatpush.bf16.msra.mxu0 %v800
        %894 = vmatpush.bf16.msra.mxu0 %v798
        %895 = vmatpush.bf16.msra.mxu0 %v796
        %896 = vmatpush.bf16.msra.mxu0 %v794
        %897 = vmatpush.bf16.msra.mxu0 %v792
        %898 = vmatpush.bf16.msra.mxu0 %v790
        %899 = vmatpush.bf16.msra.mxu0 %v788
        %900 = vmatmul.bf16.gmra.mxu0 %v634
        %v901 = vpop.f32.mrf.mxu0
        %v902 = vadd.f32 %v883, %v901
        %v903 = vpop.f32.mrf.mxu0
        %v904 = vadd.f32 %v885, %v903
        %905 = vmatmul.bf16.gmra.mxu0 %v636
        %v906 = vpop.f32.mrf.mxu0
        %v907 = vadd.f32 %v888, %v906
        %v908 = vpop.f32.mrf.mxu0
        %v909 = vadd.f32 %v890, %v908
        %910 = vdwg.mxu0
        %v911 = vadd.f32 %v864, %v902
        %912 = vadd.xlane.f32.xlu0 %v911
        %v913 = vpop.xlane.xlu0 %912
        %v914 = vadd.f32 %v866, %v904
        %915 = vadd.xlane.f32.xlu0 %v914
        %v916 = vpop.xlane.xlu0 %915
        %v917 = vadd.f32 %v869, %v907
        %918 = vadd.xlane.f32.xlu0 %v917
        %v919 = vpop.xlane.xlu0 %918
        %v920 = vadd.f32 %v871, %v909
        %921 = vadd.xlane.f32.xlu0 %v920
        %v922 = vpop.xlane.xlu0 %921
        %v923 = vmul.f32 %v913, 0.005
        %v924 = vmul.f32 %v916, 0.005
        %v925 = vmul.f32 %v919, 0.005
        %v926 = vmul.f32 %v922, 0.005
        %v927 = vmul.f32 %v864, %v864
        %v928 = vmul.f32 %v902, %v902
        %v929 = vmul.f32 %v866, %v866
        %v930 = vmul.f32 %v904, %v904
        %v931 = vmul.f32 %v869, %v869
        %v932 = vmul.f32 %v907, %v907
        %v933 = vmul.f32 %v871, %v871
        %v934 = vmul.f32 %v909, %v909
        %v935 = vadd.f32 %v927, %v928
        %936 = vadd.xlane.f32.xlu0 %v935
        %v937 = vpop.xlane.xlu0 %936
        %v938 = vadd.f32 %v929, %v930
        %939 = vadd.xlane.f32.xlu0 %v938
        %v940 = vpop.xlane.xlu0 %939
        %v941 = vadd.f32 %v931, %v932
        %942 = vadd.xlane.f32.xlu0 %v941
        %v943 = vpop.xlane.xlu0 %942
        %v944 = vadd.f32 %v933, %v934
        %945 = vadd.xlane.f32.xlu0 %v944
        %v946 = vpop.xlane.xlu0 %945
        %v947 = vmul.f32 %v937, 0.005
        %v948 = vmul.f32 %v940, 0.005
        %v949 = vmul.f32 %v943, 0.005
        %v950 = vmul.f32 %v946, 0.005
        %v951 = vmul.f32 %v923, %v923
        %v952 = vmul.f32 %v924, %v924
        %v953 = vmul.f32 %v925, %v925
        %v954 = vmul.f32 %v926, %v926
        %v955 = vsub.f32 %v947, %v951
        %v956 = vsub.f32 %v948, %v952
        %v957 = vsub.f32 %v949, %v953
        %v958 = vsub.f32 %v950, %v954
        %v959 = vsub.f32 %v864, %v923
        %v960 = vsub.f32 %v902, %v923
        %v961 = vsub.f32 %v866, %v924
        %v962 = vsub.f32 %v904, %v924
        %v963 = vsub.f32 %v869, %v925
        %v964 = vsub.f32 %v907, %v925
        %v965 = vsub.f32 %v871, %v926
        %v966 = vsub.f32 %v909, %v926
        %v967 = vadd.f32 %v955, 1e-05
        %v968 = vadd.f32 %v956, 1e-05
        %v969 = vadd.f32 %v957, 1e-05
        %v970 = vadd.f32 %v958, 1e-05
        %v971 = vrsqrt.pop %v967
        %v972 = vmul.f32 %v971, %v967
        %v973 = vmul.f32 %v972, %v971
        %v974 = vmul.f32 0.5, %v973
        %v975 = vsub.f32 1.5, %v974
        %v976 = vmul.f32 %v971, %v975
        %vm977 = vweird.f32 %v967
        %vm978 = vweird.f32 %v971
        %vm979 = vmor %vm977, %vm978
        %v980 = vsel %vm979, %v971, %v976
        %v981 = vrsqrt.pop %v968
        %v982 = vmul.f32 %v981, %v968
        %v983 = vmul.f32 %v982, %v981
        %v984 = vmul.f32 0.5, %v983
        %v985 = vsub.f32 1.5, %v984
        %v986 = vmul.f32 %v981, %v985
        %vm987 = vweird.f32 %v968
        %vm988 = vweird.f32 %v981
        %vm989 = vmor %vm987, %vm988
        %v990 = vsel %vm989, %v981, %v986
        %v991 = vrsqrt.pop %v969
        %v992 = vmul.f32 %v991, %v969
        %v993 = vmul.f32 %v992, %v991
        %v994 = vmul.f32 0.5, %v993
        %v995 = vsub.f32 1.5, %v994
        %v996 = vmul.f32 %v991, %v995
        %vm997 = vweird.f32 %v969
        %vm998 = vweird.f32 %v991
        %vm999 = vmor %vm997, %vm998
        %v1000 = vsel %vm999, %v991, %v996
        %v1001 = vrsqrt.pop %v970
        %v1002 = vmul.f32 %v1001, %v970
        %v1003 = vmul.f32 %v1002, %v1001
        %v1004 = vmul.f32 0.5, %v1003
        %v1005 = vsub.f32 1.5, %v1004
        %v1006 = vmul.f32 %v1001, %v1005
        %vm1007 = vweird.f32 %v970
        %vm1008 = vweird.f32 %v1001
        %vm1009 = vmor %vm1007, %vm1008
        %v1010 = vsel %vm1009, %v1001, %v1006
        %v1011 = vmul.f32 %v959, %v980
        %v1012 = vmul.f32 %v960, %v980
        %v1013 = vmul.f32 %v961, %v990
        %v1014 = vmul.f32 %v962, %v990
        %v1015 = vmul.f32 %v963, %v1000
        %v1016 = vmul.f32 %v964, %v1000
        %v1017 = vmul.f32 %v965, %v1010
        %v1018 = vmul.f32 %v966, %v1010
        %v1019 = vmul.f32 %v1011, %v536
        %v1020 = vmul.f32 %v1012, %v537
        %v1021 = vmul.f32 %v1013, %v536
        %v1022 = vmul.f32 %v1014, %v537
        %v1023 = vmul.f32 %v1015, %v536
        %v1024 = vmul.f32 %v1016, %v537
        %v1025 = vmul.f32 %v1017, %v536
        %v1026 = vmul.f32 %v1018, %v537
        %v1027 = vadd.f32 %v1019, %v549
        %v1028 = vadd.f32 %v1020, %v550
        %v1029 = vadd.f32 %v1021, %v549
        %v1030 = vadd.f32 %v1022, %v550
        %v1031 = vadd.f32 %v1023, %v549
        %v1032 = vadd.f32 %v1024, %v550
        %v1033 = vadd.f32 %v1025, %v549
        %v1034 = vadd.f32 %v1026, %v550
        %v1035 = vmin.f32 %v1027, 20.0
        %v1036 = vmin.f32 %v1028, 20.0
        %v1037 = vmin.f32 %v1029, 20.0
        %v1038 = vmin.f32 %v1030, 20.0
        %v1039 = vmin.f32 %v1031, 20.0
        %v1040 = vmin.f32 %v1032, 20.0
        %v1041 = vmin.f32 %v1033, 20.0
        %v1042 = vmin.f32 %v1034, 20.0
        %v1043 = vmul.f32 %v1035, 1.442695
        %v1044 = vpow.pop %v1043
        %v1045 = vmul.f32 %v1036, 1.442695
        %v1046 = vpow.pop %v1045
        %v1047 = vmul.f32 %v1037, 1.442695
        %v1048 = vpow.pop %v1047
        %v1049 = vmul.f32 %v1038, 1.442695
        %v1050 = vpow.pop %v1049
        %v1051 = vmul.f32 %v1039, 1.442695
        %v1052 = vpow.pop %v1051
        %v1053 = vmul.f32 %v1040, 1.442695
        %v1054 = vpow.pop %v1053
        %v1055 = vmul.f32 %v1041, 1.442695
        %v1056 = vpow.pop %v1055
        %v1057 = vmul.f32 %v1042, 1.442695
        %v1058 = vpow.pop %v1057
        %v1059 = vadd.f32 %v1044, 2.0
        %v1060 = vadd.f32 %v1046, 2.0
        %v1061 = vadd.f32 %v1048, 2.0
        %v1062 = vadd.f32 %v1050, 2.0
        %v1063 = vadd.f32 %v1052, 2.0
        %v1064 = vadd.f32 %v1054, 2.0
        %v1065 = vadd.f32 %v1056, 2.0
        %v1066 = vadd.f32 %v1058, 2.0
        %v1067 = vmul.f32 %v1044, %v1059
        %v1068 = vmul.f32 %v1046, %v1060
        %v1069 = vmul.f32 %v1048, %v1061
        %v1070 = vmul.f32 %v1050, %v1062
        %v1071 = vmul.f32 %v1052, %v1063
        %v1072 = vmul.f32 %v1054, %v1064
        %v1073 = vmul.f32 %v1056, %v1065
        %v1074 = vmul.f32 %v1058, %v1066
        %v1075 = vadd.f32 %v1067, 2.0
        %v1076 = vadd.f32 %v1068, 2.0
        %v1077 = vadd.f32 %v1069, 2.0
        %v1078 = vadd.f32 %v1070, 2.0
        %v1079 = vadd.f32 %v1071, 2.0
        %v1080 = vadd.f32 %v1072, 2.0
        %v1081 = vadd.f32 %v1073, 2.0
        %v1082 = vadd.f32 %v1074, 2.0
        %v1083 = vrcp.pop %v1075
        %v1084 = vrcp.pop %v1076
        %v1085 = vrcp.pop %v1077
        %v1086 = vrcp.pop %v1078
        %v1087 = vrcp.pop %v1079
        %v1088 = vrcp.pop %v1080
        %v1089 = vrcp.pop %v1081
        %v1090 = vrcp.pop %v1082
        %v1091 = vmul.f32 %v1067, %v1083
        %v1092 = vmul.f32 %v1068, %v1084
        %v1093 = vmul.f32 %v1069, %v1085
        %v1094 = vmul.f32 %v1070, %v1086
        %v1095 = vmul.f32 %v1071, %v1087
        %v1096 = vmul.f32 %v1072, %v1088
        %v1097 = vmul.f32 %v1073, %v1089
        %v1098 = vmul.f32 %v1074, %v1090
        %v1099 = vmul.f32 %v1027, %v1091
        %v1100 = vmul.f32 %v1028, %v1092
        %v1101 = vmul.f32 %v1029, %v1093
        %v1102 = vmul.f32 %v1030, %v1094
        %v1103 = vmul.f32 %v1031, %v1095
        %v1104 = vmul.f32 %v1032, %v1096
        %v1105 = vmul.f32 %v1033, %v1097
        %v1106 = vmul.f32 %v1034, %v1098
        %v1107 = vpack.c.bf16 %v1101, %v1099
        %v1108 = vpack.c.bf16 %v1102, %v1100
        %v1109 = vpack.c.bf16 %v1105, %v1103
        %v1110 = vpack.c.bf16 %v1106, %v1104
        %s1111 = scalar_lea.vmem [#allocation3], 256
        %v1112 = vld [vmem:[%s1111] sm:$0xff]
        %v1113 = vld [vmem:[%s1111 + $0x8] sm:$0xff]
        %v1114 = vld [vmem:[%s1111 + $0x10] sm:$0xff]
        %v1115 = vld [vmem:[%s1111 + $0x18] sm:$0xff]
        %v1116 = vld [vmem:[%s1111 + $0x20] sm:$0xff]
        %v1117 = vld [vmem:[%s1111 + $0x28] sm:$0xff]
        %v1118 = vld [vmem:[%s1111 + $0x30] sm:$0xff]
        %v1119 = vld [vmem:[%s1111 + $0x38] sm:$0xff]
        %v1120 = vld [vmem:[%s1111 + $0x40] sm:$0xff]
        %v1121 = vld [vmem:[%s1111 + $0x48] sm:$0xff]
        %v1122 = vld [vmem:[%s1111 + $0x50] sm:$0xff]
        %v1123 = vld [vmem:[%s1111 + $0x58] sm:$0xff]
        %v1124 = vld [vmem:[%s1111 + $0x60] sm:$0xff]
        %v1125 = vld [vmem:[%s1111 + $0x68] sm:$0xff]
        %v1126 = vld [vmem:[%s1111 + $0x70] sm:$0xff]
        %v1127 = vld [vmem:[%s1111 + $0x78] sm:$0xff]
        %v1128 = vld [vmem:[%s1111 + $0x80] sm:$0xff]
        %v1129 = vld [vmem:[%s1111 + $0x88] sm:$0xff]
        %v1130 = vld [vmem:[%s1111 + $0x90] sm:$0xff]
        %v1131 = vld [vmem:[%s1111 + $0x98] sm:$0xff]
        %v1132 = vld [vmem:[%s1111 + $0xa0] sm:$0xff]
        %v1133 = vld [vmem:[%s1111 + $0xa8] sm:$0xff]
        %v1134 = vld [vmem:[%s1111 + $0xb0] sm:$0xff]
        %v1135 = vld [vmem:[%s1111 + $0xb8] sm:$0xff]
        %v1136 = vld [vmem:[%s1111 + $0xc0] sm:$0xff]
        %v1137 = vld [vmem:[%s1111 + $0xc8] sm:$0xff]
        %v1138 = vld [vmem:[%s1111 + $0xd0] sm:$0xff]
        %v1139 = vld [vmem:[%s1111 + $0xd8] sm:$0xff]
        %v1140 = vld [vmem:[%s1111 + $0xe0] sm:$0xff]
        %v1141 = vld [vmem:[%s1111 + $0xe8] sm:$0xff]
        %v1142 = vld [vmem:[%s1111 + $0xf0] sm:$0xff]
        %v1143 = vld [vmem:[%s1111 + $0xf8] sm:$0xff]
        %s1144 = scalar_lea.vmem %s4, 2
        %v1145 = vld [vmem:[%s1144] sm:$0x3]
        %v1147 = vperm.slane %v1145, 0
        %v1148 = vperm.slane %v1145, 1
        %v1183 = vunpack.c.l.b16 %v1112
        %v1184 = vunpack.c.h.b16 %v1112
        %v1185 = vunpack.c.l.b16 %v1113
        %v1186 = vunpack.c.h.b16 %v1113
        %v1187 = vunpack.c.l.b16 %v1114
        %v1188 = vunpack.c.h.b16 %v1114
        %v1189 = vunpack.c.l.b16 %v1115
        %v1190 = vunpack.c.h.b16 %v1115
        %v1191 = vunpack.c.l.b16 %v1116
        %v1192 = vunpack.c.h.b16 %v1116
        %v1193 = vunpack.c.l.b16 %v1117
        %v1194 = vunpack.c.h.b16 %v1117
        %v1195 = vunpack.c.l.b16 %v1118
        %v1196 = vunpack.c.h.b16 %v1118
        %v1197 = vunpack.c.l.b16 %v1119
        %v1198 = vunpack.c.h.b16 %v1119
        %v1199 = vunpack.c.l.b16 %v1120
        %v1200 = vunpack.c.h.b16 %v1120
        %v1201 = vunpack.c.l.b16 %v1121
        %v1202 = vunpack.c.h.b16 %v1121
        %v1203 = vunpack.c.l.b16 %v1122
        %v1204 = vunpack.c.h.b16 %v1122
        %v1205 = vunpack.c.l.b16 %v1123
        %v1206 = vunpack.c.h.b16 %v1123
        %v1207 = vunpack.c.l.b16 %v1124
        %v1208 = vunpack.c.h.b16 %v1124
        %v1209 = vunpack.c.l.b16 %v1125
        %v1210 = vunpack.c.h.b16 %v1125
        %v1211 = vunpack.c.l.b16 %v1126
        %v1212 = vunpack.c.h.b16 %v1126
        %v1213 = vunpack.c.l.b16 %v1127
        %v1214 = vunpack.c.h.b16 %v1127
        %v1215 = vunpack.c.l.b16 %v1128
        %v1216 = vunpack.c.h.b16 %v1128
        %v1217 = vunpack.c.l.b16 %v1129
        %v1218 = vunpack.c.h.b16 %v1129
        %v1219 = vunpack.c.l.b16 %v1130
        %v1220 = vunpack.c.h.b16 %v1130
        %v1221 = vunpack.c.l.b16 %v1131
        %v1222 = vunpack.c.h.b16 %v1131
        %v1223 = vunpack.c.l.b16 %v1132
        %v1224 = vunpack.c.h.b16 %v1132
        %v1225 = vunpack.c.l.b16 %v1133
        %v1226 = vunpack.c.h.b16 %v1133
        %v1227 = vunpack.c.l.b16 %v1134
        %v1228 = vunpack.c.h.b16 %v1134
        %v1229 = vunpack.c.l.b16 %v1135
        %v1230 = vunpack.c.h.b16 %v1135
        %v1231 = vunpack.c.l.b16 %v1136
        %v1232 = vunpack.c.h.b16 %v1136
        %v1233 = vunpack.c.l.b16 %v1137
        %v1234 = vunpack.c.h.b16 %v1137
        %v1235 = vunpack.c.l.b16 %v1138
        %v1236 = vunpack.c.h.b16 %v1138
        %v1237 = vunpack.c.l.b16 %v1139
        %v1238 = vunpack.c.h.b16 %v1139
        %v1239 = vunpack.c.l.b16 %v1140
        %v1240 = vunpack.c.h.b16 %v1140
        %v1241 = vunpack.c.l.b16 %v1141
        %v1242 = vunpack.c.h.b16 %v1141
        %v1243 = vunpack.c.l.b16 %v1142
        %v1244 = vunpack.c.h.b16 %v1142
        %v1245 = vunpack.c.l.b16 %v1143
        %v1246 = vunpack.c.h.b16 %v1143
        %v1247 = vpack.c.b16 %v1185, %v1183
        %v1248 = vpack.c.b16 %v1186, %v1184
        %v1249 = vpack.c.b16 %v1189, %v1187
        %v1250 = vpack.c.b16 %v1190, %v1188
        %v1251 = vpack.c.b16 %v1193, %v1191
        %v1252 = vpack.c.b16 %v1194, %v1192
        %v1253 = vpack.c.b16 %v1197, %v1195
        %v1254 = vpack.c.b16 %v1198, %v1196
        %v1255 = vpack.c.b16 %v1201, %v1199
        %v1256 = vpack.c.b16 %v1202, %v1200
        %v1257 = vpack.c.b16 %v1205, %v1203
        %v1258 = vpack.c.b16 %v1206, %v1204
        %v1259 = vpack.c.b16 %v1209, %v1207
        %v1260 = vpack.c.b16 %v1210, %v1208
        %v1261 = vpack.c.b16 %v1213, %v1211
        %v1262 = vpack.c.b16 %v1214, %v1212
        %v1263 = vpack.c.b16 %v1217, %v1215
        %v1264 = vpack.c.b16 %v1218, %v1216
        %v1265 = vpack.c.b16 %v1221, %v1219
        %v1266 = vpack.c.b16 %v1222, %v1220
        %v1267 = vpack.c.b16 %v1225, %v1223
        %v1268 = vpack.c.b16 %v1226, %v1224
        %v1269 = vpack.c.b16 %v1229, %v1227
        %v1270 = vpack.c.b16 %v1230, %v1228
        %v1271 = vpack.c.b16 %v1233, %v1231
        %v1272 = vpack.c.b16 %v1234, %v1232
        %v1273 = vpack.c.b16 %v1237, %v1235
        %v1274 = vpack.c.b16 %v1238, %v1236
        %v1275 = vpack.c.b16 %v1241, %v1239
        %v1276 = vpack.c.b16 %v1242, %v1240
        %v1277 = vpack.c.b16 %v1245, %v1243
        %v1278 = vpack.c.b16 %v1246, %v1244
        %1311 = vmatpush.bf16.msra.mxu0 %v1261
        %1312 = vmatpush.bf16.msra.mxu0 %v1259
        %1313 = vmatpush.bf16.msra.mxu0 %v1257
        %1314 = vmatpush.bf16.msra.mxu0 %v1255
        %1315 = vmatpush.bf16.msra.mxu0 %v1253
        %1316 = vmatpush.bf16.msra.mxu0 %v1251
        %1317 = vmatpush.bf16.msra.mxu0 %v1249
        %1318 = vmatpush.bf16.msra.mxu0 %v1247
        %1319 = vmatmul.bf16.gmra.mxu0 %v1107
        %v1320 = vpop.f32.mrf.mxu0
        %v1321 = vadd.f32 %v1147, %v1320
        %v1322 = vpop.f32.mrf.mxu0
        %v1323 = vadd.f32 %v1147, %v1322
        %1324 = vmatmul.bf16.gmra.mxu0 %v1109
        %v1325 = vpop.f32.mrf.mxu0
        %v1326 = vadd.f32 %v1147, %v1325
        %v1327 = vpop.f32.mrf.mxu0
        %v1328 = vadd.f32 %v1147, %v1327
        %1329 = vdwg.mxu0
        %1330 = vmatpush.bf16.msra.mxu0 %v1277
        %1331 = vmatpush.bf16.msra.mxu0 %v1275
        %1332 = vmatpush.bf16.msra.mxu0 %v1273
        %1333 = vmatpush.bf16.msra.mxu0 %v1271
        %1334 = vmatpush.bf16.msra.mxu0 %v1269
        %1335 = vmatpush.bf16.msra.mxu0 %v1267
        %1336 = vmatpush.bf16.msra.mxu0 %v1265
        %1337 = vmatpush.bf16.msra.mxu0 %v1263
        %1338 = vmatmul.bf16.gmra.mxu0 %v1108
        %v1339 = vpop.f32.mrf.mxu0
        %v1340 = vadd.f32 %v1321, %v1339
        %v1341 = vpop.f32.mrf.mxu0
        %v1342 = vadd.f32 %v1323, %v1341
        %1343 = vmatmul.bf16.gmra.mxu0 %v1110
        %v1344 = vpop.f32.mrf.mxu0
        %v1345 = vadd.f32 %v1326, %v1344
        %v1346 = vpop.f32.mrf.mxu0
        %v1347 = vadd.f32 %v1328, %v1346
        %1348 = vdwg.mxu0
        %1349 = vmatpush.bf16.msra.mxu0 %v1262
        %1350 = vmatpush.bf16.msra.mxu0 %v1260
        %1351 = vmatpush.bf16.msra.mxu0 %v1258
        %1352 = vmatpush.bf16.msra.mxu0 %v1256
        %1353 = vmatpush.bf16.msra.mxu0 %v1254
        %1354 = vmatpush.bf16.msra.mxu0 %v1252
        %1355 = vmatpush.bf16.msra.mxu0 %v1250
        %1356 = vmatpush.bf16.msra.mxu0 %v1248
        %1357 = vmatmul.bf16.gmra.mxu0 %v1107
        %v1358 = vpop.f32.mrf.mxu0
        %v1359 = vadd.f32 %v1148, %v1358
        %v1360 = vpop.f32.mrf.mxu0
        %v1361 = vadd.f32 %v1148, %v1360
        %1362 = vmatmul.bf16.gmra.mxu0 %v1109
        %v1363 = vpop.f32.mrf.mxu0
        %v1364 = vadd.f32 %v1148, %v1363
        %v1365 = vpop.f32.mrf.mxu0
        %v1366 = vadd.f32 %v1148, %v1365
        %1367 = vdwg.mxu0
        %1368 = vmatpush.bf16.msra.mxu0 %v1278
        %1369 = vmatpush.bf16.msra.mxu0 %v1276
        %1370 = vmatpush.bf16.msra.mxu0 %v1274
        %1371 = vmatpush.bf16.msra.mxu0 %v1272
        %1372 = vmatpush.bf16.msra.mxu0 %v1270
        %1373 = vmatpush.bf16.msra.mxu0 %v1268
        %1374 = vmatpush.bf16.msra.mxu0 %v1266
        %1375 = vmatpush.bf16.msra.mxu0 %v1264
        %1376 = vmatmul.bf16.gmra.mxu0 %v1108
        %v1377 = vpop.f32.mrf.mxu0
        %v1378 = vadd.f32 %v1359, %v1377
        %v1379 = vpop.f32.mrf.mxu0
        %v1380 = vadd.f32 %v1361, %v1379
        %1381 = vmatmul.bf16.gmra.mxu0 %v1110
        %v1382 = vpop.f32.mrf.mxu0
        %v1383 = vadd.f32 %v1364, %v1382
        %v1384 = vpop.f32.mrf.mxu0
        %v1385 = vadd.f32 %v1366, %v1384
        %1386 = vdwg.mxu0
        %v1387 = vadd.f32 %v1340, %v1378
        %1388 = vadd.xlane.f32.xlu0 %v1387
        %v1389 = vpop.xlane.xlu0 %1388
        %v1390 = vadd.f32 %v1342, %v1380
        %1391 = vadd.xlane.f32.xlu0 %v1390
        %v1392 = vpop.xlane.xlu0 %1391
        %v1393 = vadd.f32 %v1345, %v1383
        %1394 = vadd.xlane.f32.xlu0 %v1393
        %v1395 = vpop.xlane.xlu0 %1394
        %v1396 = vadd.f32 %v1347, %v1385
        %1397 = vadd.xlane.f32.xlu0 %v1396
        %v1398 = vpop.xlane.xlu0 %1397
        %v1399 = vmul.f32 %v1389, 0.005
        %v1400 = vmul.f32 %v1392, 0.005
        %v1401 = vmul.f32 %v1395, 0.005
        %v1402 = vmul.f32 %v1398, 0.005
        %v1403 = vmul.f32 %v1340, %v1340
        %v1404 = vmul.f32 %v1378, %v1378
        %v1405 = vmul.f32 %v1342, %v1342
        %v1406 = vmul.f32 %v1380, %v1380
        %v1407 = vmul.f32 %v1345, %v1345
        %v1408 = vmul.f32 %v1383, %v1383
        %v1409 = vmul.f32 %v1347, %v1347
        %v1410 = vmul.f32 %v1385, %v1385
        %v1411 = vadd.f32 %v1403, %v1404
        %1412 = vadd.xlane.f32.xlu0 %v1411
        %v1413 = vpop.xlane.xlu0 %1412
        %v1414 = vadd.f32 %v1405, %v1406
        %1415 = vadd.xlane.f32.xlu0 %v1414
        %v1416 = vpop.xlane.xlu0 %1415
        %v1417 = vadd.f32 %v1407, %v1408
        %1418 = vadd.xlane.f32.xlu0 %v1417
        %v1419 = vpop.xlane.xlu0 %1418
        %v1420 = vadd.f32 %v1409, %v1410
        %1421 = vadd.xlane.f32.xlu0 %v1420
        %v1422 = vpop.xlane.xlu0 %1421
        %v1423 = vmul.f32 %v1413, 0.005
        %v1424 = vmul.f32 %v1416, 0.005
        %v1425 = vmul.f32 %v1419, 0.005
        %v1426 = vmul.f32 %v1422, 0.005
        %v1427 = vmul.f32 %v1399, %v1399
        %v1428 = vmul.f32 %v1400, %v1400
        %v1429 = vmul.f32 %v1401, %v1401
        %v1430 = vmul.f32 %v1402, %v1402
        %v1431 = vsub.f32 %v1423, %v1427
        %v1432 = vsub.f32 %v1424, %v1428
        %v1433 = vsub.f32 %v1425, %v1429
        %v1434 = vsub.f32 %v1426, %v1430
        %v1435 = vsub.f32 %v1340, %v1399
        %v1436 = vsub.f32 %v1378, %v1399
        %v1437 = vsub.f32 %v1342, %v1400
        %v1438 = vsub.f32 %v1380, %v1400
        %v1439 = vsub.f32 %v1345, %v1401
        %v1440 = vsub.f32 %v1383, %v1401
        %v1441 = vsub.f32 %v1347, %v1402
        %v1442 = vsub.f32 %v1385, %v1402
        %v1443 = vadd.f32 %v1431, 1e-05
        %v1444 = vadd.f32 %v1432, 1e-05
        %v1445 = vadd.f32 %v1433, 1e-05
        %v1446 = vadd.f32 %v1434, 1e-05
        %v1447 = vrsqrt.pop %v1443
        %v1448 = vmul.f32 %v1447, %v1443
        %v1449 = vmul.f32 %v1448, %v1447
        %v1450 = vmul.f32 0.5, %v1449
        %v1451 = vsub.f32 1.5, %v1450
        %v1452 = vmul.f32 %v1447, %v1451
        %vm1453 = vweird.f32 %v1443
        %vm1454 = vweird.f32 %v1447
        %vm1455 = vmor %vm1453, %vm1454
        %v1456 = vsel %vm1455, %v1447, %v1452
        %v1457 = vrsqrt.pop %v1444
        %v1458 = vmul.f32 %v1457, %v1444
        %v1459 = vmul.f32 %v1458, %v1457
        %v1460 = vmul.f32 0.5, %v1459
        %v1461 = vsub.f32 1.5, %v1460
        %v1462 = vmul.f32 %v1457, %v1461
        %vm1463 = vweird.f32 %v1444
        %vm1464 = vweird.f32 %v1457
        %vm1465 = vmor %vm1463, %vm1464
        %v1466 = vsel %vm1465, %v1457, %v1462
        %v1467 = vrsqrt.pop %v1445
        %v1468 = vmul.f32 %v1467, %v1445
        %v1469 = vmul.f32 %v1468, %v1467
        %v1470 = vmul.f32 0.5, %v1469
        %v1471 = vsub.f32 1.5, %v1470
        %v1472 = vmul.f32 %v1467, %v1471
        %vm1473 = vweird.f32 %v1445
        %vm1474 = vweird.f32 %v1467
        %vm1475 = vmor %vm1473, %vm1474
        %v1476 = vsel %vm1475, %v1467, %v1472
        %v1477 = vrsqrt.pop %v1446
        %v1478 = vmul.f32 %v1477, %v1446
        %v1479 = vmul.f32 %v1478, %v1477
        %v1480 = vmul.f32 0.5, %v1479
        %v1481 = vsub.f32 1.5, %v1480
        %v1482 = vmul.f32 %v1477, %v1481
        %vm1483 = vweird.f32 %v1446
        %vm1484 = vweird.f32 %v1477
        %vm1485 = vmor %vm1483, %vm1484
        %v1486 = vsel %vm1485, %v1477, %v1482
        %v1487 = vmul.f32 %v1435, %v1456
        %v1488 = vmul.f32 %v1436, %v1456
        %v1489 = vmul.f32 %v1437, %v1466
        %v1490 = vmul.f32 %v1438, %v1466
        %v1491 = vmul.f32 %v1439, %v1476
        %v1492 = vmul.f32 %v1440, %v1476
        %v1493 = vmul.f32 %v1441, %v1486
        %v1494 = vmul.f32 %v1442, %v1486
        %v1495 = vmul.f32 %v1487, %v536
        %v1496 = vmul.f32 %v1488, %v537
        %v1497 = vmul.f32 %v1489, %v536
        %v1498 = vmul.f32 %v1490, %v537
        %v1499 = vmul.f32 %v1491, %v536
        %v1500 = vmul.f32 %v1492, %v537
        %v1501 = vmul.f32 %v1493, %v536
        %v1502 = vmul.f32 %v1494, %v537
        %v1503 = vadd.f32 %v1495, %v549
        %v1504 = vadd.f32 %v1496, %v550
        %v1505 = vadd.f32 %v1497, %v549
        %v1506 = vadd.f32 %v1498, %v550
        %v1507 = vadd.f32 %v1499, %v549
        %v1508 = vadd.f32 %v1500, %v550
        %v1509 = vadd.f32 %v1501, %v549
        %v1510 = vadd.f32 %v1502, %v550
        %v1511 = vmin.f32 %v1503, 20.0
        %v1512 = vmin.f32 %v1504, 20.0
        %v1513 = vmin.f32 %v1505, 20.0
        %v1514 = vmin.f32 %v1506, 20.0
        %v1515 = vmin.f32 %v1507, 20.0
        %v1516 = vmin.f32 %v1508, 20.0
        %v1517 = vmin.f32 %v1509, 20.0
        %v1518 = vmin.f32 %v1510, 20.0
        %v1519 = vmul.f32 %v1511, 1.442695
        %v1520 = vpow.pop %v1519
        %v1521 = vmul.f32 %v1512, 1.442695
        %v1522 = vpow.pop %v1521
        %v1523 = vmul.f32 %v1513, 1.442695
        %v1524 = vpow.pop %v1523
        %v1525 = vmul.f32 %v1514, 1.442695
        %v1526 = vpow.pop %v1525
        %v1527 = vmul.f32 %v1515, 1.442695
        %v1528 = vpow.pop %v1527
        %v1529 = vmul.f32 %v1516, 1.442695
        %v1530 = vpow.pop %v1529
        %v1531 = vmul.f32 %v1517, 1.442695
        %v1532 = vpow.pop %v1531
        %v1533 = vmul.f32 %v1518, 1.442695
        %v1534 = vpow.pop %v1533
        %v1535 = vadd.f32 %v1520, 2.0
        %v1536 = vadd.f32 %v1522, 2.0
        %v1537 = vadd.f32 %v1524, 2.0
        %v1538 = vadd.f32 %v1526, 2.0
        %v1539 = vadd.f32 %v1528, 2.0
        %v1540 = vadd.f32 %v1530, 2.0
        %v1541 = vadd.f32 %v1532, 2.0
        %v1542 = vadd.f32 %v1534, 2.0
        %v1543 = vmul.f32 %v1520, %v1535
        %v1544 = vmul.f32 %v1522, %v1536
        %v1545 = vmul.f32 %v1524, %v1537
        %v1546 = vmul.f32 %v1526, %v1538
        %v1547 = vmul.f32 %v1528, %v1539
        %v1548 = vmul.f32 %v1530, %v1540
        %v1549 = vmul.f32 %v1532, %v1541
        %v1550 = vmul.f32 %v1534, %v1542
        %v1551 = vadd.f32 %v1543, 2.0
        %v1552 = vadd.f32 %v1544, 2.0
        %v1553 = vadd.f32 %v1545, 2.0
        %v1554 = vadd.f32 %v1546, 2.0
        %v1555 = vadd.f32 %v1547, 2.0
        %v1556 = vadd.f32 %v1548, 2.0
        %v1557 = vadd.f32 %v1549, 2.0
        %v1558 = vadd.f32 %v1550, 2.0
        %v1559 = vrcp.pop %v1551
        %v1560 = vrcp.pop %v1552
        %v1561 = vrcp.pop %v1553
        %v1562 = vrcp.pop %v1554
        %v1563 = vrcp.pop %v1555
        %v1564 = vrcp.pop %v1556
        %v1565 = vrcp.pop %v1557
        %v1566 = vrcp.pop %v1558
        %v1567 = vmul.f32 %v1543, %v1559
        %v1568 = vmul.f32 %v1544, %v1560
        %v1569 = vmul.f32 %v1545, %v1561
        %v1570 = vmul.f32 %v1546, %v1562
        %v1571 = vmul.f32 %v1547, %v1563
        %v1572 = vmul.f32 %v1548, %v1564
        %v1573 = vmul.f32 %v1549, %v1565
        %v1574 = vmul.f32 %v1550, %v1566
        %v1575 = vmul.f32 %v1503, %v1567
        %v1576 = vmul.f32 %v1504, %v1568
        %v1577 = vmul.f32 %v1505, %v1569
        %v1578 = vmul.f32 %v1506, %v1570
        %v1579 = vmul.f32 %v1507, %v1571
        %v1580 = vmul.f32 %v1508, %v1572
        %v1581 = vmul.f32 %v1509, %v1573
        %v1582 = vmul.f32 %v1510, %v1574
        %v1583 = vpack.c.bf16 %v1577, %v1575
        %v1584 = vpack.c.bf16 %v1578, %v1576
        %v1585 = vpack.c.bf16 %v1581, %v1579
        %v1586 = vpack.c.bf16 %v1582, %v1580
        %s1587 = scalar_lea.vmem [#allocation3], 512
        %v1588 = vld [vmem:[%s1587] sm:$0xff]
        %v1589 = vld [vmem:[%s1587 + $0x8] sm:$0xff]
        %v1590 = vld [vmem:[%s1587 + $0x10] sm:$0xff]
        %v1591 = vld [vmem:[%s1587 + $0x18] sm:$0xff]
        %v1592 = vld [vmem:[%s1587 + $0x20] sm:$0xff]
        %v1593 = vld [vmem:[%s1587 + $0x28] sm:$0xff]
        %v1594 = vld [vmem:[%s1587 + $0x30] sm:$0xff]
        %v1595 = vld [vmem:[%s1587 + $0x38] sm:$0xff]
        %v1596 = vld [vmem:[%s1587 + $0x40] sm:$0xff]
        %v1597 = vld [vmem:[%s1587 + $0x48] sm:$0xff]
        %v1598 = vld [vmem:[%s1587 + $0x50] sm:$0xff]
        %v1599 = vld [vmem:[%s1587 + $0x58] sm:$0xff]
        %v1600 = vld [vmem:[%s1587 + $0x60] sm:$0xff]
        %v1601 = vld [vmem:[%s1587 + $0x68] sm:$0xff]
        %v1602 = vld [vmem:[%s1587 + $0x70] sm:$0xff]
        %v1603 = vld [vmem:[%s1587 + $0x78] sm:$0xff]
        %v1604 = vld [vmem:[%s1587 + $0x80] sm:$0xff]
        %v1605 = vld [vmem:[%s1587 + $0x88] sm:$0xff]
        %v1606 = vld [vmem:[%s1587 + $0x90] sm:$0xff]
        %v1607 = vld [vmem:[%s1587 + $0x98] sm:$0xff]
        %v1608 = vld [vmem:[%s1587 + $0xa0] sm:$0xff]
        %v1609 = vld [vmem:[%s1587 + $0xa8] sm:$0xff]
        %v1610 = vld [vmem:[%s1587 + $0xb0] sm:$0xff]
        %v1611 = vld [vmem:[%s1587 + $0xb8] sm:$0xff]
        %v1612 = vld [vmem:[%s1587 + $0xc0] sm:$0xff]
        %v1613 = vld [vmem:[%s1587 + $0xc8] sm:$0xff]
        %v1614 = vld [vmem:[%s1587 + $0xd0] sm:$0xff]
        %v1615 = vld [vmem:[%s1587 + $0xd8] sm:$0xff]
        %v1616 = vld [vmem:[%s1587 + $0xe0] sm:$0xff]
        %v1617 = vld [vmem:[%s1587 + $0xe8] sm:$0xff]
        %v1618 = vld [vmem:[%s1587 + $0xf0] sm:$0xff]
        %v1619 = vld [vmem:[%s1587 + $0xf8] sm:$0xff]
        %s1620 = scalar_lea.vmem %s4, 4
        %v1621 = vld [vmem:[%s1620] sm:$0x3]
        %v1623 = vperm.slane %v1621, 0
        %v1624 = vperm.slane %v1621, 1
        %v1659 = vunpack.c.l.b16 %v1588
        %v1660 = vunpack.c.h.b16 %v1588
        %v1661 = vunpack.c.l.b16 %v1589
        %v1662 = vunpack.c.h.b16 %v1589
        %v1663 = vunpack.c.l.b16 %v1590
        %v1664 = vunpack.c.h.b16 %v1590
        %v1665 = vunpack.c.l.b16 %v1591
        %v1666 = vunpack.c.h.b16 %v1591
        %v1667 = vunpack.c.l.b16 %v1592
        %v1668 = vunpack.c.h.b16 %v1592
        %v1669 = vunpack.c.l.b16 %v1593
        %v1670 = vunpack.c.h.b16 %v1593
        %v1671 = vunpack.c.l.b16 %v1594
        %v1672 = vunpack.c.h.b16 %v1594
        %v1673 = vunpack.c.l.b16 %v1595
        %v1674 = vunpack.c.h.b16 %v1595
        %v1675 = vunpack.c.l.b16 %v1596
        %v1676 = vunpack.c.h.b16 %v1596
        %v1677 = vunpack.c.l.b16 %v1597
        %v1678 = vunpack.c.h.b16 %v1597
        %v1679 = vunpack.c.l.b16 %v1598
        %v1680 = vunpack.c.h.b16 %v1598
        %v1681 = vunpack.c.l.b16 %v1599
        %v1682 = vunpack.c.h.b16 %v1599
        %v1683 = vunpack.c.l.b16 %v1600
        %v1684 = vunpack.c.h.b16 %v1600
        %v1685 = vunpack.c.l.b16 %v1601
        %v1686 = vunpack.c.h.b16 %v1601
        %v1687 = vunpack.c.l.b16 %v1602
        %v1688 = vunpack.c.h.b16 %v1602
        %v1689 = vunpack.c.l.b16 %v1603
        %v1690 = vunpack.c.h.b16 %v1603
        %v1691 = vunpack.c.l.b16 %v1604
        %v1692 = vunpack.c.h.b16 %v1604
        %v1693 = vunpack.c.l.b16 %v1605
        %v1694 = vunpack.c.h.b16 %v1605
        %v1695 = vunpack.c.l.b16 %v1606
        %v1696 = vunpack.c.h.b16 %v1606
        %v1697 = vunpack.c.l.b16 %v1607
        %v1698 = vunpack.c.h.b16 %v1607
        %v1699 = vunpack.c.l.b16 %v1608
        %v1700 = vunpack.c.h.b16 %v1608
        %v1701 = vunpack.c.l.b16 %v1609
        %v1702 = vunpack.c.h.b16 %v1609
        %v1703 = vunpack.c.l.b16 %v1610
        %v1704 = vunpack.c.h.b16 %v1610
        %v1705 = vunpack.c.l.b16 %v1611
        %v1706 = vunpack.c.h.b16 %v1611
        %v1707 = vunpack.c.l.b16 %v1612
        %v1708 = vunpack.c.h.b16 %v1612
        %v1709 = vunpack.c.l.b16 %v1613
        %v1710 = vunpack.c.h.b16 %v1613
        %v1711 = vunpack.c.l.b16 %v1614
        %v1712 = vunpack.c.h.b16 %v1614
        %v1713 = vunpack.c.l.b16 %v1615
        %v1714 = vunpack.c.h.b16 %v1615
        %v1715 = vunpack.c.l.b16 %v1616
        %v1716 = vunpack.c.h.b16 %v1616
        %v1717 = vunpack.c.l.b16 %v1617
        %v1718 = vunpack.c.h.b16 %v1617
        %v1719 = vunpack.c.l.b16 %v1618
        %v1720 = vunpack.c.h.b16 %v1618
        %v1721 = vunpack.c.l.b16 %v1619
        %v1722 = vunpack.c.h.b16 %v1619
        %v1723 = vpack.c.b16 %v1661, %v1659
        %v1724 = vpack.c.b16 %v1662, %v1660
        %v1725 = vpack.c.b16 %v1665, %v1663
        %v1726 = vpack.c.b16 %v1666, %v1664
        %v1727 = vpack.c.b16 %v1669, %v1667
        %v1728 = vpack.c.b16 %v1670, %v1668
        %v1729 = vpack.c.b16 %v1673, %v1671
        %v1730 = vpack.c.b16 %v1674, %v1672
        %v1731 = vpack.c.b16 %v1677, %v1675
        %v1732 = vpack.c.b16 %v1678, %v1676
        %v1733 = vpack.c.b16 %v1681, %v1679
        %v1734 = vpack.c.b16 %v1682, %v1680
        %v1735 = vpack.c.b16 %v1685, %v1683
        %v1736 = vpack.c.b16 %v1686, %v1684
        %v1737 = vpack.c.b16 %v1689, %v1687
        %v1738 = vpack.c.b16 %v1690, %v1688
        %v1739 = vpack.c.b16 %v1693, %v1691
        %v1740 = vpack.c.b16 %v1694, %v1692
        %v1741 = vpack.c.b16 %v1697, %v1695
        %v1742 = vpack.c.b16 %v1698, %v1696
        %v1743 = vpack.c.b16 %v1701, %v1699
        %v1744 = vpack.c.b16 %v1702, %v1700
        %v1745 = vpack.c.b16 %v1705, %v1703
        %v1746 = vpack.c.b16 %v1706, %v1704
        %v1747 = vpack.c.b16 %v1709, %v1707
        %v1748 = vpack.c.b16 %v1710, %v1708
        %v1749 = vpack.c.b16 %v1713, %v1711
        %v1750 = vpack.c.b16 %v1714, %v1712
        %v1751 = vpack.c.b16 %v1717, %v1715
        %v1752 = vpack.c.b16 %v1718, %v1716
        %v1753 = vpack.c.b16 %v1721, %v1719
        %v1754 = vpack.c.b16 %v1722, %v1720
        %1787 = vmatpush.bf16.msra.mxu0 %v1737
        %1788 = vmatpush.bf16.msra.mxu0 %v1735
        %1789 = vmatpush.bf16.msra.mxu0 %v1733
        %1790 = vmatpush.bf16.msra.mxu0 %v1731
        %1791 = vmatpush.bf16.msra.mxu0 %v1729
        %1792 = vmatpush.bf16.msra.mxu0 %v1727
        %1793 = vmatpush.bf16.msra.mxu0 %v1725
        %1794 = vmatpush.bf16.msra.mxu0 %v1723
        %1795 = vmatmul.bf16.gmra.mxu0 %v1583
        %v1796 = vpop.f32.mrf.mxu0
        %v1797 = vadd.f32 %v1623, %v1796
        %v1798 = vpop.f32.mrf.mxu0
        %v1799 = vadd.f32 %v1623, %v1798
        %1800 = vmatmul.bf16.gmra.mxu0 %v1585
        %v1801 = vpop.f32.mrf.mxu0
        %v1802 = vadd.f32 %v1623, %v1801
        %v1803 = vpop.f32.mrf.mxu0
        %v1804 = vadd.f32 %v1623, %v1803
        %1805 = vdwg.mxu0
        %1806 = vmatpush.bf16.msra.mxu0 %v1753
        %1807 = vmatpush.bf16.msra.mxu0 %v1751
        %1808 = vmatpush.bf16.msra.mxu0 %v1749
        %1809 = vmatpush.bf16.msra.mxu0 %v1747
        %1810 = vmatpush.bf16.msra.mxu0 %v1745
        %1811 = vmatpush.bf16.msra.mxu0 %v1743
        %1812 = vmatpush.bf16.msra.mxu0 %v1741
        %1813 = vmatpush.bf16.msra.mxu0 %v1739
        %1814 = vmatmul.bf16.gmra.mxu0 %v1584
        %v1815 = vpop.f32.mrf.mxu0
        %v1816 = vadd.f32 %v1797, %v1815
        %v1817 = vpop.f32.mrf.mxu0
        %v1818 = vadd.f32 %v1799, %v1817
        %1819 = vmatmul.bf16.gmra.mxu0 %v1586
        %v1820 = vpop.f32.mrf.mxu0
        %v1821 = vadd.f32 %v1802, %v1820
        %v1822 = vpop.f32.mrf.mxu0
        %v1823 = vadd.f32 %v1804, %v1822
        %1824 = vdwg.mxu0
        %1825 = vmatpush.bf16.msra.mxu0 %v1738
        %1826 = vmatpush.bf16.msra.mxu0 %v1736
        %1827 = vmatpush.bf16.msra.mxu0 %v1734
        %1828 = vmatpush.bf16.msra.mxu0 %v1732
        %1829 = vmatpush.bf16.msra.mxu0 %v1730
        %1830 = vmatpush.bf16.msra.mxu0 %v1728
        %1831 = vmatpush.bf16.msra.mxu0 %v1726
        %1832 = vmatpush.bf16.msra.mxu0 %v1724
        %1833 = vmatmul.bf16.gmra.mxu0 %v1583
        %v1834 = vpop.f32.mrf.mxu0
        %v1835 = vadd.f32 %v1624, %v1834
        %v1836 = vpop.f32.mrf.mxu0
        %v1837 = vadd.f32 %v1624, %v1836
        %1838 = vmatmul.bf16.gmra.mxu0 %v1585
        %v1839 = vpop.f32.mrf.mxu0
        %v1840 = vadd.f32 %v1624, %v1839
        %v1841 = vpop.f32.mrf.mxu0
        %v1842 = vadd.f32 %v1624, %v1841
        %1843 = vdwg.mxu0
        %1844 = vmatpush.bf16.msra.mxu0 %v1754
        %1845 = vmatpush.bf16.msra.mxu0 %v1752
        %1846 = vmatpush.bf16.msra.mxu0 %v1750
        %1847 = vmatpush.bf16.msra.mxu0 %v1748
        %1848 = vmatpush.bf16.msra.mxu0 %v1746
        %1849 = vmatpush.bf16.msra.mxu0 %v1744
        %1850 = vmatpush.bf16.msra.mxu0 %v1742
        %1851 = vmatpush.bf16.msra.mxu0 %v1740
        %1852 = vmatmul.bf16.gmra.mxu0 %v1584
        %v1853 = vpop.f32.mrf.mxu0
        %v1854 = vadd.f32 %v1835, %v1853
        %v1855 = vpop.f32.mrf.mxu0
        %v1856 = vadd.f32 %v1837, %v1855
        %1857 = vmatmul.bf16.gmra.mxu0 %v1586
        %v1858 = vpop.f32.mrf.mxu0
        %v1859 = vadd.f32 %v1840, %v1858
        %v1860 = vpop.f32.mrf.mxu0
        %v1861 = vadd.f32 %v1842, %v1860
        %1862 = vdwg.mxu0
        %v1863 = vadd.f32 %v1816, %v1854
        %1864 = vadd.xlane.f32.xlu0 %v1863
        %v1865 = vpop.xlane.xlu0 %1864
        %v1866 = vadd.f32 %v1818, %v1856
        %1867 = vadd.xlane.f32.xlu0 %v1866
        %v1868 = vpop.xlane.xlu0 %1867
        %v1869 = vadd.f32 %v1821, %v1859
        %1870 = vadd.xlane.f32.xlu0 %v1869
        %v1871 = vpop.xlane.xlu0 %1870
        %v1872 = vadd.f32 %v1823, %v1861
        %1873 = vadd.xlane.f32.xlu0 %v1872
        %v1874 = vpop.xlane.xlu0 %1873
        %v1875 = vmul.f32 %v1865, 0.005
        %v1876 = vmul.f32 %v1868, 0.005
        %v1877 = vmul.f32 %v1871, 0.005
        %v1878 = vmul.f32 %v1874, 0.005
        %v1879 = vmul.f32 %v1816, %v1816
        %v1880 = vmul.f32 %v1854, %v1854
        %v1881 = vmul.f32 %v1818, %v1818
        %v1882 = vmul.f32 %v1856, %v1856
        %v1883 = vmul.f32 %v1821, %v1821
        %v1884 = vmul.f32 %v1859, %v1859
        %v1885 = vmul.f32 %v1823, %v1823
        %v1886 = vmul.f32 %v1861, %v1861
        %v1887 = vadd.f32 %v1879, %v1880
        %1888 = vadd.xlane.f32.xlu0 %v1887
        %v1889 = vpop.xlane.xlu0 %1888
        %v1890 = vadd.f32 %v1881, %v1882
        %1891 = vadd.xlane.f32.xlu0 %v1890
        %v1892 = vpop.xlane.xlu0 %1891
        %v1893 = vadd.f32 %v1883, %v1884
        %1894 = vadd.xlane.f32.xlu0 %v1893
        %v1895 = vpop.xlane.xlu0 %1894
        %v1896 = vadd.f32 %v1885, %v1886
        %1897 = vadd.xlane.f32.xlu0 %v1896
        %v1898 = vpop.xlane.xlu0 %1897
        %v1899 = vmul.f32 %v1889, 0.005
        %v1900 = vmul.f32 %v1892, 0.005
        %v1901 = vmul.f32 %v1895, 0.005
        %v1902 = vmul.f32 %v1898, 0.005
        %v1903 = vmul.f32 %v1875, %v1875
        %v1904 = vmul.f32 %v1876, %v1876
        %v1905 = vmul.f32 %v1877, %v1877
        %v1906 = vmul.f32 %v1878, %v1878
        %v1907 = vsub.f32 %v1899, %v1903
        %v1908 = vsub.f32 %v1900, %v1904
        %v1909 = vsub.f32 %v1901, %v1905
        %v1910 = vsub.f32 %v1902, %v1906
        %v1911 = vsub.f32 %v1816, %v1875
        %v1912 = vsub.f32 %v1854, %v1875
        %v1913 = vsub.f32 %v1818, %v1876
        %v1914 = vsub.f32 %v1856, %v1876
        %v1915 = vsub.f32 %v1821, %v1877
        %v1916 = vsub.f32 %v1859, %v1877
        %v1917 = vsub.f32 %v1823, %v1878
        %v1918 = vsub.f32 %v1861, %v1878
        %v1919 = vadd.f32 %v1907, 1e-05
        %v1920 = vadd.f32 %v1908, 1e-05
        %v1921 = vadd.f32 %v1909, 1e-05
        %v1922 = vadd.f32 %v1910, 1e-05
        %v1923 = vrsqrt.pop %v1919
        %v1924 = vmul.f32 %v1923, %v1919
        %v1925 = vmul.f32 %v1924, %v1923
        %v1926 = vmul.f32 0.5, %v1925
        %v1927 = vsub.f32 1.5, %v1926
        %v1928 = vmul.f32 %v1923, %v1927
        %vm1929 = vweird.f32 %v1919
        %vm1930 = vweird.f32 %v1923
        %vm1931 = vmor %vm1929, %vm1930
        %v1932 = vsel %vm1931, %v1923, %v1928
        %v1933 = vrsqrt.pop %v1920
        %v1934 = vmul.f32 %v1933, %v1920
        %v1935 = vmul.f32 %v1934, %v1933
        %v1936 = vmul.f32 0.5, %v1935
        %v1937 = vsub.f32 1.5, %v1936
        %v1938 = vmul.f32 %v1933, %v1937
        %vm1939 = vweird.f32 %v1920
        %vm1940 = vweird.f32 %v1933
        %vm1941 = vmor %vm1939, %vm1940
        %v1942 = vsel %vm1941, %v1933, %v1938
        %v1943 = vrsqrt.pop %v1921
        %v1944 = vmul.f32 %v1943, %v1921
        %v1945 = vmul.f32 %v1944, %v1943
        %v1946 = vmul.f32 0.5, %v1945
        %v1947 = vsub.f32 1.5, %v1946
        %v1948 = vmul.f32 %v1943, %v1947
        %vm1949 = vweird.f32 %v1921
        %vm1950 = vweird.f32 %v1943
        %vm1951 = vmor %vm1949, %vm1950
        %v1952 = vsel %vm1951, %v1943, %v1948
        %v1953 = vrsqrt.pop %v1922
        %v1954 = vmul.f32 %v1953, %v1922
        %v1955 = vmul.f32 %v1954, %v1953
        %v1956 = vmul.f32 0.5, %v1955
        %v1957 = vsub.f32 1.5, %v1956
        %v1958 = vmul.f32 %v1953, %v1957
        %vm1959 = vweird.f32 %v1922
        %vm1960 = vweird.f32 %v1953
        %vm1961 = vmor %vm1959, %vm1960
        %v1962 = vsel %vm1961, %v1953, %v1958
        %v1963 = vmul.f32 %v1911, %v1932
        %v1964 = vmul.f32 %v1912, %v1932
        %v1965 = vmul.f32 %v1913, %v1942
        %v1966 = vmul.f32 %v1914, %v1942
        %v1967 = vmul.f32 %v1915, %v1952
        %v1968 = vmul.f32 %v1916, %v1952
        %v1969 = vmul.f32 %v1917, %v1962
        %v1970 = vmul.f32 %v1918, %v1962
        %v1971 = vmul.f32 %v1963, %v536
        %v1972 = vmul.f32 %v1964, %v537
        %v1973 = vmul.f32 %v1965, %v536
        %v1974 = vmul.f32 %v1966, %v537
        %v1975 = vmul.f32 %v1967, %v536
        %v1976 = vmul.f32 %v1968, %v537
        %v1977 = vmul.f32 %v1969, %v536
        %v1978 = vmul.f32 %v1970, %v537
        %v1979 = vadd.f32 %v1971, %v549
        %v1980 = vadd.f32 %v1972, %v550
        %v1981 = vadd.f32 %v1973, %v549
        %v1982 = vadd.f32 %v1974, %v550
        %v1983 = vadd.f32 %v1975, %v549
        %v1984 = vadd.f32 %v1976, %v550
        %v1985 = vadd.f32 %v1977, %v549
        %v1986 = vadd.f32 %v1978, %v550
        %v1987 = vmin.f32 %v1979, 20.0
        %v1988 = vmin.f32 %v1980, 20.0
        %v1989 = vmin.f32 %v1981, 20.0
        %v1990 = vmin.f32 %v1982, 20.0
        %v1991 = vmin.f32 %v1983, 20.0
        %v1992 = vmin.f32 %v1984, 20.0
        %v1993 = vmin.f32 %v1985, 20.0
        %v1994 = vmin.f32 %v1986, 20.0
        %v1995 = vmul.f32 %v1987, 1.442695
        %v1996 = vpow.pop %v1995
        %v1997 = vmul.f32 %v1988, 1.442695
        %v1998 = vpow.pop %v1997
        %v1999 = vmul.f32 %v1989, 1.442695
        %v2000 = vpow.pop %v1999
        %v2001 = vmul.f32 %v1990, 1.442695
        %v2002 = vpow.pop %v2001
        %v2003 = vmul.f32 %v1991, 1.442695
        %v2004 = vpow.pop %v2003
        %v2005 = vmul.f32 %v1992, 1.442695
        %v2006 = vpow.pop %v2005
        %v2007 = vmul.f32 %v1993, 1.442695
        %v2008 = vpow.pop %v2007
        %v2009 = vmul.f32 %v1994, 1.442695
        %v2010 = vpow.pop %v2009
        %v2011 = vadd.f32 %v1996, 2.0
        %v2012 = vadd.f32 %v1998, 2.0
        %v2013 = vadd.f32 %v2000, 2.0
        %v2014 = vadd.f32 %v2002, 2.0
        %v2015 = vadd.f32 %v2004, 2.0
        %v2016 = vadd.f32 %v2006, 2.0
        %v2017 = vadd.f32 %v2008, 2.0
        %v2018 = vadd.f32 %v2010, 2.0
        %v2019 = vmul.f32 %v1996, %v2011
        %v2020 = vmul.f32 %v1998, %v2012
        %v2021 = vmul.f32 %v2000, %v2013
        %v2022 = vmul.f32 %v2002, %v2014
        %v2023 = vmul.f32 %v2004, %v2015
        %v2024 = vmul.f32 %v2006, %v2016
        %v2025 = vmul.f32 %v2008, %v2017
        %v2026 = vmul.f32 %v2010, %v2018
        %v2027 = vadd.f32 %v2019, 2.0
        %v2028 = vadd.f32 %v2020, 2.0
        %v2029 = vadd.f32 %v2021, 2.0
        %v2030 = vadd.f32 %v2022, 2.0
        %v2031 = vadd.f32 %v2023, 2.0
        %v2032 = vadd.f32 %v2024, 2.0
        %v2033 = vadd.f32 %v2025, 2.0
        %v2034 = vadd.f32 %v2026, 2.0
        %v2035 = vrcp.pop %v2027
        %v2036 = vrcp.pop %v2028
        %v2037 = vrcp.pop %v2029
        %v2038 = vrcp.pop %v2030
        %v2039 = vrcp.pop %v2031
        %v2040 = vrcp.pop %v2032
        %v2041 = vrcp.pop %v2033
        %v2042 = vrcp.pop %v2034
        %v2043 = vmul.f32 %v2019, %v2035
        %v2044 = vmul.f32 %v2020, %v2036
        %v2045 = vmul.f32 %v2021, %v2037
        %v2046 = vmul.f32 %v2022, %v2038
        %v2047 = vmul.f32 %v2023, %v2039
        %v2048 = vmul.f32 %v2024, %v2040
        %v2049 = vmul.f32 %v2025, %v2041
        %v2050 = vmul.f32 %v2026, %v2042
        %v2051 = vmul.f32 %v1979, %v2043
        %v2052 = vmul.f32 %v1980, %v2044
        %v2053 = vmul.f32 %v1981, %v2045
        %v2054 = vmul.f32 %v1982, %v2046
        %v2055 = vmul.f32 %v1983, %v2047
        %v2056 = vmul.f32 %v1984, %v2048
        %v2057 = vmul.f32 %v1985, %v2049
        %v2058 = vmul.f32 %v1986, %v2050
        %v2059 = vpack.c.bf16 %v2053, %v2051
        %v2060 = vpack.c.bf16 %v2054, %v2052
        %v2061 = vpack.c.bf16 %v2057, %v2055
        %v2062 = vpack.c.bf16 %v2058, %v2056
        %s2063 = scalar_lea.vmem [#allocation3], 768
        %v2064 = vld [vmem:[%s2063] sm:$0xff]
        %v2065 = vld [vmem:[%s2063 + $0x8] sm:$0xff]
        %v2066 = vld [vmem:[%s2063 + $0x10] sm:$0xff]
        %v2067 = vld [vmem:[%s2063 + $0x18] sm:$0xff]
        %v2068 = vld [vmem:[%s2063 + $0x20] sm:$0xff]
        %v2069 = vld [vmem:[%s2063 + $0x28] sm:$0xff]
        %v2070 = vld [vmem:[%s2063 + $0x30] sm:$0xff]
        %v2071 = vld [vmem:[%s2063 + $0x38] sm:$0xff]
        %v2072 = vld [vmem:[%s2063 + $0x40] sm:$0xff]
        %v2073 = vld [vmem:[%s2063 + $0x48] sm:$0xff]
        %v2074 = vld [vmem:[%s2063 + $0x50] sm:$0xff]
        %v2075 = vld [vmem:[%s2063 + $0x58] sm:$0xff]
        %v2076 = vld [vmem:[%s2063 + $0x60] sm:$0xff]
        %v2077 = vld [vmem:[%s2063 + $0x68] sm:$0xff]
        %v2078 = vld [vmem:[%s2063 + $0x70] sm:$0xff]
        %v2079 = vld [vmem:[%s2063 + $0x78] sm:$0xff]
        %v2080 = vld [vmem:[%s2063 + $0x80] sm:$0xff]
        %v2081 = vld [vmem:[%s2063 + $0x88] sm:$0xff]
        %v2082 = vld [vmem:[%s2063 + $0x90] sm:$0xff]
        %v2083 = vld [vmem:[%s2063 + $0x98] sm:$0xff]
        %v2084 = vld [vmem:[%s2063 + $0xa0] sm:$0xff]
        %v2085 = vld [vmem:[%s2063 + $0xa8] sm:$0xff]
        %v2086 = vld [vmem:[%s2063 + $0xb0] sm:$0xff]
        %v2087 = vld [vmem:[%s2063 + $0xb8] sm:$0xff]
        %v2088 = vld [vmem:[%s2063 + $0xc0] sm:$0xff]
        %v2089 = vld [vmem:[%s2063 + $0xc8] sm:$0xff]
        %v2090 = vld [vmem:[%s2063 + $0xd0] sm:$0xff]
        %v2091 = vld [vmem:[%s2063 + $0xd8] sm:$0xff]
        %v2092 = vld [vmem:[%s2063 + $0xe0] sm:$0xff]
        %v2093 = vld [vmem:[%s2063 + $0xe8] sm:$0xff]
        %v2094 = vld [vmem:[%s2063 + $0xf0] sm:$0xff]
        %v2095 = vld [vmem:[%s2063 + $0xf8] sm:$0xff]
        %s2096 = scalar_lea.vmem %s4, 6
        %v2097 = vld [vmem:[%s2096] sm:$0x3]
        %v2099 = vperm.slane %v2097, 0
        %v2100 = vperm.slane %v2097, 1
        %v2135 = vunpack.c.l.b16 %v2064
        %v2136 = vunpack.c.h.b16 %v2064
        %v2137 = vunpack.c.l.b16 %v2065
        %v2138 = vunpack.c.h.b16 %v2065
        %v2139 = vunpack.c.l.b16 %v2066
        %v2140 = vunpack.c.h.b16 %v2066
        %v2141 = vunpack.c.l.b16 %v2067
        %v2142 = vunpack.c.h.b16 %v2067
        %v2143 = vunpack.c.l.b16 %v2068
        %v2144 = vunpack.c.h.b16 %v2068
        %v2145 = vunpack.c.l.b16 %v2069
        %v2146 = vunpack.c.h.b16 %v2069
        %v2147 = vunpack.c.l.b16 %v2070
        %v2148 = vunpack.c.h.b16 %v2070
        %v2149 = vunpack.c.l.b16 %v2071
        %v2150 = vunpack.c.h.b16 %v2071
        %v2151 = vunpack.c.l.b16 %v2072
        %v2152 = vunpack.c.h.b16 %v2072
        %v2153 = vunpack.c.l.b16 %v2073
        %v2154 = vunpack.c.h.b16 %v2073
        %v2155 = vunpack.c.l.b16 %v2074
        %v2156 = vunpack.c.h.b16 %v2074
        %v2157 = vunpack.c.l.b16 %v2075
        %v2158 = vunpack.c.h.b16 %v2075
        %v2159 = vunpack.c.l.b16 %v2076
        %v2160 = vunpack.c.h.b16 %v2076
        %v2161 = vunpack.c.l.b16 %v2077
        %v2162 = vunpack.c.h.b16 %v2077
        %v2163 = vunpack.c.l.b16 %v2078
        %v2164 = vunpack.c.h.b16 %v2078
        %v2165 = vunpack.c.l.b16 %v2079
        %v2166 = vunpack.c.h.b16 %v2079
        %v2167 = vunpack.c.l.b16 %v2080
        %v2168 = vunpack.c.h.b16 %v2080
        %v2169 = vunpack.c.l.b16 %v2081
        %v2170 = vunpack.c.h.b16 %v2081
        %v2171 = vunpack.c.l.b16 %v2082
        %v2172 = vunpack.c.h.b16 %v2082
        %v2173 = vunpack.c.l.b16 %v2083
        %v2174 = vunpack.c.h.b16 %v2083
        %v2175 = vunpack.c.l.b16 %v2084
        %v2176 = vunpack.c.h.b16 %v2084
        %v2177 = vunpack.c.l.b16 %v2085
        %v2178 = vunpack.c.h.b16 %v2085
        %v2179 = vunpack.c.l.b16 %v2086
        %v2180 = vunpack.c.h.b16 %v2086
        %v2181 = vunpack.c.l.b16 %v2087
        %v2182 = vunpack.c.h.b16 %v2087
        %v2183 = vunpack.c.l.b16 %v2088
        %v2184 = vunpack.c.h.b16 %v2088
        %v2185 = vunpack.c.l.b16 %v2089
        %v2186 = vunpack.c.h.b16 %v2089
        %v2187 = vunpack.c.l.b16 %v2090
        %v2188 = vunpack.c.h.b16 %v2090
        %v2189 = vunpack.c.l.b16 %v2091
        %v2190 = vunpack.c.h.b16 %v2091
        %v2191 = vunpack.c.l.b16 %v2092
        %v2192 = vunpack.c.h.b16 %v2092
        %v2193 = vunpack.c.l.b16 %v2093
        %v2194 = vunpack.c.h.b16 %v2093
        %v2195 = vunpack.c.l.b16 %v2094
        %v2196 = vunpack.c.h.b16 %v2094
        %v2197 = vunpack.c.l.b16 %v2095
        %v2198 = vunpack.c.h.b16 %v2095
        %v2199 = vpack.c.b16 %v2137, %v2135
        %v2200 = vpack.c.b16 %v2138, %v2136
        %v2201 = vpack.c.b16 %v2141, %v2139
        %v2202 = vpack.c.b16 %v2142, %v2140
        %v2203 = vpack.c.b16 %v2145, %v2143
        %v2204 = vpack.c.b16 %v2146, %v2144
        %v2205 = vpack.c.b16 %v2149, %v2147
        %v2206 = vpack.c.b16 %v2150, %v2148
        %v2207 = vpack.c.b16 %v2153, %v2151
        %v2208 = vpack.c.b16 %v2154, %v2152
        %v2209 = vpack.c.b16 %v2157, %v2155
        %v2210 = vpack.c.b16 %v2158, %v2156
        %v2211 = vpack.c.b16 %v2161, %v2159
        %v2212 = vpack.c.b16 %v2162, %v2160
        %v2213 = vpack.c.b16 %v2165, %v2163
        %v2214 = vpack.c.b16 %v2166, %v2164
        %v2215 = vpack.c.b16 %v2169, %v2167
        %v2216 = vpack.c.b16 %v2170, %v2168
        %v2217 = vpack.c.b16 %v2173, %v2171
        %v2218 = vpack.c.b16 %v2174, %v2172
        %v2219 = vpack.c.b16 %v2177, %v2175
        %v2220 = vpack.c.b16 %v2178, %v2176
        %v2221 = vpack.c.b16 %v2181, %v2179
        %v2222 = vpack.c.b16 %v2182, %v2180
        %v2223 = vpack.c.b16 %v2185, %v2183
        %v2224 = vpack.c.b16 %v2186, %v2184
        %v2225 = vpack.c.b16 %v2189, %v2187
        %v2226 = vpack.c.b16 %v2190, %v2188
        %v2227 = vpack.c.b16 %v2193, %v2191
        %v2228 = vpack.c.b16 %v2194, %v2192
        %v2229 = vpack.c.b16 %v2197, %v2195
        %v2230 = vpack.c.b16 %v2198, %v2196
        %2263 = vmatpush.bf16.msra.mxu0 %v2213
        %2264 = vmatpush.bf16.msra.mxu0 %v2211
        %2265 = vmatpush.bf16.msra.mxu0 %v2209
        %2266 = vmatpush.bf16.msra.mxu0 %v2207
        %2267 = vmatpush.bf16.msra.mxu0 %v2205
        %2268 = vmatpush.bf16.msra.mxu0 %v2203
        %2269 = vmatpush.bf16.msra.mxu0 %v2201
        %2270 = vmatpush.bf16.msra.mxu0 %v2199
        %2271 = vmatmul.bf16.gmra.mxu0 %v2059
        %v2272 = vpop.f32.mrf.mxu0
        %v2273 = vadd.f32 %v2099, %v2272
        %v2274 = vpop.f32.mrf.mxu0
        %v2275 = vadd.f32 %v2099, %v2274
        %2276 = vmatmul.bf16.gmra.mxu0 %v2061
        %v2277 = vpop.f32.mrf.mxu0
        %v2278 = vadd.f32 %v2099, %v2277
        %v2279 = vpop.f32.mrf.mxu0
        %v2280 = vadd.f32 %v2099, %v2279
        %2281 = vdwg.mxu0
        %2282 = vmatpush.bf16.msra.mxu0 %v2229
        %2283 = vmatpush.bf16.msra.mxu0 %v2227
        %2284 = vmatpush.bf16.msra.mxu0 %v2225
        %2285 = vmatpush.bf16.msra.mxu0 %v2223
        %2286 = vmatpush.bf16.msra.mxu0 %v2221
        %2287 = vmatpush.bf16.msra.mxu0 %v2219
        %2288 = vmatpush.bf16.msra.mxu0 %v2217
        %2289 = vmatpush.bf16.msra.mxu0 %v2215
        %2290 = vmatmul.bf16.gmra.mxu0 %v2060
        %v2291 = vpop.f32.mrf.mxu0
        %v2292 = vadd.f32 %v2273, %v2291
        %v2293 = vpop.f32.mrf.mxu0
        %v2294 = vadd.f32 %v2275, %v2293
        %2295 = vmatmul.bf16.gmra.mxu0 %v2062
        %v2296 = vpop.f32.mrf.mxu0
        %v2297 = vadd.f32 %v2278, %v2296
        %v2298 = vpop.f32.mrf.mxu0
        %v2299 = vadd.f32 %v2280, %v2298
        %2300 = vdwg.mxu0
        %2301 = vmatpush.bf16.msra.mxu0 %v2214
        %2302 = vmatpush.bf16.msra.mxu0 %v2212
        %2303 = vmatpush.bf16.msra.mxu0 %v2210
        %2304 = vmatpush.bf16.msra.mxu0 %v2208
        %2305 = vmatpush.bf16.msra.mxu0 %v2206
        %2306 = vmatpush.bf16.msra.mxu0 %v2204
        %2307 = vmatpush.bf16.msra.mxu0 %v2202
        %2308 = vmatpush.bf16.msra.mxu0 %v2200
        %2309 = vmatmul.bf16.gmra.mxu0 %v2059
        %v2310 = vpop.f32.mrf.mxu0
        %v2311 = vadd.f32 %v2100, %v2310
        %v2312 = vpop.f32.mrf.mxu0
        %v2313 = vadd.f32 %v2100, %v2312
        %2314 = vmatmul.bf16.gmra.mxu0 %v2061
        %v2315 = vpop.f32.mrf.mxu0
        %v2316 = vadd.f32 %v2100, %v2315
        %v2317 = vpop.f32.mrf.mxu0
        %v2318 = vadd.f32 %v2100, %v2317
        %2319 = vdwg.mxu0
        %2320 = vmatpush.bf16.msra.mxu0 %v2230
        %2321 = vmatpush.bf16.msra.mxu0 %v2228
        %2322 = vmatpush.bf16.msra.mxu0 %v2226
        %2323 = vmatpush.bf16.msra.mxu0 %v2224
        %2324 = vmatpush.bf16.msra.mxu0 %v2222
        %2325 = vmatpush.bf16.msra.mxu0 %v2220
        %2326 = vmatpush.bf16.msra.mxu0 %v2218
        %2327 = vmatpush.bf16.msra.mxu0 %v2216
        %2328 = vmatmul.bf16.gmra.mxu0 %v2060
        %v2329 = vpop.f32.mrf.mxu0
        %v2330 = vadd.f32 %v2311, %v2329
        %v2331 = vpop.f32.mrf.mxu0
        %v2332 = vadd.f32 %v2313, %v2331
        %2333 = vmatmul.bf16.gmra.mxu0 %v2062
        %v2334 = vpop.f32.mrf.mxu0
        %v2335 = vadd.f32 %v2316, %v2334
        %v2336 = vpop.f32.mrf.mxu0
        %v2337 = vadd.f32 %v2318, %v2336
        %2338 = vdwg.mxu0
        %v2339 = vadd.f32 %v2292, %v2330
        %2340 = vadd.xlane.f32.xlu0 %v2339
        %v2341 = vpop.xlane.xlu0 %2340
        %v2342 = vadd.f32 %v2294, %v2332
        %2343 = vadd.xlane.f32.xlu0 %v2342
        %v2344 = vpop.xlane.xlu0 %2343
        %v2345 = vadd.f32 %v2297, %v2335
        %2346 = vadd.xlane.f32.xlu0 %v2345
        %v2347 = vpop.xlane.xlu0 %2346
        %v2348 = vadd.f32 %v2299, %v2337
        %2349 = vadd.xlane.f32.xlu0 %v2348
        %v2350 = vpop.xlane.xlu0 %2349
        %v2351 = vmul.f32 %v2341, 0.005
        %v2352 = vmul.f32 %v2344, 0.005
        %v2353 = vmul.f32 %v2347, 0.005
        %v2354 = vmul.f32 %v2350, 0.005
        %v2355 = vmul.f32 %v2292, %v2292
        %v2356 = vmul.f32 %v2330, %v2330
        %v2357 = vmul.f32 %v2294, %v2294
        %v2358 = vmul.f32 %v2332, %v2332
        %v2359 = vmul.f32 %v2297, %v2297
        %v2360 = vmul.f32 %v2335, %v2335
        %v2361 = vmul.f32 %v2299, %v2299
        %v2362 = vmul.f32 %v2337, %v2337
        %v2363 = vadd.f32 %v2355, %v2356
        %2364 = vadd.xlane.f32.xlu0 %v2363
        %v2365 = vpop.xlane.xlu0 %2364
        %v2366 = vadd.f32 %v2357, %v2358
        %2367 = vadd.xlane.f32.xlu0 %v2366
        %v2368 = vpop.xlane.xlu0 %2367
        %v2369 = vadd.f32 %v2359, %v2360
        %2370 = vadd.xlane.f32.xlu0 %v2369
        %v2371 = vpop.xlane.xlu0 %2370
        %v2372 = vadd.f32 %v2361, %v2362
        %2373 = vadd.xlane.f32.xlu0 %v2372
        %v2374 = vpop.xlane.xlu0 %2373
        %v2375 = vmul.f32 %v2365, 0.005
        %v2376 = vmul.f32 %v2368, 0.005
        %v2377 = vmul.f32 %v2371, 0.005
        %v2378 = vmul.f32 %v2374, 0.005
        %v2379 = vmul.f32 %v2351, %v2351
        %v2380 = vmul.f32 %v2352, %v2352
        %v2381 = vmul.f32 %v2353, %v2353
        %v2382 = vmul.f32 %v2354, %v2354
        %v2383 = vsub.f32 %v2375, %v2379
        %v2384 = vsub.f32 %v2376, %v2380
        %v2385 = vsub.f32 %v2377, %v2381
        %v2386 = vsub.f32 %v2378, %v2382
        %v2387 = vsub.f32 %v2292, %v2351
        %v2388 = vsub.f32 %v2330, %v2351
        %v2389 = vsub.f32 %v2294, %v2352
        %v2390 = vsub.f32 %v2332, %v2352
        %v2391 = vsub.f32 %v2297, %v2353
        %v2392 = vsub.f32 %v2335, %v2353
        %v2393 = vsub.f32 %v2299, %v2354
        %v2394 = vsub.f32 %v2337, %v2354
        %v2395 = vadd.f32 %v2383, 1e-05
        %v2396 = vadd.f32 %v2384, 1e-05
        %v2397 = vadd.f32 %v2385, 1e-05
        %v2398 = vadd.f32 %v2386, 1e-05
        %v2399 = vrsqrt.pop %v2395
        %v2400 = vmul.f32 %v2399, %v2395
        %v2401 = vmul.f32 %v2400, %v2399
        %v2402 = vmul.f32 0.5, %v2401
        %v2403 = vsub.f32 1.5, %v2402
        %v2404 = vmul.f32 %v2399, %v2403
        %vm2405 = vweird.f32 %v2395
        %vm2406 = vweird.f32 %v2399
        %vm2407 = vmor %vm2405, %vm2406
        %v2408 = vsel %vm2407, %v2399, %v2404
        %v2409 = vrsqrt.pop %v2396
        %v2410 = vmul.f32 %v2409, %v2396
        %v2411 = vmul.f32 %v2410, %v2409
        %v2412 = vmul.f32 0.5, %v2411
        %v2413 = vsub.f32 1.5, %v2412
        %v2414 = vmul.f32 %v2409, %v2413
        %vm2415 = vweird.f32 %v2396
        %vm2416 = vweird.f32 %v2409
        %vm2417 = vmor %vm2415, %vm2416
        %v2418 = vsel %vm2417, %v2409, %v2414
        %v2419 = vrsqrt.pop %v2397
        %v2420 = vmul.f32 %v2419, %v2397
        %v2421 = vmul.f32 %v2420, %v2419
        %v2422 = vmul.f32 0.5, %v2421
        %v2423 = vsub.f32 1.5, %v2422
        %v2424 = vmul.f32 %v2419, %v2423
        %vm2425 = vweird.f32 %v2397
        %vm2426 = vweird.f32 %v2419
        %vm2427 = vmor %vm2425, %vm2426
        %v2428 = vsel %vm2427, %v2419, %v2424
        %v2429 = vrsqrt.pop %v2398
        %v2430 = vmul.f32 %v2429, %v2398
        %v2431 = vmul.f32 %v2430, %v2429
        %v2432 = vmul.f32 0.5, %v2431
        %v2433 = vsub.f32 1.5, %v2432
        %v2434 = vmul.f32 %v2429, %v2433
        %vm2435 = vweird.f32 %v2398
        %vm2436 = vweird.f32 %v2429
        %vm2437 = vmor %vm2435, %vm2436
        %v2438 = vsel %vm2437, %v2429, %v2434
        %v2439 = vmul.f32 %v2387, %v2408
        %v2440 = vmul.f32 %v2388, %v2408
        %v2441 = vmul.f32 %v2389, %v2418
        %v2442 = vmul.f32 %v2390, %v2418
        %v2443 = vmul.f32 %v2391, %v2428
        %v2444 = vmul.f32 %v2392, %v2428
        %v2445 = vmul.f32 %v2393, %v2438
        %v2446 = vmul.f32 %v2394, %v2438
        %v2447 = vmul.f32 %v2439, %v536
        %v2448 = vmul.f32 %v2440, %v537
        %v2449 = vmul.f32 %v2441, %v536
        %v2450 = vmul.f32 %v2442, %v537
        %v2451 = vmul.f32 %v2443, %v536
        %v2452 = vmul.f32 %v2444, %v537
        %v2453 = vmul.f32 %v2445, %v536
        %v2454 = vmul.f32 %v2446, %v537
        %v2455 = vadd.f32 %v2447, %v549
        %v2456 = vadd.f32 %v2448, %v550
        %v2457 = vadd.f32 %v2449, %v549
        %v2458 = vadd.f32 %v2450, %v550
        %v2459 = vadd.f32 %v2451, %v549
        %v2460 = vadd.f32 %v2452, %v550
        %v2461 = vadd.f32 %v2453, %v549
        %v2462 = vadd.f32 %v2454, %v550
        %v2463 = vmin.f32 %v2455, 20.0
        %v2464 = vmin.f32 %v2456, 20.0
        %v2465 = vmin.f32 %v2457, 20.0
        %v2466 = vmin.f32 %v2458, 20.0
        %v2467 = vmin.f32 %v2459, 20.0
        %v2468 = vmin.f32 %v2460, 20.0
        %v2469 = vmin.f32 %v2461, 20.0
        %v2470 = vmin.f32 %v2462, 20.0
        %v2471 = vmul.f32 %v2463, 1.442695
        %v2472 = vpow.pop %v2471
        %v2473 = vmul.f32 %v2464, 1.442695
        %v2474 = vpow.pop %v2473
        %v2475 = vmul.f32 %v2465, 1.442695
        %v2476 = vpow.pop %v2475
        %v2477 = vmul.f32 %v2466, 1.442695
        %v2478 = vpow.pop %v2477
        %v2479 = vmul.f32 %v2467, 1.442695
        %v2480 = vpow.pop %v2479
        %v2481 = vmul.f32 %v2468, 1.442695
        %v2482 = vpow.pop %v2481
        %v2483 = vmul.f32 %v2469, 1.442695
        %v2484 = vpow.pop %v2483
        %v2485 = vmul.f32 %v2470, 1.442695
        %v2486 = vpow.pop %v2485
        %v2487 = vadd.f32 %v2472, 2.0
        %v2488 = vadd.f32 %v2474, 2.0
        %v2489 = vadd.f32 %v2476, 2.0
        %v2490 = vadd.f32 %v2478, 2.0
        %v2491 = vadd.f32 %v2480, 2.0
        %v2492 = vadd.f32 %v2482, 2.0
        %v2493 = vadd.f32 %v2484, 2.0
        %v2494 = vadd.f32 %v2486, 2.0
        %v2495 = vmul.f32 %v2472, %v2487
        %v2496 = vmul.f32 %v2474, %v2488
        %v2497 = vmul.f32 %v2476, %v2489
        %v2498 = vmul.f32 %v2478, %v2490
        %v2499 = vmul.f32 %v2480, %v2491
        %v2500 = vmul.f32 %v2482, %v2492
        %v2501 = vmul.f32 %v2484, %v2493
        %v2502 = vmul.f32 %v2486, %v2494
        %v2503 = vadd.f32 %v2495, 2.0
        %v2504 = vadd.f32 %v2496, 2.0
        %v2505 = vadd.f32 %v2497, 2.0
        %v2506 = vadd.f32 %v2498, 2.0
        %v2507 = vadd.f32 %v2499, 2.0
        %v2508 = vadd.f32 %v2500, 2.0
        %v2509 = vadd.f32 %v2501, 2.0
        %v2510 = vadd.f32 %v2502, 2.0
        %v2511 = vrcp.pop %v2503
        %v2512 = vrcp.pop %v2504
        %v2513 = vrcp.pop %v2505
        %v2514 = vrcp.pop %v2506
        %v2515 = vrcp.pop %v2507
        %v2516 = vrcp.pop %v2508
        %v2517 = vrcp.pop %v2509
        %v2518 = vrcp.pop %v2510
        %v2519 = vmul.f32 %v2495, %v2511
        %v2520 = vmul.f32 %v2496, %v2512
        %v2521 = vmul.f32 %v2497, %v2513
        %v2522 = vmul.f32 %v2498, %v2514
        %v2523 = vmul.f32 %v2499, %v2515
        %v2524 = vmul.f32 %v2500, %v2516
        %v2525 = vmul.f32 %v2501, %v2517
        %v2526 = vmul.f32 %v2502, %v2518
        %v2527 = vmul.f32 %v2455, %v2519
        %v2528 = vmul.f32 %v2456, %v2520
        %v2529 = vmul.f32 %v2457, %v2521
        %v2530 = vmul.f32 %v2458, %v2522
        %v2531 = vmul.f32 %v2459, %v2523
        %v2532 = vmul.f32 %v2460, %v2524
        %v2533 = vmul.f32 %v2461, %v2525
        %v2534 = vmul.f32 %v2462, %v2526
        %v2535 = vpack.c.bf16 %v2529, %v2527
        %v2536 = vpack.c.bf16 %v2530, %v2528
        %v2537 = vpack.c.bf16 %v2533, %v2531
        %v2538 = vpack.c.bf16 %v2534, %v2532
        %s2539 = scalar_lea.vmem [#allocation3], 1024
        %v2540 = vld [vmem:[%s2539] sm:$0xff]
        %v2541 = vld [vmem:[%s2539 + $0x8] sm:$0xff]
        %v2542 = vld [vmem:[%s2539 + $0x10] sm:$0xff]
        %v2543 = vld [vmem:[%s2539 + $0x18] sm:$0xff]
        %v2544 = vld [vmem:[%s2539 + $0x20] sm:$0xff]
        %v2545 = vld [vmem:[%s2539 + $0x28] sm:$0xff]
        %v2546 = vld [vmem:[%s2539 + $0x30] sm:$0xff]
        %v2547 = vld [vmem:[%s2539 + $0x38] sm:$0xff]
        %v2548 = vld [vmem:[%s2539 + $0x40] sm:$0xff]
        %v2549 = vld [vmem:[%s2539 + $0x48] sm:$0xff]
        %v2550 = vld [vmem:[%s2539 + $0x50] sm:$0xff]
        %v2551 = vld [vmem:[%s2539 + $0x58] sm:$0xff]
        %v2552 = vld [vmem:[%s2539 + $0x60] sm:$0xff]
        %v2553 = vld [vmem:[%s2539 + $0x68] sm:$0xff]
        %v2554 = vld [vmem:[%s2539 + $0x70] sm:$0xff]
        %v2555 = vld [vmem:[%s2539 + $0x78] sm:$0xff]
        %v2556 = vld [vmem:[%s2539 + $0x80] sm:$0xff]
        %v2557 = vld [vmem:[%s2539 + $0x88] sm:$0xff]
        %v2558 = vld [vmem:[%s2539 + $0x90] sm:$0xff]
        %v2559 = vld [vmem:[%s2539 + $0x98] sm:$0xff]
        %v2560 = vld [vmem:[%s2539 + $0xa0] sm:$0xff]
        %v2561 = vld [vmem:[%s2539 + $0xa8] sm:$0xff]
        %v2562 = vld [vmem:[%s2539 + $0xb0] sm:$0xff]
        %v2563 = vld [vmem:[%s2539 + $0xb8] sm:$0xff]
        %v2564 = vld [vmem:[%s2539 + $0xc0] sm:$0xff]
        %v2565 = vld [vmem:[%s2539 + $0xc8] sm:$0xff]
        %v2566 = vld [vmem:[%s2539 + $0xd0] sm:$0xff]
        %v2567 = vld [vmem:[%s2539 + $0xd8] sm:$0xff]
        %v2568 = vld [vmem:[%s2539 + $0xe0] sm:$0xff]
        %v2569 = vld [vmem:[%s2539 + $0xe8] sm:$0xff]
        %v2570 = vld [vmem:[%s2539 + $0xf0] sm:$0xff]
        %v2571 = vld [vmem:[%s2539 + $0xf8] sm:$0xff]
        %s2572 = scalar_lea.vmem %s4, 8
        %v2573 = vld [vmem:[%s2572] sm:$0x3]
        %v2575 = vperm.slane %v2573, 0
        %v2576 = vperm.slane %v2573, 1
        %v2611 = vunpack.c.l.b16 %v2540
        %v2612 = vunpack.c.h.b16 %v2540
        %v2613 = vunpack.c.l.b16 %v2541
        %v2614 = vunpack.c.h.b16 %v2541
        %v2615 = vunpack.c.l.b16 %v2542
        %v2616 = vunpack.c.h.b16 %v2542
        %v2617 = vunpack.c.l.b16 %v2543
        %v2618 = vunpack.c.h.b16 %v2543
        %v2619 = vunpack.c.l.b16 %v2544
        %v2620 = vunpack.c.h.b16 %v2544
        %v2621 = vunpack.c.l.b16 %v2545
        %v2622 = vunpack.c.h.b16 %v2545
        %v2623 = vunpack.c.l.b16 %v2546
        %v2624 = vunpack.c.h.b16 %v2546
        %v2625 = vunpack.c.l.b16 %v2547
        %v2626 = vunpack.c.h.b16 %v2547
        %v2627 = vunpack.c.l.b16 %v2548
        %v2628 = vunpack.c.h.b16 %v2548
        %v2629 = vunpack.c.l.b16 %v2549
        %v2630 = vunpack.c.h.b16 %v2549
        %v2631 = vunpack.c.l.b16 %v2550
        %v2632 = vunpack.c.h.b16 %v2550
        %v2633 = vunpack.c.l.b16 %v2551
        %v2634 = vunpack.c.h.b16 %v2551
        %v2635 = vunpack.c.l.b16 %v2552
        %v2636 = vunpack.c.h.b16 %v2552
        %v2637 = vunpack.c.l.b16 %v2553
        %v2638 = vunpack.c.h.b16 %v2553
        %v2639 = vunpack.c.l.b16 %v2554
        %v2640 = vunpack.c.h.b16 %v2554
        %v2641 = vunpack.c.l.b16 %v2555
        %v2642 = vunpack.c.h.b16 %v2555
        %v2643 = vunpack.c.l.b16 %v2556
        %v2644 = vunpack.c.h.b16 %v2556
        %v2645 = vunpack.c.l.b16 %v2557
        %v2646 = vunpack.c.h.b16 %v2557
        %v2647 = vunpack.c.l.b16 %v2558
        %v2648 = vunpack.c.h.b16 %v2558
        %v2649 = vunpack.c.l.b16 %v2559
        %v2650 = vunpack.c.h.b16 %v2559
        %v2651 = vunpack.c.l.b16 %v2560
        %v2652 = vunpack.c.h.b16 %v2560
        %v2653 = vunpack.c.l.b16 %v2561
        %v2654 = vunpack.c.h.b16 %v2561
        %v2655 = vunpack.c.l.b16 %v2562
        %v2656 = vunpack.c.h.b16 %v2562
        %v2657 = vunpack.c.l.b16 %v2563
        %v2658 = vunpack.c.h.b16 %v2563
        %v2659 = vunpack.c.l.b16 %v2564
        %v2660 = vunpack.c.h.b16 %v2564
        %v2661 = vunpack.c.l.b16 %v2565
        %v2662 = vunpack.c.h.b16 %v2565
        %v2663 = vunpack.c.l.b16 %v2566
        %v2664 = vunpack.c.h.b16 %v2566
        %v2665 = vunpack.c.l.b16 %v2567
        %v2666 = vunpack.c.h.b16 %v2567
        %v2667 = vunpack.c.l.b16 %v2568
        %v2668 = vunpack.c.h.b16 %v2568
        %v2669 = vunpack.c.l.b16 %v2569
        %v2670 = vunpack.c.h.b16 %v2569
        %v2671 = vunpack.c.l.b16 %v2570
        %v2672 = vunpack.c.h.b16 %v2570
        %v2673 = vunpack.c.l.b16 %v2571
        %v2674 = vunpack.c.h.b16 %v2571
        %v2675 = vpack.c.b16 %v2613, %v2611
        %v2676 = vpack.c.b16 %v2614, %v2612
        %v2677 = vpack.c.b16 %v2617, %v2615
        %v2678 = vpack.c.b16 %v2618, %v2616
        %v2679 = vpack.c.b16 %v2621, %v2619
        %v2680 = vpack.c.b16 %v2622, %v2620
        %v2681 = vpack.c.b16 %v2625, %v2623
        %v2682 = vpack.c.b16 %v2626, %v2624
        %v2683 = vpack.c.b16 %v2629, %v2627
        %v2684 = vpack.c.b16 %v2630, %v2628
        %v2685 = vpack.c.b16 %v2633, %v2631
        %v2686 = vpack.c.b16 %v2634, %v2632
        %v2687 = vpack.c.b16 %v2637, %v2635
        %v2688 = vpack.c.b16 %v2638, %v2636
        %v2689 = vpack.c.b16 %v2641, %v2639
        %v2690 = vpack.c.b16 %v2642, %v2640
        %v2691 = vpack.c.b16 %v2645, %v2643
        %v2692 = vpack.c.b16 %v2646, %v2644
        %v2693 = vpack.c.b16 %v2649, %v2647
        %v2694 = vpack.c.b16 %v2650, %v2648
        %v2695 = vpack.c.b16 %v2653, %v2651
        %v2696 = vpack.c.b16 %v2654, %v2652
        %v2697 = vpack.c.b16 %v2657, %v2655
        %v2698 = vpack.c.b16 %v2658, %v2656
        %v2699 = vpack.c.b16 %v2661, %v2659
        %v2700 = vpack.c.b16 %v2662, %v2660
        %v2701 = vpack.c.b16 %v2665, %v2663
        %v2702 = vpack.c.b16 %v2666, %v2664
        %v2703 = vpack.c.b16 %v2669, %v2667
        %v2704 = vpack.c.b16 %v2670, %v2668
        %v2705 = vpack.c.b16 %v2673, %v2671
        %v2706 = vpack.c.b16 %v2674, %v2672
        %2739 = vmatpush.bf16.msra.mxu0 %v2689
        %2740 = vmatpush.bf16.msra.mxu0 %v2687
        %2741 = vmatpush.bf16.msra.mxu0 %v2685
        %2742 = vmatpush.bf16.msra.mxu0 %v2683
        %2743 = vmatpush.bf16.msra.mxu0 %v2681
        %2744 = vmatpush.bf16.msra.mxu0 %v2679
        %2745 = vmatpush.bf16.msra.mxu0 %v2677
        %2746 = vmatpush.bf16.msra.mxu0 %v2675
        %2747 = vmatmul.bf16.gmra.mxu0 %v2535
        %v2748 = vpop.f32.mrf.mxu0
        %v2749 = vadd.f32 %v2575, %v2748
        %v2750 = vpop.f32.mrf.mxu0
        %v2751 = vadd.f32 %v2575, %v2750
        %2752 = vmatmul.bf16.gmra.mxu0 %v2537
        %v2753 = vpop.f32.mrf.mxu0
        %v2754 = vadd.f32 %v2575, %v2753
        %v2755 = vpop.f32.mrf.mxu0
        %v2756 = vadd.f32 %v2575, %v2755
        %2757 = vdwg.mxu0
        %2758 = vmatpush.bf16.msra.mxu0 %v2705
        %2759 = vmatpush.bf16.msra.mxu0 %v2703
        %2760 = vmatpush.bf16.msra.mxu0 %v2701
        %2761 = vmatpush.bf16.msra.mxu0 %v2699
        %2762 = vmatpush.bf16.msra.mxu0 %v2697
        %2763 = vmatpush.bf16.msra.mxu0 %v2695
        %2764 = vmatpush.bf16.msra.mxu0 %v2693
        %2765 = vmatpush.bf16.msra.mxu0 %v2691
        %2766 = vmatmul.bf16.gmra.mxu0 %v2536
        %v2767 = vpop.f32.mrf.mxu0
        %v2768 = vadd.f32 %v2749, %v2767
        %v2769 = vpop.f32.mrf.mxu0
        %v2770 = vadd.f32 %v2751, %v2769
        %2771 = vmatmul.bf16.gmra.mxu0 %v2538
        %v2772 = vpop.f32.mrf.mxu0
        %v2773 = vadd.f32 %v2754, %v2772
        %v2774 = vpop.f32.mrf.mxu0
        %v2775 = vadd.f32 %v2756, %v2774
        %2776 = vdwg.mxu0
        %2777 = vmatpush.bf16.msra.mxu0 %v2690
        %2778 = vmatpush.bf16.msra.mxu0 %v2688
        %2779 = vmatpush.bf16.msra.mxu0 %v2686
        %2780 = vmatpush.bf16.msra.mxu0 %v2684
        %2781 = vmatpush.bf16.msra.mxu0 %v2682
        %2782 = vmatpush.bf16.msra.mxu0 %v2680
        %2783 = vmatpush.bf16.msra.mxu0 %v2678
        %2784 = vmatpush.bf16.msra.mxu0 %v2676
        %2785 = vmatmul.bf16.gmra.mxu0 %v2535
        %v2786 = vpop.f32.mrf.mxu0
        %v2787 = vadd.f32 %v2576, %v2786
        %v2788 = vpop.f32.mrf.mxu0
        %v2789 = vadd.f32 %v2576, %v2788
        %2790 = vmatmul.bf16.gmra.mxu0 %v2537
        %v2791 = vpop.f32.mrf.mxu0
        %v2792 = vadd.f32 %v2576, %v2791
        %v2793 = vpop.f32.mrf.mxu0
        %v2794 = vadd.f32 %v2576, %v2793
        %2795 = vdwg.mxu0
        %2796 = vmatpush.bf16.msra.mxu0 %v2706
        %2797 = vmatpush.bf16.msra.mxu0 %v2704
        %2798 = vmatpush.bf16.msra.mxu0 %v2702
        %2799 = vmatpush.bf16.msra.mxu0 %v2700
        %2800 = vmatpush.bf16.msra.mxu0 %v2698
        %2801 = vmatpush.bf16.msra.mxu0 %v2696
        %2802 = vmatpush.bf16.msra.mxu0 %v2694
        %2803 = vmatpush.bf16.msra.mxu0 %v2692
        %2804 = vmatmul.bf16.gmra.mxu0 %v2536
        %v2805 = vpop.f32.mrf.mxu0
        %v2806 = vadd.f32 %v2787, %v2805
        %v2807 = vpop.f32.mrf.mxu0
        %v2808 = vadd.f32 %v2789, %v2807
        %2809 = vmatmul.bf16.gmra.mxu0 %v2538
        %v2810 = vpop.f32.mrf.mxu0
        %v2811 = vadd.f32 %v2792, %v2810
        %v2812 = vpop.f32.mrf.mxu0
        %v2813 = vadd.f32 %v2794, %v2812
        %2814 = vdwg.mxu0
        %v2815 = vadd.f32 %v2768, %v2806
        %2816 = vadd.xlane.f32.xlu0 %v2815
        %v2817 = vpop.xlane.xlu0 %2816
        %v2818 = vadd.f32 %v2770, %v2808
        %2819 = vadd.xlane.f32.xlu0 %v2818
        %v2820 = vpop.xlane.xlu0 %2819
        %v2821 = vadd.f32 %v2773, %v2811
        %2822 = vadd.xlane.f32.xlu0 %v2821
        %v2823 = vpop.xlane.xlu0 %2822
        %v2824 = vadd.f32 %v2775, %v2813
        %2825 = vadd.xlane.f32.xlu0 %v2824
        %v2826 = vpop.xlane.xlu0 %2825
        %v2827 = vmul.f32 %v2817, 0.005
        %v2828 = vmul.f32 %v2820, 0.005
        %v2829 = vmul.f32 %v2823, 0.005
        %v2830 = vmul.f32 %v2826, 0.005
        %v2831 = vmul.f32 %v2768, %v2768
        %v2832 = vmul.f32 %v2806, %v2806
        %v2833 = vmul.f32 %v2770, %v2770
        %v2834 = vmul.f32 %v2808, %v2808
        %v2835 = vmul.f32 %v2773, %v2773
        %v2836 = vmul.f32 %v2811, %v2811
        %v2837 = vmul.f32 %v2775, %v2775
        %v2838 = vmul.f32 %v2813, %v2813
        %v2839 = vadd.f32 %v2831, %v2832
        %2840 = vadd.xlane.f32.xlu0 %v2839
        %v2841 = vpop.xlane.xlu0 %2840
        %v2842 = vadd.f32 %v2833, %v2834
        %2843 = vadd.xlane.f32.xlu0 %v2842
        %v2844 = vpop.xlane.xlu0 %2843
        %v2845 = vadd.f32 %v2835, %v2836
        %2846 = vadd.xlane.f32.xlu0 %v2845
        %v2847 = vpop.xlane.xlu0 %2846
        %v2848 = vadd.f32 %v2837, %v2838
        %2849 = vadd.xlane.f32.xlu0 %v2848
        %v2850 = vpop.xlane.xlu0 %2849
        %v2851 = vmul.f32 %v2841, 0.005
        %v2852 = vmul.f32 %v2844, 0.005
        %v2853 = vmul.f32 %v2847, 0.005
        %v2854 = vmul.f32 %v2850, 0.005
        %v2855 = vmul.f32 %v2827, %v2827
        %v2856 = vmul.f32 %v2828, %v2828
        %v2857 = vmul.f32 %v2829, %v2829
        %v2858 = vmul.f32 %v2830, %v2830
        %v2859 = vsub.f32 %v2851, %v2855
        %v2860 = vsub.f32 %v2852, %v2856
        %v2861 = vsub.f32 %v2853, %v2857
        %v2862 = vsub.f32 %v2854, %v2858
        %v2863 = vsub.f32 %v2768, %v2827
        %v2864 = vsub.f32 %v2806, %v2827
        %v2865 = vsub.f32 %v2770, %v2828
        %v2866 = vsub.f32 %v2808, %v2828
        %v2867 = vsub.f32 %v2773, %v2829
        %v2868 = vsub.f32 %v2811, %v2829
        %v2869 = vsub.f32 %v2775, %v2830
        %v2870 = vsub.f32 %v2813, %v2830
        %v2871 = vadd.f32 %v2859, 1e-05
        %v2872 = vadd.f32 %v2860, 1e-05
        %v2873 = vadd.f32 %v2861, 1e-05
        %v2874 = vadd.f32 %v2862, 1e-05
        %v2875 = vrsqrt.pop %v2871
        %v2876 = vmul.f32 %v2875, %v2871
        %v2877 = vmul.f32 %v2876, %v2875
        %v2878 = vmul.f32 0.5, %v2877
        %v2879 = vsub.f32 1.5, %v2878
        %v2880 = vmul.f32 %v2875, %v2879
        %vm2881 = vweird.f32 %v2871
        %vm2882 = vweird.f32 %v2875
        %vm2883 = vmor %vm2881, %vm2882
        %v2884 = vsel %vm2883, %v2875, %v2880
        %v2885 = vrsqrt.pop %v2872
        %v2886 = vmul.f32 %v2885, %v2872
        %v2887 = vmul.f32 %v2886, %v2885
        %v2888 = vmul.f32 0.5, %v2887
        %v2889 = vsub.f32 1.5, %v2888
        %v2890 = vmul.f32 %v2885, %v2889
        %vm2891 = vweird.f32 %v2872
        %vm2892 = vweird.f32 %v2885
        %vm2893 = vmor %vm2891, %vm2892
        %v2894 = vsel %vm2893, %v2885, %v2890
        %v2895 = vrsqrt.pop %v2873
        %v2896 = vmul.f32 %v2895, %v2873
        %v2897 = vmul.f32 %v2896, %v2895
        %v2898 = vmul.f32 0.5, %v2897
        %v2899 = vsub.f32 1.5, %v2898
        %v2900 = vmul.f32 %v2895, %v2899
        %vm2901 = vweird.f32 %v2873
        %vm2902 = vweird.f32 %v2895
        %vm2903 = vmor %vm2901, %vm2902
        %v2904 = vsel %vm2903, %v2895, %v2900
        %v2905 = vrsqrt.pop %v2874
        %v2906 = vmul.f32 %v2905, %v2874
        %v2907 = vmul.f32 %v2906, %v2905
        %v2908 = vmul.f32 0.5, %v2907
        %v2909 = vsub.f32 1.5, %v2908
        %v2910 = vmul.f32 %v2905, %v2909
        %vm2911 = vweird.f32 %v2874
        %vm2912 = vweird.f32 %v2905
        %vm2913 = vmor %vm2911, %vm2912
        %v2914 = vsel %vm2913, %v2905, %v2910
        %v2915 = vmul.f32 %v2863, %v2884
        %v2916 = vmul.f32 %v2864, %v2884
        %v2917 = vmul.f32 %v2865, %v2894
        %v2918 = vmul.f32 %v2866, %v2894
        %v2919 = vmul.f32 %v2867, %v2904
        %v2920 = vmul.f32 %v2868, %v2904
        %v2921 = vmul.f32 %v2869, %v2914
        %v2922 = vmul.f32 %v2870, %v2914
        %v2923 = vmul.f32 %v2915, %v536
        %v2924 = vmul.f32 %v2916, %v537
        %v2925 = vmul.f32 %v2917, %v536
        %v2926 = vmul.f32 %v2918, %v537
        %v2927 = vmul.f32 %v2919, %v536
        %v2928 = vmul.f32 %v2920, %v537
        %v2929 = vmul.f32 %v2921, %v536
        %v2930 = vmul.f32 %v2922, %v537
        %v2931 = vadd.f32 %v2923, %v549
        %v2932 = vadd.f32 %v2924, %v550
        %v2933 = vadd.f32 %v2925, %v549
        %v2934 = vadd.f32 %v2926, %v550
        %v2935 = vadd.f32 %v2927, %v549
        %v2936 = vadd.f32 %v2928, %v550
        %v2937 = vadd.f32 %v2929, %v549
        %v2938 = vadd.f32 %v2930, %v550
        %v2939 = vmin.f32 %v2931, 20.0
        %v2940 = vmin.f32 %v2932, 20.0
        %v2941 = vmin.f32 %v2933, 20.0
        %v2942 = vmin.f32 %v2934, 20.0
        %v2943 = vmin.f32 %v2935, 20.0
        %v2944 = vmin.f32 %v2936, 20.0
        %v2945 = vmin.f32 %v2937, 20.0
        %v2946 = vmin.f32 %v2938, 20.0
        %v2947 = vmul.f32 %v2939, 1.442695
        %v2948 = vpow.pop %v2947
        %v2949 = vmul.f32 %v2940, 1.442695
        %v2950 = vpow.pop %v2949
        %v2951 = vmul.f32 %v2941, 1.442695
        %v2952 = vpow.pop %v2951
        %v2953 = vmul.f32 %v2942, 1.442695
        %v2954 = vpow.pop %v2953
        %v2955 = vmul.f32 %v2943, 1.442695
        %v2956 = vpow.pop %v2955
        %v2957 = vmul.f32 %v2944, 1.442695
        %v2958 = vpow.pop %v2957
        %v2959 = vmul.f32 %v2945, 1.442695
        %v2960 = vpow.pop %v2959
        %v2961 = vmul.f32 %v2946, 1.442695
        %v2962 = vpow.pop %v2961
        %v2963 = vadd.f32 %v2948, 2.0
        %v2964 = vadd.f32 %v2950, 2.0
        %v2965 = vadd.f32 %v2952, 2.0
        %v2966 = vadd.f32 %v2954, 2.0
        %v2967 = vadd.f32 %v2956, 2.0
        %v2968 = vadd.f32 %v2958, 2.0
        %v2969 = vadd.f32 %v2960, 2.0
        %v2970 = vadd.f32 %v2962, 2.0
        %v2971 = vmul.f32 %v2948, %v2963
        %v2972 = vmul.f32 %v2950, %v2964
        %v2973 = vmul.f32 %v2952, %v2965
        %v2974 = vmul.f32 %v2954, %v2966
        %v2975 = vmul.f32 %v2956, %v2967
        %v2976 = vmul.f32 %v2958, %v2968
        %v2977 = vmul.f32 %v2960, %v2969
        %v2978 = vmul.f32 %v2962, %v2970
        %v2979 = vadd.f32 %v2971, 2.0
        %v2980 = vadd.f32 %v2972, 2.0
        %v2981 = vadd.f32 %v2973, 2.0
        %v2982 = vadd.f32 %v2974, 2.0
        %v2983 = vadd.f32 %v2975, 2.0
        %v2984 = vadd.f32 %v2976, 2.0
        %v2985 = vadd.f32 %v2977, 2.0
        %v2986 = vadd.f32 %v2978, 2.0
        %v2987 = vrcp.pop %v2979
        %v2988 = vrcp.pop %v2980
        %v2989 = vrcp.pop %v2981
        %v2990 = vrcp.pop %v2982
        %v2991 = vrcp.pop %v2983
        %v2992 = vrcp.pop %v2984
        %v2993 = vrcp.pop %v2985
        %v2994 = vrcp.pop %v2986
        %v2995 = vmul.f32 %v2971, %v2987
        %v2996 = vmul.f32 %v2972, %v2988
        %v2997 = vmul.f32 %v2973, %v2989
        %v2998 = vmul.f32 %v2974, %v2990
        %v2999 = vmul.f32 %v2975, %v2991
        %v3000 = vmul.f32 %v2976, %v2992
        %v3001 = vmul.f32 %v2977, %v2993
        %v3002 = vmul.f32 %v2978, %v2994
        %v3003 = vmul.f32 %v2931, %v2995
        %v3004 = vmul.f32 %v2932, %v2996
        %v3005 = vmul.f32 %v2933, %v2997
        %v3006 = vmul.f32 %v2934, %v2998
        %v3007 = vmul.f32 %v2935, %v2999
        %v3008 = vmul.f32 %v2936, %v3000
        %v3009 = vmul.f32 %v2937, %v3001
        %v3010 = vmul.f32 %v2938, %v3002
        %v3011 = vpack.c.bf16 %v3005, %v3003
        %v3012 = vpack.c.bf16 %v3006, %v3004
        %v3013 = vpack.c.bf16 %v3009, %v3007
        %v3014 = vpack.c.bf16 %v3010, %v3008
        %s3015 = scalar_lea.vmem [#allocation3], 1280
        %v3016 = vld [vmem:[%s3015] sm:$0xff]
        %v3017 = vld [vmem:[%s3015 + $0x8] sm:$0xff]
        %v3018 = vld [vmem:[%s3015 + $0x10] sm:$0xff]
        %v3019 = vld [vmem:[%s3015 + $0x18] sm:$0xff]
        %v3020 = vld [vmem:[%s3015 + $0x20] sm:$0xff]
        %v3021 = vld [vmem:[%s3015 + $0x28] sm:$0xff]
        %v3022 = vld [vmem:[%s3015 + $0x30] sm:$0xff]
        %v3023 = vld [vmem:[%s3015 + $0x38] sm:$0xff]
        %v3024 = vld [vmem:[%s3015 + $0x40] sm:$0xff]
        %v3025 = vld [vmem:[%s3015 + $0x48] sm:$0xff]
        %v3026 = vld [vmem:[%s3015 + $0x50] sm:$0xff]
        %v3027 = vld [vmem:[%s3015 + $0x58] sm:$0xff]
        %v3028 = vld [vmem:[%s3015 + $0x60] sm:$0xff]
        %v3029 = vld [vmem:[%s3015 + $0x68] sm:$0xff]
        %v3030 = vld [vmem:[%s3015 + $0x70] sm:$0xff]
        %v3031 = vld [vmem:[%s3015 + $0x78] sm:$0xff]
        %v3032 = vld [vmem:[%s3015 + $0x80] sm:$0xff]
        %v3033 = vld [vmem:[%s3015 + $0x88] sm:$0xff]
        %v3034 = vld [vmem:[%s3015 + $0x90] sm:$0xff]
        %v3035 = vld [vmem:[%s3015 + $0x98] sm:$0xff]
        %v3036 = vld [vmem:[%s3015 + $0xa0] sm:$0xff]
        %v3037 = vld [vmem:[%s3015 + $0xa8] sm:$0xff]
        %v3038 = vld [vmem:[%s3015 + $0xb0] sm:$0xff]
        %v3039 = vld [vmem:[%s3015 + $0xb8] sm:$0xff]
        %v3040 = vld [vmem:[%s3015 + $0xc0] sm:$0xff]
        %v3041 = vld [vmem:[%s3015 + $0xc8] sm:$0xff]
        %v3042 = vld [vmem:[%s3015 + $0xd0] sm:$0xff]
        %v3043 = vld [vmem:[%s3015 + $0xd8] sm:$0xff]
        %v3044 = vld [vmem:[%s3015 + $0xe0] sm:$0xff]
        %v3045 = vld [vmem:[%s3015 + $0xe8] sm:$0xff]
        %v3046 = vld [vmem:[%s3015 + $0xf0] sm:$0xff]
        %v3047 = vld [vmem:[%s3015 + $0xf8] sm:$0xff]
        %s3048 = scalar_lea.vmem %s4, 10
        %v3049 = vld [vmem:[%s3048] sm:$0x3]
        %v3051 = vperm.slane %v3049, 0
        %v3052 = vperm.slane %v3049, 1
        %v3087 = vunpack.c.l.b16 %v3016
        %v3088 = vunpack.c.h.b16 %v3016
        %v3089 = vunpack.c.l.b16 %v3017
        %v3090 = vunpack.c.h.b16 %v3017
        %v3091 = vunpack.c.l.b16 %v3018
        %v3092 = vunpack.c.h.b16 %v3018
        %v3093 = vunpack.c.l.b16 %v3019
        %v3094 = vunpack.c.h.b16 %v3019
        %v3095 = vunpack.c.l.b16 %v3020
        %v3096 = vunpack.c.h.b16 %v3020
        %v3097 = vunpack.c.l.b16 %v3021
        %v3098 = vunpack.c.h.b16 %v3021
        %v3099 = vunpack.c.l.b16 %v3022
        %v3100 = vunpack.c.h.b16 %v3022
        %v3101 = vunpack.c.l.b16 %v3023
        %v3102 = vunpack.c.h.b16 %v3023
        %v3103 = vunpack.c.l.b16 %v3024
        %v3104 = vunpack.c.h.b16 %v3024
        %v3105 = vunpack.c.l.b16 %v3025
        %v3106 = vunpack.c.h.b16 %v3025
        %v3107 = vunpack.c.l.b16 %v3026
        %v3108 = vunpack.c.h.b16 %v3026
        %v3109 = vunpack.c.l.b16 %v3027
        %v3110 = vunpack.c.h.b16 %v3027
        %v3111 = vunpack.c.l.b16 %v3028
        %v3112 = vunpack.c.h.b16 %v3028
        %v3113 = vunpack.c.l.b16 %v3029
        %v3114 = vunpack.c.h.b16 %v3029
        %v3115 = vunpack.c.l.b16 %v3030
        %v3116 = vunpack.c.h.b16 %v3030
        %v3117 = vunpack.c.l.b16 %v3031
        %v3118 = vunpack.c.h.b16 %v3031
        %v3119 = vunpack.c.l.b16 %v3032
        %v3120 = vunpack.c.h.b16 %v3032
        %v3121 = vunpack.c.l.b16 %v3033
        %v3122 = vunpack.c.h.b16 %v3033
        %v3123 = vunpack.c.l.b16 %v3034
        %v3124 = vunpack.c.h.b16 %v3034
        %v3125 = vunpack.c.l.b16 %v3035
        %v3126 = vunpack.c.h.b16 %v3035
        %v3127 = vunpack.c.l.b16 %v3036
        %v3128 = vunpack.c.h.b16 %v3036
        %v3129 = vunpack.c.l.b16 %v3037
        %v3130 = vunpack.c.h.b16 %v3037
        %v3131 = vunpack.c.l.b16 %v3038
        %v3132 = vunpack.c.h.b16 %v3038
        %v3133 = vunpack.c.l.b16 %v3039
        %v3134 = vunpack.c.h.b16 %v3039
        %v3135 = vunpack.c.l.b16 %v3040
        %v3136 = vunpack.c.h.b16 %v3040
        %v3137 = vunpack.c.l.b16 %v3041
        %v3138 = vunpack.c.h.b16 %v3041
        %v3139 = vunpack.c.l.b16 %v3042
        %v3140 = vunpack.c.h.b16 %v3042
        %v3141 = vunpack.c.l.b16 %v3043
        %v3142 = vunpack.c.h.b16 %v3043
        %v3143 = vunpack.c.l.b16 %v3044
        %v3144 = vunpack.c.h.b16 %v3044
        %v3145 = vunpack.c.l.b16 %v3045
        %v3146 = vunpack.c.h.b16 %v3045
        %v3147 = vunpack.c.l.b16 %v3046
        %v3148 = vunpack.c.h.b16 %v3046
        %v3149 = vunpack.c.l.b16 %v3047
        %v3150 = vunpack.c.h.b16 %v3047
        %v3151 = vpack.c.b16 %v3089, %v3087
        %v3152 = vpack.c.b16 %v3090, %v3088
        %v3153 = vpack.c.b16 %v3093, %v3091
        %v3154 = vpack.c.b16 %v3094, %v3092
        %v3155 = vpack.c.b16 %v3097, %v3095
        %v3156 = vpack.c.b16 %v3098, %v3096
        %v3157 = vpack.c.b16 %v3101, %v3099
        %v3158 = vpack.c.b16 %v3102, %v3100
        %v3159 = vpack.c.b16 %v3105, %v3103
        %v3160 = vpack.c.b16 %v3106, %v3104
        %v3161 = vpack.c.b16 %v3109, %v3107
        %v3162 = vpack.c.b16 %v3110, %v3108
        %v3163 = vpack.c.b16 %v3113, %v3111
        %v3164 = vpack.c.b16 %v3114, %v3112
        %v3165 = vpack.c.b16 %v3117, %v3115
        %v3166 = vpack.c.b16 %v3118, %v3116
        %v3167 = vpack.c.b16 %v3121, %v3119
        %v3168 = vpack.c.b16 %v3122, %v3120
        %v3169 = vpack.c.b16 %v3125, %v3123
        %v3170 = vpack.c.b16 %v3126, %v3124
        %v3171 = vpack.c.b16 %v3129, %v3127
        %v3172 = vpack.c.b16 %v3130, %v3128
        %v3173 = vpack.c.b16 %v3133, %v3131
        %v3174 = vpack.c.b16 %v3134, %v3132
        %v3175 = vpack.c.b16 %v3137, %v3135
        %v3176 = vpack.c.b16 %v3138, %v3136
        %v3177 = vpack.c.b16 %v3141, %v3139
        %v3178 = vpack.c.b16 %v3142, %v3140
        %v3179 = vpack.c.b16 %v3145, %v3143
        %v3180 = vpack.c.b16 %v3146, %v3144
        %v3181 = vpack.c.b16 %v3149, %v3147
        %v3182 = vpack.c.b16 %v3150, %v3148
        %3215 = vmatpush.bf16.msra.mxu0 %v3165
        %3216 = vmatpush.bf16.msra.mxu0 %v3163
        %3217 = vmatpush.bf16.msra.mxu0 %v3161
        %3218 = vmatpush.bf16.msra.mxu0 %v3159
        %3219 = vmatpush.bf16.msra.mxu0 %v3157
        %3220 = vmatpush.bf16.msra.mxu0 %v3155
        %3221 = vmatpush.bf16.msra.mxu0 %v3153
        %3222 = vmatpush.bf16.msra.mxu0 %v3151
        %3223 = vmatmul.bf16.gmra.mxu0 %v3011
        %v3224 = vpop.f32.mrf.mxu0
        %v3225 = vadd.f32 %v3051, %v3224
        %v3226 = vpop.f32.mrf.mxu0
        %v3227 = vadd.f32 %v3051, %v3226
        %3228 = vmatmul.bf16.gmra.mxu0 %v3013
        %v3229 = vpop.f32.mrf.mxu0
        %v3230 = vadd.f32 %v3051, %v3229
        %v3231 = vpop.f32.mrf.mxu0
        %v3232 = vadd.f32 %v3051, %v3231
        %3233 = vdwg.mxu0
        %3234 = vmatpush.bf16.msra.mxu0 %v3181
        %3235 = vmatpush.bf16.msra.mxu0 %v3179
        %3236 = vmatpush.bf16.msra.mxu0 %v3177
        %3237 = vmatpush.bf16.msra.mxu0 %v3175
        %3238 = vmatpush.bf16.msra.mxu0 %v3173
        %3239 = vmatpush.bf16.msra.mxu0 %v3171
        %3240 = vmatpush.bf16.msra.mxu0 %v3169
        %3241 = vmatpush.bf16.msra.mxu0 %v3167
        %3242 = vmatmul.bf16.gmra.mxu0 %v3012
        %v3243 = vpop.f32.mrf.mxu0
        %v3244 = vadd.f32 %v3225, %v3243
        %v3245 = vpop.f32.mrf.mxu0
        %v3246 = vadd.f32 %v3227, %v3245
        %3247 = vmatmul.bf16.gmra.mxu0 %v3014
        %v3248 = vpop.f32.mrf.mxu0
        %v3249 = vadd.f32 %v3230, %v3248
        %v3250 = vpop.f32.mrf.mxu0
        %v3251 = vadd.f32 %v3232, %v3250
        %3252 = vdwg.mxu0
        %3253 = vmatpush.bf16.msra.mxu0 %v3166
        %3254 = vmatpush.bf16.msra.mxu0 %v3164
        %3255 = vmatpush.bf16.msra.mxu0 %v3162
        %3256 = vmatpush.bf16.msra.mxu0 %v3160
        %3257 = vmatpush.bf16.msra.mxu0 %v3158
        %3258 = vmatpush.bf16.msra.mxu0 %v3156
        %3259 = vmatpush.bf16.msra.mxu0 %v3154
        %3260 = vmatpush.bf16.msra.mxu0 %v3152
        %3261 = vmatmul.bf16.gmra.mxu0 %v3011
        %v3262 = vpop.f32.mrf.mxu0
        %v3263 = vadd.f32 %v3052, %v3262
        %v3264 = vpop.f32.mrf.mxu0
        %v3265 = vadd.f32 %v3052, %v3264
        %3266 = vmatmul.bf16.gmra.mxu0 %v3013
        %v3267 = vpop.f32.mrf.mxu0
        %v3268 = vadd.f32 %v3052, %v3267
        %v3269 = vpop.f32.mrf.mxu0
        %v3270 = vadd.f32 %v3052, %v3269
        %3271 = vdwg.mxu0
        %3272 = vmatpush.bf16.msra.mxu0 %v3182
        %3273 = vmatpush.bf16.msra.mxu0 %v3180
        %3274 = vmatpush.bf16.msra.mxu0 %v3178
        %3275 = vmatpush.bf16.msra.mxu0 %v3176
        %3276 = vmatpush.bf16.msra.mxu0 %v3174
        %3277 = vmatpush.bf16.msra.mxu0 %v3172
        %3278 = vmatpush.bf16.msra.mxu0 %v3170
        %3279 = vmatpush.bf16.msra.mxu0 %v3168
        %3280 = vmatmul.bf16.gmra.mxu0 %v3012
        %v3281 = vpop.f32.mrf.mxu0
        %v3282 = vadd.f32 %v3263, %v3281
        %v3283 = vpop.f32.mrf.mxu0
        %v3284 = vadd.f32 %v3265, %v3283
        %3285 = vmatmul.bf16.gmra.mxu0 %v3014
        %v3286 = vpop.f32.mrf.mxu0
        %v3287 = vadd.f32 %v3268, %v3286
        %v3288 = vpop.f32.mrf.mxu0
        %v3289 = vadd.f32 %v3270, %v3288
        %3290 = vdwg.mxu0
        %v3291 = vadd.f32 %v3244, %v3282
        %3292 = vadd.xlane.f32.xlu0 %v3291
        %v3293 = vpop.xlane.xlu0 %3292
        %v3294 = vadd.f32 %v3246, %v3284
        %3295 = vadd.xlane.f32.xlu0 %v3294
        %v3296 = vpop.xlane.xlu0 %3295
        %v3297 = vadd.f32 %v3249, %v3287
        %3298 = vadd.xlane.f32.xlu0 %v3297
        %v3299 = vpop.xlane.xlu0 %3298
        %v3300 = vadd.f32 %v3251, %v3289
        %3301 = vadd.xlane.f32.xlu0 %v3300
        %v3302 = vpop.xlane.xlu0 %3301
        %v3303 = vmul.f32 %v3293, 0.005
        %v3304 = vmul.f32 %v3296, 0.005
        %v3305 = vmul.f32 %v3299, 0.005
        %v3306 = vmul.f32 %v3302, 0.005
        %v3307 = vmul.f32 %v3244, %v3244
        %v3308 = vmul.f32 %v3282, %v3282
        %v3309 = vmul.f32 %v3246, %v3246
        %v3310 = vmul.f32 %v3284, %v3284
        %v3311 = vmul.f32 %v3249, %v3249
        %v3312 = vmul.f32 %v3287, %v3287
        %v3313 = vmul.f32 %v3251, %v3251
        %v3314 = vmul.f32 %v3289, %v3289
        %v3315 = vadd.f32 %v3307, %v3308
        %3316 = vadd.xlane.f32.xlu0 %v3315
        %v3317 = vpop.xlane.xlu0 %3316
        %v3318 = vadd.f32 %v3309, %v3310
        %3319 = vadd.xlane.f32.xlu0 %v3318
        %v3320 = vpop.xlane.xlu0 %3319
        %v3321 = vadd.f32 %v3311, %v3312
        %3322 = vadd.xlane.f32.xlu0 %v3321
        %v3323 = vpop.xlane.xlu0 %3322
        %v3324 = vadd.f32 %v3313, %v3314
        %3325 = vadd.xlane.f32.xlu0 %v3324
        %v3326 = vpop.xlane.xlu0 %3325
        %v3327 = vmul.f32 %v3317, 0.005
        %v3328 = vmul.f32 %v3320, 0.005
        %v3329 = vmul.f32 %v3323, 0.005
        %v3330 = vmul.f32 %v3326, 0.005
        %v3331 = vmul.f32 %v3303, %v3303
        %v3332 = vmul.f32 %v3304, %v3304
        %v3333 = vmul.f32 %v3305, %v3305
        %v3334 = vmul.f32 %v3306, %v3306
        %v3335 = vsub.f32 %v3327, %v3331
        %v3336 = vsub.f32 %v3328, %v3332
        %v3337 = vsub.f32 %v3329, %v3333
        %v3338 = vsub.f32 %v3330, %v3334
        %v3339 = vsub.f32 %v3244, %v3303
        %v3340 = vsub.f32 %v3282, %v3303
        %v3341 = vsub.f32 %v3246, %v3304
        %v3342 = vsub.f32 %v3284, %v3304
        %v3343 = vsub.f32 %v3249, %v3305
        %v3344 = vsub.f32 %v3287, %v3305
        %v3345 = vsub.f32 %v3251, %v3306
        %v3346 = vsub.f32 %v3289, %v3306
        %v3347 = vadd.f32 %v3335, 1e-05
        %v3348 = vadd.f32 %v3336, 1e-05
        %v3349 = vadd.f32 %v3337, 1e-05
        %v3350 = vadd.f32 %v3338, 1e-05
        %v3351 = vrsqrt.pop %v3347
        %v3352 = vmul.f32 %v3351, %v3347
        %v3353 = vmul.f32 %v3352, %v3351
        %v3354 = vmul.f32 0.5, %v3353
        %v3355 = vsub.f32 1.5, %v3354
        %v3356 = vmul.f32 %v3351, %v3355
        %vm3357 = vweird.f32 %v3347
        %vm3358 = vweird.f32 %v3351
        %vm3359 = vmor %vm3357, %vm3358
        %v3360 = vsel %vm3359, %v3351, %v3356
        %v3361 = vrsqrt.pop %v3348
        %v3362 = vmul.f32 %v3361, %v3348
        %v3363 = vmul.f32 %v3362, %v3361
        %v3364 = vmul.f32 0.5, %v3363
        %v3365 = vsub.f32 1.5, %v3364
        %v3366 = vmul.f32 %v3361, %v3365
        %vm3367 = vweird.f32 %v3348
        %vm3368 = vweird.f32 %v3361
        %vm3369 = vmor %vm3367, %vm3368
        %v3370 = vsel %vm3369, %v3361, %v3366
        %v3371 = vrsqrt.pop %v3349
        %v3372 = vmul.f32 %v3371, %v3349
        %v3373 = vmul.f32 %v3372, %v3371
        %v3374 = vmul.f32 0.5, %v3373
        %v3375 = vsub.f32 1.5, %v3374
        %v3376 = vmul.f32 %v3371, %v3375
        %vm3377 = vweird.f32 %v3349
        %vm3378 = vweird.f32 %v3371
        %vm3379 = vmor %vm3377, %vm3378
        %v3380 = vsel %vm3379, %v3371, %v3376
        %v3381 = vrsqrt.pop %v3350
        %v3382 = vmul.f32 %v3381, %v3350
        %v3383 = vmul.f32 %v3382, %v3381
        %v3384 = vmul.f32 0.5, %v3383
        %v3385 = vsub.f32 1.5, %v3384
        %v3386 = vmul.f32 %v3381, %v3385
        %vm3387 = vweird.f32 %v3350
        %vm3388 = vweird.f32 %v3381
        %vm3389 = vmor %vm3387, %vm3388
        %v3390 = vsel %vm3389, %v3381, %v3386
        %v3391 = vmul.f32 %v3339, %v3360
        %v3392 = vmul.f32 %v3340, %v3360
        %v3393 = vmul.f32 %v3341, %v3370
        %v3394 = vmul.f32 %v3342, %v3370
        %v3395 = vmul.f32 %v3343, %v3380
        %v3396 = vmul.f32 %v3344, %v3380
        %v3397 = vmul.f32 %v3345, %v3390
        %v3398 = vmul.f32 %v3346, %v3390
        %v3399 = vmul.f32 %v3391, %v536
        %v3400 = vmul.f32 %v3392, %v537
        %v3401 = vmul.f32 %v3393, %v536
        %v3402 = vmul.f32 %v3394, %v537
        %v3403 = vmul.f32 %v3395, %v536
        %v3404 = vmul.f32 %v3396, %v537
        %v3405 = vmul.f32 %v3397, %v536
        %v3406 = vmul.f32 %v3398, %v537
        %v3407 = vadd.f32 %v3399, %v549
        %v3408 = vadd.f32 %v3400, %v550
        %v3409 = vadd.f32 %v3401, %v549
        %v3410 = vadd.f32 %v3402, %v550
        %v3411 = vadd.f32 %v3403, %v549
        %v3412 = vadd.f32 %v3404, %v550
        %v3413 = vadd.f32 %v3405, %v549
        %v3414 = vadd.f32 %v3406, %v550
        %v3415 = vmin.f32 %v3407, 20.0
        %v3416 = vmin.f32 %v3408, 20.0
        %v3417 = vmin.f32 %v3409, 20.0
        %v3418 = vmin.f32 %v3410, 20.0
        %v3419 = vmin.f32 %v3411, 20.0
        %v3420 = vmin.f32 %v3412, 20.0
        %v3421 = vmin.f32 %v3413, 20.0
        %v3422 = vmin.f32 %v3414, 20.0
        %v3423 = vmul.f32 %v3415, 1.442695
        %v3424 = vpow.pop %v3423
        %v3425 = vmul.f32 %v3416, 1.442695
        %v3426 = vpow.pop %v3425
        %v3427 = vmul.f32 %v3417, 1.442695
        %v3428 = vpow.pop %v3427
        %v3429 = vmul.f32 %v3418, 1.442695
        %v3430 = vpow.pop %v3429
        %v3431 = vmul.f32 %v3419, 1.442695
        %v3432 = vpow.pop %v3431
        %v3433 = vmul.f32 %v3420, 1.442695
        %v3434 = vpow.pop %v3433
        %v3435 = vmul.f32 %v3421, 1.442695
        %v3436 = vpow.pop %v3435
        %v3437 = vmul.f32 %v3422, 1.442695
        %v3438 = vpow.pop %v3437
        %v3439 = vadd.f32 %v3424, 2.0
        %v3440 = vadd.f32 %v3426, 2.0
        %v3441 = vadd.f32 %v3428, 2.0
        %v3442 = vadd.f32 %v3430, 2.0
        %v3443 = vadd.f32 %v3432, 2.0
        %v3444 = vadd.f32 %v3434, 2.0
        %v3445 = vadd.f32 %v3436, 2.0
        %v3446 = vadd.f32 %v3438, 2.0
        %v3447 = vmul.f32 %v3424, %v3439
        %v3448 = vmul.f32 %v3426, %v3440
        %v3449 = vmul.f32 %v3428, %v3441
        %v3450 = vmul.f32 %v3430, %v3442
        %v3451 = vmul.f32 %v3432, %v3443
        %v3452 = vmul.f32 %v3434, %v3444
        %v3453 = vmul.f32 %v3436, %v3445
        %v3454 = vmul.f32 %v3438, %v3446
        %v3455 = vadd.f32 %v3447, 2.0
        %v3456 = vadd.f32 %v3448, 2.0
        %v3457 = vadd.f32 %v3449, 2.0
        %v3458 = vadd.f32 %v3450, 2.0
        %v3459 = vadd.f32 %v3451, 2.0
        %v3460 = vadd.f32 %v3452, 2.0
        %v3461 = vadd.f32 %v3453, 2.0
        %v3462 = vadd.f32 %v3454, 2.0
        %v3463 = vrcp.pop %v3455
        %v3464 = vrcp.pop %v3456
        %v3465 = vrcp.pop %v3457
        %v3466 = vrcp.pop %v3458
        %v3467 = vrcp.pop %v3459
        %v3468 = vrcp.pop %v3460
        %v3469 = vrcp.pop %v3461
        %v3470 = vrcp.pop %v3462
        %v3471 = vmul.f32 %v3447, %v3463
        %v3472 = vmul.f32 %v3448, %v3464
        %v3473 = vmul.f32 %v3449, %v3465
        %v3474 = vmul.f32 %v3450, %v3466
        %v3475 = vmul.f32 %v3451, %v3467
        %v3476 = vmul.f32 %v3452, %v3468
        %v3477 = vmul.f32 %v3453, %v3469
        %v3478 = vmul.f32 %v3454, %v3470
        %v3479 = vmul.f32 %v3407, %v3471
        %v3480 = vmul.f32 %v3408, %v3472
        %v3481 = vmul.f32 %v3409, %v3473
        %v3482 = vmul.f32 %v3410, %v3474
        %v3483 = vmul.f32 %v3411, %v3475
        %v3484 = vmul.f32 %v3412, %v3476
        %v3485 = vmul.f32 %v3413, %v3477
        %v3486 = vmul.f32 %v3414, %v3478
        %v3487 = vld [vmem:[%s7] sm:$0x3]
        %v3489 = vperm.slane %v3487, 0
        %v3490 = vperm.slane %v3487, 1
        %v3493 = vmul.f32 %v3479, %v3489
        %v3494 = vmul.f32 %v3480, %v3490
        %v3495 = vmul.f32 %v3481, %v3489
        %v3496 = vmul.f32 %v3482, %v3490
        %v3497 = vmul.f32 %v3483, %v3489
        %v3498 = vmul.f32 %v3484, %v3490
        %v3499 = vmul.f32 %v3485, %v3489
        %v3500 = vmul.f32 %v3486, %v3490
        %v3501 = vadd.f32 %v3493, %v3494
        %3502 = vadd.xlane.f32.xlu0 %v3501
        %v3503 = vpop.xlane.xlu0 %3502
        %v3504 = vadd.f32 %v3495, %v3496
        %3505 = vadd.xlane.f32.xlu0 %v3504
        %v3506 = vpop.xlane.xlu0 %3505
        %v3507 = vadd.f32 %v3497, %v3498
        %3508 = vadd.xlane.f32.xlu0 %v3507
        %v3509 = vpop.xlane.xlu0 %3508
        %v3510 = vadd.f32 %v3499, %v3500
        %3511 = vadd.xlane.f32.xlu0 %v3510
        %v3512 = vpop.xlane.xlu0 %3511
        %v3513 = vld [vmem:[#allocation2] sm:$0x1]
        %v3515 = vperm.slane %v3513, 0
        %v3517 = vadd.f32 %v3503, %v3515
        %v3518 = vadd.f32 %v3506, %v3515
        %v3519 = vadd.f32 %v3509, %v3515
        %v3520 = vadd.f32 %v3512, %v3515
        %v3521 = vmax.f32 %v3517, 0.0
        %v3522 = vmax.f32 %v3518, 0.0
        %v3523 = vmax.f32 %v3519, 0.0
        %v3524 = vmax.f32 %v3520, 0.0
        %v3525 = vand.u32 2147483647, %v3517
        %v3526 = vand.u32 2147483647, %v3518
        %v3527 = vand.u32 2147483647, %v3519
        %v3528 = vand.u32 2147483647, %v3520
        %v3529 = vsub.f32 0.0, %v3525
        %v3530 = vsub.f32 0.0, %v3526
        %v3531 = vsub.f32 0.0, %v3527
        %v3532 = vsub.f32 0.0, %v3528
        %v3533 = vmul.f32 %v3529, 1.442695
        %v3534 = vpow.pop %v3533
        %v3535 = vmul.f32 %v3530, 1.442695
        %v3536 = vpow.pop %v3535
        %v3537 = vmul.f32 %v3531, 1.442695
        %v3538 = vpow.pop %v3537
        %v3539 = vmul.f32 %v3532, 1.442695
        %v3540 = vpow.pop %v3539
        %v3541 = vadd.f32 %v3534, 1.0
        %v3542 = vlog2.pop %v3541
        %v3543 = vmul.f32 %v3542, 0.6931472
        %v3544 = vmul.f32 -0.5, %v3534
        %v3545 = vadd.f32 %v3544, 1.0
        %v3546 = vmul.f32 %v3545, %v3534
        %v3547 = vand.u32 2147483647, %v3534
        %vm3548 = vcmp.lt.f32.partialorder %v3547, 0.0004427343
        %v3549 = vsel %vm3548, %v3546, %v3543
        %v3550 = vadd.f32 %v3536, 1.0
        %v3551 = vlog2.pop %v3550
        %v3552 = vmul.f32 %v3551, 0.6931472
        %v3553 = vmul.f32 -0.5, %v3536
        %v3554 = vadd.f32 %v3553, 1.0
        %v3555 = vmul.f32 %v3554, %v3536
        %v3556 = vand.u32 2147483647, %v3536
        %vm3557 = vcmp.lt.f32.partialorder %v3556, 0.0004427343
        %v3558 = vsel %vm3557, %v3555, %v3552
        %v3559 = vadd.f32 %v3538, 1.0
        %v3560 = vlog2.pop %v3559
        %v3561 = vmul.f32 %v3560, 0.6931472
        %v3562 = vmul.f32 -0.5, %v3538
        %v3563 = vadd.f32 %v3562, 1.0
        %v3564 = vmul.f32 %v3563, %v3538
        %v3565 = vand.u32 2147483647, %v3538
        %vm3566 = vcmp.lt.f32.partialorder %v3565, 0.0004427343
        %v3567 = vsel %vm3566, %v3564, %v3561
        %v3568 = vadd.f32 %v3540, 1.0
        %v3569 = vlog2.pop %v3568
        %v3570 = vmul.f32 %v3569, 0.6931472
        %v3571 = vmul.f32 -0.5, %v3540
        %v3572 = vadd.f32 %v3571, 1.0
        %v3573 = vmul.f32 %v3572, %v3540
        %v3574 = vand.u32 2147483647, %v3540
        %vm3575 = vcmp.lt.f32.partialorder %v3574, 0.0004427343
        %v3576 = vsel %vm3575, %v3573, %v3570
        %v3577 = vadd.f32 %v3521, %v3549
        %v3578 = vadd.f32 %v3522, %v3558
        %v3579 = vadd.f32 %v3523, %v3567
        %v3580 = vadd.f32 %v3524, %v3576
        %vm3581 = vcmask 7168
        %3582 = vst.msk [vmem:[%s353] sm:$0xff] %vm3581, %v3577
        %3583 = vst.msk [vmem:[%s353 + $0x8] sm:$0xff] %vm3581, %v3578
        %3584 = vst.msk [vmem:[%s353 + $0x10] sm:$0xff] %vm3581, %v3579
        %3585 = vst.msk [vmem:[%s353 + $0x18] sm:$0xff] %vm3581, %v3580
        %s3586 = smul.u32 4, %s23
        %p3587 = scmp.lt.s32.totalorder %s3586, 7
        %s3588 = scalar_select %p3587, %s3586, 7
        %s3589 = smul.addr %s3588, 8
        %s3590 = scalar_lea.vmem %s9, %s3589
        // Predicated region
        $region61: #{tpu_custom_call.1} parent=55 // pred_check
          %p3591 = pneg %p235
        $region62: #{tpu_custom_call.1} parent=55 // pred_check_branch
          %3593 = sbr.rel (%p3591) target = $region64
        $region63: #{tpu_custom_call.1} parent=55 // pred_region
          %s3594 = smul.u32 4, %s23
        $region64: #{tpu_custom_call.1} parent=55 // pred_fallthru
          _
      $region56: #{tpu_custom_call.1} parent=5 // pred_fallthru
        _
      %p3595 = scmp.le.s32.totalorder 2, %s18
      // Predicated region
      $region65: #{tpu_custom_call.1} parent=5 // pred_check
        %p3596 = pneg %p3595
      $region66: #{tpu_custom_call.1} parent=5 // pred_check_branch
        %3598 = sbr.rel (%p3596) target = $region68
      $region67: #{tpu_custom_call.1} parent=5 // pred_region
        %s3599 = ssub.s32 %s18, 2
        // Predicated region
        $region69: #{tpu_custom_call.1} parent=67 // pred_check
          %p3600 = pneg %p241
        $region70: #{tpu_custom_call.1} parent=67 // pred_check_branch
          %3602 = sbr.rel (%p3600) target = $region72
        $region71: #{tpu_custom_call.1} parent=67 // pred_region
          %s3603 = smul.u32 4, %s24
          %p3604 = scmp.lt.s32.totalorder %s3603, 7
          %s3605 = scalar_select %p3604, %s3603, 7
          %s3606 = smul.addr %s3605, 8
          %s3607 = scalar_lea.vmem %s9, %s3606
        $region72: #{tpu_custom_call.1} parent=67 // pred_fallthru
          _
      $region68: #{tpu_custom_call.1} parent=5 // pred_fallthru
        _
    $region6: #{tpu_custom_call.1} parent=1 // loop_footer
      %s22 = sadd.s32 1, %s18
    $region7: #{tpu_custom_call.1} parent=1 // loop_footer_branch
      %17 = sbr.rel target = $region3
    $region8: #{tpu_custom_call.1} parent=1 // loop_exit
      _
    %3608 = vsyncpa [#allocation4], 1
    %s3609 = scalar_lea.sflag [#allocation4], 1
    %3610 = vsyncpa %s3609, 1

// kernel: tpu_custom_call.1
$region0: #{tpu_custom_call.1}
  #allocation0 [shape = 'u32[]', space=smem, size = 0x4, offset = 0x4, fixed_abs, tag = 'smem constant byte address 0x4 - core index']
  #allocation1 [shape = 'u32[72,128]{1,0:T(1,128)}', space=vmem, size = 0x9000, scoped, tag = 'internal scratch']
  #allocation2 [shape = 'f32[1,1]{1,0:T(1,128)S(1)}', space=vmem, size = 0x200, scoped, tag = 'scoped memory for tpu_custom_call.1']
  %s0 = inlined_call_operand.vmem [shape: f32[64,16], index: 0, kind: input, shape index: {}]
  %s1 = inlined_call_operand.vmem [shape: bf16[16,256], index: 1, kind: input, shape index: {}]
  %s2 = inlined_call_operand.vmem [shape: f32[1,256], index: 2, kind: input, shape index: {}]
  %s3 = inlined_call_operand.hbm [shape: bf16[6,256,256], index: 3, kind: input, shape index: {}]
  %s4 = inlined_call_operand.vmem [shape: f32[6,1,256], index: 4, kind: input, shape index: {}]
  %s5 = inlined_call_operand.vmem [shape: f32[1,256], index: 5, kind: input, shape index: {}]
  %s6 = inlined_call_operand.vmem [shape: f32[1,256], index: 6, kind: input, shape index: {}]
  %s7 = inlined_call_operand.vmem [shape: f32[1,256], index: 7, kind: input, shape index: {}]
  %s8 = inlined_call_operand.<no memory space> [shape: f32[1,1], index: 8, kind: input, shape index: {}]
  %s9 = inlined_call_operand.vmem [shape: f32[64,1], index: 9, kind: output, shape index: {}]
  %s10 = sld [smem:[#allocation0]]
  $region73: #{tpu_custom_call.1} parent=0
    _
  %s12 = ssub.s32 1, %s10
  %s13 = scalar_select 0, %s12, %s10
  %v14 = vstv %s8
  %15 = vst [vmem:[#allocation2] sm:$0x1] %v14
  $region1: #{tpu_custom_call.1} parent=0
    #allocation3 [shape = 'u8[786432]{0}', space=vmem, size = 0xc0000, scoped, tag = 'input window, operand 3, single buffered']
    #allocation4 [shape = 's32[2]{0}', space=sflag, size = 0x8, scoped, tag = 'scoped memory for tpu_custom_call.1']
    %16 = vsyncpa [#allocation4], 0
    loop: start=0, step=1, limit=4
    $region2: #{tpu_custom_call.1} parent=1 // loop_pre_header
      _
    $region3: #{tpu_custom_call.1} parent=1 // loop_header
      %s18 = sphi 0, %s22
      %p19 = scmp.ge.s32.totalorder %s18, 4
      %s28 = sphi 0, %s30
      %s31 = sphi 0, %s28
      %s32 = sphi 0, %s31
      %s48 = sphi 0, %s32
      %s52 = sphi 0, %s52
      %s54 = sphi 0, %s52
      %s55 = sphi 0, %s54
      %s69 = sphi 0, %s55
      %s73 = sphi 0, %s73
      %s75 = sphi 0, %s73
      %s76 = sphi 0, %s75
      %s90 = sphi 0, %s76
      %s94 = sphi 0, %s94
      %s96 = sphi 0, %s94
      %s97 = sphi 0, %s96
      %s111 = sphi 0, %s97
      %s115 = sphi 0, %s115
      %s117 = sphi 0, %s115
      %s118 = sphi 0, %s117
      %s132 = sphi 0, %s118
      %s136 = sphi 0, %s136
      %s138 = sphi 0, %s136
      %s139 = sphi 0, %s138
      %s153 = sphi 0, %s139
      %s157 = sphi 0, %s157
      %s159 = sphi 0, %s157
      %s160 = sphi 0, %s159
      %s174 = sphi 0, %s160
      %s178 = sphi 0, %s178
      %s180 = sphi 0, %s178
      %s181 = sphi 0, %s180
      %s195 = sphi 0, %s181
      %s199 = sphi 0, %s199
      %s201 = sphi 0, %s199
      %s202 = sphi 0, %s201
      %s216 = sphi 0, %s202
      %s222 = sphi 0, %s224
      %s225 = sphi 0, %s222
      %s226 = sphi 0, %s225
      %s242 = sphi 0, %s226
    $region4: #{tpu_custom_call.1} parent=1 // loop_header_branch
      %21 = sbr.rel (%p19) target = $region8
    $region5: #{tpu_custom_call.1} parent=1 // loop_body
      %s23 = ssub.s32 %s18, 1
      %s24 = ssub.s32 %s18, 2
      %s25 = sadd.s32 %s18, 1
      %s26 = ssub.s32 %s18, %s25
      %p27 = scmp.eq.s32.totalorder %s26, 0
      %s29 = sadd.s32 %s28, 1
      %s30 = scalar_select %p27, %s28, %s29
      %p33 = pneg %p27
      %p34 = scmp.eq.s32.totalorder %s18, 1
      %p35 = por %p33, %p34
      %p36 = scmp.ne.s32.totalorder %s28, %s31
      %p37 = scmp.eq.s32.totalorder %s18, 0
      %p38 = por %p36, %p37
      %p39 = scmp.ne.s32.totalorder %s28, %s31
      %p40 = scmp.eq.s32.totalorder %s23, 1
      %p41 = por %p39, %p40
      %p42 = scmp.ne.s32.totalorder %s31, %s32
      %p43 = scmp.eq.s32.totalorder %s23, 0
      %p44 = por %p42, %p43
      %p45 = scmp.ne.s32.totalorder %s31, %s32
      %p46 = scmp.eq.s32.totalorder %s24, 1
      %p47 = por %p45, %p46
      %p49 = scmp.ne.s32.totalorder %s32, %s48
      %p50 = scmp.eq.s32.totalorder %s24, 0
      %p51 = por %p49, %p50
      %s53 = sadd.s32 %s52, 1
      %p56 = scmp.eq.s32.totalorder %s18, 1
      %p57 = scmp.ne.s32.totalorder %s52, %s54
      %p58 = scmp.eq.s32.totalorder %s18, 0
      %p59 = por %p57, %p58
      %p60 = scmp.ne.s32.totalorder %s52, %s54
      %p61 = scmp.eq.s32.totalorder %s23, 1
      %p62 = por %p60, %p61
      %p63 = scmp.ne.s32.totalorder %s54, %s55
      %p64 = scmp.eq.s32.totalorder %s23, 0
      %p65 = por %p63, %p64
      %p66 = scmp.ne.s32.totalorder %s54, %s55
      %p67 = scmp.eq.s32.totalorder %s24, 1
      %p68 = por %p66, %p67
      %p70 = scmp.ne.s32.totalorder %s55, %s69
      %p71 = scmp.eq.s32.totalorder %s24, 0
      %p72 = por %p70, %p71
      %s74 = sadd.s32 %s73, 1
      %p77 = scmp.eq.s32.totalorder %s18, 1
      %p78 = scmp.ne.s32.totalorder %s73, %s75
      %p79 = scmp.eq.s32.totalorder %s18, 0
      %p80 = por %p78, %p79
      %p81 = scmp.ne.s32.totalorder %s73, %s75
      %p82 = scmp.eq.s32.totalorder %s23, 1
      %p83 = por %p81, %p82
      %p84 = scmp.ne.s32.totalorder %s75, %s76
      %p85 = scmp.eq.s32.totalorder %s23, 0
      %p86 = por %p84, %p85
      %p87 = scmp.ne.s32.totalorder %s75, %s76
      %p88 = scmp.eq.s32.totalorder %s24, 1
      %p89 = por %p87, %p88
      %p91 = scmp.ne.s32.totalorder %s76, %s90
      %p92 = scmp.eq.s32.totalorder %s24, 0
      %p93 = por %p91, %p92
      %s95 = sadd.s32 %s94, 1
      %p98 = scmp.eq.s32.totalorder %s18, 1
      %p99 = scmp.ne.s32.totalorder %s94, %s96
      %p100 = scmp.eq.s32.totalorder %s18, 0
      %p101 = por %p99, %p100
      %p102 = scmp.ne.s32.totalorder %s94, %s96
      %p103 = scmp.eq.s32.totalorder %s23, 1
      %p104 = por %p102, %p103
      %p105 = scmp.ne.s32.totalorder %s96, %s97
      %p106 = scmp.eq.s32.totalorder %s23, 0
      %p107 = por %p105, %p106
      %p108 = scmp.ne.s32.totalorder %s96, %s97
      %p109 = scmp.eq.s32.totalorder %s24, 1
      %p110 = por %p108, %p109
      %p112 = scmp.ne.s32.totalorder %s97, %s111
      %p113 = scmp.eq.s32.totalorder %s24, 0
      %p114 = por %p112, %p113
      %s116 = sadd.s32 %s115, 1
      %p119 = scmp.eq.s32.totalorder %s18, 1
      %p120 = scmp.ne.s32.totalorder %s115, %s117
      %p121 = scmp.eq.s32.totalorder %s18, 0
      %p122 = por %p120, %p121
      %p123 = scmp.ne.s32.totalorder %s115, %s117
      %p124 = scmp.eq.s32.totalorder %s23, 1
      %p125 = por %p123, %p124
      %p126 = scmp.ne.s32.totalorder %s117, %s118
      %p127 = scmp.eq.s32.totalorder %s23, 0
      %p128 = por %p126, %p127
      %p129 = scmp.ne.s32.totalorder %s117, %s118
      %p130 = scmp.eq.s32.totalorder %s24, 1
      %p131 = por %p129, %p130
      %p133 = scmp.ne.s32.totalorder %s118, %s132
      %p134 = scmp.eq.s32.totalorder %s24, 0
      %p135 = por %p133, %p134
      %s137 = sadd.s32 %s136, 1
      %p140 = scmp.eq.s32.totalorder %s18, 1
      %p141 = scmp.ne.s32.totalorder %s136, %s138
      %p142 = scmp.eq.s32.totalorder %s18, 0
      %p143 = por %p141, %p142
      %p144 = scmp.ne.s32.totalorder %s136, %s138
      %p145 = scmp.eq.s32.totalorder %s23, 1
      %p146 = por %p144, %p145
      %p147 = scmp.ne.s32.totalorder %s138, %s139
      %p148 = scmp.eq.s32.totalorder %s23, 0
      %p149 = por %p147, %p148
      %p150 = scmp.ne.s32.totalorder %s138, %s139
      %p151 = scmp.eq.s32.totalorder %s24, 1
      %p152 = por %p150, %p151
      %p154 = scmp.ne.s32.totalorder %s139, %s153
      %p155 = scmp.eq.s32.totalorder %s24, 0
      %p156 = por %p154, %p155
      %s158 = sadd.s32 %s157, 1
      %p161 = scmp.eq.s32.totalorder %s18, 1
      %p162 = scmp.ne.s32.totalorder %s157, %s159
      %p163 = scmp.eq.s32.totalorder %s18, 0
      %p164 = por %p162, %p163
      %p165 = scmp.ne.s32.totalorder %s157, %s159
      %p166 = scmp.eq.s32.totalorder %s23, 1
      %p167 = por %p165, %p166
      %p168 = scmp.ne.s32.totalorder %s159, %s160
      %p169 = scmp.eq.s32.totalorder %s23, 0
      %p170 = por %p168, %p169
      %p171 = scmp.ne.s32.totalorder %s159, %s160
      %p172 = scmp.eq.s32.totalorder %s24, 1
      %p173 = por %p171, %p172
      %p175 = scmp.ne.s32.totalorder %s160, %s174
      %p176 = scmp.eq.s32.totalorder %s24, 0
      %p177 = por %p175, %p176
      %s179 = sadd.s32 %s178, 1
      %p182 = scmp.eq.s32.totalorder %s18, 1
      %p183 = scmp.ne.s32.totalorder %s178, %s180
      %p184 = scmp.eq.s32.totalorder %s18, 0
      %p185 = por %p183, %p184
      %p186 = scmp.ne.s32.totalorder %s178, %s180
      %p187 = scmp.eq.s32.totalorder %s23, 1
      %p188 = por %p186, %p187
      %p189 = scmp.ne.s32.totalorder %s180, %s181
      %p190 = scmp.eq.s32.totalorder %s23, 0
      %p191 = por %p189, %p190
      %p192 = scmp.ne.s32.totalorder %s180, %s181
      %p193 = scmp.eq.s32.totalorder %s24, 1
      %p194 = por %p192, %p193
      %p196 = scmp.ne.s32.totalorder %s181, %s195
      %p197 = scmp.eq.s32.totalorder %s24, 0
      %p198 = por %p196, %p197
      %s200 = sadd.s32 %s199, 1
      %p203 = scmp.eq.s32.totalorder %s18, 1
      %p204 = scmp.ne.s32.totalorder %s199, %s201
      %p205 = scmp.eq.s32.totalorder %s18, 0
      %p206 = por %p204, %p205
      %p207 = scmp.ne.s32.totalorder %s199, %s201
      %p208 = scmp.eq.s32.totalorder %s23, 1
      %p209 = por %p207, %p208
      %p210 = scmp.ne.s32.totalorder %s201, %s202
      %p211 = scmp.eq.s32.totalorder %s23, 0
      %p212 = por %p210, %p211
      %p213 = scmp.ne.s32.totalorder %s201, %s202
      %p214 = scmp.eq.s32.totalorder %s24, 1
      %p215 = por %p213, %p214
      %p217 = scmp.ne.s32.totalorder %s202, %s216
      %p218 = scmp.eq.s32.totalorder %s24, 0
      %p219 = por %p217, %p218
      %s220 = ssub.s32 %s18, %s25
      %p221 = scmp.eq.s32.totalorder %s220, 0
      %s223 = sadd.s32 %s222, 1
      %s224 = scalar_select %p221, %s222, %s223
      %p227 = pneg %p221
      %p228 = scmp.eq.s32.totalorder %s18, 1
      %p229 = por %p227, %p228
      %p230 = scmp.ne.s32.totalorder %s222, %s225
      %p231 = scmp.eq.s32.totalorder %s18, 0
      %p232 = por %p230, %p231
      %p233 = scmp.ne.s32.totalorder %s222, %s225
      %p234 = scmp.eq.s32.totalorder %s23, 1
      %p235 = por %p233, %p234
      %p236 = scmp.ne.s32.totalorder %s225, %s226
      %p237 = scmp.eq.s32.totalorder %s23, 0
      %p238 = por %p236, %p237
      %p239 = scmp.ne.s32.totalorder %s225, %s226
      %p240 = scmp.eq.s32.totalorder %s24, 1
      %p241 = por %p239, %p240
      %p243 = scmp.ne.s32.totalorder %s226, %s242
      %p244 = scmp.eq.s32.totalorder %s24, 0
      %p245 = por %p243, %p244
      %p246 = scmp.le.s32.totalorder 1, %s18
      %p247 = scmp.lt.s32.totalorder %s18, 3
      %p248 = pnand %p246, %p247
      %p249 = pneg %p248
      // Predicated region
      $region9: #{tpu_custom_call.1} parent=5 // pred_check
        _
      $region10: #{tpu_custom_call.1} parent=5 // pred_check_branch
        %251 = sbr.rel (%p248) target = $region12
      $region11: #{tpu_custom_call.1} parent=5 // pred_region
        %s252 = ssub.s32 %s18, 1
        // Predicated region
        $region13: #{tpu_custom_call.1} parent=11 // pred_check
          %p253 = pneg %p65
        $region14: #{tpu_custom_call.1} parent=11 // pred_check_branch
          %255 = sbr.rel (%p253) target = $region16
        $region15: #{tpu_custom_call.1} parent=11 // pred_region
          _
        $region16: #{tpu_custom_call.1} parent=11 // pred_fallthru
          _
        // Predicated region
        $region17: #{tpu_custom_call.1} parent=11 // pred_check
          %p256 = pneg %p86
        $region18: #{tpu_custom_call.1} parent=11 // pred_check_branch
          %258 = sbr.rel (%p256) target = $region20
        $region19: #{tpu_custom_call.1} parent=11 // pred_region
          _
        $region20: #{tpu_custom_call.1} parent=11 // pred_fallthru
          _
        // Predicated region
        $region21: #{tpu_custom_call.1} parent=11 // pred_check
          %p259 = pneg %p107
        $region22: #{tpu_custom_call.1} parent=11 // pred_check_branch
          %261 = sbr.rel (%p259) target = $region24
        $region23: #{tpu_custom_call.1} parent=11 // pred_region
          %263 = vsyncadd [#allocation4], 0
          %s264 = sshll.u32 %s3, 4
          %s265 = int_to_ptr.hbm [resolvable:$true] %s264
          %s266 = sshll.u32 [#allocation3], 4
          %s267 = int_to_ptr.vmem [resolvable:$true] %s266
          %272 = dma.hbm_to_vmem [thread:$0]  %s265, 24576, %s267, [#allocation4], 128, 128, 8
        $region24: #{tpu_custom_call.1} parent=11 // pred_fallthru
          _
        // Predicated region
        $region25: #{tpu_custom_call.1} parent=11 // pred_check
          %p273 = pneg %p128
        $region26: #{tpu_custom_call.1} parent=11 // pred_check_branch
          %275 = sbr.rel (%p273) target = $region28
        $region27: #{tpu_custom_call.1} parent=11 // pred_region
          _
        $region28: #{tpu_custom_call.1} parent=11 // pred_fallthru
          _
        // Predicated region
        $region29: #{tpu_custom_call.1} parent=11 // pred_check
          %p276 = pneg %p149
        $region30: #{tpu_custom_call.1} parent=11 // pred_check_branch
          %278 = sbr.rel (%p276) target = $region32
        $region31: #{tpu_custom_call.1} parent=11 // pred_region
          _
        $region32: #{tpu_custom_call.1} parent=11 // pred_fallthru
          _
        // Predicated region
        $region33: #{tpu_custom_call.1} parent=11 // pred_check
          %p279 = pneg %p170
        $region34: #{tpu_custom_call.1} parent=11 // pred_check_branch
          %281 = sbr.rel (%p279) target = $region36
        $region35: #{tpu_custom_call.1} parent=11 // pred_region
          _
        $region36: #{tpu_custom_call.1} parent=11 // pred_fallthru
          _
        // Predicated region
        $region37: #{tpu_custom_call.1} parent=11 // pred_check
          %p282 = pneg %p191
        $region38: #{tpu_custom_call.1} parent=11 // pred_check_branch
          %284 = sbr.rel (%p282) target = $region40
        $region39: #{tpu_custom_call.1} parent=11 // pred_region
          _
        $region40: #{tpu_custom_call.1} parent=11 // pred_fallthru
          _
        // Predicated region
        $region41: #{tpu_custom_call.1} parent=11 // pred_check
          %p285 = pneg %p212
        $region42: #{tpu_custom_call.1} parent=11 // pred_check_branch
          %287 = sbr.rel (%p285) target = $region44
        $region43: #{tpu_custom_call.1} parent=11 // pred_region
          _
        $region44: #{tpu_custom_call.1} parent=11 // pred_fallthru
          _
      $region12: #{tpu_custom_call.1} parent=5 // pred_fallthru
        _
      %p288 = scmp.lt.s32.totalorder %s18, 2
      // Predicated region
      $region45: #{tpu_custom_call.1} parent=5 // pred_check
        %p289 = pneg %p288
      $region46: #{tpu_custom_call.1} parent=5 // pred_check_branch
        %291 = sbr.rel (%p289) target = $region48
      $region47: #{tpu_custom_call.1} parent=5 // pred_region
        // Predicated region
        $region49: #{tpu_custom_call.1} parent=47 // pred_check
          %p292 = pneg %p38
        $region50: #{tpu_custom_call.1} parent=47 // pred_check_branch
          %294 = sbr.rel (%p292) target = $region52
        $region51: #{tpu_custom_call.1} parent=47 // pred_region
          %s295 = smul.u32 4, %s18
          %p296 = scmp.lt.s32.totalorder %s295, 7
          %s297 = scalar_select %p296, %s295, 7
          %s298 = smul.addr %s297, 8
          %s299 = scalar_lea.vmem %s0, %s298
          %s300 = smul.u32 4, %s18
        $region52: #{tpu_custom_call.1} parent=47 // pred_fallthru
          _
      $region48: #{tpu_custom_call.1} parent=5 // pred_fallthru
        _
      %p301 = scmp.le.s32.totalorder 1, %s18
      %p302 = scmp.lt.s32.totalorder %s18, 3
      %p303 = pnand %p301, %p302
      %p304 = pneg %p303
      // Predicated region
      $region53: #{tpu_custom_call.1} parent=5 // pred_check
        _
      $region54: #{tpu_custom_call.1} parent=5 // pred_check_branch
        %306 = sbr.rel (%p303) target = $region56
      $region55: #{tpu_custom_call.1} parent=5 // pred_region
        %s307 = ssub.s32 %s18, 1
        // Predicated region
        $region57: #{tpu_custom_call.1} parent=55 // pred_check
          %p308 = pneg %p107
        $region58: #{tpu_custom_call.1} parent=55 // pred_check_branch
          %310 = sbr.rel (%p308) target = $region60
        $region59: #{tpu_custom_call.1} parent=55 // pred_region
          %312 = dma.done [#allocation4], 24576
        $region60: #{tpu_custom_call.1} parent=55 // pred_fallthru
          _
        %s313 = smul.u32 4, %s23
        %p314 = scmp.lt.s32.totalorder %s313, 7
        %s315 = scalar_select %p314, %s313, 7
        %s316 = smul.addr %s315, 8
        %s317 = scalar_lea.vmem %s0, %s316
        %p318 = pneg %p44
        %p319 = pneg %p41
        %p320 = pneg %p65
        %p321 = pneg %p62
        %p322 = pneg %p86
        %p323 = pneg %p83
        %p324 = pneg %p107
        %p325 = pneg %p104
        %p326 = pneg %p128
        %p327 = pneg %p125
        %p328 = pneg %p149
        %p329 = pneg %p146
        %p330 = pneg %p170
        %p331 = pneg %p167
        %p332 = pneg %p191
        %p333 = pneg %p188
        %p334 = pneg %p212
        %p335 = pneg %p209
        %p336 = pneg %p238
        %p337 = pneg %p235
        %s338 = smul.u32 4, %s23
        %p339 = scmp.lt.s32.totalorder %s338, 7
        %s340 = scalar_select %p339, %s338, 7
        %s341 = smul.addr %s340, 8
        %s342 = scalar_lea.vmem %s9, %s341
        %s343 = smul.u32 4, %s23
        %p344 = scmp.lt.s32.totalorder %s343, 7
        %s345 = scalar_select %p344, %s343, 7
        %s346 = smul.addr %s345, 8
        %s347 = scalar_lea.vmem %s0, %s346
        %s348 = smul.u32 4, %s23
        %s349 = smul.u32 4, %s23
        %p350 = scmp.lt.s32.totalorder %s349, 7
        %s351 = scalar_select %p350, %s349, 7
        %s352 = smul.addr %s351, 8
        %s353 = scalar_lea.vmem %s9, %s352
        %s354 = smul.u32 4, %s23
        %v356 = vld [vmem:[%s5] sm:$0x3]
        %v357 = vld [vmem:[%s6] sm:$0x3]
        %v358 = vld [vmem:[%s347] sm:$0xff]
        %v359 = vld [vmem:[%s347 + $0x8] sm:$0xff]
        %v360 = vld [vmem:[%s347 + $0x10] sm:$0xff]
        %v361 = vld [vmem:[%s347 + $0x18] sm:$0xff]
        %v362 = vpack.c.bf16 %v359, %v358
        %v363 = vpack.c.bf16 %v361, %v360
        %v364 = vld [vmem:[%s1] sm:$0xff]
        %v365 = vld [vmem:[%s1 + $0x8] sm:$0xff]
        %v366 = vld [vmem:[%s2] sm:$0x3]
        %v368 = vperm.slane %v366, 0
        %v369 = vperm.slane %v366, 1
        %v374 = vunpack.c.l.b16 %v364
        %v375 = vunpack.c.h.b16 %v364
        %v376 = vunpack.c.l.b16 %v365
        %v377 = vunpack.c.h.b16 %v365
        %v378 = vpack.c.b16 %v376, %v374
        %v379 = vpack.c.b16 %v377, %v375
        %vm382 = vcmask 130048
        %v384 = vsel %vm382, %v362, 0
        %v387 = vsel %vm382, %v363, 0
        %389 = vmatpush.bf16.msra.mxu0 0
        %390 = vmatpush.bf16.msra.mxu0 0
        %391 = vmatpush.bf16.msra.mxu0 0
        %392 = vmatpush.bf16.msra.mxu0 0
        %393 = vmatpush.bf16.msra.mxu0 0
        %394 = vmatpush.bf16.msra.mxu0 0
        %395 = vmatpush.bf16.msra.mxu0 0
        %396 = vmatpush.bf16.msra.mxu0 %v378
        %397 = vmatmul.bf16.gmra.mxu0 %v384
        %v398 = vpop.f32.mrf.mxu0
        %v399 = vadd.f32 %v368, %v398
        %v400 = vpop.f32.mrf.mxu0
        %v401 = vadd.f32 %v368, %v400
        %402 = vmatmul.bf16.gmra.mxu0 %v387
        %v403 = vpop.f32.mrf.mxu0
        %v404 = vadd.f32 %v368, %v403
        %v405 = vpop.f32.mrf.mxu0
        %v406 = vadd.f32 %v368, %v405
        %407 = vdwg.mxu0
        %408 = vmatpush.bf16.msra.mxu0 0
        %409 = vmatpush.bf16.msra.mxu0 0
        %410 = vmatpush.bf16.msra.mxu0 0
        %411 = vmatpush.bf16.msra.mxu0 0
        %412 = vmatpush.bf16.msra.mxu0 0
        %413 = vmatpush.bf16.msra.mxu0 0
        %414 = vmatpush.bf16.msra.mxu0 0
        %415 = vmatpush.bf16.msra.mxu0 %v379
        %416 = vmatmul.bf16.gmra.mxu0 %v384
        %v417 = vpop.f32.mrf.mxu0
        %v418 = vadd.f32 %v369, %v417
        %v419 = vpop.f32.mrf.mxu0
        %v420 = vadd.f32 %v369, %v419
        %421 = vmatmul.bf16.gmra.mxu0 %v387
        %v422 = vpop.f32.mrf.mxu0
        %v423 = vadd.f32 %v369, %v422
        %v424 = vpop.f32.mrf.mxu0
        %v425 = vadd.f32 %v369, %v424
        %426 = vdwg.mxu0
        %v427 = vadd.f32 %v399, %v418
        %428 = vadd.xlane.f32.xlu0 %v427
        %v429 = vpop.xlane.xlu0 %428
        %v430 = vadd.f32 %v401, %v420
        %431 = vadd.xlane.f32.xlu0 %v430
        %v432 = vpop.xlane.xlu0 %431
        %v433 = vadd.f32 %v404, %v423
        %434 = vadd.xlane.f32.xlu0 %v433
        %v435 = vpop.xlane.xlu0 %434
        %v436 = vadd.f32 %v406, %v425
        %437 = vadd.xlane.f32.xlu0 %v436
        %v438 = vpop.xlane.xlu0 %437
        %v439 = vmul.f32 %v429, 0.005
        %v440 = vmul.f32 %v432, 0.005
        %v441 = vmul.f32 %v435, 0.005
        %v442 = vmul.f32 %v438, 0.005
        %v443 = vmul.f32 %v399, %v399
        %v444 = vmul.f32 %v418, %v418
        %v445 = vmul.f32 %v401, %v401
        %v446 = vmul.f32 %v420, %v420
        %v447 = vmul.f32 %v404, %v404
        %v448 = vmul.f32 %v423, %v423
        %v449 = vmul.f32 %v406, %v406
        %v450 = vmul.f32 %v425, %v425
        %v451 = vadd.f32 %v443, %v444
        %452 = vadd.xlane.f32.xlu0 %v451
        %v453 = vpop.xlane.xlu0 %452
        %v454 = vadd.f32 %v445, %v446
        %455 = vadd.xlane.f32.xlu0 %v454
        %v456 = vpop.xlane.xlu0 %455
        %v457 = vadd.f32 %v447, %v448
        %458 = vadd.xlane.f32.xlu0 %v457
        %v459 = vpop.xlane.xlu0 %458
        %v460 = vadd.f32 %v449, %v450
        %461 = vadd.xlane.f32.xlu0 %v460
        %v462 = vpop.xlane.xlu0 %461
        %v463 = vmul.f32 %v453, 0.005
        %v464 = vmul.f32 %v456, 0.005
        %v465 = vmul.f32 %v459, 0.005
        %v466 = vmul.f32 %v462, 0.005
        %v467 = vmul.f32 %v439, %v439
        %v468 = vmul.f32 %v440, %v440
        %v469 = vmul.f32 %v441, %v441
        %v470 = vmul.f32 %v442, %v442
        %v471 = vsub.f32 %v463, %v467
        %v472 = vsub.f32 %v464, %v468
        %v473 = vsub.f32 %v465, %v469
        %v474 = vsub.f32 %v466, %v470
        %v475 = vsub.f32 %v399, %v439
        %v476 = vsub.f32 %v418, %v439
        %v477 = vsub.f32 %v401, %v440
        %v478 = vsub.f32 %v420, %v440
        %v479 = vsub.f32 %v404, %v441
        %v480 = vsub.f32 %v423, %v441
        %v481 = vsub.f32 %v406, %v442
        %v482 = vsub.f32 %v425, %v442
        %v483 = vadd.f32 %v471, 1e-05
        %v484 = vadd.f32 %v472, 1e-05
        %v485 = vadd.f32 %v473, 1e-05
        %v486 = vadd.f32 %v474, 1e-05
        %v487 = vrsqrt.pop %v483
        %v488 = vmul.f32 %v487, %v483
        %v489 = vmul.f32 %v488, %v487
        %v490 = vmul.f32 0.5, %v489
        %v491 = vsub.f32 1.5, %v490
        %v492 = vmul.f32 %v487, %v491
        %vm493 = vweird.f32 %v483
        %vm494 = vweird.f32 %v487
        %vm495 = vmor %vm493, %vm494
        %v496 = vsel %vm495, %v487, %v492
        %v497 = vrsqrt.pop %v484
        %v498 = vmul.f32 %v497, %v484
        %v499 = vmul.f32 %v498, %v497
        %v500 = vmul.f32 0.5, %v499
        %v501 = vsub.f32 1.5, %v500
        %v502 = vmul.f32 %v497, %v501
        %vm503 = vweird.f32 %v484
        %vm504 = vweird.f32 %v497
        %vm505 = vmor %vm503, %vm504
        %v506 = vsel %vm505, %v497, %v502
        %v507 = vrsqrt.pop %v485
        %v508 = vmul.f32 %v507, %v485
        %v509 = vmul.f32 %v508, %v507
        %v510 = vmul.f32 0.5, %v509
        %v511 = vsub.f32 1.5, %v510
        %v512 = vmul.f32 %v507, %v511
        %vm513 = vweird.f32 %v485
        %vm514 = vweird.f32 %v507
        %vm515 = vmor %vm513, %vm514
        %v516 = vsel %vm515, %v507, %v512
        %v517 = vrsqrt.pop %v486
        %v518 = vmul.f32 %v517, %v486
        %v519 = vmul.f32 %v518, %v517
        %v520 = vmul.f32 0.5, %v519
        %v521 = vsub.f32 1.5, %v520
        %v522 = vmul.f32 %v517, %v521
        %vm523 = vweird.f32 %v486
        %vm524 = vweird.f32 %v517
        %vm525 = vmor %vm523, %vm524
        %v526 = vsel %vm525, %v517, %v522
        %v527 = vmul.f32 %v475, %v496
        %v528 = vmul.f32 %v476, %v496
        %v529 = vmul.f32 %v477, %v506
        %v530 = vmul.f32 %v478, %v506
        %v531 = vmul.f32 %v479, %v516
        %v532 = vmul.f32 %v480, %v516
        %v533 = vmul.f32 %v481, %v526
        %v534 = vmul.f32 %v482, %v526
        %v536 = vperm.slane %v356, 0
        %v537 = vperm.slane %v356, 1
        %v540 = vmul.f32 %v527, %v536
        %v541 = vmul.f32 %v528, %v537
        %v542 = vmul.f32 %v529, %v536
        %v543 = vmul.f32 %v530, %v537
        %v544 = vmul.f32 %v531, %v536
        %v545 = vmul.f32 %v532, %v537
        %v546 = vmul.f32 %v533, %v536
        %v547 = vmul.f32 %v534, %v537
        %v549 = vperm.slane %v357, 0
        %v550 = vperm.slane %v357, 1
        %v553 = vadd.f32 %v540, %v549
        %v554 = vadd.f32 %v541, %v550
        %v555 = vadd.f32 %v542, %v549
        %v556 = vadd.f32 %v543, %v550
        %v557 = vadd.f32 %v544, %v549
        %v558 = vadd.f32 %v545, %v550
        %v559 = vadd.f32 %v546, %v549
        %v560 = vadd.f32 %v547, %v550
        %v561 = vmin.f32 %v553, 20.0
        %v562 = vmin.f32 %v554, 20.0
        %v563 = vmin.f32 %v555, 20.0
        %v564 = vmin.f32 %v556, 20.0
        %v565 = vmin.f32 %v557, 20.0
        %v566 = vmin.f32 %v558, 20.0
        %v567 = vmin.f32 %v559, 20.0
        %v568 = vmin.f32 %v560, 20.0
        %v569 = vmul.f32 %v561, 1.442695
        %v570 = vpow.pop %v569
        %v571 = vmul.f32 %v562, 1.442695
        %v572 = vpow.pop %v571
        %v573 = vmul.f32 %v563, 1.442695
        %v574 = vpow.pop %v573
        %v575 = vmul.f32 %v564, 1.442695
        %v576 = vpow.pop %v575
        %v577 = vmul.f32 %v565, 1.442695
        %v578 = vpow.pop %v577
        %v579 = vmul.f32 %v566, 1.442695
        %v580 = vpow.pop %v579
        %v581 = vmul.f32 %v567, 1.442695
        %v582 = vpow.pop %v581
        %v583 = vmul.f32 %v568, 1.442695
        %v584 = vpow.pop %v583
        %v585 = vadd.f32 %v570, 2.0
        %v586 = vadd.f32 %v572, 2.0
        %v587 = vadd.f32 %v574, 2.0
        %v588 = vadd.f32 %v576, 2.0
        %v589 = vadd.f32 %v578, 2.0
        %v590 = vadd.f32 %v580, 2.0
        %v591 = vadd.f32 %v582, 2.0
        %v592 = vadd.f32 %v584, 2.0
        %v593 = vmul.f32 %v570, %v585
        %v594 = vmul.f32 %v572, %v586
        %v595 = vmul.f32 %v574, %v587
        %v596 = vmul.f32 %v576, %v588
        %v597 = vmul.f32 %v578, %v589
        %v598 = vmul.f32 %v580, %v590
        %v599 = vmul.f32 %v582, %v591
        %v600 = vmul.f32 %v584, %v592
        %v601 = vadd.f32 %v593, 2.0
        %v602 = vadd.f32 %v594, 2.0
        %v603 = vadd.f32 %v595, 2.0
        %v604 = vadd.f32 %v596, 2.0
        %v605 = vadd.f32 %v597, 2.0
        %v606 = vadd.f32 %v598, 2.0
        %v607 = vadd.f32 %v599, 2.0
        %v608 = vadd.f32 %v600, 2.0
        %v609 = vrcp.pop %v601
        %v610 = vrcp.pop %v602
        %v611 = vrcp.pop %v603
        %v612 = vrcp.pop %v604
        %v613 = vrcp.pop %v605
        %v614 = vrcp.pop %v606
        %v615 = vrcp.pop %v607
        %v616 = vrcp.pop %v608
        %v617 = vmul.f32 %v593, %v609
        %v618 = vmul.f32 %v594, %v610
        %v619 = vmul.f32 %v595, %v611
        %v620 = vmul.f32 %v596, %v612
        %v621 = vmul.f32 %v597, %v613
        %v622 = vmul.f32 %v598, %v614
        %v623 = vmul.f32 %v599, %v615
        %v624 = vmul.f32 %v600, %v616
        %v625 = vmul.f32 %v553, %v617
        %v626 = vmul.f32 %v554, %v618
        %v627 = vmul.f32 %v555, %v619
        %v628 = vmul.f32 %v556, %v620
        %v629 = vmul.f32 %v557, %v621
        %v630 = vmul.f32 %v558, %v622
        %v631 = vmul.f32 %v559, %v623
        %v632 = vmul.f32 %v560, %v624
        %v633 = vpack.c.bf16 %v627, %v625
        %v634 = vpack.c.bf16 %v628, %v626
        %v635 = vpack.c.bf16 %v631, %v629
        %v636 = vpack.c.bf16 %v632, %v630
        %v637 = vld [vmem:[#allocation3] sm:$0xff]
        %v638 = vld [vmem:[#allocation3 + $0x8] sm:$0xff]
        %v639 = vld [vmem:[#allocation3 + $0x10] sm:$0xff]
        %v640 = vld [vmem:[#allocation3 + $0x18] sm:$0xff]
        %v641 = vld [vmem:[#allocation3 + $0x20] sm:$0xff]
        %v642 = vld [vmem:[#allocation3 + $0x28] sm:$0xff]
        %v643 = vld [vmem:[#allocation3 + $0x30] sm:$0xff]
        %v644 = vld [vmem:[#allocation3 + $0x38] sm:$0xff]
        %v645 = vld [vmem:[#allocation3 + $0x40] sm:$0xff]
        %v646 = vld [vmem:[#allocation3 + $0x48] sm:$0xff]
        %v647 = vld [vmem:[#allocation3 + $0x50] sm:$0xff]
        %v648 = vld [vmem:[#allocation3 + $0x58] sm:$0xff]
        %v649 = vld [vmem:[#allocation3 + $0x60] sm:$0xff]
        %v650 = vld [vmem:[#allocation3 + $0x68] sm:$0xff]
        %v651 = vld [vmem:[#allocation3 + $0x70] sm:$0xff]
        %v652 = vld [vmem:[#allocation3 + $0x78] sm:$0xff]
        %v653 = vld [vmem:[#allocation3 + $0x80] sm:$0xff]
        %v654 = vld [vmem:[#allocation3 + $0x88] sm:$0xff]
        %v655 = vld [vmem:[#allocation3 + $0x90] sm:$0xff]
        %v656 = vld [vmem:[#allocation3 + $0x98] sm:$0xff]
        %v657 = vld [vmem:[#allocation3 + $0xa0] sm:$0xff]
        %v658 = vld [vmem:[#allocation3 + $0xa8] sm:$0xff]
        %v659 = vld [vmem:[#allocation3 + $0xb0] sm:$0xff]
        %v660 = vld [vmem:[#allocation3 + $0xb8] sm:$0xff]
        %v661 = vld [vmem:[#allocation3 + $0xc0] sm:$0xff]
        %v662 = vld [vmem:[#allocation3 + $0xc8] sm:$0xff]
        %v663 = vld [vmem:[#allocation3 + $0xd0] sm:$0xff]
        %v664 = vld [vmem:[#allocation3 + $0xd8] sm:$0xff]
        %v665 = vld [vmem:[#allocation3 + $0xe0] sm:$0xff]
        %v666 = vld [vmem:[#allocation3 + $0xe8] sm:$0xff]
        %v667 = vld [vmem:[#allocation3 + $0xf0] sm:$0xff]
        %v668 = vld [vmem:[#allocation3 + $0xf8] sm:$0xff]
        %v669 = vld [vmem:[%s4] sm:$0x3]
        %v671 = vperm.slane %v669, 0
        %v672 = vperm.slane %v669, 1
        %v707 = vunpack.c.l.b16 %v637
        %v708 = vunpack.c.h.b16 %v637
        %v709 = vunpack.c.l.b16 %v638
        %v710 = vunpack.c.h.b16 %v638
        %v711 = vunpack.c.l.b16 %v639
        %v712 = vunpack.c.h.b16 %v639
        %v713 = vunpack.c.l.b16 %v640
        %v714 = vunpack.c.h.b16 %v640
        %v715 = vunpack.c.l.b16 %v641
        %v716 = vunpack.c.h.b16 %v641
        %v717 = vunpack.c.l.b16 %v642
        %v718 = vunpack.c.h.b16 %v642
        %v719 = vunpack.c.l.b16 %v643
        %v720 = vunpack.c.h.b16 %v643
        %v721 = vunpack.c.l.b16 %v644
        %v722 = vunpack.c.h.b16 %v644
        %v723 = vunpack.c.l.b16 %v645
        %v724 = vunpack.c.h.b16 %v645
        %v725 = vunpack.c.l.b16 %v646
        %v726 = vunpack.c.h.b16 %v646
        %v727 = vunpack.c.l.b16 %v647
        %v728 = vunpack.c.h.b16 %v647
        %v729 = vunpack.c.l.b16 %v648
        %v730 = vunpack.c.h.b16 %v648
        %v731 = vunpack.c.l.b16 %v649
        %v732 = vunpack.c.h.b16 %v649
        %v733 = vunpack.c.l.b16 %v650
        %v734 = vunpack.c.h.b16 %v650
        %v735 = vunpack.c.l.b16 %v651
        %v736 = vunpack.c.h.b16 %v651
        %v737 = vunpack.c.l.b16 %v652
        %v738 = vunpack.c.h.b16 %v652
        %v739 = vunpack.c.l.b16 %v653
        %v740 = vunpack.c.h.b16 %v653
        %v741 = vunpack.c.l.b16 %v654
        %v742 = vunpack.c.h.b16 %v654
        %v743 = vunpack.c.l.b16 %v655
        %v744 = vunpack.c.h.b16 %v655
        %v745 = vunpack.c.l.b16 %v656
        %v746 = vunpack.c.h.b16 %v656
        %v747 = vunpack.c.l.b16 %v657
        %v748 = vunpack.c.h.b16 %v657
        %v749 = vunpack.c.l.b16 %v658
        %v750 = vunpack.c.h.b16 %v658
        %v751 = vunpack.c.l.b16 %v659
        %v752 = vunpack.c.h.b16 %v659
        %v753 = vunpack.c.l.b16 %v660
        %v754 = vunpack.c.h.b16 %v660
        %v755 = vunpack.c.l.b16 %v661
        %v756 = vunpack.c.h.b16 %v661
        %v757 = vunpack.c.l.b16 %v662
        %v758 = vunpack.c.h.b16 %v662
        %v759 = vunpack.c.l.b16 %v663
        %v760 = vunpack.c.h.b16 %v663
        %v761 = vunpack.c.l.b16 %v664
        %v762 = vunpack.c.h.b16 %v664
        %v763 = vunpack.c.l.b16 %v665
        %v764 = vunpack.c.h.b16 %v665
        %v765 = vunpack.c.l.b16 %v666
        %v766 = vunpack.c.h.b16 %v666
        %v767 = vunpack.c.l.b16 %v667
        %v768 = vunpack.c.h.b16 %v667
        %v769 = vunpack.c.l.b16 %v668
        %v770 = vunpack.c.h.b16 %v668
        %v771 = vpack.c.b16 %v709, %v707
        %v772 = vpack.c.b16 %v710, %v708
        %v773 = vpack.c.b16 %v713, %v711
        %v774 = vpack.c.b16 %v714, %v712
        %v775 = vpack.c.b16 %v717, %v715
        %v776 = vpack.c.b16 %v718, %v716
        %v777 = vpack.c.b16 %v721, %v719
        %v778 = vpack.c.b16 %v722, %v720
        %v779 = vpack.c.b16 %v725, %v723
        %v780 = vpack.c.b16 %v726, %v724
        %v781 = vpack.c.b16 %v729, %v727
        %v782 = vpack.c.b16 %v730, %v728
        %v783 = vpack.c.b16 %v733, %v731
        %v784 = vpack.c.b16 %v734, %v732
        %v785 = vpack.c.b16 %v737, %v735
        %v786 = vpack.c.b16 %v738, %v736
        %v787 = vpack.c.b16 %v741, %v739
        %v788 = vpack.c.b16 %v742, %v740
        %v789 = vpack.c.b16 %v745, %v743
        %v790 = vpack.c.b16 %v746, %v744
        %v791 = vpack.c.b16 %v749, %v747
        %v792 = vpack.c.b16 %v750, %v748
        %v793 = vpack.c.b16 %v753, %v751
        %v794 = vpack.c.b16 %v754, %v752
        %v795 = vpack.c.b16 %v757, %v755
        %v796 = vpack.c.b16 %v758, %v756
        %v797 = vpack.c.b16 %v761, %v759
        %v798 = vpack.c.b16 %v762, %v760
        %v799 = vpack.c.b16 %v765, %v763
        %v800 = vpack.c.b16 %v766, %v764
        %v801 = vpack.c.b16 %v769, %v767
        %v802 = vpack.c.b16 %v770, %v768
        %835 = vmatpush.bf16.msra.mxu0 %v785
        %836 = vmatpush.bf16.msra.mxu0 %v783
        %837 = vmatpush.bf16.msra.mxu0 %v781
        %838 = vmatpush.bf16.msra.mxu0 %v779
        %839 = vmatpush.bf16.msra.mxu0 %v777
        %840 = vmatpush.bf16.msra.mxu0 %v775
        %841 = vmatpush.bf16.msra.mxu0 %v773
        %842 = vmatpush.bf16.msra.mxu0 %v771
        %843 = vmatmul.bf16.gmra.mxu0 %v633
        %v844 = vpop.f32.mrf.mxu0
        %v845 = vadd.f32 %v671, %v844
        %v846 = vpop.f32.mrf.mxu0
        %v847 = vadd.f32 %v671, %v846
        %848 = vmatmul.bf16.gmra.mxu0 %v635
        %v849 = vpop.f32.mrf.mxu0
        %v850 = vadd.f32 %v671, %v849
        %v851 = vpop.f32.mrf.mxu0
        %v852 = vadd.f32 %v671, %v851
        %853 = vdwg.mxu0
        %854 = vmatpush.bf16.msra.mxu0 %v801
        %855 = vmatpush.bf16.msra.mxu0 %v799
        %856 = vmatpush.bf16.msra.mxu0 %v797
        %857 = vmatpush.bf16.msra.mxu0 %v795
        %858 = vmatpush.bf16.msra.mxu0 %v793
        %859 = vmatpush.bf16.msra.mxu0 %v791
        %860 = vmatpush.bf16.msra.mxu0 %v789
        %861 = vmatpush.bf16.msra.mxu0 %v787
        %862 = vmatmul.bf16.gmra.mxu0 %v634
        %v863 = vpop.f32.mrf.mxu0
        %v864 = vadd.f32 %v845, %v863
        %v865 = vpop.f32.mrf.mxu0
        %v866 = vadd.f32 %v847, %v865
        %867 = vmatmul.bf16.gmra.mxu0 %v636
        %v868 = vpop.f32.mrf.mxu0
        %v869 = vadd.f32 %v850, %v868
        %v870 = vpop.f32.mrf.mxu0
        %v871 = vadd.f32 %v852, %v870
        %872 = vdwg.mxu0
        %873 = vmatpush.bf16.msra.mxu0 %v786
        %874 = vmatpush.bf16.msra.mxu0 %v784
        %875 = vmatpush.bf16.msra.mxu0 %v782
        %876 = vmatpush.bf16.msra.mxu0 %v780
        %877 = vmatpush.bf16.msra.mxu0 %v778
        %878 = vmatpush.bf16.msra.mxu0 %v776
        %879 = vmatpush.bf16.msra.mxu0 %v774
        %880 = vmatpush.bf16.msra.mxu0 %v772
        %881 = vmatmul.bf16.gmra.mxu0 %v633
        %v882 = vpop.f32.mrf.mxu0
        %v883 = vadd.f32 %v672, %v882
        %v884 = vpop.f32.mrf.mxu0
        %v885 = vadd.f32 %v672, %v884
        %886 = vmatmul.bf16.gmra.mxu0 %v635
        %v887 = vpop.f32.mrf.mxu0
        %v888 = vadd.f32 %v672, %v887
        %v889 = vpop.f32.mrf.mxu0
        %v890 = vadd.f32 %v672, %v889
        %891 = vdwg.mxu0
        %892 = vmatpush.bf16.msra.mxu0 %v802
        %893 = vmatpush.bf16.msra.mxu0 %v800
        %894 = vmatpush.bf16.msra.mxu0 %v798
        %895 = vmatpush.bf16.msra.mxu0 %v796
        %896 = vmatpush.bf16.msra.mxu0 %v794
        %897 = vmatpush.bf16.msra.mxu0 %v792
        %898 = vmatpush.bf16.msra.mxu0 %v790
        %899 = vmatpush.bf16.msra.mxu0 %v788
        %900 = vmatmul.bf16.gmra.mxu0 %v634
        %v901 = vpop.f32.mrf.mxu0
        %v902 = vadd.f32 %v883, %v901
        %v903 = vpop.f32.mrf.mxu0
        %v904 = vadd.f32 %v885, %v903
        %905 = vmatmul.bf16.gmra.mxu0 %v636
        %v906 = vpop.f32.mrf.mxu0
        %v907 = vadd.f32 %v888, %v906
        %v908 = vpop.f32.mrf.mxu0
        %v909 = vadd.f32 %v890, %v908
        %910 = vdwg.mxu0
        %v911 = vadd.f32 %v864, %v902
        %912 = vadd.xlane.f32.xlu0 %v911
        %v913 = vpop.xlane.xlu0 %912
        %v914 = vadd.f32 %v866, %v904
        %915 = vadd.xlane.f32.xlu0 %v914
        %v916 = vpop.xlane.xlu0 %915
        %v917 = vadd.f32 %v869, %v907
        %918 = vadd.xlane.f32.xlu0 %v917
        %v919 = vpop.xlane.xlu0 %918
        %v920 = vadd.f32 %v871, %v909
        %921 = vadd.xlane.f32.xlu0 %v920
        %v922 = vpop.xlane.xlu0 %921
        %v923 = vmul.f32 %v913, 0.005
        %v924 = vmul.f32 %v916, 0.005
        %v925 = vmul.f32 %v919, 0.005
        %v926 = vmul.f32 %v922, 0.005
        %v927 = vmul.f32 %v864, %v864
        %v928 = vmul.f32 %v902, %v902
        %v929 = vmul.f32 %v866, %v866
        %v930 = vmul.f32 %v904, %v904
        %v931 = vmul.f32 %v869, %v869
        %v932 = vmul.f32 %v907, %v907
        %v933 = vmul.f32 %v871, %v871
        %v934 = vmul.f32 %v909, %v909
        %v935 = vadd.f32 %v927, %v928
        %936 = vadd.xlane.f32.xlu0 %v935
        %v937 = vpop.xlane.xlu0 %936
        %v938 = vadd.f32 %v929, %v930
        %939 = vadd.xlane.f32.xlu0 %v938
        %v940 = vpop.xlane.xlu0 %939
        %v941 = vadd.f32 %v931, %v932
        %942 = vadd.xlane.f32.xlu0 %v941
        %v943 = vpop.xlane.xlu0 %942
        %v944 = vadd.f32 %v933, %v934
        %945 = vadd.xlane.f32.xlu0 %v944
        %v946 = vpop.xlane.xlu0 %945
        %v947 = vmul.f32 %v937, 0.005
        %v948 = vmul.f32 %v940, 0.005
        %v949 = vmul.f32 %v943, 0.005
        %v950 = vmul.f32 %v946, 0.005
        %v951 = vmul.f32 %v923, %v923
        %v952 = vmul.f32 %v924, %v924
        %v953 = vmul.f32 %v925, %v925
        %v954 = vmul.f32 %v926, %v926
        %v955 = vsub.f32 %v947, %v951
        %v956 = vsub.f32 %v948, %v952
        %v957 = vsub.f32 %v949, %v953
        %v958 = vsub.f32 %v950, %v954
        %v959 = vsub.f32 %v864, %v923
        %v960 = vsub.f32 %v902, %v923
        %v961 = vsub.f32 %v866, %v924
        %v962 = vsub.f32 %v904, %v924
        %v963 = vsub.f32 %v869, %v925
        %v964 = vsub.f32 %v907, %v925
        %v965 = vsub.f32 %v871, %v926
        %v966 = vsub.f32 %v909, %v926
        %v967 = vadd.f32 %v955, 1e-05
        %v968 = vadd.f32 %v956, 1e-05
        %v969 = vadd.f32 %v957, 1e-05
        %v970 = vadd.f32 %v958, 1e-05
        %v971 = vrsqrt.pop %v967
        %v972 = vmul.f32 %v971, %v967
        %v973 = vmul.f32 %v972, %v971
        %v974 = vmul.f32 0.5, %v973
        %v975 = vsub.f32 1.5, %v974
        %v976 = vmul.f32 %v971, %v975
        %vm977 = vweird.f32 %v967
        %vm978 = vweird.f32 %v971
        %vm979 = vmor %vm977, %vm978
        %v980 = vsel %vm979, %v971, %v976
        %v981 = vrsqrt.pop %v968
        %v982 = vmul.f32 %v981, %v968
        %v983 = vmul.f32 %v982, %v981
        %v984 = vmul.f32 0.5, %v983
        %v985 = vsub.f32 1.5, %v984
        %v986 = vmul.f32 %v981, %v985
        %vm987 = vweird.f32 %v968
        %vm988 = vweird.f32 %v981
        %vm989 = vmor %vm987, %vm988
        %v990 = vsel %vm989, %v981, %v986
        %v991 = vrsqrt.pop %v969
        %v992 = vmul.f32 %v991, %v969
        %v993 = vmul.f32 %v992, %v991
        %v994 = vmul.f32 0.5, %v993
        %v995 = vsub.f32 1.5, %v994
        %v996 = vmul.f32 %v991, %v995
        %vm997 = vweird.f32 %v969
        %vm998 = vweird.f32 %v991
        %vm999 = vmor %vm997, %vm998
        %v1000 = vsel %vm999, %v991, %v996
        %v1001 = vrsqrt.pop %v970
        %v1002 = vmul.f32 %v1001, %v970
        %v1003 = vmul.f32 %v1002, %v1001
        %v1004 = vmul.f32 0.5, %v1003
        %v1005 = vsub.f32 1.5, %v1004
        %v1006 = vmul.f32 %v1001, %v1005
        %vm1007 = vweird.f32 %v970
        %vm1008 = vweird.f32 %v1001
        %vm1009 = vmor %vm1007, %vm1008
        %v1010 = vsel %vm1009, %v1001, %v1006
        %v1011 = vmul.f32 %v959, %v980
        %v1012 = vmul.f32 %v960, %v980
        %v1013 = vmul.f32 %v961, %v990
        %v1014 = vmul.f32 %v962, %v990
        %v1015 = vmul.f32 %v963, %v1000
        %v1016 = vmul.f32 %v964, %v1000
        %v1017 = vmul.f32 %v965, %v1010
        %v1018 = vmul.f32 %v966, %v1010
        %v1019 = vmul.f32 %v1011, %v536
        %v1020 = vmul.f32 %v1012, %v537
        %v1021 = vmul.f32 %v1013, %v536
        %v1022 = vmul.f32 %v1014, %v537
        %v1023 = vmul.f32 %v1015, %v536
        %v1024 = vmul.f32 %v1016, %v537
        %v1025 = vmul.f32 %v1017, %v536
        %v1026 = vmul.f32 %v1018, %v537
        %v1027 = vadd.f32 %v1019, %v549
        %v1028 = vadd.f32 %v1020, %v550
        %v1029 = vadd.f32 %v1021, %v549
        %v1030 = vadd.f32 %v1022, %v550
        %v1031 = vadd.f32 %v1023, %v549
        %v1032 = vadd.f32 %v1024, %v550
        %v1033 = vadd.f32 %v1025, %v549
        %v1034 = vadd.f32 %v1026, %v550
        %v1035 = vmin.f32 %v1027, 20.0
        %v1036 = vmin.f32 %v1028, 20.0
        %v1037 = vmin.f32 %v1029, 20.0
        %v1038 = vmin.f32 %v1030, 20.0
        %v1039 = vmin.f32 %v1031, 20.0
        %v1040 = vmin.f32 %v1032, 20.0
        %v1041 = vmin.f32 %v1033, 20.0
        %v1042 = vmin.f32 %v1034, 20.0
        %v1043 = vmul.f32 %v1035, 1.442695
        %v1044 = vpow.pop %v1043
        %v1045 = vmul.f32 %v1036, 1.442695
        %v1046 = vpow.pop %v1045
        %v1047 = vmul.f32 %v1037, 1.442695
        %v1048 = vpow.pop %v1047
        %v1049 = vmul.f32 %v1038, 1.442695
        %v1050 = vpow.pop %v1049
        %v1051 = vmul.f32 %v1039, 1.442695
        %v1052 = vpow.pop %v1051
        %v1053 = vmul.f32 %v1040, 1.442695
        %v1054 = vpow.pop %v1053
        %v1055 = vmul.f32 %v1041, 1.442695
        %v1056 = vpow.pop %v1055
        %v1057 = vmul.f32 %v1042, 1.442695
        %v1058 = vpow.pop %v1057
        %v1059 = vadd.f32 %v1044, 2.0
        %v1060 = vadd.f32 %v1046, 2.0
        %v1061 = vadd.f32 %v1048, 2.0
        %v1062 = vadd.f32 %v1050, 2.0
        %v1063 = vadd.f32 %v1052, 2.0
        %v1064 = vadd.f32 %v1054, 2.0
        %v1065 = vadd.f32 %v1056, 2.0
        %v1066 = vadd.f32 %v1058, 2.0
        %v1067 = vmul.f32 %v1044, %v1059
        %v1068 = vmul.f32 %v1046, %v1060
        %v1069 = vmul.f32 %v1048, %v1061
        %v1070 = vmul.f32 %v1050, %v1062
        %v1071 = vmul.f32 %v1052, %v1063
        %v1072 = vmul.f32 %v1054, %v1064
        %v1073 = vmul.f32 %v1056, %v1065
        %v1074 = vmul.f32 %v1058, %v1066
        %v1075 = vadd.f32 %v1067, 2.0
        %v1076 = vadd.f32 %v1068, 2.0
        %v1077 = vadd.f32 %v1069, 2.0
        %v1078 = vadd.f32 %v1070, 2.0
        %v1079 = vadd.f32 %v1071, 2.0
        %v1080 = vadd.f32 %v1072, 2.0
        %v1081 = vadd.f32 %v1073, 2.0
        %v1082 = vadd.f32 %v1074, 2.0
        %v1083 = vrcp.pop %v1075
        %v1084 = vrcp.pop %v1076
        %v1085 = vrcp.pop %v1077
        %v1086 = vrcp.pop %v1078
        %v1087 = vrcp.pop %v1079
        %v1088 = vrcp.pop %v1080
        %v1089 = vrcp.pop %v1081
        %v1090 = vrcp.pop %v1082
        %v1091 = vmul.f32 %v1067, %v1083
        %v1092 = vmul.f32 %v1068, %v1084
        %v1093 = vmul.f32 %v1069, %v1085
        %v1094 = vmul.f32 %v1070, %v1086
        %v1095 = vmul.f32 %v1071, %v1087
        %v1096 = vmul.f32 %v1072, %v1088
        %v1097 = vmul.f32 %v1073, %v1089
        %v1098 = vmul.f32 %v1074, %v1090
        %v1099 = vmul.f32 %v1027, %v1091
        %v1100 = vmul.f32 %v1028, %v1092
        %v1101 = vmul.f32 %v1029, %v1093
        %v1102 = vmul.f32 %v1030, %v1094
        %v1103 = vmul.f32 %v1031, %v1095
        %v1104 = vmul.f32 %v1032, %v1096
        %v1105 = vmul.f32 %v1033, %v1097
        %v1106 = vmul.f32 %v1034, %v1098
        %v1107 = vpack.c.bf16 %v1101, %v1099
        %v1108 = vpack.c.bf16 %v1102, %v1100
        %v1109 = vpack.c.bf16 %v1105, %v1103
        %v1110 = vpack.c.bf16 %v1106, %v1104
        %s1111 = scalar_lea.vmem [#allocation3], 256
        %v1112 = vld [vmem:[%s1111] sm:$0xff]
        %v1113 = vld [vmem:[%s1111 + $0x8] sm:$0xff]
        %v1114 = vld [vmem:[%s1111 + $0x10] sm:$0xff]
        %v1115 = vld [vmem:[%s1111 + $0x18] sm:$0xff]
        %v1116 = vld [vmem:[%s1111 + $0x20] sm:$0xff]
        %v1117 = vld [vmem:[%s1111 + $0x28] sm:$0xff]
        %v1118 = vld [vmem:[%s1111 + $0x30] sm:$0xff]
        %v1119 = vld [vmem:[%s1111 + $0x38] sm:$0xff]
        %v1120 = vld [vmem:[%s1111 + $0x40] sm:$0xff]
        %v1121 = vld [vmem:[%s1111 + $0x48] sm:$0xff]
        %v1122 = vld [vmem:[%s1111 + $0x50] sm:$0xff]
        %v1123 = vld [vmem:[%s1111 + $0x58] sm:$0xff]
        %v1124 = vld [vmem:[%s1111 + $0x60] sm:$0xff]
        %v1125 = vld [vmem:[%s1111 + $0x68] sm:$0xff]
        %v1126 = vld [vmem:[%s1111 + $0x70] sm:$0xff]
        %v1127 = vld [vmem:[%s1111 + $0x78] sm:$0xff]
        %v1128 = vld [vmem:[%s1111 + $0x80] sm:$0xff]
        %v1129 = vld [vmem:[%s1111 + $0x88] sm:$0xff]
        %v1130 = vld [vmem:[%s1111 + $0x90] sm:$0xff]
        %v1131 = vld [vmem:[%s1111 + $0x98] sm:$0xff]
        %v1132 = vld [vmem:[%s1111 + $0xa0] sm:$0xff]
        %v1133 = vld [vmem:[%s1111 + $0xa8] sm:$0xff]
        %v1134 = vld [vmem:[%s1111 + $0xb0] sm:$0xff]
        %v1135 = vld [vmem:[%s1111 + $0xb8] sm:$0xff]
        %v1136 = vld [vmem:[%s1111 + $0xc0] sm:$0xff]
        %v1137 = vld [vmem:[%s1111 + $0xc8] sm:$0xff]
        %v1138 = vld [vmem:[%s1111 + $0xd0] sm:$0xff]
        %v1139 = vld [vmem:[%s1111 + $0xd8] sm:$0xff]
        %v1140 = vld [vmem:[%s1111 + $0xe0] sm:$0xff]
        %v1141 = vld [vmem:[%s1111 + $0xe8] sm:$0xff]
        %v1142 = vld [vmem:[%s1111 + $0xf0] sm:$0xff]
        %v1143 = vld [vmem:[%s1111 + $0xf8] sm:$0xff]
        %s1144 = scalar_lea.vmem %s4, 2
        %v1145 = vld [vmem:[%s1144] sm:$0x3]
        %v1147 = vperm.slane %v1145, 0
        %v1148 = vperm.slane %v1145, 1
        %v1183 = vunpack.c.l.b16 %v1112
        %v1184 = vunpack.c.h.b16 %v1112
        %v1185 = vunpack.c.l.b16 %v1113
        %v1186 = vunpack.c.h.b16 %v1113
        %v1187 = vunpack.c.l.b16 %v1114
        %v1188 = vunpack.c.h.b16 %v1114
        %v1189 = vunpack.c.l.b16 %v1115
        %v1190 = vunpack.c.h.b16 %v1115
        %v1191 = vunpack.c.l.b16 %v1116
        %v1192 = vunpack.c.h.b16 %v1116
        %v1193 = vunpack.c.l.b16 %v1117
        %v1194 = vunpack.c.h.b16 %v1117
        %v1195 = vunpack.c.l.b16 %v1118
        %v1196 = vunpack.c.h.b16 %v1118
        %v1197 = vunpack.c.l.b16 %v1119
        %v1198 = vunpack.c.h.b16 %v1119
        %v1199 = vunpack.c.l.b16 %v1120
        %v1200 = vunpack.c.h.b16 %v1120
        %v1201 = vunpack.c.l.b16 %v1121
        %v1202 = vunpack.c.h.b16 %v1121
        %v1203 = vunpack.c.l.b16 %v1122
        %v1204 = vunpack.c.h.b16 %v1122
        %v1205 = vunpack.c.l.b16 %v1123
        %v1206 = vunpack.c.h.b16 %v1123
        %v1207 = vunpack.c.l.b16 %v1124
        %v1208 = vunpack.c.h.b16 %v1124
        %v1209 = vunpack.c.l.b16 %v1125
        %v1210 = vunpack.c.h.b16 %v1125
        %v1211 = vunpack.c.l.b16 %v1126
        %v1212 = vunpack.c.h.b16 %v1126
        %v1213 = vunpack.c.l.b16 %v1127
        %v1214 = vunpack.c.h.b16 %v1127
        %v1215 = vunpack.c.l.b16 %v1128
        %v1216 = vunpack.c.h.b16 %v1128
        %v1217 = vunpack.c.l.b16 %v1129
        %v1218 = vunpack.c.h.b16 %v1129
        %v1219 = vunpack.c.l.b16 %v1130
        %v1220 = vunpack.c.h.b16 %v1130
        %v1221 = vunpack.c.l.b16 %v1131
        %v1222 = vunpack.c.h.b16 %v1131
        %v1223 = vunpack.c.l.b16 %v1132
        %v1224 = vunpack.c.h.b16 %v1132
        %v1225 = vunpack.c.l.b16 %v1133
        %v1226 = vunpack.c.h.b16 %v1133
        %v1227 = vunpack.c.l.b16 %v1134
        %v1228 = vunpack.c.h.b16 %v1134
        %v1229 = vunpack.c.l.b16 %v1135
        %v1230 = vunpack.c.h.b16 %v1135
        %v1231 = vunpack.c.l.b16 %v1136
        %v1232 = vunpack.c.h.b16 %v1136
        %v1233 = vunpack.c.l.b16 %v1137
        %v1234 = vunpack.c.h.b16 %v1137
        %v1235 = vunpack.c.l.b16 %v1138
        %v1236 = vunpack.c.h.b16 %v1138
        %v1237 = vunpack.c.l.b16 %v1139
        %v1238 = vunpack.c.h.b16 %v1139
        %v1239 = vunpack.c.l.b16 %v1140
        %v1240 = vunpack.c.h.b16 %v1140
        %v1241 = vunpack.c.l.b16 %v1141
        %v1242 = vunpack.c.h.b16 %v1141
        %v1243 = vunpack.c.l.b16 %v1142
        %v1244 = vunpack.c.h.b16 %v1142
        %v1245 = vunpack.c.l.b16 %v1143
        %v1246 = vunpack.c.h.b16 %v1143
        %v1247 = vpack.c.b16 %v1185, %v1183
        %v1248 = vpack.c.b16 %v1186, %v1184
        %v1249 = vpack.c.b16 %v1189, %v1187
        %v1250 = vpack.c.b16 %v1190, %v1188
        %v1251 = vpack.c.b16 %v1193, %v1191
        %v1252 = vpack.c.b16 %v1194, %v1192
        %v1253 = vpack.c.b16 %v1197, %v1195
        %v1254 = vpack.c.b16 %v1198, %v1196
        %v1255 = vpack.c.b16 %v1201, %v1199
        %v1256 = vpack.c.b16 %v1202, %v1200
        %v1257 = vpack.c.b16 %v1205, %v1203
        %v1258 = vpack.c.b16 %v1206, %v1204
        %v1259 = vpack.c.b16 %v1209, %v1207
        %v1260 = vpack.c.b16 %v1210, %v1208
        %v1261 = vpack.c.b16 %v1213, %v1211
        %v1262 = vpack.c.b16 %v1214, %v1212
        %v1263 = vpack.c.b16 %v1217, %v1215
        %v1264 = vpack.c.b16 %v1218, %v1216
        %v1265 = vpack.c.b16 %v1221, %v1219
        %v1266 = vpack.c.b16 %v1222, %v1220
        %v1267 = vpack.c.b16 %v1225, %v1223
        %v1268 = vpack.c.b16 %v1226, %v1224
        %v1269 = vpack.c.b16 %v1229, %v1227
        %v1270 = vpack.c.b16 %v1230, %v1228
        %v1271 = vpack.c.b16 %v1233, %v1231
        %v1272 = vpack.c.b16 %v1234, %v1232
        %v1273 = vpack.c.b16 %v1237, %v1235
        %v1274 = vpack.c.b16 %v1238, %v1236
        %v1275 = vpack.c.b16 %v1241, %v1239
        %v1276 = vpack.c.b16 %v1242, %v1240
        %v1277 = vpack.c.b16 %v1245, %v1243
        %v1278 = vpack.c.b16 %v1246, %v1244
        %1311 = vmatpush.bf16.msra.mxu0 %v1261
        %1312 = vmatpush.bf16.msra.mxu0 %v1259
        %1313 = vmatpush.bf16.msra.mxu0 %v1257
        %1314 = vmatpush.bf16.msra.mxu0 %v1255
        %1315 = vmatpush.bf16.msra.mxu0 %v1253
        %1316 = vmatpush.bf16.msra.mxu0 %v1251
        %1317 = vmatpush.bf16.msra.mxu0 %v1249
        %1318 = vmatpush.bf16.msra.mxu0 %v1247
        %1319 = vmatmul.bf16.gmra.mxu0 %v1107
        %v1320 = vpop.f32.mrf.mxu0
        %v1321 = vadd.f32 %v1147, %v1320
        %v1322 = vpop.f32.mrf.mxu0
        %v1323 = vadd.f32 %v1147, %v1322
        %1324 = vmatmul.bf16.gmra.mxu0 %v1109
        %v1325 = vpop.f32.mrf.mxu0
        %v1326 = vadd.f32 %v1147, %v1325
        %v1327 = vpop.f32.mrf.mxu0
        %v1328 = vadd.f32 %v1147, %v1327
        %1329 = vdwg.mxu0
        %1330 = vmatpush.bf16.msra.mxu0 %v1277
        %1331 = vmatpush.bf16.msra.mxu0 %v1275
        %1332 = vmatpush.bf16.msra.mxu0 %v1273
        %1333 = vmatpush.bf16.msra.mxu0 %v1271
        %1334 = vmatpush.bf16.msra.mxu0 %v1269
        %1335 = vmatpush.bf16.msra.mxu0 %v1267
        %1336 = vmatpush.bf16.msra.mxu0 %v1265
        %1337 = vmatpush.bf16.msra.mxu0 %v1263
        %1338 = vmatmul.bf16.gmra.mxu0 %v1108
        %v1339 = vpop.f32.mrf.mxu0
        %v1340 = vadd.f32 %v1321, %v1339
        %v1341 = vpop.f32.mrf.mxu0
        %v1342 = vadd.f32 %v1323, %v1341
        %1343 = vmatmul.bf16.gmra.mxu0 %v1110
        %v1344 = vpop.f32.mrf.mxu0
        %v1345 = vadd.f32 %v1326, %v1344
        %v1346 = vpop.f32.mrf.mxu0
        %v1347 = vadd.f32 %v1328, %v1346
        %1348 = vdwg.mxu0
        %1349 = vmatpush.bf16.msra.mxu0 %v1262
        %1350 = vmatpush.bf16.msra.mxu0 %v1260
        %1351 = vmatpush.bf16.msra.mxu0 %v1258
        %1352 = vmatpush.bf16.msra.mxu0 %v1256
        %1353 = vmatpush.bf16.msra.mxu0 %v1254
        %1354 = vmatpush.bf16.msra.mxu0 %v1252
        %1355 = vmatpush.bf16.msra.mxu0 %v1250
        %1356 = vmatpush.bf16.msra.mxu0 %v1248
        %1357 = vmatmul.bf16.gmra.mxu0 %v1107
        %v1358 = vpop.f32.mrf.mxu0
        %v1359 = vadd.f32 %v1148, %v1358
        %v1360 = vpop.f32.mrf.mxu0
        %v1361 = vadd.f32 %v1148, %v1360
        %1362 = vmatmul.bf16.gmra.mxu0 %v1109
        %v1363 = vpop.f32.mrf.mxu0
        %v1364 = vadd.f32 %v1148, %v1363
        %v1365 = vpop.f32.mrf.mxu0
        %v1366 = vadd.f32 %v1148, %v1365
        %1367 = vdwg.mxu0
        %1368 = vmatpush.bf16.msra.mxu0 %v1278
        %1369 = vmatpush.bf16.msra.mxu0 %v1276
        %1370 = vmatpush.bf16.msra.mxu0 %v1274
        %1371 = vmatpush.bf16.msra.mxu0 %v1272
        %1372 = vmatpush.bf16.msra.mxu0 %v1270
        %1373 = vmatpush.bf16.msra.mxu0 %v1268
        %1374 = vmatpush.bf16.msra.mxu0 %v1266
        %1375 = vmatpush.bf16.msra.mxu0 %v1264
        %1376 = vmatmul.bf16.gmra.mxu0 %v1108
        %v1377 = vpop.f32.mrf.mxu0
        %v1378 = vadd.f32 %v1359, %v1377
        %v1379 = vpop.f32.mrf.mxu0
        %v1380 = vadd.f32 %v1361, %v1379
        %1381 = vmatmul.bf16.gmra.mxu0 %v1110
        %v1382 = vpop.f32.mrf.mxu0
        %v1383 = vadd.f32 %v1364, %v1382
        %v1384 = vpop.f32.mrf.mxu0
        %v1385 = vadd.f32 %v1366, %v1384
        %1386 = vdwg.mxu0
        %v1387 = vadd.f32 %v1340, %v1378
        %1388 = vadd.xlane.f32.xlu0 %v1387
        %v1389 = vpop.xlane.xlu0 %1388
        %v1390 = vadd.f32 %v1342, %v1380
        %1391 = vadd.xlane.f32.xlu0 %v1390
        %v1392 = vpop.xlane.xlu0 %1391
        %v1393 = vadd.f32 %v1345, %v1383
        %1394 = vadd.xlane.f32.xlu0 %v1393
        %v1395 = vpop.xlane.xlu0 %1394
        %v1396 = vadd.f32 %v1347, %v1385
        %1397 = vadd.xlane.f32.xlu0 %v1396
        %v1398 = vpop.xlane.xlu0 %1397
        %v1399 = vmul.f32 %v1389, 0.005
        %v1400 = vmul.f32 %v1392, 0.005
        %v1401 = vmul.f32 %v1395, 0.005
        %v1402 = vmul.f32 %v1398, 0.005
        %v1403 = vmul.f32 %v1340, %v1340
        %v1404 = vmul.f32 %v1378, %v1378
        %v1405 = vmul.f32 %v1342, %v1342
        %v1406 = vmul.f32 %v1380, %v1380
        %v1407 = vmul.f32 %v1345, %v1345
        %v1408 = vmul.f32 %v1383, %v1383
        %v1409 = vmul.f32 %v1347, %v1347
        %v1410 = vmul.f32 %v1385, %v1385
        %v1411 = vadd.f32 %v1403, %v1404
        %1412 = vadd.xlane.f32.xlu0 %v1411
        %v1413 = vpop.xlane.xlu0 %1412
        %v1414 = vadd.f32 %v1405, %v1406
        %1415 = vadd.xlane.f32.xlu0 %v1414
        %v1416 = vpop.xlane.xlu0 %1415
        %v1417 = vadd.f32 %v1407, %v1408
        %1418 = vadd.xlane.f32.xlu0 %v1417
        %v1419 = vpop.xlane.xlu0 %1418
        %v1420 = vadd.f32 %v1409, %v1410
        %1421 = vadd.xlane.f32.xlu0 %v1420
        %v1422 = vpop.xlane.xlu0 %1421
        %v1423 = vmul.f32 %v1413, 0.005
        %v1424 = vmul.f32 %v1416, 0.005
        %v1425 = vmul.f32 %v1419, 0.005
        %v1426 = vmul.f32 %v1422, 0.005
        %v1427 = vmul.f32 %v1399, %v1399
        %v1428 = vmul.f32 %v1400, %v1400
        %v1429 = vmul.f32 %v1401, %v1401
        %v1430 = vmul.f32 %v1402, %v1402
        %v1431 = vsub.f32 %v1423, %v1427
        %v1432 = vsub.f32 %v1424, %v1428
        %v1433 = vsub.f32 %v1425, %v1429
        %v1434 = vsub.f32 %v1426, %v1430
        %v1435 = vsub.f32 %v1340, %v1399
        %v1436 = vsub.f32 %v1378, %v1399
        %v1437 = vsub.f32 %v1342, %v1400
        %v1438 = vsub.f32 %v1380, %v1400
        %v1439 = vsub.f32 %v1345, %v1401
        %v1440 = vsub.f32 %v1383, %v1401
        %v1441 = vsub.f32 %v1347, %v1402
        %v1442 = vsub.f32 %v1385, %v1402
        %v1443 = vadd.f32 %v1431, 1e-05
        %v1444 = vadd.f32 %v1432, 1e-05
        %v1445 = vadd.f32 %v1433, 1e-05
        %v1446 = vadd.f32 %v1434, 1e-05
        %v1447 = vrsqrt.pop %v1443
        %v1448 = vmul.f32 %v1447, %v1443
        %v1449 = vmul.f32 %v1448, %v1447
        %v1450 = vmul.f32 0.5, %v1449
        %v1451 = vsub.f32 1.5, %v1450
        %v1452 = vmul.f32 %v1447, %v1451
        %vm1453 = vweird.f32 %v1443
        %vm1454 = vweird.f32 %v1447
        %vm1455 = vmor %vm1453, %vm1454
        %v1456 = vsel %vm1455, %v1447, %v1452
        %v1457 = vrsqrt.pop %v1444
        %v1458 = vmul.f32 %v1457, %v1444
        %v1459 = vmul.f32 %v1458, %v1457
        %v1460 = vmul.f32 0.5, %v1459
        %v1461 = vsub.f32 1.5, %v1460
        %v1462 = vmul.f32 %v1457, %v1461
        %vm1463 = vweird.f32 %v1444
        %vm1464 = vweird.f32 %v1457
        %vm1465 = vmor %vm1463, %vm1464
        %v1466 = vsel %vm1465, %v1457, %v1462
        %v1467 = vrsqrt.pop %v1445
        %v1468 = vmul.f32 %v1467, %v1445
        %v1469 = vmul.f32 %v1468, %v1467
        %v1470 = vmul.f32 0.5, %v1469
        %v1471 = vsub.f32 1.5, %v1470
        %v1472 = vmul.f32 %v1467, %v1471
        %vm1473 = vweird.f32 %v1445
        %vm1474 = vweird.f32 %v1467
        %vm1475 = vmor %vm1473, %vm1474
        %v1476 = vsel %vm1475, %v1467, %v1472
        %v1477 = vrsqrt.pop %v1446
        %v1478 = vmul.f32 %v1477, %v1446
        %v1479 = vmul.f32 %v1478, %v1477
        %v1480 = vmul.f32 0.5, %v1479
        %v1481 = vsub.f32 1.5, %v1480
        %v1482 = vmul.f32 %v1477, %v1481
        %vm1483 = vweird.f32 %v1446
        %vm1484 = vweird.f32 %v1477
        %vm1485 = vmor %vm1483, %vm1484
        %v1486 = vsel %vm1485, %v1477, %v1482
        %v1487 = vmul.f32 %v1435, %v1456
        %v1488 = vmul.f32 %v1436, %v1456
        %v1489 = vmul.f32 %v1437, %v1466
        %v1490 = vmul.f32 %v1438, %v1466
        %v1491 = vmul.f32 %v1439, %v1476
        %v1492 = vmul.f32 %v1440, %v1476
        %v1493 = vmul.f32 %v1441, %v1486
        %v1494 = vmul.f32 %v1442, %v1486
        %v1495 = vmul.f32 %v1487, %v536
        %v1496 = vmul.f32 %v1488, %v537
        %v1497 = vmul.f32 %v1489, %v536
        %v1498 = vmul.f32 %v1490, %v537
        %v1499 = vmul.f32 %v1491, %v536
        %v1500 = vmul.f32 %v1492, %v537
        %v1501 = vmul.f32 %v1493, %v536
        %v1502 = vmul.f32 %v1494, %v537
        %v1503 = vadd.f32 %v1495, %v549
        %v1504 = vadd.f32 %v1496, %v550
        %v1505 = vadd.f32 %v1497, %v549
        %v1506 = vadd.f32 %v1498, %v550
        %v1507 = vadd.f32 %v1499, %v549
        %v1508 = vadd.f32 %v1500, %v550
        %v1509 = vadd.f32 %v1501, %v549
        %v1510 = vadd.f32 %v1502, %v550
        %v1511 = vmin.f32 %v1503, 20.0
        %v1512 = vmin.f32 %v1504, 20.0
        %v1513 = vmin.f32 %v1505, 20.0
        %v1514 = vmin.f32 %v1506, 20.0
        %v1515 = vmin.f32 %v1507, 20.0
        %v1516 = vmin.f32 %v1508, 20.0
        %v1517 = vmin.f32 %v1509, 20.0
        %v1518 = vmin.f32 %v1510, 20.0
        %v1519 = vmul.f32 %v1511, 1.442695
        %v1520 = vpow.pop %v1519
        %v1521 = vmul.f32 %v1512, 1.442695
        %v1522 = vpow.pop %v1521
        %v1523 = vmul.f32 %v1513, 1.442695
        %v1524 = vpow.pop %v1523
        %v1525 = vmul.f32 %v1514, 1.442695
        %v1526 = vpow.pop %v1525
        %v1527 = vmul.f32 %v1515, 1.442695
        %v1528 = vpow.pop %v1527
        %v1529 = vmul.f32 %v1516, 1.442695
        %v1530 = vpow.pop %v1529
        %v1531 = vmul.f32 %v1517, 1.442695
        %v1532 = vpow.pop %v1531
        %v1533 = vmul.f32 %v1518, 1.442695
        %v1534 = vpow.pop %v1533
        %v1535 = vadd.f32 %v1520, 2.0
        %v1536 = vadd.f32 %v1522, 2.0
        %v1537 = vadd.f32 %v1524, 2.0
        %v1538 = vadd.f32 %v1526, 2.0
        %v1539 = vadd.f32 %v1528, 2.0
        %v1540 = vadd.f32 %v1530, 2.0
        %v1541 = vadd.f32 %v1532, 2.0
        %v1542 = vadd.f32 %v1534, 2.0
        %v1543 = vmul.f32 %v1520, %v1535
        %v1544 = vmul.f32 %v1522, %v1536
        %v1545 = vmul.f32 %v1524, %v1537
        %v1546 = vmul.f32 %v1526, %v1538
        %v1547 = vmul.f32 %v1528, %v1539
        %v1548 = vmul.f32 %v1530, %v1540
        %v1549 = vmul.f32 %v1532, %v1541
        %v1550 = vmul.f32 %v1534, %v1542
        %v1551 = vadd.f32 %v1543, 2.0
        %v1552 = vadd.f32 %v1544, 2.0
        %v1553 = vadd.f32 %v1545, 2.0
        %v1554 = vadd.f32 %v1546, 2.0
        %v1555 = vadd.f32 %v1547, 2.0
        %v1556 = vadd.f32 %v1548, 2.0
        %v1557 = vadd.f32 %v1549, 2.0
        %v1558 = vadd.f32 %v1550, 2.0
        %v1559 = vrcp.pop %v1551
        %v1560 = vrcp.pop %v1552
        %v1561 = vrcp.pop %v1553
        %v1562 = vrcp.pop %v1554
        %v1563 = vrcp.pop %v1555
        %v1564 = vrcp.pop %v1556
        %v1565 = vrcp.pop %v1557
        %v1566 = vrcp.pop %v1558
        %v1567 = vmul.f32 %v1543, %v1559
        %v1568 = vmul.f32 %v1544, %v1560
        %v1569 = vmul.f32 %v1545, %v1561
        %v1570 = vmul.f32 %v1546, %v1562
        %v1571 = vmul.f32 %v1547, %v1563
        %v1572 = vmul.f32 %v1548, %v1564
        %v1573 = vmul.f32 %v1549, %v1565
        %v1574 = vmul.f32 %v1550, %v1566
        %v1575 = vmul.f32 %v1503, %v1567
        %v1576 = vmul.f32 %v1504, %v1568
        %v1577 = vmul.f32 %v1505, %v1569
        %v1578 = vmul.f32 %v1506, %v1570
        %v1579 = vmul.f32 %v1507, %v1571
        %v1580 = vmul.f32 %v1508, %v1572
        %v1581 = vmul.f32 %v1509, %v1573
        %v1582 = vmul.f32 %v1510, %v1574
        %v1583 = vpack.c.bf16 %v1577, %v1575
        %v1584 = vpack.c.bf16 %v1578, %v1576
        %v1585 = vpack.c.bf16 %v1581, %v1579
        %v1586 = vpack.c.bf16 %v1582, %v1580
        %s1587 = scalar_lea.vmem [#allocation3], 512
        %v1588 = vld [vmem:[%s1587] sm:$0xff]
        %v1589 = vld [vmem:[%s1587 + $0x8] sm:$0xff]
        %v1590 = vld [vmem:[%s1587 + $0x10] sm:$0xff]
        %v1591 = vld [vmem:[%s1587 + $0x18] sm:$0xff]
        %v1592 = vld [vmem:[%s1587 + $0x20] sm:$0xff]
        %v1593 = vld [vmem:[%s1587 + $0x28] sm:$0xff]
        %v1594 = vld [vmem:[%s1587 + $0x30] sm:$0xff]
        %v1595 = vld [vmem:[%s1587 + $0x38] sm:$0xff]
        %v1596 = vld [vmem:[%s1587 + $0x40] sm:$0xff]
        %v1597 = vld [vmem:[%s1587 + $0x48] sm:$0xff]
        %v1598 = vld [vmem:[%s1587 + $0x50] sm:$0xff]
        %v1599 = vld [vmem:[%s1587 + $0x58] sm:$0xff]
        %v1600 = vld [vmem:[%s1587 + $0x60] sm:$0xff]
        %v1601 = vld [vmem:[%s1587 + $0x68] sm:$0xff]
        %v1602 = vld [vmem:[%s1587 + $0x70] sm:$0xff]
        %v1603 = vld [vmem:[%s1587 + $0x78] sm:$0xff]
        %v1604 = vld [vmem:[%s1587 + $0x80] sm:$0xff]
        %v1605 = vld [vmem:[%s1587 + $0x88] sm:$0xff]
        %v1606 = vld [vmem:[%s1587 + $0x90] sm:$0xff]
        %v1607 = vld [vmem:[%s1587 + $0x98] sm:$0xff]
        %v1608 = vld [vmem:[%s1587 + $0xa0] sm:$0xff]
        %v1609 = vld [vmem:[%s1587 + $0xa8] sm:$0xff]
        %v1610 = vld [vmem:[%s1587 + $0xb0] sm:$0xff]
        %v1611 = vld [vmem:[%s1587 + $0xb8] sm:$0xff]
        %v1612 = vld [vmem:[%s1587 + $0xc0] sm:$0xff]
        %v1613 = vld [vmem:[%s1587 + $0xc8] sm:$0xff]
        %v1614 = vld [vmem:[%s1587 + $0xd0] sm:$0xff]
        %v1615 = vld [vmem:[%s1587 + $0xd8] sm:$0xff]
        %v1616 = vld [vmem:[%s1587 + $0xe0] sm:$0xff]
        %v1617 = vld [vmem:[%s1587 + $0xe8] sm:$0xff]
        %v1618 = vld [vmem:[%s1587 + $0xf0] sm:$0xff]
        %v1619 = vld [vmem:[%s1587 + $0xf8] sm:$0xff]
        %s1620 = scalar_lea.vmem %s4, 4
        %v1621 = vld [vmem:[%s1620] sm:$0x3]
        %v1623 = vperm.slane %v1621, 0
        %v1624 = vperm.slane %v1621, 1
        %v1659 = vunpack.c.l.b16 %v1588
        %v1660 = vunpack.c.h.b16 %v1588
        %v1661 = vunpack.c.l.b16 %v1589
        %v1662 = vunpack.c.h.b16 %v1589
        %v1663 = vunpack.c.l.b16 %v1590
        %v1664 = vunpack.c.h.b16 %v1590
        %v1665 = vunpack.c.l.b16 %v1591
        %v1666 = vunpack.c.h.b16 %v1591
        %v1667 = vunpack.c.l.b16 %v1592
        %v1668 = vunpack.c.h.b16 %v1592
        %v1669 = vunpack.c.l.b16 %v1593
        %v1670 = vunpack.c.h.b16 %v1593
        %v1671 = vunpack.c.l.b16 %v1594
        %v1672 = vunpack.c.h.b16 %v1594
        %v1673 = vunpack.c.l.b16 %v1595
        %v1674 = vunpack.c.h.b16 %v1595
        %v1675 = vunpack.c.l.b16 %v1596
        %v1676 = vunpack.c.h.b16 %v1596
        %v1677 = vunpack.c.l.b16 %v1597
        %v1678 = vunpack.c.h.b16 %v1597
        %v1679 = vunpack.c.l.b16 %v1598
        %v1680 = vunpack.c.h.b16 %v1598
        %v1681 = vunpack.c.l.b16 %v1599
        %v1682 = vunpack.c.h.b16 %v1599
        %v1683 = vunpack.c.l.b16 %v1600
        %v1684 = vunpack.c.h.b16 %v1600
        %v1685 = vunpack.c.l.b16 %v1601
        %v1686 = vunpack.c.h.b16 %v1601
        %v1687 = vunpack.c.l.b16 %v1602
        %v1688 = vunpack.c.h.b16 %v1602
        %v1689 = vunpack.c.l.b16 %v1603
        %v1690 = vunpack.c.h.b16 %v1603
        %v1691 = vunpack.c.l.b16 %v1604
        %v1692 = vunpack.c.h.b16 %v1604
        %v1693 = vunpack.c.l.b16 %v1605
        %v1694 = vunpack.c.h.b16 %v1605
        %v1695 = vunpack.c.l.b16 %v1606
        %v1696 = vunpack.c.h.b16 %v1606
        %v1697 = vunpack.c.l.b16 %v1607
        %v1698 = vunpack.c.h.b16 %v1607
        %v1699 = vunpack.c.l.b16 %v1608
        %v1700 = vunpack.c.h.b16 %v1608
        %v1701 = vunpack.c.l.b16 %v1609
        %v1702 = vunpack.c.h.b16 %v1609
        %v1703 = vunpack.c.l.b16 %v1610
        %v1704 = vunpack.c.h.b16 %v1610
        %v1705 = vunpack.c.l.b16 %v1611
        %v1706 = vunpack.c.h.b16 %v1611
        %v1707 = vunpack.c.l.b16 %v1612
        %v1708 = vunpack.c.h.b16 %v1612
        %v1709 = vunpack.c.l.b16 %v1613
        %v1710 = vunpack.c.h.b16 %v1613
        %v1711 = vunpack.c.l.b16 %v1614
        %v1712 = vunpack.c.h.b16 %v1614
        %v1713 = vunpack.c.l.b16 %v1615
        %v1714 = vunpack.c.h.b16 %v1615
        %v1715 = vunpack.c.l.b16 %v1616
        %v1716 = vunpack.c.h.b16 %v1616
        %v1717 = vunpack.c.l.b16 %v1617
        %v1718 = vunpack.c.h.b16 %v1617
        %v1719 = vunpack.c.l.b16 %v1618
        %v1720 = vunpack.c.h.b16 %v1618
        %v1721 = vunpack.c.l.b16 %v1619
        %v1722 = vunpack.c.h.b16 %v1619
        %v1723 = vpack.c.b16 %v1661, %v1659
        %v1724 = vpack.c.b16 %v1662, %v1660
        %v1725 = vpack.c.b16 %v1665, %v1663
        %v1726 = vpack.c.b16 %v1666, %v1664
        %v1727 = vpack.c.b16 %v1669, %v1667
        %v1728 = vpack.c.b16 %v1670, %v1668
        %v1729 = vpack.c.b16 %v1673, %v1671
        %v1730 = vpack.c.b16 %v1674, %v1672
        %v1731 = vpack.c.b16 %v1677, %v1675
        %v1732 = vpack.c.b16 %v1678, %v1676
        %v1733 = vpack.c.b16 %v1681, %v1679
        %v1734 = vpack.c.b16 %v1682, %v1680
        %v1735 = vpack.c.b16 %v1685, %v1683
        %v1736 = vpack.c.b16 %v1686, %v1684
        %v1737 = vpack.c.b16 %v1689, %v1687
        %v1738 = vpack.c.b16 %v1690, %v1688
        %v1739 = vpack.c.b16 %v1693, %v1691
        %v1740 = vpack.c.b16 %v1694, %v1692
        %v1741 = vpack.c.b16 %v1697, %v1695
        %v1742 = vpack.c.b16 %v1698, %v1696
        %v1743 = vpack.c.b16 %v1701, %v1699
        %v1744 = vpack.c.b16 %v1702, %v1700
        %v1745 = vpack.c.b16 %v1705, %v1703
        %v1746 = vpack.c.b16 %v1706, %v1704
        %v1747 = vpack.c.b16 %v1709, %v1707
        %v1748 = vpack.c.b16 %v1710, %v1708
        %v1749 = vpack.c.b16 %v1713, %v1711
        %v1750 = vpack.c.b16 %v1714, %v1712
        %v1751 = vpack.c.b16 %v1717, %v1715
        %v1752 = vpack.c.b16 %v1718, %v1716
        %v1753 = vpack.c.b16 %v1721, %v1719
        %v1754 = vpack.c.b16 %v1722, %v1720
        %1787 = vmatpush.bf16.msra.mxu0 %v1737
        %1788 = vmatpush.bf16.msra.mxu0 %v1735
        %1789 = vmatpush.bf16.msra.mxu0 %v1733
        %1790 = vmatpush.bf16.msra.mxu0 %v1731
        %1791 = vmatpush.bf16.msra.mxu0 %v1729
        %1792 = vmatpush.bf16.msra.mxu0 %v1727
        %1793 = vmatpush.bf16.msra.mxu0 %v1725
        %1794 = vmatpush.bf16.msra.mxu0 %v1723
        %1795 = vmatmul.bf16.gmra.mxu0 %v1583
        %v1796 = vpop.f32.mrf.mxu0
        %v1797 = vadd.f32 %v1623, %v1796
        %v1798 = vpop.f32.mrf.mxu0
        %v1799 = vadd.f32 %v1623, %v1798
        %1800 = vmatmul.bf16.gmra.mxu0 %v1585
        %v1801 = vpop.f32.mrf.mxu0
        %v1802 = vadd.f32 %v1623, %v1801
        %v1803 = vpop.f32.mrf.mxu0
        %v1804 = vadd.f32 %v1623, %v1803
        %1805 = vdwg.mxu0
        %1806 = vmatpush.bf16.msra.mxu0 %v1753
        %1807 = vmatpush.bf16.msra.mxu0 %v1751
        %1808 = vmatpush.bf16.msra.mxu0 %v1749
        %1809 = vmatpush.bf16.msra.mxu0 %v1747
        %1810 = vmatpush.bf16.msra.mxu0 %v1745
        %1811 = vmatpush.bf16.msra.mxu0 %v1743
        %1812 = vmatpush.bf16.msra.mxu0 %v1741
        %1813 = vmatpush.bf16.msra.mxu0 %v1739
        %1814 = vmatmul.bf16.gmra.mxu0 %v1584
        %v1815 = vpop.f32.mrf.mxu0
        %v1816 = vadd.f32 %v1797, %v1815
        %v1817 = vpop.f32.mrf.mxu0
        %v1818 = vadd.f32 %v1799, %v1817
        %1819 = vmatmul.bf16.gmra.mxu0 %v1586
        %v1820 = vpop.f32.mrf.mxu0
        %v1821 = vadd.f32 %v1802, %v1820
        %v1822 = vpop.f32.mrf.mxu0
        %v1823 = vadd.f32 %v1804, %v1822
        %1824 = vdwg.mxu0
        %1825 = vmatpush.bf16.msra.mxu0 %v1738
        %1826 = vmatpush.bf16.msra.mxu0 %v1736
        %1827 = vmatpush.bf16.msra.mxu0 %v1734
        %1828 = vmatpush.bf16.msra.mxu0 %v1732
        %1829 = vmatpush.bf16.msra.mxu0 %v1730
        %1830 = vmatpush.bf16.msra.mxu0 %v1728
        %1831 = vmatpush.bf16.msra.mxu0 %v1726
        %1832 = vmatpush.bf16.msra.mxu0 %v1724
        %1833 = vmatmul.bf16.gmra.mxu0 %v1583
        %v1834 = vpop.f32.mrf.mxu0
        %v1835 = vadd.f32 %v1624, %v1834
        %v1836 = vpop.f32.mrf.mxu0
        %v1837 = vadd.f32 %v1624, %v1836
        %1838 = vmatmul.bf16.gmra.mxu0 %v1585
        %v1839 = vpop.f32.mrf.mxu0
        %v1840 = vadd.f32 %v1624, %v1839
        %v1841 = vpop.f32.mrf.mxu0
        %v1842 = vadd.f32 %v1624, %v1841
        %1843 = vdwg.mxu0
        %1844 = vmatpush.bf16.msra.mxu0 %v1754
        %1845 = vmatpush.bf16.msra.mxu0 %v1752
        %1846 = vmatpush.bf16.msra.mxu0 %v1750
        %1847 = vmatpush.bf16.msra.mxu0 %v1748
        %1848 = vmatpush.bf16.msra.mxu0 %v1746
        %1849 = vmatpush.bf16.msra.mxu0 %v1744
        %1850 = vmatpush.bf16.msra.mxu0 %v1742
        %1851 = vmatpush.bf16.msra.mxu0 %v1740
        %1852 = vmatmul.bf16.gmra.mxu0 %v1584
        %v1853 = vpop.f32.mrf.mxu0
        %v1854 = vadd.f32 %v1835, %v1853
        %v1855 = vpop.f32.mrf.mxu0
        %v1856 = vadd.f32 %v1837, %v1855
        %1857 = vmatmul.bf16.gmra.mxu0 %v1586
        %v1858 = vpop.f32.mrf.mxu0
        %v1859 = vadd.f32 %v1840, %v1858
        %v1860 = vpop.f32.mrf.mxu0
        %v1861 = vadd.f32 %v1842, %v1860
        %1862 = vdwg.mxu0
        %v1863 = vadd.f32 %v1816, %v1854
        %1864 = vadd.xlane.f32.xlu0 %v1863
        %v1865 = vpop.xlane.xlu0 %1864
        %v1866 = vadd.f32 %v1818, %v1856
        %1867 = vadd.xlane.f32.xlu0 %v1866
        %v1868 = vpop.xlane.xlu0 %1867
        %v1869 = vadd.f32 %v1821, %v1859
        %1870 = vadd.xlane.f32.xlu0 %v1869
        %v1871 = vpop.xlane.xlu0 %1870
        %v1872 = vadd.f32 %v1823, %v1861
        %1873 = vadd.xlane.f32.xlu0 %v1872
        %v1874 = vpop.xlane.xlu0 %1873
        %v1875 = vmul.f32 %v1865, 0.005
        %v1876 = vmul.f32 %v1868, 0.005
        %v1877 = vmul.f32 %v1871, 0.005
        %v1878 = vmul.f32 %v1874, 0.005
        %v1879 = vmul.f32 %v1816, %v1816
        %v1880 = vmul.f32 %v1854, %v1854
        %v1881 = vmul.f32 %v1818, %v1818
        %v1882 = vmul.f32 %v1856, %v1856
        %v1883 = vmul.f32 %v1821, %v1821
        %v1884 = vmul.f32 %v1859, %v1859
        %v1885 = vmul.f32 %v1823, %v1823
        %v1886 = vmul.f32 %v1861, %v1861
        %v1887 = vadd.f32 %v1879, %v1880
        %1888 = vadd.xlane.f32.xlu0 %v1887
        %v1889 = vpop.xlane.xlu0 %1888
        %v1890 = vadd.f32 %v1881, %v1882
        %1891 = vadd.xlane.f32.xlu0 %v1890
        %v1892 = vpop.xlane.xlu0 %1891
        %v1893 = vadd.f32 %v1883, %v1884
        %1894 = vadd.xlane.f32.xlu0 %v1893
        %v1895 = vpop.xlane.xlu0 %1894
        %v1896 = vadd.f32 %v1885, %v1886
        %1897 = vadd.xlane.f32.xlu0 %v1896
        %v1898 = vpop.xlane.xlu0 %1897
        %v1899 = vmul.f32 %v1889, 0.005
        %v1900 = vmul.f32 %v1892, 0.005
        %v1901 = vmul.f32 %v1895, 0.005
        %v1902 = vmul.f32 %v1898, 0.005
        %v1903 = vmul.f32 %v1875, %v1875
        %v1904 = vmul.f32 %v1876, %v1876
        %v1905 = vmul.f32 %v1877, %v1877
        %v1906 = vmul.f32 %v1878, %v1878
        %v1907 = vsub.f32 %v1899, %v1903
        %v1908 = vsub.f32 %v1900, %v1904
        %v1909 = vsub.f32 %v1901, %v1905
        %v1910 = vsub.f32 %v1902, %v1906
        %v1911 = vsub.f32 %v1816, %v1875
        %v1912 = vsub.f32 %v1854, %v1875
        %v1913 = vsub.f32 %v1818, %v1876
        %v1914 = vsub.f32 %v1856, %v1876
        %v1915 = vsub.f32 %v1821, %v1877
        %v1916 = vsub.f32 %v1859, %v1877
        %v1917 = vsub.f32 %v1823, %v1878
        %v1918 = vsub.f32 %v1861, %v1878
        %v1919 = vadd.f32 %v1907, 1e-05
        %v1920 = vadd.f32 %v1908, 1e-05
        %v1921 = vadd.f32 %v1909, 1e-05
        %v1922 = vadd.f32 %v1910, 1e-05
        %v1923 = vrsqrt.pop %v1919
        %v1924 = vmul.f32 %v1923, %v1919
        %v1925 = vmul.f32 %v1924, %v1923
        %v1926 = vmul.f32 0.5, %v1925
        %v1927 = vsub.f32 1.5, %v1926
        %v1928 = vmul.f32 %v1923, %v1927
        %vm1929 = vweird.f32 %v1919
        %vm1930 = vweird.f32 %v1923
        %vm1931 = vmor %vm1929, %vm1930
        %v1932 = vsel %vm1931, %v1923, %v1928
        %v1933 = vrsqrt.pop %v1920
        %v1934 = vmul.f32 %v1933, %v1920
        %v1935 = vmul.f32 %v1934, %v1933
        %v1936 = vmul.f32 0.5, %v1935
        %v1937 = vsub.f32 1.5, %v1936
        %v1938 = vmul.f32 %v1933, %v1937
        %vm1939 = vweird.f32 %v1920
        %vm1940 = vweird.f32 %v1933
        %vm1941 = vmor %vm1939, %vm1940
        %v1942 = vsel %vm1941, %v1933, %v1938
        %v1943 = vrsqrt.pop %v1921
        %v1944 = vmul.f32 %v1943, %v1921
        %v1945 = vmul.f32 %v1944, %v1943
        %v1946 = vmul.f32 0.5, %v1945
        %v1947 = vsub.f32 1.5, %v1946
        %v1948 = vmul.f32 %v1943, %v1947
        %vm1949 = vweird.f32 %v1921
        %vm1950 = vweird.f32 %v1943
        %vm1951 = vmor %vm1949, %vm1950
        %v1952 = vsel %vm1951, %v1943, %v1948
        %v1953 = vrsqrt.pop %v1922
        %v1954 = vmul.f32 %v1953, %v1922
        %v1955 = vmul.f32 %v1954, %v1953
        %v1956 = vmul.f32 0.5, %v1955
        %v1957 = vsub.f32 1.5, %v1956
        %v1958 = vmul.f32 %v1953, %v1957
        %vm1959 = vweird.f32 %v1922
        %vm1960 = vweird.f32 %v1953
        %vm1961 = vmor %vm1959, %vm1960
        %v1962 = vsel %vm1961, %v1953, %v1958
        %v1963 = vmul.f32 %v1911, %v1932
        %v1964 = vmul.f32 %v1912, %v1932
        %v1965 = vmul.f32 %v1913, %v1942
        %v1966 = vmul.f32 %v1914, %v1942
        %v1967 = vmul.f32 %v1915, %v1952
        %v1968 = vmul.f32 %v1916, %v1952
        %v1969 = vmul.f32 %v1917, %v1962
        %v1970 = vmul.f32 %v1918, %v1962
        %v1971 = vmul.f32 %v1963, %v536
        %v1972 = vmul.f32 %v1964, %v537
        %v1973 = vmul.f32 %v1965, %v536
        %v1974 = vmul.f32 %v1966, %v537
        %v1975 = vmul.f32 %v1967, %v536
        %v1976 = vmul.f32 %v1968, %v537
        %v1977 = vmul.f32 %v1969, %v536
        %v1978 = vmul.f32 %v1970, %v537
        %v1979 = vadd.f32 %v1971, %v549
        %v1980 = vadd.f32 %v1972, %v550
        %v1981 = vadd.f32 %v1973, %v549
        %v1982 = vadd.f32 %v1974, %v550
        %v1983 = vadd.f32 %v1975, %v549
        %v1984 = vadd.f32 %v1976, %v550
        %v1985 = vadd.f32 %v1977, %v549
        %v1986 = vadd.f32 %v1978, %v550
        %v1987 = vmin.f32 %v1979, 20.0
        %v1988 = vmin.f32 %v1980, 20.0
        %v1989 = vmin.f32 %v1981, 20.0
        %v1990 = vmin.f32 %v1982, 20.0
        %v1991 = vmin.f32 %v1983, 20.0
        %v1992 = vmin.f32 %v1984, 20.0
        %v1993 = vmin.f32 %v1985, 20.0
        %v1994 = vmin.f32 %v1986, 20.0
        %v1995 = vmul.f32 %v1987, 1.442695
        %v1996 = vpow.pop %v1995
        %v1997 = vmul.f32 %v1988, 1.442695
        %v1998 = vpow.pop %v1997
        %v1999 = vmul.f32 %v1989, 1.442695
        %v2000 = vpow.pop %v1999
        %v2001 = vmul.f32 %v1990, 1.442695
        %v2002 = vpow.pop %v2001
        %v2003 = vmul.f32 %v1991, 1.442695
        %v2004 = vpow.pop %v2003
        %v2005 = vmul.f32 %v1992, 1.442695
        %v2006 = vpow.pop %v2005
        %v2007 = vmul.f32 %v1993, 1.442695
        %v2008 = vpow.pop %v2007
        %v2009 = vmul.f32 %v1994, 1.442695
        %v2010 = vpow.pop %v2009
        %v2011 = vadd.f32 %v1996, 2.0
        %v2012 = vadd.f32 %v1998, 2.0
        %v2013 = vadd.f32 %v2000, 2.0
        %v2014 = vadd.f32 %v2002, 2.0
        %v2015 = vadd.f32 %v2004, 2.0
        %v2016 = vadd.f32 %v2006, 2.0
        %v2017 = vadd.f32 %v2008, 2.0
        %v2018 = vadd.f32 %v2010, 2.0
        %v2019 = vmul.f32 %v1996, %v2011
        %v2020 = vmul.f32 %v1998, %v2012
        %v2021 = vmul.f32 %v2000, %v2013
        %v2022 = vmul.f32 %v2002, %v2014
        %v2023 = vmul.f32 %v2004, %v2015
        %v2024 = vmul.f32 %v2006, %v2016
        %v2025 = vmul.f32 %v2008, %v2017
        %v2026 = vmul.f32 %v2010, %v2018
        %v2027 = vadd.f32 %v2019, 2.0
        %v2028 = vadd.f32 %v2020, 2.0
        %v2029 = vadd.f32 %v2021, 2.0
        %v2030 = vadd.f32 %v2022, 2.0
        %v2031 = vadd.f32 %v2023, 2.0
        %v2032 = vadd.f32 %v2024, 2.0
        %v2033 = vadd.f32 %v2025, 2.0
        %v2034 = vadd.f32 %v2026, 2.0
        %v2035 = vrcp.pop %v2027
        %v2036 = vrcp.pop %v2028
        %v2037 = vrcp.pop %v2029
        %v2038 = vrcp.pop %v2030
        %v2039 = vrcp.pop %v2031
        %v2040 = vrcp.pop %v2032
        %v2041 = vrcp.pop %v2033
        %v2042 = vrcp.pop %v2034
        %v2043 = vmul.f32 %v2019, %v2035
        %v2044 = vmul.f32 %v2020, %v2036
        %v2045 = vmul.f32 %v2021, %v2037
        %v2046 = vmul.f32 %v2022, %v2038
        %v2047 = vmul.f32 %v2023, %v2039
        %v2048 = vmul.f32 %v2024, %v2040
        %v2049 = vmul.f32 %v2025, %v2041
        %v2050 = vmul.f32 %v2026, %v2042
        %v2051 = vmul.f32 %v1979, %v2043
        %v2052 = vmul.f32 %v1980, %v2044
        %v2053 = vmul.f32 %v1981, %v2045
        %v2054 = vmul.f32 %v1982, %v2046
        %v2055 = vmul.f32 %v1983, %v2047
        %v2056 = vmul.f32 %v1984, %v2048
        %v2057 = vmul.f32 %v1985, %v2049
        %v2058 = vmul.f32 %v1986, %v2050
        %v2059 = vpack.c.bf16 %v2053, %v2051
        %v2060 = vpack.c.bf16 %v2054, %v2052
        %v2061 = vpack.c.bf16 %v2057, %v2055
        %v2062 = vpack.c.bf16 %v2058, %v2056
        %s2063 = scalar_lea.vmem [#allocation3], 768
        %v2064 = vld [vmem:[%s2063] sm:$0xff]
        %v2065 = vld [vmem:[%s2063 + $0x8] sm:$0xff]
        %v2066 = vld [vmem:[%s2063 + $0x10] sm:$0xff]
        %v2067 = vld [vmem:[%s2063 + $0x18] sm:$0xff]
        %v2068 = vld [vmem:[%s2063 + $0x20] sm:$0xff]
        %v2069 = vld [vmem:[%s2063 + $0x28] sm:$0xff]
        %v2070 = vld [vmem:[%s2063 + $0x30] sm:$0xff]
        %v2071 = vld [vmem:[%s2063 + $0x38] sm:$0xff]
        %v2072 = vld [vmem:[%s2063 + $0x40] sm:$0xff]
        %v2073 = vld [vmem:[%s2063 + $0x48] sm:$0xff]
        %v2074 = vld [vmem:[%s2063 + $0x50] sm:$0xff]
        %v2075 = vld [vmem:[%s2063 + $0x58] sm:$0xff]
        %v2076 = vld [vmem:[%s2063 + $0x60] sm:$0xff]
        %v2077 = vld [vmem:[%s2063 + $0x68] sm:$0xff]
        %v2078 = vld [vmem:[%s2063 + $0x70] sm:$0xff]
        %v2079 = vld [vmem:[%s2063 + $0x78] sm:$0xff]
        %v2080 = vld [vmem:[%s2063 + $0x80] sm:$0xff]
        %v2081 = vld [vmem:[%s2063 + $0x88] sm:$0xff]
        %v2082 = vld [vmem:[%s2063 + $0x90] sm:$0xff]
        %v2083 = vld [vmem:[%s2063 + $0x98] sm:$0xff]
        %v2084 = vld [vmem:[%s2063 + $0xa0] sm:$0xff]
        %v2085 = vld [vmem:[%s2063 + $0xa8] sm:$0xff]
        %v2086 = vld [vmem:[%s2063 + $0xb0] sm:$0xff]
        %v2087 = vld [vmem:[%s2063 + $0xb8] sm:$0xff]
        %v2088 = vld [vmem:[%s2063 + $0xc0] sm:$0xff]
        %v2089 = vld [vmem:[%s2063 + $0xc8] sm:$0xff]
        %v2090 = vld [vmem:[%s2063 + $0xd0] sm:$0xff]
        %v2091 = vld [vmem:[%s2063 + $0xd8] sm:$0xff]
        %v2092 = vld [vmem:[%s2063 + $0xe0] sm:$0xff]
        %v2093 = vld [vmem:[%s2063 + $0xe8] sm:$0xff]
        %v2094 = vld [vmem:[%s2063 + $0xf0] sm:$0xff]
        %v2095 = vld [vmem:[%s2063 + $0xf8] sm:$0xff]
        %s2096 = scalar_lea.vmem %s4, 6
        %v2097 = vld [vmem:[%s2096] sm:$0x3]
        %v2099 = vperm.slane %v2097, 0
        %v2100 = vperm.slane %v2097, 1
        %v2135 = vunpack.c.l.b16 %v2064
        %v2136 = vunpack.c.h.b16 %v2064
        %v2137 = vunpack.c.l.b16 %v2065
        %v2138 = vunpack.c.h.b16 %v2065
        %v2139 = vunpack.c.l.b16 %v2066
        %v2140 = vunpack.c.h.b16 %v2066
        %v2141 = vunpack.c.l.b16 %v2067
        %v2142 = vunpack.c.h.b16 %v2067
        %v2143 = vunpack.c.l.b16 %v2068
        %v2144 = vunpack.c.h.b16 %v2068
        %v2145 = vunpack.c.l.b16 %v2069
        %v2146 = vunpack.c.h.b16 %v2069
        %v2147 = vunpack.c.l.b16 %v2070
        %v2148 = vunpack.c.h.b16 %v2070
        %v2149 = vunpack.c.l.b16 %v2071
        %v2150 = vunpack.c.h.b16 %v2071
        %v2151 = vunpack.c.l.b16 %v2072
        %v2152 = vunpack.c.h.b16 %v2072
        %v2153 = vunpack.c.l.b16 %v2073
        %v2154 = vunpack.c.h.b16 %v2073
        %v2155 = vunpack.c.l.b16 %v2074
        %v2156 = vunpack.c.h.b16 %v2074
        %v2157 = vunpack.c.l.b16 %v2075
        %v2158 = vunpack.c.h.b16 %v2075
        %v2159 = vunpack.c.l.b16 %v2076
        %v2160 = vunpack.c.h.b16 %v2076
        %v2161 = vunpack.c.l.b16 %v2077
        %v2162 = vunpack.c.h.b16 %v2077
        %v2163 = vunpack.c.l.b16 %v2078
        %v2164 = vunpack.c.h.b16 %v2078
        %v2165 = vunpack.c.l.b16 %v2079
        %v2166 = vunpack.c.h.b16 %v2079
        %v2167 = vunpack.c.l.b16 %v2080
        %v2168 = vunpack.c.h.b16 %v2080
        %v2169 = vunpack.c.l.b16 %v2081
        %v2170 = vunpack.c.h.b16 %v2081
        %v2171 = vunpack.c.l.b16 %v2082
        %v2172 = vunpack.c.h.b16 %v2082
        %v2173 = vunpack.c.l.b16 %v2083
        %v2174 = vunpack.c.h.b16 %v2083
        %v2175 = vunpack.c.l.b16 %v2084
        %v2176 = vunpack.c.h.b16 %v2084
        %v2177 = vunpack.c.l.b16 %v2085
        %v2178 = vunpack.c.h.b16 %v2085
        %v2179 = vunpack.c.l.b16 %v2086
        %v2180 = vunpack.c.h.b16 %v2086
        %v2181 = vunpack.c.l.b16 %v2087
        %v2182 = vunpack.c.h.b16 %v2087
        %v2183 = vunpack.c.l.b16 %v2088
        %v2184 = vunpack.c.h.b16 %v2088
        %v2185 = vunpack.c.l.b16 %v2089
        %v2186 = vunpack.c.h.b16 %v2089
        %v2187 = vunpack.c.l.b16 %v2090
        %v2188 = vunpack.c.h.b16 %v2090
        %v2189 = vunpack.c.l.b16 %v2091
        %v2190 = vunpack.c.h.b16 %v2091
        %v2191 = vunpack.c.l.b16 %v2092
        %v2192 = vunpack.c.h.b16 %v2092
        %v2193 = vunpack.c.l.b16 %v2093
        %v2194 = vunpack.c.h.b16 %v2093
        %v2195 = vunpack.c.l.b16 %v2094
        %v2196 = vunpack.c.h.b16 %v2094
        %v2197 = vunpack.c.l.b16 %v2095
        %v2198 = vunpack.c.h.b16 %v2095
        %v2199 = vpack.c.b16 %v2137, %v2135
        %v2200 = vpack.c.b16 %v2138, %v2136
        %v2201 = vpack.c.b16 %v2141, %v2139
        %v2202 = vpack.c.b16 %v2142, %v2140
        %v2203 = vpack.c.b16 %v2145, %v2143
        %v2204 = vpack.c.b16 %v2146, %v2144
        %v2205 = vpack.c.b16 %v2149, %v2147
        %v2206 = vpack.c.b16 %v2150, %v2148
        %v2207 = vpack.c.b16 %v2153, %v2151
        %v2208 = vpack.c.b16 %v2154, %v2152
        %v2209 = vpack.c.b16 %v2157, %v2155
        %v2210 = vpack.c.b16 %v2158, %v2156
        %v2211 = vpack.c.b16 %v2161, %v2159
        %v2212 = vpack.c.b16 %v2162, %v2160
        %v2213 = vpack.c.b16 %v2165, %v2163
        %v2214 = vpack.c.b16 %v2166, %v2164
        %v2215 = vpack.c.b16 %v2169, %v2167
        %v2216 = vpack.c.b16 %v2170, %v2168
        %v2217 = vpack.c.b16 %v2173, %v2171
        %v2218 = vpack.c.b16 %v2174, %v2172
        %v2219 = vpack.c.b16 %v2177, %v2175
        %v2220 = vpack.c.b16 %v2178, %v2176
        %v2221 = vpack.c.b16 %v2181, %v2179
        %v2222 = vpack.c.b16 %v2182, %v2180
        %v2223 = vpack.c.b16 %v2185, %v2183
        %v2224 = vpack.c.b16 %v2186, %v2184
        %v2225 = vpack.c.b16 %v2189, %v2187
        %v2226 = vpack.c.b16 %v2190, %v2188
        %v2227 = vpack.c.b16 %v2193, %v2191
        %v2228 = vpack.c.b16 %v2194, %v2192
        %v2229 = vpack.c.b16 %v2197, %v2195
        %v2230 = vpack.c.b16 %v2198, %v2196
        %2263 = vmatpush.bf16.msra.mxu0 %v2213
        %2264 = vmatpush.bf16.msra.mxu0 %v2211
        %2265 = vmatpush.bf16.msra.mxu0 %v2209
        %2266 = vmatpush.bf16.msra.mxu0 %v2207
        %2267 = vmatpush.bf16.msra.mxu0 %v2205
        %2268 = vmatpush.bf16.msra.mxu0 %v2203
        %2269 = vmatpush.bf16.msra.mxu0 %v2201
        %2270 = vmatpush.bf16.msra.mxu0 %v2199
        %2271 = vmatmul.bf16.gmra.mxu0 %v2059
        %v2272 = vpop.f32.mrf.mxu0
        %v2273 = vadd.f32 %v2099, %v2272
        %v2274 = vpop.f32.mrf.mxu0
        %v2275 = vadd.f32 %v2099, %v2274
        %2276 = vmatmul.bf16.gmra.mxu0 %v2061
        %v2277 = vpop.f32.mrf.mxu0
        %v2278 = vadd.f32 %v2099, %v2277
        %v2279 = vpop.f32.mrf.mxu0
        %v2280 = vadd.f32 %v2099, %v2279
        %2281 = vdwg.mxu0
        %2282 = vmatpush.bf16.msra.mxu0 %v2229
        %2283 = vmatpush.bf16.msra.mxu0 %v2227
        %2284 = vmatpush.bf16.msra.mxu0 %v2225
        %2285 = vmatpush.bf16.msra.mxu0 %v2223
        %2286 = vmatpush.bf16.msra.mxu0 %v2221
        %2287 = vmatpush.bf16.msra.mxu0 %v2219
        %2288 = vmatpush.bf16.msra.mxu0 %v2217
        %2289 = vmatpush.bf16.msra.mxu0 %v2215
        %2290 = vmatmul.bf16.gmra.mxu0 %v2060
        %v2291 = vpop.f32.mrf.mxu0
        %v2292 = vadd.f32 %v2273, %v2291
        %v2293 = vpop.f32.mrf.mxu0
        %v2294 = vadd.f32 %v2275, %v2293
        %2295 = vmatmul.bf16.gmra.mxu0 %v2062
        %v2296 = vpop.f32.mrf.mxu0
        %v2297 = vadd.f32 %v2278, %v2296
        %v2298 = vpop.f32.mrf.mxu0
        %v2299 = vadd.f32 %v2280, %v2298
        %2300 = vdwg.mxu0
        %2301 = vmatpush.bf16.msra.mxu0 %v2214
        %2302 = vmatpush.bf16.msra.mxu0 %v2212
        %2303 = vmatpush.bf16.msra.mxu0 %v2210
        %2304 = vmatpush.bf16.msra.mxu0 %v2208
        %2305 = vmatpush.bf16.msra.mxu0 %v2206
        %2306 = vmatpush.bf16.msra.mxu0 %v2204
        %2307 = vmatpush.bf16.msra.mxu0 %v2202
        %2308 = vmatpush.bf16.msra.mxu0 %v2200
        %2309 = vmatmul.bf16.gmra.mxu0 %v2059
        %v2310 = vpop.f32.mrf.mxu0
        %v2311 = vadd.f32 %v2100, %v2310
        %v2312 = vpop.f32.mrf.mxu0
        %v2313 = vadd.f32 %v2100, %v2312
        %2314 = vmatmul.bf16.gmra.mxu0 %v2061
        %v2315 = vpop.f32.mrf.mxu0
        %v2316 = vadd.f32 %v2100, %v2315
        %v2317 = vpop.f32.mrf.mxu0
        %v2318 = vadd.f32 %v2100, %v2317
        %2319 = vdwg.mxu0
        %2320 = vmatpush.bf16.msra.mxu0 %v2230
        %2321 = vmatpush.bf16.msra.mxu0 %v2228
        %2322 = vmatpush.bf16.msra.mxu0 %v2226
        %2323 = vmatpush.bf16.msra.mxu0 %v2224
        %2324 = vmatpush.bf16.msra.mxu0 %v2222
        %2325 = vmatpush.bf16.msra.mxu0 %v2220
        %2326 = vmatpush.bf16.msra.mxu0 %v2218
        %2327 = vmatpush.bf16.msra.mxu0 %v2216
        %2328 = vmatmul.bf16.gmra.mxu0 %v2060
        %v2329 = vpop.f32.mrf.mxu0
        %v2330 = vadd.f32 %v2311, %v2329
        %v2331 = vpop.f32.mrf.mxu0
        %v2332 = vadd.f32 %v2313, %v2331
        %2333 = vmatmul.bf16.gmra.mxu0 %v2062
        %v2334 = vpop.f32.mrf.mxu0
        %v2335 = vadd.f32 %v2316, %v2334
        %v2336 = vpop.f32.mrf.mxu0
        %v2337 = vadd.f32 %v2318, %v2336
        %2338 = vdwg.mxu0
        %v2339 = vadd.f32 %v2292, %v2330
        %2340 = vadd.xlane.f32.xlu0 %v2339
        %v2341 = vpop.xlane.xlu0 %2340
        %v2342 = vadd.f32 %v2294, %v2332
        %2343 = vadd.xlane.f32.xlu0 %v2342
        %v2344 = vpop.xlane.xlu0 %2343
        %v2345 = vadd.f32 %v2297, %v2335
        %2346 = vadd.xlane.f32.xlu0 %v2345
        %v2347 = vpop.xlane.xlu0 %2346
        %v2348 = vadd.f32 %v2299, %v2337
        %2349 = vadd.xlane.f32.xlu0 %v2348
        %v2350 = vpop.xlane.xlu0 %2349
        %v2351 = vmul.f32 %v2341, 0.005
        %v2352 = vmul.f32 %v2344, 0.005
        %v2353 = vmul.f32 %v2347, 0.005
        %v2354 = vmul.f32 %v2350, 0.005
        %v2355 = vmul.f32 %v2292, %v2292
        %v2356 = vmul.f32 %v2330, %v2330
        %v2357 = vmul.f32 %v2294, %v2294
        %v2358 = vmul.f32 %v2332, %v2332
        %v2359 = vmul.f32 %v2297, %v2297
        %v2360 = vmul.f32 %v2335, %v2335
        %v2361 = vmul.f32 %v2299, %v2299
        %v2362 = vmul.f32 %v2337, %v2337
        %v2363 = vadd.f32 %v2355, %v2356
        %2364 = vadd.xlane.f32.xlu0 %v2363
        %v2365 = vpop.xlane.xlu0 %2364
        %v2366 = vadd.f32 %v2357, %v2358
        %2367 = vadd.xlane.f32.xlu0 %v2366
        %v2368 = vpop.xlane.xlu0 %2367
        %v2369 = vadd.f32 %v2359, %v2360
        %2370 = vadd.xlane.f32.xlu0 %v2369
        %v2371 = vpop.xlane.xlu0 %2370
        %v2372 = vadd.f32 %v2361, %v2362
        %2373 = vadd.xlane.f32.xlu0 %v2372
        %v2374 = vpop.xlane.xlu0 %2373
        %v2375 = vmul.f32 %v2365, 0.005
        %v2376 = vmul.f32 %v2368, 0.005
        %v2377 = vmul.f32 %v2371, 0.005
        %v2378 = vmul.f32 %v2374, 0.005
        %v2379 = vmul.f32 %v2351, %v2351
        %v2380 = vmul.f32 %v2352, %v2352
        %v2381 = vmul.f32 %v2353, %v2353
        %v2382 = vmul.f32 %v2354, %v2354
        %v2383 = vsub.f32 %v2375, %v2379
        %v2384 = vsub.f32 %v2376, %v2380
        %v2385 = vsub.f32 %v2377, %v2381
        %v2386 = vsub.f32 %v2378, %v2382
        %v2387 = vsub.f32 %v2292, %v2351
        %v2388 = vsub.f32 %v2330, %v2351
        %v2389 = vsub.f32 %v2294, %v2352
        %v2390 = vsub.f32 %v2332, %v2352
        %v2391 = vsub.f32 %v2297, %v2353
        %v2392 = vsub.f32 %v2335, %v2353
        %v2393 = vsub.f32 %v2299, %v2354
        %v2394 = vsub.f32 %v2337, %v2354
        %v2395 = vadd.f32 %v2383, 1e-05
        %v2396 = vadd.f32 %v2384, 1e-05
        %v2397 = vadd.f32 %v2385, 1e-05
        %v2398 = vadd.f32 %v2386, 1e-05
        %v2399 = vrsqrt.pop %v2395
        %v2400 = vmul.f32 %v2399, %v2395
        %v2401 = vmul.f32 %v2400, %v2399
        %v2402 = vmul.f32 0.5, %v2401
        %v2403 = vsub.f32 1.5, %v2402
        %v2404 = vmul.f32 %v2399, %v2403
        %vm2405 = vweird.f32 %v2395
        %vm2406 = vweird.f32 %v2399
        %vm2407 = vmor %vm2405, %vm2406
        %v2408 = vsel %vm2407, %v2399, %v2404
        %v2409 = vrsqrt.pop %v2396
        %v2410 = vmul.f32 %v2409, %v2396
        %v2411 = vmul.f32 %v2410, %v2409
        %v2412 = vmul.f32 0.5, %v2411
        %v2413 = vsub.f32 1.5, %v2412
        %v2414 = vmul.f32 %v2409, %v2413
        %vm2415 = vweird.f32 %v2396
        %vm2416 = vweird.f32 %v2409
        %vm2417 = vmor %vm2415, %vm2416
        %v2418 = vsel %vm2417, %v2409, %v2414
        %v2419 = vrsqrt.pop %v2397
        %v2420 = vmul.f32 %v2419, %v2397
        %v2421 = vmul.f32 %v2420, %v2419
        %v2422 = vmul.f32 0.5, %v2421
        %v2423 = vsub.f32 1.5, %v2422
        %v2424 = vmul.f32 %v2419, %v2423
        %vm2425 = vweird.f32 %v2397
        %vm2426 = vweird.f32 %v2419
        %vm2427 = vmor %vm2425, %vm2426
        %v2428 = vsel %vm2427, %v2419, %v2424
        %v2429 = vrsqrt.pop %v2398
        %v2430 = vmul.f32 %v2429, %v2398
        %v2431 = vmul.f32 %v2430, %v2429
        %v2432 = vmul.f32 0.5, %v2431
        %v2433 = vsub.f32 1.5, %v2432
        %v2434 = vmul.f32 %v2429, %v2433
        %vm2435 = vweird.f32 %v2398
        %vm2436 = vweird.f32 %v2429
        %vm2437 = vmor %vm2435, %vm2436
        %v2438 = vsel %vm2437, %v2429, %v2434
        %v2439 = vmul.f32 %v2387, %v2408
        %v2440 = vmul.f32 %v2388, %v2408
        %v2441 = vmul.f32 %v2389, %v2418
        %v2442 = vmul.f32 %v2390, %v2418
        %v2443 = vmul.f32 %v2391, %v2428
        %v2444 = vmul.f32 %v2392, %v2428
        %v2445 = vmul.f32 %v2393, %v2438
        %v2446 = vmul.f32 %v2394, %v2438
        %v2447 = vmul.f32 %v2439, %v536
        %v2448 = vmul.f32 %v2440, %v537
        %v2449 = vmul.f32 %v2441, %v536
        %v2450 = vmul.f32 %v2442, %v537
        %v2451 = vmul.f32 %v2443, %v536
        %v2452 = vmul.f32 %v2444, %v537
        %v2453 = vmul.f32 %v2445, %v536
        %v2454 = vmul.f32 %v2446, %v537
        %v2455 = vadd.f32 %v2447, %v549
        %v2456 = vadd.f32 %v2448, %v550
        %v2457 = vadd.f32 %v2449, %v549
        %v2458 = vadd.f32 %v2450, %v550
        %v2459 = vadd.f32 %v2451, %v549
        %v2460 = vadd.f32 %v2452, %v550
        %v2461 = vadd.f32 %v2453, %v549
        %v2462 = vadd.f32 %v2454, %v550
        %v2463 = vmin.f32 %v2455, 20.0
        %v2464 = vmin.f32 %v2456, 20.0
        %v2465 = vmin.f32 %v2457, 20.0
        %v2466 = vmin.f32 %v2458, 20.0
        %v2467 = vmin.f32 %v2459, 20.0
        %v2468 = vmin.f32 %v2460, 20.0
        %v2469 = vmin.f32 %v2461, 20.0
        %v2470 = vmin.f32 %v2462, 20.0
        %v2471 = vmul.f32 %v2463, 1.442695
        %v2472 = vpow.pop %v2471
        %v2473 = vmul.f32 %v2464, 1.442695
        %v2474 = vpow.pop %v2473
        %v2475 = vmul.f32 %v2465, 1.442695
        %v2476 = vpow.pop %v2475
        %v2477 = vmul.f32 %v2466, 1.442695
        %v2478 = vpow.pop %v2477
        %v2479 = vmul.f32 %v2467, 1.442695
        %v2480 = vpow.pop %v2479
        %v2481 = vmul.f32 %v2468, 1.442695
        %v2482 = vpow.pop %v2481
        %v2483 = vmul.f32 %v2469, 1.442695
        %v2484 = vpow.pop %v2483
        %v2485 = vmul.f32 %v2470, 1.442695
        %v2486 = vpow.pop %v2485
        %v2487 = vadd.f32 %v2472, 2.0
        %v2488 = vadd.f32 %v2474, 2.0
        %v2489 = vadd.f32 %v2476, 2.0
        %v2490 = vadd.f32 %v2478, 2.0
        %v2491 = vadd.f32 %v2480, 2.0
        %v2492 = vadd.f32 %v2482, 2.0
        %v2493 = vadd.f32 %v2484, 2.0
        %v2494 = vadd.f32 %v2486, 2.0
        %v2495 = vmul.f32 %v2472, %v2487
        %v2496 = vmul.f32 %v2474, %v2488
        %v2497 = vmul.f32 %v2476, %v2489
        %v2498 = vmul.f32 %v2478, %v2490
        %v2499 = vmul.f32 %v2480, %v2491
        %v2500 = vmul.f32 %v2482, %v2492
        %v2501 = vmul.f32 %v2484, %v2493
        %v2502 = vmul.f32 %v2486, %v2494
        %v2503 = vadd.f32 %v2495, 2.0
        %v2504 = vadd.f32 %v2496, 2.0
        %v2505 = vadd.f32 %v2497, 2.0
        %v2506 = vadd.f32 %v2498, 2.0
        %v2507 = vadd.f32 %v2499, 2.0
        %v2508 = vadd.f32 %v2500, 2.0
        %v2509 = vadd.f32 %v2501, 2.0
        %v2510 = vadd.f32 %v2502, 2.0
        %v2511 = vrcp.pop %v2503
        %v2512 = vrcp.pop %v2504
        %v2513 = vrcp.pop %v2505
        %v2514 = vrcp.pop %v2506
        %v2515 = vrcp.pop %v2507
        %v2516 = vrcp.pop %v2508
        %v2517 = vrcp.pop %v2509
        %v2518 = vrcp.pop %v2510
        %v2519 = vmul.f32 %v2495, %v2511
        %v2520 = vmul.f32 %v2496, %v2512
        %v2521 = vmul.f32 %v2497, %v2513
        %v2522 = vmul.f32 %v2498, %v2514
        %v2523 = vmul.f32 %v2499, %v2515
        %v2524 = vmul.f32 %v2500, %v2516
        %v2525 = vmul.f32 %v2501, %v2517
        %v2526 = vmul.f32 %v2502, %v2518
        %v2527 = vmul.f32 %v2455, %v2519
        %v2528 = vmul.f32 %v2456, %v2520
        %v2529 = vmul.f32 %v2457, %v2521
        %v2530 = vmul.f32 %v2458, %v2522
        %v2531 = vmul.f32 %v2459, %v2523
        %v2532 = vmul.f32 %v2460, %v2524
        %v2533 = vmul.f32 %v2461, %v2525
        %v2534 = vmul.f32 %v2462, %v2526
        %v2535 = vpack.c.bf16 %v2529, %v2527
        %v2536 = vpack.c.bf16 %v2530, %v2528
        %v2537 = vpack.c.bf16 %v2533, %v2531
        %v2538 = vpack.c.bf16 %v2534, %v2532
        %s2539 = scalar_lea.vmem [#allocation3], 1024
        %v2540 = vld [vmem:[%s2539] sm:$0xff]
        %v2541 = vld [vmem:[%s2539 + $0x8] sm:$0xff]
        %v2542 = vld [vmem:[%s2539 + $0x10] sm:$0xff]
        %v2543 = vld [vmem:[%s2539 + $0x18] sm:$0xff]
        %v2544 = vld [vmem:[%s2539 + $0x20] sm:$0xff]
        %v2545 = vld [vmem:[%s2539 + $0x28] sm:$0xff]
        %v2546 = vld [vmem:[%s2539 + $0x30] sm:$0xff]
        %v2547 = vld [vmem:[%s2539 + $0x38] sm:$0xff]
        %v2548 = vld [vmem:[%s2539 + $0x40] sm:$0xff]
        %v2549 = vld [vmem:[%s2539 + $0x48] sm:$0xff]
        %v2550 = vld [vmem:[%s2539 + $0x50] sm:$0xff]
        %v2551 = vld [vmem:[%s2539 + $0x58] sm:$0xff]
        %v2552 = vld [vmem:[%s2539 + $0x60] sm:$0xff]
        %v2553 = vld [vmem:[%s2539 + $0x68] sm:$0xff]
        %v2554 = vld [vmem:[%s2539 + $0x70] sm:$0xff]
        %v2555 = vld [vmem:[%s2539 + $0x78] sm:$0xff]
        %v2556 = vld [vmem:[%s2539 + $0x80] sm:$0xff]
        %v2557 = vld [vmem:[%s2539 + $0x88] sm:$0xff]
        %v2558 = vld [vmem:[%s2539 + $0x90] sm:$0xff]
        %v2559 = vld [vmem:[%s2539 + $0x98] sm:$0xff]
        %v2560 = vld [vmem:[%s2539 + $0xa0] sm:$0xff]
        %v2561 = vld [vmem:[%s2539 + $0xa8] sm:$0xff]
        %v2562 = vld [vmem:[%s2539 + $0xb0] sm:$0xff]
        %v2563 = vld [vmem:[%s2539 + $0xb8] sm:$0xff]
        %v2564 = vld [vmem:[%s2539 + $0xc0] sm:$0xff]
        %v2565 = vld [vmem:[%s2539 + $0xc8] sm:$0xff]
        %v2566 = vld [vmem:[%s2539 + $0xd0] sm:$0xff]
        %v2567 = vld [vmem:[%s2539 + $0xd8] sm:$0xff]
        %v2568 = vld [vmem:[%s2539 + $0xe0] sm:$0xff]
        %v2569 = vld [vmem:[%s2539 + $0xe8] sm:$0xff]
        %v2570 = vld [vmem:[%s2539 + $0xf0] sm:$0xff]
        %v2571 = vld [vmem:[%s2539 + $0xf8] sm:$0xff]
        %s2572 = scalar_lea.vmem %s4, 8
        %v2573 = vld [vmem:[%s2572] sm:$0x3]
        %v2575 = vperm.slane %v2573, 0
        %v2576 = vperm.slane %v2573, 1
        %v2611 = vunpack.c.l.b16 %v2540
        %v2612 = vunpack.c.h.b16 %v2540
        %v2613 = vunpack.c.l.b16 %v2541
        %v2614 = vunpack.c.h.b16 %v2541
        %v2615 = vunpack.c.l.b16 %v2542
        %v2616 = vunpack.c.h.b16 %v2542
        %v2617 = vunpack.c.l.b16 %v2543
        %v2618 = vunpack.c.h.b16 %v2543
        %v2619 = vunpack.c.l.b16 %v2544
        %v2620 = vunpack.c.h.b16 %v2544
        %v2621 = vunpack.c.l.b16 %v2545
        %v2622 = vunpack.c.h.b16 %v2545
        %v2623 = vunpack.c.l.b16 %v2546
        %v2624 = vunpack.c.h.b16 %v2546
        %v2625 = vunpack.c.l.b16 %v2547
        %v2626 = vunpack.c.h.b16 %v2547
        %v2627 = vunpack.c.l.b16 %v2548
        %v2628 = vunpack.c.h.b16 %v2548
        %v2629 = vunpack.c.l.b16 %v2549
        %v2630 = vunpack.c.h.b16 %v2549
        %v2631 = vunpack.c.l.b16 %v2550
        %v2632 = vunpack.c.h.b16 %v2550
        %v2633 = vunpack.c.l.b16 %v2551
        %v2634 = vunpack.c.h.b16 %v2551
        %v2635 = vunpack.c.l.b16 %v2552
        %v2636 = vunpack.c.h.b16 %v2552
        %v2637 = vunpack.c.l.b16 %v2553
        %v2638 = vunpack.c.h.b16 %v2553
        %v2639 = vunpack.c.l.b16 %v2554
        %v2640 = vunpack.c.h.b16 %v2554
        %v2641 = vunpack.c.l.b16 %v2555
        %v2642 = vunpack.c.h.b16 %v2555
        %v2643 = vunpack.c.l.b16 %v2556
        %v2644 = vunpack.c.h.b16 %v2556
        %v2645 = vunpack.c.l.b16 %v2557
        %v2646 = vunpack.c.h.b16 %v2557
        %v2647 = vunpack.c.l.b16 %v2558
        %v2648 = vunpack.c.h.b16 %v2558
        %v2649 = vunpack.c.l.b16 %v2559
        %v2650 = vunpack.c.h.b16 %v2559
        %v2651 = vunpack.c.l.b16 %v2560
        %v2652 = vunpack.c.h.b16 %v2560
        %v2653 = vunpack.c.l.b16 %v2561
        %v2654 = vunpack.c.h.b16 %v2561
        %v2655 = vunpack.c.l.b16 %v2562
        %v2656 = vunpack.c.h.b16 %v2562
        %v2657 = vunpack.c.l.b16 %v2563
        %v2658 = vunpack.c.h.b16 %v2563
        %v2659 = vunpack.c.l.b16 %v2564
        %v2660 = vunpack.c.h.b16 %v2564
        %v2661 = vunpack.c.l.b16 %v2565
        %v2662 = vunpack.c.h.b16 %v2565
        %v2663 = vunpack.c.l.b16 %v2566
        %v2664 = vunpack.c.h.b16 %v2566
        %v2665 = vunpack.c.l.b16 %v2567
        %v2666 = vunpack.c.h.b16 %v2567
        %v2667 = vunpack.c.l.b16 %v2568
        %v2668 = vunpack.c.h.b16 %v2568
        %v2669 = vunpack.c.l.b16 %v2569
        %v2670 = vunpack.c.h.b16 %v2569
        %v2671 = vunpack.c.l.b16 %v2570
        %v2672 = vunpack.c.h.b16 %v2570
        %v2673 = vunpack.c.l.b16 %v2571
        %v2674 = vunpack.c.h.b16 %v2571
        %v2675 = vpack.c.b16 %v2613, %v2611
        %v2676 = vpack.c.b16 %v2614, %v2612
        %v2677 = vpack.c.b16 %v2617, %v2615
        %v2678 = vpack.c.b16 %v2618, %v2616
        %v2679 = vpack.c.b16 %v2621, %v2619
        %v2680 = vpack.c.b16 %v2622, %v2620
        %v2681 = vpack.c.b16 %v2625, %v2623
        %v2682 = vpack.c.b16 %v2626, %v2624
        %v2683 = vpack.c.b16 %v2629, %v2627
        %v2684 = vpack.c.b16 %v2630, %v2628
        %v2685 = vpack.c.b16 %v2633, %v2631
        %v2686 = vpack.c.b16 %v2634, %v2632
        %v2687 = vpack.c.b16 %v2637, %v2635
        %v2688 = vpack.c.b16 %v2638, %v2636
        %v2689 = vpack.c.b16 %v2641, %v2639
        %v2690 = vpack.c.b16 %v2642, %v2640
        %v2691 = vpack.c.b16 %v2645, %v2643
        %v2692 = vpack.c.b16 %v2646, %v2644
        %v2693 = vpack.c.b16 %v2649, %v2647
        %v2694 = vpack.c.b16 %v2650, %v2648
        %v2695 = vpack.c.b16 %v2653, %v2651
        %v2696 = vpack.c.b16 %v2654, %v2652
        %v2697 = vpack.c.b16 %v2657, %v2655
        %v2698 = vpack.c.b16 %v2658, %v2656
        %v2699 = vpack.c.b16 %v2661, %v2659
        %v2700 = vpack.c.b16 %v2662, %v2660
        %v2701 = vpack.c.b16 %v2665, %v2663
        %v2702 = vpack.c.b16 %v2666, %v2664
        %v2703 = vpack.c.b16 %v2669, %v2667
        %v2704 = vpack.c.b16 %v2670, %v2668
        %v2705 = vpack.c.b16 %v2673, %v2671
        %v2706 = vpack.c.b16 %v2674, %v2672
        %2739 = vmatpush.bf16.msra.mxu0 %v2689
        %2740 = vmatpush.bf16.msra.mxu0 %v2687
        %2741 = vmatpush.bf16.msra.mxu0 %v2685
        %2742 = vmatpush.bf16.msra.mxu0 %v2683
        %2743 = vmatpush.bf16.msra.mxu0 %v2681
        %2744 = vmatpush.bf16.msra.mxu0 %v2679
        %2745 = vmatpush.bf16.msra.mxu0 %v2677
        %2746 = vmatpush.bf16.msra.mxu0 %v2675
        %2747 = vmatmul.bf16.gmra.mxu0 %v2535
        %v2748 = vpop.f32.mrf.mxu0
        %v2749 = vadd.f32 %v2575, %v2748
        %v2750 = vpop.f32.mrf.mxu0
        %v2751 = vadd.f32 %v2575, %v2750
        %2752 = vmatmul.bf16.gmra.mxu0 %v2537
        %v2753 = vpop.f32.mrf.mxu0
        %v2754 = vadd.f32 %v2575, %v2753
        %v2755 = vpop.f32.mrf.mxu0
        %v2756 = vadd.f32 %v2575, %v2755
        %2757 = vdwg.mxu0
        %2758 = vmatpush.bf16.msra.mxu0 %v2705
        %2759 = vmatpush.bf16.msra.mxu0 %v2703
        %2760 = vmatpush.bf16.msra.mxu0 %v2701
        %2761 = vmatpush.bf16.msra.mxu0 %v2699
        %2762 = vmatpush.bf16.msra.mxu0 %v2697
        %2763 = vmatpush.bf16.msra.mxu0 %v2695
        %2764 = vmatpush.bf16.msra.mxu0 %v2693
        %2765 = vmatpush.bf16.msra.mxu0 %v2691
        %2766 = vmatmul.bf16.gmra.mxu0 %v2536
        %v2767 = vpop.f32.mrf.mxu0
        %v2768 = vadd.f32 %v2749, %v2767
        %v2769 = vpop.f32.mrf.mxu0
        %v2770 = vadd.f32 %v2751, %v2769
        %2771 = vmatmul.bf16.gmra.mxu0 %v2538
        %v2772 = vpop.f32.mrf.mxu0
        %v2773 = vadd.f32 %v2754, %v2772
        %v2774 = vpop.f32.mrf.mxu0
        %v2775 = vadd.f32 %v2756, %v2774
        %2776 = vdwg.mxu0
        %2777 = vmatpush.bf16.msra.mxu0 %v2690
        %2778 = vmatpush.bf16.msra.mxu0 %v2688
        %2779 = vmatpush.bf16.msra.mxu0 %v2686
        %2780 = vmatpush.bf16.msra.mxu0 %v2684
        %2781 = vmatpush.bf16.msra.mxu0 %v2682
        %2782 = vmatpush.bf16.msra.mxu0 %v2680
        %2783 = vmatpush.bf16.msra.mxu0 %v2678
        %2784 = vmatpush.bf16.msra.mxu0 %v2676
        %2785 = vmatmul.bf16.gmra.mxu0 %v2535
        %v2786 = vpop.f32.mrf.mxu0
        %v2787 = vadd.f32 %v2576, %v2786
        %v2788 = vpop.f32.mrf.mxu0
        %v2789 = vadd.f32 %v2576, %v2788
        %2790 = vmatmul.bf16.gmra.mxu0 %v2537
        %v2791 = vpop.f32.mrf.mxu0
        %v2792 = vadd.f32 %v2576, %v2791
        %v2793 = vpop.f32.mrf.mxu0
        %v2794 = vadd.f32 %v2576, %v2793
        %2795 = vdwg.mxu0
        %2796 = vmatpush.bf16.msra.mxu0 %v2706
        %2797 = vmatpush.bf16.msra.mxu0 %v2704
        %2798 = vmatpush.bf16.msra.mxu0 %v2702
        %2799 = vmatpush.bf16.msra.mxu0 %v2700
        %2800 = vmatpush.bf16.msra.mxu0 %v2698
        %2801 = vmatpush.bf16.msra.mxu0 %v2696
        %2802 = vmatpush.bf16.msra.mxu0 %v2694
        %2803 = vmatpush.bf16.msra.mxu0 %v2692
        %2804 = vmatmul.bf16.gmra.mxu0 %v2536
        %v2805 = vpop.f32.mrf.mxu0
        %v2806 = vadd.f32 %v2787, %v2805
        %v2807 = vpop.f32.mrf.mxu0
        %v2808 = vadd.f32 %v2789, %v2807
        %2809 = vmatmul.bf16.gmra.mxu0 %v2538
        %v2810 = vpop.f32.mrf.mxu0
        %v2811 = vadd.f32 %v2792, %v2810
        %v2812 = vpop.f32.mrf.mxu0
        %v2813 = vadd.f32 %v2794, %v2812
        %2814 = vdwg.mxu0
        %v2815 = vadd.f32 %v2768, %v2806
        %2816 = vadd.xlane.f32.xlu0 %v2815
        %v2817 = vpop.xlane.xlu0 %2816
        %v2818 = vadd.f32 %v2770, %v2808
        %2819 = vadd.xlane.f32.xlu0 %v2818
        %v2820 = vpop.xlane.xlu0 %2819
        %v2821 = vadd.f32 %v2773, %v2811
        %2822 = vadd.xlane.f32.xlu0 %v2821
        %v2823 = vpop.xlane.xlu0 %2822
        %v2824 = vadd.f32 %v2775, %v2813
        %2825 = vadd.xlane.f32.xlu0 %v2824
        %v2826 = vpop.xlane.xlu0 %2825
        %v2827 = vmul.f32 %v2817, 0.005
        %v2828 = vmul.f32 %v2820, 0.005
        %v2829 = vmul.f32 %v2823, 0.005
        %v2830 = vmul.f32 %v2826, 0.005
        %v2831 = vmul.f32 %v2768, %v2768
        %v2832 = vmul.f32 %v2806, %v2806
        %v2833 = vmul.f32 %v2770, %v2770
        %v2834 = vmul.f32 %v2808, %v2808
        %v2835 = vmul.f32 %v2773, %v2773
        %v2836 = vmul.f32 %v2811, %v2811
        %v2837 = vmul.f32 %v2775, %v2775
        %v2838 = vmul.f32 %v2813, %v2813
        %v2839 = vadd.f32 %v2831, %v2832
        %2840 = vadd.xlane.f32.xlu0 %v2839
        %v2841 = vpop.xlane.xlu0 %2840
        %v2842 = vadd.f32 %v2833, %v2834
        %2843 = vadd.xlane.f32.xlu0 %v2842
        %v2844 = vpop.xlane.xlu0 %2843
        %v2845 = vadd.f32 %v2835, %v2836
        %2846 = vadd.xlane.f32.xlu0 %v2845
        %v2847 = vpop.xlane.xlu0 %2846
        %v2848 = vadd.f32 %v2837, %v2838
        %2849 = vadd.xlane.f32.xlu0 %v2848
        %v2850 = vpop.xlane.xlu0 %2849
        %v2851 = vmul.f32 %v2841, 0.005
        %v2852 = vmul.f32 %v2844, 0.005
        %v2853 = vmul.f32 %v2847, 0.005
        %v2854 = vmul.f32 %v2850, 0.005
        %v2855 = vmul.f32 %v2827, %v2827
        %v2856 = vmul.f32 %v2828, %v2828
        %v2857 = vmul.f32 %v2829, %v2829
        %v2858 = vmul.f32 %v2830, %v2830
        %v2859 = vsub.f32 %v2851, %v2855
        %v2860 = vsub.f32 %v2852, %v2856
        %v2861 = vsub.f32 %v2853, %v2857
        %v2862 = vsub.f32 %v2854, %v2858
        %v2863 = vsub.f32 %v2768, %v2827
        %v2864 = vsub.f32 %v2806, %v2827
        %v2865 = vsub.f32 %v2770, %v2828
        %v2866 = vsub.f32 %v2808, %v2828
        %v2867 = vsub.f32 %v2773, %v2829
        %v2868 = vsub.f32 %v2811, %v2829
        %v2869 = vsub.f32 %v2775, %v2830
        %v2870 = vsub.f32 %v2813, %v2830
        %v2871 = vadd.f32 %v2859, 1e-05
        %v2872 = vadd.f32 %v2860, 1e-05
        %v2873 = vadd.f32 %v2861, 1e-05
        %v2874 = vadd.f32 %v2862, 1e-05
        %v2875 = vrsqrt.pop %v2871
        %v2876 = vmul.f32 %v2875, %v2871
        %v2877 = vmul.f32 %v2876, %v2875
        %v2878 = vmul.f32 0.5, %v2877
        %v2879 = vsub.f32 1.5, %v2878
        %v2880 = vmul.f32 %v2875, %v2879
        %vm2881 = vweird.f32 %v2871
        %vm2882 = vweird.f32 %v2875
        %vm2883 = vmor %vm2881, %vm2882
        %v2884 = vsel %vm2883, %v2875, %v2880
        %v2885 = vrsqrt.pop %v2872
        %v2886 = vmul.f32 %v2885, %v2872
        %v2887 = vmul.f32 %v2886, %v2885
        %v2888 = vmul.f32 0.5, %v2887
        %v2889 = vsub.f32 1.5, %v2888
        %v2890 = vmul.f32 %v2885, %v2889
        %vm2891 = vweird.f32 %v2872
        %vm2892 = vweird.f32 %v2885
        %vm2893 = vmor %vm2891, %vm2892
        %v2894 = vsel %vm2893, %v2885, %v2890
        %v2895 = vrsqrt.pop %v2873
        %v2896 = vmul.f32 %v2895, %v2873
        %v2897 = vmul.f32 %v2896, %v2895
        %v2898 = vmul.f32 0.5, %v2897
        %v2899 = vsub.f32 1.5, %v2898
        %v2900 = vmul.f32 %v2895, %v2899
        %vm2901 = vweird.f32 %v2873
        %vm2902 = vweird.f32 %v2895
        %vm2903 = vmor %vm2901, %vm2902
        %v2904 = vsel %vm2903, %v2895, %v2900
        %v2905 = vrsqrt.pop %v2874
        %v2906 = vmul.f32 %v2905, %v2874
        %v2907 = vmul.f32 %v2906, %v2905
        %v2908 = vmul.f32 0.5, %v2907
        %v2909 = vsub.f32 1.5, %v2908
        %v2910 = vmul.f32 %v2905, %v2909
        %vm2911 = vweird.f32 %v2874
        %vm2912 = vweird.f32 %v2905
        %vm2913 = vmor %vm2911, %vm2912
        %v2914 = vsel %vm2913, %v2905, %v2910
        %v2915 = vmul.f32 %v2863, %v2884
        %v2916 = vmul.f32 %v2864, %v2884
        %v2917 = vmul.f32 %v2865, %v2894
        %v2918 = vmul.f32 %v2866, %v2894
        %v2919 = vmul.f32 %v2867, %v2904
        %v2920 = vmul.f32 %v2868, %v2904
        %v2921 = vmul.f32 %v2869, %v2914
        %v2922 = vmul.f32 %v2870, %v2914
        %v2923 = vmul.f32 %v2915, %v536
        %v2924 = vmul.f32 %v2916, %v537
        %v2925 = vmul.f32 %v2917, %v536
        %v2926 = vmul.f32 %v2918, %v537
        %v2927 = vmul.f32 %v2919, %v536
        %v2928 = vmul.f32 %v2920, %v537
        %v2929 = vmul.f32 %v2921, %v536
        %v2930 = vmul.f32 %v2922, %v537
        %v2931 = vadd.f32 %v2923, %v549
        %v2932 = vadd.f32 %v2924, %v550
        %v2933 = vadd.f32 %v2925, %v549
        %v2934 = vadd.f32 %v2926, %v550
        %v2935 = vadd.f32 %v2927, %v549
        %v2936 = vadd.f32 %v2928, %v550
        %v2937 = vadd.f32 %v2929, %v549
        %v2938 = vadd.f32 %v2930, %v550
        %v2939 = vmin.f32 %v2931, 20.0
        %v2940 = vmin.f32 %v2932, 20.0
        %v2941 = vmin.f32 %v2933, 20.0
        %v2942 = vmin.f32 %v2934, 20.0
        %v2943 = vmin.f32 %v2935, 20.0
        %v2944 = vmin.f32 %v2936, 20.0
        %v2945 = vmin.f32 %v2937, 20.0
        %v2946 = vmin.f32 %v2938, 20.0
        %v2947 = vmul.f32 %v2939, 1.442695
        %v2948 = vpow.pop %v2947
        %v2949 = vmul.f32 %v2940, 1.442695
        %v2950 = vpow.pop %v2949
        %v2951 = vmul.f32 %v2941, 1.442695
        %v2952 = vpow.pop %v2951
        %v2953 = vmul.f32 %v2942, 1.442695
        %v2954 = vpow.pop %v2953
        %v2955 = vmul.f32 %v2943, 1.442695
        %v2956 = vpow.pop %v2955
        %v2957 = vmul.f32 %v2944, 1.442695
        %v2958 = vpow.pop %v2957
        %v2959 = vmul.f32 %v2945, 1.442695
        %v2960 = vpow.pop %v2959
        %v2961 = vmul.f32 %v2946, 1.442695
        %v2962 = vpow.pop %v2961
        %v2963 = vadd.f32 %v2948, 2.0
        %v2964 = vadd.f32 %v2950, 2.0
        %v2965 = vadd.f32 %v2952, 2.0
        %v2966 = vadd.f32 %v2954, 2.0
        %v2967 = vadd.f32 %v2956, 2.0
        %v2968 = vadd.f32 %v2958, 2.0
        %v2969 = vadd.f32 %v2960, 2.0
        %v2970 = vadd.f32 %v2962, 2.0
        %v2971 = vmul.f32 %v2948, %v2963
        %v2972 = vmul.f32 %v2950, %v2964
        %v2973 = vmul.f32 %v2952, %v2965
        %v2974 = vmul.f32 %v2954, %v2966
        %v2975 = vmul.f32 %v2956, %v2967
        %v2976 = vmul.f32 %v2958, %v2968
        %v2977 = vmul.f32 %v2960, %v2969
        %v2978 = vmul.f32 %v2962, %v2970
        %v2979 = vadd.f32 %v2971, 2.0
        %v2980 = vadd.f32 %v2972, 2.0
        %v2981 = vadd.f32 %v2973, 2.0
        %v2982 = vadd.f32 %v2974, 2.0
        %v2983 = vadd.f32 %v2975, 2.0
        %v2984 = vadd.f32 %v2976, 2.0
        %v2985 = vadd.f32 %v2977, 2.0
        %v2986 = vadd.f32 %v2978, 2.0
        %v2987 = vrcp.pop %v2979
        %v2988 = vrcp.pop %v2980
        %v2989 = vrcp.pop %v2981
        %v2990 = vrcp.pop %v2982
        %v2991 = vrcp.pop %v2983
        %v2992 = vrcp.pop %v2984
        %v2993 = vrcp.pop %v2985
        %v2994 = vrcp.pop %v2986
        %v2995 = vmul.f32 %v2971, %v2987
        %v2996 = vmul.f32 %v2972, %v2988
        %v2997 = vmul.f32 %v2973, %v2989
        %v2998 = vmul.f32 %v2974, %v2990
        %v2999 = vmul.f32 %v2975, %v2991
        %v3000 = vmul.f32 %v2976, %v2992
        %v3001 = vmul.f32 %v2977, %v2993
        %v3002 = vmul.f32 %v2978, %v2994
        %v3003 = vmul.f32 %v2931, %v2995
        %v3004 = vmul.f32 %v2932, %v2996
        %v3005 = vmul.f32 %v2933, %v2997
        %v3006 = vmul.f32 %v2934, %v2998
        %v3007 = vmul.f32 %v2935, %v2999
        %v3008 = vmul.f32 %v2936, %v3000
        %v3009 = vmul.f32 %v2937, %v3001
        %v3010 = vmul.f32 %v2938, %v3002
        %v3011 = vpack.c.bf16 %v3005, %v3003
        %v3012 = vpack.c.bf16 %v3006, %v3004
        %v3013 = vpack.c.bf16 %v3009, %v3007
        %v3014 = vpack.c.bf16 %v3010, %v3008
        %s3015 = scalar_lea.vmem [#allocation3], 1280
        %v3016 = vld [vmem:[%s3015] sm:$0xff]
        %v3017 = vld [vmem:[%s3015 + $0x8] sm:$0xff]
        %v3018 = vld [vmem:[%s3015 + $0x10] sm:$0xff]
        %v3019 = vld [vmem:[%s3015 + $0x18] sm:$0xff]
        %v3020 = vld [vmem:[%s3015 + $0x20] sm:$0xff]
        %v3021 = vld [vmem:[%s3015 + $0x28] sm:$0xff]
        %v3022 = vld [vmem:[%s3015 + $0x30] sm:$0xff]
        %v3023 = vld [vmem:[%s3015 + $0x38] sm:$0xff]
        %v3024 = vld [vmem:[%s3015 + $0x40] sm:$0xff]
        %v3025 = vld [vmem:[%s3015 + $0x48] sm:$0xff]
        %v3026 = vld [vmem:[%s3015 + $0x50] sm:$0xff]
        %v3027 = vld [vmem:[%s3015 + $0x58] sm:$0xff]
        %v3028 = vld [vmem:[%s3015 + $0x60] sm:$0xff]
        %v3029 = vld [vmem:[%s3015 + $0x68] sm:$0xff]
        %v3030 = vld [vmem:[%s3015 + $0x70] sm:$0xff]
        %v3031 = vld [vmem:[%s3015 + $0x78] sm:$0xff]
        %v3032 = vld [vmem:[%s3015 + $0x80] sm:$0xff]
        %v3033 = vld [vmem:[%s3015 + $0x88] sm:$0xff]
        %v3034 = vld [vmem:[%s3015 + $0x90] sm:$0xff]
        %v3035 = vld [vmem:[%s3015 + $0x98] sm:$0xff]
        %v3036 = vld [vmem:[%s3015 + $0xa0] sm:$0xff]
        %v3037 = vld [vmem:[%s3015 + $0xa8] sm:$0xff]
        %v3038 = vld [vmem:[%s3015 + $0xb0] sm:$0xff]
        %v3039 = vld [vmem:[%s3015 + $0xb8] sm:$0xff]
        %v3040 = vld [vmem:[%s3015 + $0xc0] sm:$0xff]
        %v3041 = vld [vmem:[%s3015 + $0xc8] sm:$0xff]
        %v3042 = vld [vmem:[%s3015 + $0xd0] sm:$0xff]
        %v3043 = vld [vmem:[%s3015 + $0xd8] sm:$0xff]
        %v3044 = vld [vmem:[%s3015 + $0xe0] sm:$0xff]
        %v3045 = vld [vmem:[%s3015 + $0xe8] sm:$0xff]
        %v3046 = vld [vmem:[%s3015 + $0xf0] sm:$0xff]
        %v3047 = vld [vmem:[%s3015 + $0xf8] sm:$0xff]
        %s3048 = scalar_lea.vmem %s4, 10
        %v3049 = vld [vmem:[%s3048] sm:$0x3]
        %v3051 = vperm.slane %v3049, 0
        %v3052 = vperm.slane %v3049, 1
        %v3087 = vunpack.c.l.b16 %v3016
        %v3088 = vunpack.c.h.b16 %v3016
        %v3089 = vunpack.c.l.b16 %v3017
        %v3090 = vunpack.c.h.b16 %v3017
        %v3091 = vunpack.c.l.b16 %v3018
        %v3092 = vunpack.c.h.b16 %v3018
        %v3093 = vunpack.c.l.b16 %v3019
        %v3094 = vunpack.c.h.b16 %v3019
        %v3095 = vunpack.c.l.b16 %v3020
        %v3096 = vunpack.c.h.b16 %v3020
        %v3097 = vunpack.c.l.b16 %v3021
        %v3098 = vunpack.c.h.b16 %v3021
        %v3099 = vunpack.c.l.b16 %v3022
        %v3100 = vunpack.c.h.b16 %v3022
        %v3101 = vunpack.c.l.b16 %v3023
        %v3102 = vunpack.c.h.b16 %v3023
        %v3103 = vunpack.c.l.b16 %v3024
        %v3104 = vunpack.c.h.b16 %v3024
        %v3105 = vunpack.c.l.b16 %v3025
        %v3106 = vunpack.c.h.b16 %v3025
        %v3107 = vunpack.c.l.b16 %v3026
        %v3108 = vunpack.c.h.b16 %v3026
        %v3109 = vunpack.c.l.b16 %v3027
        %v3110 = vunpack.c.h.b16 %v3027
        %v3111 = vunpack.c.l.b16 %v3028
        %v3112 = vunpack.c.h.b16 %v3028
        %v3113 = vunpack.c.l.b16 %v3029
        %v3114 = vunpack.c.h.b16 %v3029
        %v3115 = vunpack.c.l.b16 %v3030
        %v3116 = vunpack.c.h.b16 %v3030
        %v3117 = vunpack.c.l.b16 %v3031
        %v3118 = vunpack.c.h.b16 %v3031
        %v3119 = vunpack.c.l.b16 %v3032
        %v3120 = vunpack.c.h.b16 %v3032
        %v3121 = vunpack.c.l.b16 %v3033
        %v3122 = vunpack.c.h.b16 %v3033
        %v3123 = vunpack.c.l.b16 %v3034
        %v3124 = vunpack.c.h.b16 %v3034
        %v3125 = vunpack.c.l.b16 %v3035
        %v3126 = vunpack.c.h.b16 %v3035
        %v3127 = vunpack.c.l.b16 %v3036
        %v3128 = vunpack.c.h.b16 %v3036
        %v3129 = vunpack.c.l.b16 %v3037
        %v3130 = vunpack.c.h.b16 %v3037
        %v3131 = vunpack.c.l.b16 %v3038
        %v3132 = vunpack.c.h.b16 %v3038
        %v3133 = vunpack.c.l.b16 %v3039
        %v3134 = vunpack.c.h.b16 %v3039
        %v3135 = vunpack.c.l.b16 %v3040
        %v3136 = vunpack.c.h.b16 %v3040
        %v3137 = vunpack.c.l.b16 %v3041
        %v3138 = vunpack.c.h.b16 %v3041
        %v3139 = vunpack.c.l.b16 %v3042
        %v3140 = vunpack.c.h.b16 %v3042
        %v3141 = vunpack.c.l.b16 %v3043
        %v3142 = vunpack.c.h.b16 %v3043
        %v3143 = vunpack.c.l.b16 %v3044
        %v3144 = vunpack.c.h.b16 %v3044
        %v3145 = vunpack.c.l.b16 %v3045
        %v3146 = vunpack.c.h.b16 %v3045
        %v3147 = vunpack.c.l.b16 %v3046
        %v3148 = vunpack.c.h.b16 %v3046
        %v3149 = vunpack.c.l.b16 %v3047
        %v3150 = vunpack.c.h.b16 %v3047
        %v3151 = vpack.c.b16 %v3089, %v3087
        %v3152 = vpack.c.b16 %v3090, %v3088
        %v3153 = vpack.c.b16 %v3093, %v3091
        %v3154 = vpack.c.b16 %v3094, %v3092
        %v3155 = vpack.c.b16 %v3097, %v3095
        %v3156 = vpack.c.b16 %v3098, %v3096
        %v3157 = vpack.c.b16 %v3101, %v3099
        %v3158 = vpack.c.b16 %v3102, %v3100
        %v3159 = vpack.c.b16 %v3105, %v3103
        %v3160 = vpack.c.b16 %v3106, %v3104
        %v3161 = vpack.c.b16 %v3109, %v3107
        %v3162 = vpack.c.b16 %v3110, %v3108
        %v3163 = vpack.c.b16 %v3113, %v3111
        %v3164 = vpack.c.b16 %v3114, %v3112
        %v3165 = vpack.c.b16 %v3117, %v3115
        %v3166 = vpack.c.b16 %v3118, %v3116
        %v3167 = vpack.c.b16 %v3121, %v3119
        %v3168 = vpack.c.b16 %v3122, %v3120
        %v3169 = vpack.c.b16 %v3125, %v3123
        %v3170 = vpack.c.b16 %v3126, %v3124
        %v3171 = vpack.c.b16 %v3129, %v3127
        %v3172 = vpack.c.b16 %v3130, %v3128
        %v3173 = vpack.c.b16 %v3133, %v3131
        %v3174 = vpack.c.b16 %v3134, %v3132
        %v3175 = vpack.c.b16 %v3137, %v3135
        %v3176 = vpack.c.b16 %v3138, %v3136
        %v3177 = vpack.c.b16 %v3141, %v3139
        %v3178 = vpack.c.b16 %v3142, %v3140
        %v3179 = vpack.c.b16 %v3145, %v3143
        %v3180 = vpack.c.b16 %v3146, %v3144
        %v3181 = vpack.c.b16 %v3149, %v3147
        %v3182 = vpack.c.b16 %v3150, %v3148
        %3215 = vmatpush.bf16.msra.mxu0 %v3165
        %3216 = vmatpush.bf16.msra.mxu0 %v3163
        %3217 = vmatpush.bf16.msra.mxu0 %v3161
        %3218 = vmatpush.bf16.msra.mxu0 %v3159
        %3219 = vmatpush.bf16.msra.mxu0 %v3157
        %3220 = vmatpush.bf16.msra.mxu0 %v3155
        %3221 = vmatpush.bf16.msra.mxu0 %v3153
        %3222 = vmatpush.bf16.msra.mxu0 %v3151
        %3223 = vmatmul.bf16.gmra.mxu0 %v3011
        %v3224 = vpop.f32.mrf.mxu0
        %v3225 = vadd.f32 %v3051, %v3224
        %v3226 = vpop.f32.mrf.mxu0
        %v3227 = vadd.f32 %v3051, %v3226
        %3228 = vmatmul.bf16.gmra.mxu0 %v3013
        %v3229 = vpop.f32.mrf.mxu0
        %v3230 = vadd.f32 %v3051, %v3229
        %v3231 = vpop.f32.mrf.mxu0
        %v3232 = vadd.f32 %v3051, %v3231
        %3233 = vdwg.mxu0
        %3234 = vmatpush.bf16.msra.mxu0 %v3181
        %3235 = vmatpush.bf16.msra.mxu0 %v3179
        %3236 = vmatpush.bf16.msra.mxu0 %v3177
        %3237 = vmatpush.bf16.msra.mxu0 %v3175
        %3238 = vmatpush.bf16.msra.mxu0 %v3173
        %3239 = vmatpush.bf16.msra.mxu0 %v3171
        %3240 = vmatpush.bf16.msra.mxu0 %v3169
        %3241 = vmatpush.bf16.msra.mxu0 %v3167
        %3242 = vmatmul.bf16.gmra.mxu0 %v3012
        %v3243 = vpop.f32.mrf.mxu0
        %v3244 = vadd.f32 %v3225, %v3243
        %v3245 = vpop.f32.mrf.mxu0
        %v3246 = vadd.f32 %v3227, %v3245
        %3247 = vmatmul.bf16.gmra.mxu0 %v3014
        %v3248 = vpop.f32.mrf.mxu0
        %v3249 = vadd.f32 %v3230, %v3248
        %v3250 = vpop.f32.mrf.mxu0
        %v3251 = vadd.f32 %v3232, %v3250
        %3252 = vdwg.mxu0
        %3253 = vmatpush.bf16.msra.mxu0 %v3166
        %3254 = vmatpush.bf16.msra.mxu0 %v3164
        %3255 = vmatpush.bf16.msra.mxu0 %v3162
        %3256 = vmatpush.bf16.msra.mxu0 %v3160
        %3257 = vmatpush.bf16.msra.mxu0 %v3158
        %3258 = vmatpush.bf16.msra.mxu0 %v3156
        %3259 = vmatpush.bf16.msra.mxu0 %v3154
        %3260 = vmatpush.bf16.msra.mxu0 %v3152
        %3261 = vmatmul.bf16.gmra.mxu0 %v3011
        %v3262 = vpop.f32.mrf.mxu0
        %v3263 = vadd.f32 %v3052, %v3262
        %v3264 = vpop.f32.mrf.mxu0
        %v3265 = vadd.f32 %v3052, %v3264
        %3266 = vmatmul.bf16.gmra.mxu0 %v3013
        %v3267 = vpop.f32.mrf.mxu0
        %v3268 = vadd.f32 %v3052, %v3267
        %v3269 = vpop.f32.mrf.mxu0
        %v3270 = vadd.f32 %v3052, %v3269
        %3271 = vdwg.mxu0
        %3272 = vmatpush.bf16.msra.mxu0 %v3182
        %3273 = vmatpush.bf16.msra.mxu0 %v3180
        %3274 = vmatpush.bf16.msra.mxu0 %v3178
        %3275 = vmatpush.bf16.msra.mxu0 %v3176
        %3276 = vmatpush.bf16.msra.mxu0 %v3174
        %3277 = vmatpush.bf16.msra.mxu0 %v3172
        %3278 = vmatpush.bf16.msra.mxu0 %v3170
        %3279 = vmatpush.bf16.msra.mxu0 %v3168
        %3280 = vmatmul.bf16.gmra.mxu0 %v3012
        %v3281 = vpop.f32.mrf.mxu0
        %v3282 = vadd.f32 %v3263, %v3281
        %v3283 = vpop.f32.mrf.mxu0
        %v3284 = vadd.f32 %v3265, %v3283
        %3285 = vmatmul.bf16.gmra.mxu0 %v3014
        %v3286 = vpop.f32.mrf.mxu0
        %v3287 = vadd.f32 %v3268, %v3286
        %v3288 = vpop.f32.mrf.mxu0
        %v3289 = vadd.f32 %v3270, %v3288
        %3290 = vdwg.mxu0
        %v3291 = vadd.f32 %v3244, %v3282
        %3292 = vadd.xlane.f32.xlu0 %v3291
        %v3293 = vpop.xlane.xlu0 %3292
        %v3294 = vadd.f32 %v3246, %v3284
        %3295 = vadd.xlane.f32.xlu0 %v3294
        %v3296 = vpop.xlane.xlu0 %3295
        %v3297 = vadd.f32 %v3249, %v3287
        %3298 = vadd.xlane.f32.xlu0 %v3297
        %v3299 = vpop.xlane.xlu0 %3298
        %v3300 = vadd.f32 %v3251, %v3289
        %3301 = vadd.xlane.f32.xlu0 %v3300
        %v3302 = vpop.xlane.xlu0 %3301
        %v3303 = vmul.f32 %v3293, 0.005
        %v3304 = vmul.f32 %v3296, 0.005
        %v3305 = vmul.f32 %v3299, 0.005
        %v3306 = vmul.f32 %v3302, 0.005
        %v3307 = vmul.f32 %v3244, %v3244
        %v3308 = vmul.f32 %v3282, %v3282
        %v3309 = vmul.f32 %v3246, %v3246
        %v3310 = vmul.f32 %v3284, %v3284
        %v3311 = vmul.f32 %v3249, %v3249
        %v3312 = vmul.f32 %v3287, %v3287
        %v3313 = vmul.f32 %v3251, %v3251
        %v3314 = vmul.f32 %v3289, %v3289
        %v3315 = vadd.f32 %v3307, %v3308
        %3316 = vadd.xlane.f32.xlu0 %v3315
        %v3317 = vpop.xlane.xlu0 %3316
        %v3318 = vadd.f32 %v3309, %v3310
        %3319 = vadd.xlane.f32.xlu0 %v3318
        %v3320 = vpop.xlane.xlu0 %3319
        %v3321 = vadd.f32 %v3311, %v3312
        %3322 = vadd.xlane.f32.xlu0 %v3321
        %v3323 = vpop.xlane.xlu0 %3322
        %v3324 = vadd.f32 %v3313, %v3314
        %3325 = vadd.xlane.f32.xlu0 %v3324
        %v3326 = vpop.xlane.xlu0 %3325
        %v3327 = vmul.f32 %v3317, 0.005
        %v3328 = vmul.f32 %v3320, 0.005
        %v3329 = vmul.f32 %v3323, 0.005
        %v3330 = vmul.f32 %v3326, 0.005
        %v3331 = vmul.f32 %v3303, %v3303
        %v3332 = vmul.f32 %v3304, %v3304
        %v3333 = vmul.f32 %v3305, %v3305
        %v3334 = vmul.f32 %v3306, %v3306
        %v3335 = vsub.f32 %v3327, %v3331
        %v3336 = vsub.f32 %v3328, %v3332
        %v3337 = vsub.f32 %v3329, %v3333
        %v3338 = vsub.f32 %v3330, %v3334
        %v3339 = vsub.f32 %v3244, %v3303
        %v3340 = vsub.f32 %v3282, %v3303
        %v3341 = vsub.f32 %v3246, %v3304
        %v3342 = vsub.f32 %v3284, %v3304
        %v3343 = vsub.f32 %v3249, %v3305
        %v3344 = vsub.f32 %v3287, %v3305
        %v3345 = vsub.f32 %v3251, %v3306
        %v3346 = vsub.f32 %v3289, %v3306
        %v3347 = vadd.f32 %v3335, 1e-05
        %v3348 = vadd.f32 %v3336, 1e-05
        %v3349 = vadd.f32 %v3337, 1e-05
        %v3350 = vadd.f32 %v3338, 1e-05
        %v3351 = vrsqrt.pop %v3347
        %v3352 = vmul.f32 %v3351, %v3347
        %v3353 = vmul.f32 %v3352, %v3351
        %v3354 = vmul.f32 0.5, %v3353
        %v3355 = vsub.f32 1.5, %v3354
        %v3356 = vmul.f32 %v3351, %v3355
        %vm3357 = vweird.f32 %v3347
        %vm3358 = vweird.f32 %v3351
        %vm3359 = vmor %vm3357, %vm3358
        %v3360 = vsel %vm3359, %v3351, %v3356
        %v3361 = vrsqrt.pop %v3348
        %v3362 = vmul.f32 %v3361, %v3348
        %v3363 = vmul.f32 %v3362, %v3361
        %v3364 = vmul.f32 0.5, %v3363
        %v3365 = vsub.f32 1.5, %v3364
        %v3366 = vmul.f32 %v3361, %v3365
        %vm3367 = vweird.f32 %v3348
        %vm3368 = vweird.f32 %v3361
        %vm3369 = vmor %vm3367, %vm3368
        %v3370 = vsel %vm3369, %v3361, %v3366
        %v3371 = vrsqrt.pop %v3349
        %v3372 = vmul.f32 %v3371, %v3349
        %v3373 = vmul.f32 %v3372, %v3371
        %v3374 = vmul.f32 0.5, %v3373
        %v3375 = vsub.f32 1.5, %v3374
        %v3376 = vmul.f32 %v3371, %v3375
        %vm3377 = vweird.f32 %v3349
        %vm3378 = vweird.f32 %v3371
        %vm3379 = vmor %vm3377, %vm3378
        %v3380 = vsel %vm3379, %v3371, %v3376
        %v3381 = vrsqrt.pop %v3350
        %v3382 = vmul.f32 %v3381, %v3350
        %v3383 = vmul.f32 %v3382, %v3381
        %v3384 = vmul.f32 0.5, %v3383
        %v3385 = vsub.f32 1.5, %v3384
        %v3386 = vmul.f32 %v3381, %v3385
        %vm3387 = vweird.f32 %v3350
        %vm3388 = vweird.f32 %v3381
        %vm3389 = vmor %vm3387, %vm3388
        %v3390 = vsel %vm3389, %v3381, %v3386
        %v3391 = vmul.f32 %v3339, %v3360
        %v3392 = vmul.f32 %v3340, %v3360
        %v3393 = vmul.f32 %v3341, %v3370
        %v3394 = vmul.f32 %v3342, %v3370
        %v3395 = vmul.f32 %v3343, %v3380
        %v3396 = vmul.f32 %v3344, %v3380
        %v3397 = vmul.f32 %v3345, %v3390
        %v3398 = vmul.f32 %v3346, %v3390
        %v3399 = vmul.f32 %v3391, %v536
        %v3400 = vmul.f32 %v3392, %v537
        %v3401 = vmul.f32 %v3393, %v536
        %v3402 = vmul.f32 %v3394, %v537
        %v3403 = vmul.f32 %v3395, %v536
        %v3404 = vmul.f32 %v3396, %v537
        %v3405 = vmul.f32 %v3397, %v536
        %v3406 = vmul.f32 %v3398, %v537
        %v3407 = vadd.f32 %v3399, %v549
        %v3408 = vadd.f32 %v3400, %v550
        %v3409 = vadd.f32 %v3401, %v549
        %v3410 = vadd.f32 %v3402, %v550
        %v3411 = vadd.f32 %v3403, %v549
        %v3412 = vadd.f32 %v3404, %v550
        %v3413 = vadd.f32 %v3405, %v549
        %v3414 = vadd.f32 %v3406, %v550
        %v3415 = vmin.f32 %v3407, 20.0
        %v3416 = vmin.f32 %v3408, 20.0
        %v3417 = vmin.f32 %v3409, 20.0
        %v3418 = vmin.f32 %v3410, 20.0
        %v3419 = vmin.f32 %v3411, 20.0
        %v3420 = vmin.f32 %v3412, 20.0
        %v3421 = vmin.f32 %v3413, 20.0
        %v3422 = vmin.f32 %v3414, 20.0
        %v3423 = vmul.f32 %v3415, 1.442695
        %v3424 = vpow.pop %v3423
        %v3425 = vmul.f32 %v3416, 1.442695
        %v3426 = vpow.pop %v3425
        %v3427 = vmul.f32 %v3417, 1.442695
        %v3428 = vpow.pop %v3427
        %v3429 = vmul.f32 %v3418, 1.442695
        %v3430 = vpow.pop %v3429
        %v3431 = vmul.f32 %v3419, 1.442695
        %v3432 = vpow.pop %v3431
        %v3433 = vmul.f32 %v3420, 1.442695
        %v3434 = vpow.pop %v3433
        %v3435 = vmul.f32 %v3421, 1.442695
        %v3436 = vpow.pop %v3435
        %v3437 = vmul.f32 %v3422, 1.442695
        %v3438 = vpow.pop %v3437
        %v3439 = vadd.f32 %v3424, 2.0
        %v3440 = vadd.f32 %v3426, 2.0
        %v3441 = vadd.f32 %v3428, 2.0
        %v3442 = vadd.f32 %v3430, 2.0
        %v3443 = vadd.f32 %v3432, 2.0
        %v3444 = vadd.f32 %v3434, 2.0
        %v3445 = vadd.f32 %v3436, 2.0
        %v3446 = vadd.f32 %v3438, 2.0
        %v3447 = vmul.f32 %v3424, %v3439
        %v3448 = vmul.f32 %v3426, %v3440
        %v3449 = vmul.f32 %v3428, %v3441
        %v3450 = vmul.f32 %v3430, %v3442
        %v3451 = vmul.f32 %v3432, %v3443
        %v3452 = vmul.f32 %v3434, %v3444
        %v3453 = vmul.f32 %v3436, %v3445
        %v3454 = vmul.f32 %v3438, %v3446
        %v3455 = vadd.f32 %v3447, 2.0
        %v3456 = vadd.f32 %v3448, 2.0
        %v3457 = vadd.f32 %v3449, 2.0
        %v3458 = vadd.f32 %v3450, 2.0
        %v3459 = vadd.f32 %v3451, 2.0
        %v3460 = vadd.f32 %v3452, 2.0
        %v3461 = vadd.f32 %v3453, 2.0
        %v3462 = vadd.f32 %v3454, 2.0
        %v3463 = vrcp.pop %v3455
        %v3464 = vrcp.pop %v3456
        %v3465 = vrcp.pop %v3457
        %v3466 = vrcp.pop %v3458
        %v3467 = vrcp.pop %v3459
        %v3468 = vrcp.pop %v3460
        %v3469 = vrcp.pop %v3461
        %v3470 = vrcp.pop %v3462
        %v3471 = vmul.f32 %v3447, %v3463
        %v3472 = vmul.f32 %v3448, %v3464
        %v3473 = vmul.f32 %v3449, %v3465
        %v3474 = vmul.f32 %v3450, %v3466
        %v3475 = vmul.f32 %v3451, %v3467
        %v3476 = vmul.f32 %v3452, %v3468
        %v3477 = vmul.f32 %v3453, %v3469
        %v3478 = vmul.f32 %v3454, %v3470
        %v3479 = vmul.f32 %v3407, %v3471
        %v3480 = vmul.f32 %v3408, %v3472
        %v3481 = vmul.f32 %v3409, %v3473
        %v3482 = vmul.f32 %v3410, %v3474
        %v3483 = vmul.f32 %v3411, %v3475
        %v3484 = vmul.f32 %v3412, %v3476
        %v3485 = vmul.f32 %v3413, %v3477
        %v3486 = vmul.f32 %v3414, %v3478
        %v3487 = vld [vmem:[%s7] sm:$0x3]
        %v3489 = vperm.slane %v3487, 0
        %v3490 = vperm.slane %v3487, 1
        %v3493 = vmul.f32 %v3479, %v3489
        %v3494 = vmul.f32 %v3480, %v3490
        %v3495 = vmul.f32 %v3481, %v3489
        %v3496 = vmul.f32 %v3482, %v3490
        %v3497 = vmul.f32 %v3483, %v3489
        %v3498 = vmul.f32 %v3484, %v3490
        %v3499 = vmul.f32 %v3485, %v3489
        %v3500 = vmul.f32 %v3486, %v3490
        %v3501 = vadd.f32 %v3493, %v3494
        %3502 = vadd.xlane.f32.xlu0 %v3501
        %v3503 = vpop.xlane.xlu0 %3502
        %v3504 = vadd.f32 %v3495, %v3496
        %3505 = vadd.xlane.f32.xlu0 %v3504
        %v3506 = vpop.xlane.xlu0 %3505
        %v3507 = vadd.f32 %v3497, %v3498
        %3508 = vadd.xlane.f32.xlu0 %v3507
        %v3509 = vpop.xlane.xlu0 %3508
        %v3510 = vadd.f32 %v3499, %v3500
        %3511 = vadd.xlane.f32.xlu0 %v3510
        %v3512 = vpop.xlane.xlu0 %3511
        %v3513 = vld [vmem:[#allocation2] sm:$0x1]
        %v3515 = vperm.slane %v3513, 0
        %v3517 = vadd.f32 %v3503, %v3515
        %v3518 = vadd.f32 %v3506, %v3515
        %v3519 = vadd.f32 %v3509, %v3515
        %v3520 = vadd.f32 %v3512, %v3515
        %v3521 = vmax.f32 %v3517, 0.0
        %v3522 = vmax.f32 %v3518, 0.0
        %v3523 = vmax.f32 %v3519, 0.0
        %v3524 = vmax.f32 %v3520, 0.0
        %v3525 = vand.u32 2147483647, %v3517
        %v3526 = vand.u32 2147483647, %v3518
        %v3527 = vand.u32 2147483647, %v3519
        %v3528 = vand.u32 2147483647, %v3520
        %v3529 = vsub.f32 0.0, %v3525
        %v3530 = vsub.f32 0.0, %v3526
        %v3531 = vsub.f32 0.0, %v3527
        %v3532 = vsub.f32 0.0, %v3528
        %v3533 = vmul.f32 %v3529, 1.442695
        %v3534 = vpow.pop %v3533
        %v3535 = vmul.f32 %v3530, 1.442695
        %v3536 = vpow.pop %v3535
        %v3537 = vmul.f32 %v3531, 1.442695
        %v3538 = vpow.pop %v3537
        %v3539 = vmul.f32 %v3532, 1.442695
        %v3540 = vpow.pop %v3539
        %v3541 = vadd.f32 %v3534, 1.0
        %v3542 = vlog2.pop %v3541
        %v3543 = vmul.f32 %v3542, 0.6931472
        %v3544 = vmul.f32 -0.5, %v3534
        %v3545 = vadd.f32 %v3544, 1.0
        %v3546 = vmul.f32 %v3545, %v3534
        %v3547 = vand.u32 2147483647, %v3534
        %vm3548 = vcmp.lt.f32.partialorder %v3547, 0.0004427343
        %v3549 = vsel %vm3548, %v3546, %v3543
        %v3550 = vadd.f32 %v3536, 1.0
        %v3551 = vlog2.pop %v3550
        %v3552 = vmul.f32 %v3551, 0.6931472
        %v3553 = vmul.f32 -0.5, %v3536
        %v3554 = vadd.f32 %v3553, 1.0
        %v3555 = vmul.f32 %v3554, %v3536
        %v3556 = vand.u32 2147483647, %v3536
        %vm3557 = vcmp.lt.f32.partialorder %v3556, 0.0004427343
        %v3558 = vsel %vm3557, %v3555, %v3552
        %v3559 = vadd.f32 %v3538, 1.0
        %v3560 = vlog2.pop %v3559
        %v3561 = vmul.f32 %v3560, 0.6931472
        %v3562 = vmul.f32 -0.5, %v3538
        %v3563 = vadd.f32 %v3562, 1.0
        %v3564 = vmul.f32 %v3563, %v3538
        %v3565 = vand.u32 2147483647, %v3538
        %vm3566 = vcmp.lt.f32.partialorder %v3565, 0.0004427343
        %v3567 = vsel %vm3566, %v3564, %v3561
        %v3568 = vadd.f32 %v3540, 1.0
        %v3569 = vlog2.pop %v3568
        %v3570 = vmul.f32 %v3569, 0.6931472
        %v3571 = vmul.f32 -0.5, %v3540
        %v3572 = vadd.f32 %v3571, 1.0
        %v3573 = vmul.f32 %v3572, %v3540
        %v3574 = vand.u32 2147483647, %v3540
        %vm3575 = vcmp.lt.f32.partialorder %v3574, 0.0004427343
        %v3576 = vsel %vm3575, %v3573, %v3570
        %v3577 = vadd.f32 %v3521, %v3549
        %v3578 = vadd.f32 %v3522, %v3558
        %v3579 = vadd.f32 %v3523, %v3567
        %v3580 = vadd.f32 %v3524, %v3576
        %vm3581 = vcmask 7168
        %3582 = vst.msk [vmem:[%s353] sm:$0xff] %vm3581, %v3577
        %3583 = vst.msk [vmem:[%s353 + $0x8] sm:$0xff] %vm3581, %v3578
        %3584 = vst.msk [vmem:[%s353 + $0x10] sm:$0xff] %vm3581, %v3579
        %3585 = vst.msk [vmem:[%s353 + $0x18] sm:$0xff] %vm3581, %v3580
        %s3586 = smul.u32 4, %s23
        %p3587 = scmp.lt.s32.totalorder %s3586, 7
        %s3588 = scalar_select %p3587, %s3586, 7
        %s3589 = smul.addr %s3588, 8
        %s3590 = scalar_lea.vmem %s9, %s3589
        // Predicated region
        $region61: #{tpu_custom_call.1} parent=55 // pred_check
          %p3591 = pneg %p235
        $region62: #{tpu_custom_call.1} parent=55 // pred_check_branch
          %3593 = sbr.rel (%p3591) target = $region64
        $region63: #{tpu_custom_call.1} parent=55 // pred_region
          %s3594 = smul.u32 4, %s23
        $region64: #{tpu_custom_call.1} parent=55 // pred_fallthru
          _
      $region56: #{tpu_custom_call.1} parent=5 // pred_fallthru
        _
      %p3595 = scmp.le.s32.totalorder 2, %s18
      // Predicated region
      $region65: #{tpu_custom_call.1} parent=5 // pred_check
        %p3596 = pneg %p3595
      $region66: #{tpu_custom_call.1} parent=5 // pred_check_branch
        %3598 = sbr.rel (%p3596) target = $region68
      $region67: #{tpu_custom_call.1} parent=5 // pred_region
        %s3599 = ssub.s32 %s18, 2
        // Predicated region
        $region69: #{tpu_custom_call.1} parent=67 // pred_check
          %p3600 = pneg %p241
        $region70: #{tpu_custom_call.1} parent=67 // pred_check_branch
          %3602 = sbr.rel (%p3600) target = $region72
        $region71: #{tpu_custom_call.1} parent=67 // pred_region
          %s3603 = smul.u32 4, %s24
          %p3604 = scmp.lt.s32.totalorder %s3603, 7
          %s3605 = scalar_select %p3604, %s3603, 7
          %s3606 = smul.addr %s3605, 8
          %s3607 = scalar_lea.vmem %s9, %s3606
        $region72: #{tpu_custom_call.1} parent=67 // pred_fallthru
          _
      $region68: #{tpu_custom_call.1} parent=5 // pred_fallthru
        _
    $region6: #{tpu_custom_call.1} parent=1 // loop_footer
      %s22 = sadd.s32 1, %s18
    $region7: #{tpu_custom_call.1} parent=1 // loop_footer_branch
      %17 = sbr.rel target = $region3
    $region8: #{tpu_custom_call.1} parent=1 // loop_exit
      _
    %3608 = vsyncpa [#allocation4], 1
    %s3609 = scalar_lea.sflag [#allocation4], 1
    %3610 = vsyncpa %s3609, 1

</llo_original>
